<compile_context>
chip_gen: v7x
topology: tpu7x:2x2x1
jax: 0.10.0
libtpu: 0.0.40
codegen_flags: <defaults>
</compile_context>

<pallas_src>
import functools

import numpy as np
import jax
import jax.numpy as jnp
from jax import lax
from jax.experimental import pallas as pl
from jax.experimental.pallas import tpu as pltpu

LN_EPS = 1e-5
F32 = jnp.float32
BF16 = jnp.bfloat16


def _layer_norm(x, g, b):
    mu = jnp.mean(x, axis=-1, keepdims=True)
    var = jnp.mean(jnp.square(x - mu), axis=-1, keepdims=True)
    return (x - mu) * lax.rsqrt(var + LN_EPS) * g + b


# --------------------------- fused forward kernel ---------------------------
def _cross_attention_kernel(
        # per-batch data (one batch element per grid step)
        d1_ref, d2_ref, s1_ref, s2_ref,
        ms1_ref, ms2_ref, mc1_ref, mc2_ref,
        npm1_ref, npm2_ref,
        # stacked weights (layer-major, whole arrays resident)
        ln_g_ref, ln_b_ref, wq_ref, wk_ref, wv_ref, wfc1_ref, wfc2_ref,
        pw1_ref, pb1_ref, pw2_ref, pb2_ref, pg_ref, pbt_ref,
        # outputs
        dyn1_ref, st1_ref, dyn2_ref, st2_ref,
        a1u_ref, a1v_ref, a2u_ref, a2v_ref, acu_ref, acv_ref,
        *, n_head, d_k, d_v, diag_mask_flag, inv_temp):
    L, D = d1_ref.shape

    def combined_mask(m_ref):
        # PyTorch: combined = 1 - ((1 - diag_mask) + mask > 0), diag_mask has
        # zero diagonal when diag_mask_flag. Kept at (L, L); broadcast over
        # the head axis at the use sites (no n_head replication).
        m = m_ref[...].astype(F32)
        if diag_mask_flag:
            row = lax.broadcasted_iota(jnp.int32, (L, L), 0)
            col = lax.broadcasted_iota(jnp.int32, (L, L), 1)
            m = m + (row == col).astype(F32)
        return 1.0 - (m > 0.0).astype(F32)

    def split_heads(x2, dh):
        # (L, n_head*dh) lane-major -> (n_head, L, dh) with head as a true
        # batch dim (cheap static lane slices; no per-head matmuls).
        return jnp.stack(
            [x2[:, h * dh:(h + 1) * dh] for h in range(n_head)], axis=0)

    def mha(layer, q2, k2, v2, cm, attn_ref, static_idx=None):
        # q2/k2/v2: (L, D) f32; cm: (L, L) f32.
        lg = ln_g_ref[layer]                        # (3, D)
        lb = ln_b_ref[layer]
        qn = _layer_norm(q2, lg[0:1, :], lb[0:1, :]).astype(BF16)
        kn = _layer_norm(k2, lg[1:2, :], lb[1:2, :]).astype(BF16)
        vn = _layer_norm(v2, lg[2:3, :], lb[2:3, :]).astype(BF16)

        # One wide matmul per projection (all heads at once). 1/temperature
        # applied to the f32 accumulation (exactly equivalent to scaling the
        # f32 scores as in the reference).
        qw = (jnp.dot(qn, wq_ref[layer], preferred_element_type=F32)
              * inv_temp).astype(BF16)              # (L, n_head*d_k)
        kw = jnp.dot(kn, wk_ref[layer],
                     preferred_element_type=F32).astype(BF16)
        vw = jnp.dot(vn, wv_ref[layer],
                     preferred_element_type=F32).astype(BF16)   # (L, H*d_v)

        qh = split_heads(qw, d_k)                   # (H, L, d_k)
        kh = split_heads(kw, d_k)
        vh = split_heads(vw, d_v)                   # (H, L, d_v)

        s = jnp.einsum('hqd,hkd->hqk', qh, kh,
                       preferred_element_type=F32)  # (H, L, L)
        cmb = cm[None, :, :]
        s = s * cmb
        # softmax(s*cm) -> *cm -> /(sum+1e-13) folded into one pass:
        # divisors cancel, single row-reduction + single approx reciprocal.
        e = jnp.exp(s - jnp.max(s, axis=-1, keepdims=True)) * cmb
        p = e * pl.reciprocal(jnp.sum(e, axis=-1, keepdims=True) + 1e-13,
                              approx=True)
        attn_ref[...] = p                           # (H, L, L) head-major

        ctx = jnp.einsum('hqk,hkd->hqd', p.astype(BF16), vh,
                         preferred_element_type=F32)            # (H, L, d_v)
        # fc1 over the (implicit) head concat: one batched einsum, then a
        # trivial reduce over the head axis (no Python accumulation loop).
        dyn = jnp.einsum('hqd,hdm->hqm', ctx.astype(BF16), wfc1_ref[layer],
                         preferred_element_type=F32).sum(axis=0)  # (L, dm)
        if static_idx is None:
            return dyn

        # Static path: vw is already in per-token head-major lane order
        # [h0*d_v..., h1*d_v...], exactly PyTorch's permute+concat layout, so
        # fc2 is a single 2D dot with joint (n_head*d_v) contraction.
        stat = jnp.dot(vw, wfc2_ref[static_idx], preferred_element_type=F32)
        return dyn, stat

    def pff(idx, x, npm, residual):
        # conv1d(k=1) -> tanh -> conv1d(k=1) (+res) -> LayerNorm, with the
        # non_pad_mask fused before and after.
        x = x * npm
        h = jnp.tanh(jnp.dot(x.astype(BF16), pw1_ref[idx],
                             preferred_element_type=F32) + pb1_ref[idx])
        y = jnp.dot(h.astype(BF16), pw2_ref[idx],
                    preferred_element_type=F32) + pb2_ref[idx]
        if residual:
            y = y + x
        y = _layer_norm(y, pg_ref[idx], pbt_ref[idx])
        return y * npm

    x_d1 = d1_ref[...]
    x_d2 = d2_ref[...]
    x_s1 = s1_ref[...]
    x_s2 = s2_ref[...]
    npm1 = npm1_ref[...]                            # (L, 1)
    npm2 = npm2_ref[...]

    # Combined masks built once per distinct mask (reused by lv1 and lv2).
    cm_s1 = combined_mask(ms1_ref)
    cm_s2 = combined_mask(ms2_ref)
    cm_c1 = combined_mask(mc1_ref)
    cm_c2 = combined_mask(mc2_ref)

    d1u, s1o = mha(0, x_d1, x_s1, x_s1, cm_s1, a1u_ref, static_idx=0)
    d1v, s2o = mha(1, x_d2, x_s2, x_s2, cm_s2, a1v_ref, static_idx=1)
    d2u = mha(2, d1u, d1v, d1v, cm_c1, acu_ref)
    d2v = mha(3, d1v, d1u, d1u, cm_c2, acv_ref)
    d3u = mha(4, d2u, d2u, d2u, cm_s1, a2u_ref)
    d3v = mha(5, d2v, d2v, d2v, cm_s2, a2v_ref)

    dyn1_ref[...] = pff(0, d3u, npm1, residual=True)
    st1_ref[...] = pff(1, s1o, npm1, residual=False)
    dyn2_ref[...] = pff(2, d3v, npm2, residual=True)
    st2_ref[...] = pff(3, s2o, npm2, residual=False)


# --------------------------------- wrapper ----------------------------------
def _batch_spec(shape):
    rest = tuple(int(x) for x in shape[1:])
    zeros = (0,) * len(rest)
    return pl.BlockSpec((None,) + rest, lambda b, _z=zeros: (b,) + _z)


def _bcast_spec(shape):
    dims = tuple(int(x) for x in shape)
    zeros = (0,) * len(dims)
    return pl.BlockSpec(dims, lambda b, _z=zeros: _z)


def cross_attention_forward(params, dynamic_1, dynamic_2, static_1, static_2,
                            crs_attn_mask1, crs_attn_mask2,
                            slf_attn_mask1, slf_attn_mask2,
                            non_pad_mask1, non_pad_mask2,
                            *, n_head, d_model, d_k, d_v, diag_mask,
                            bottle_neck):
    B, L, D = dynamic_1.shape
    assert D == bottle_neck and bottle_neck == d_model, (
        "the stacked attention layers of the reference module require "
        "bottle_neck == d_model")

    inv_temp = float(1.0 / np.power(d_k, 0.5))
    kernel = functools.partial(
        _cross_attention_kernel, n_head=n_head, d_k=d_k, d_v=d_v,
        diag_mask_flag=diag_mask, inv_temp=inv_temp)

    # Masks are 0/1 — ship them as bf16 to halve mask DMA bytes.
    ms1 = slf_attn_mask1.astype(BF16)
    ms2 = slf_attn_mask2.astype(BF16)
    mc1 = crs_attn_mask1.astype(BF16)
    mc2 = crs_attn_mask2.astype(BF16)
    npm1 = non_pad_mask1.astype(jnp.float32)
    npm2 = non_pad_mask2.astype(jnp.float32)

    batched_inputs = [dynamic_1, dynamic_2, static_1, static_2,
                      ms1, ms2, mc1, mc2, npm1, npm2]
    weight_inputs = [params[k] for k in
                     ('ln_g', 'ln_b', 'wq', 'wk', 'wv', 'wfc1', 'wfc2',
                      'pw1', 'pb1', 'pw2', 'pb2', 'pg', 'pb')]
    in_specs = ([_batch_spec(a.shape) for a in batched_inputs]
                + [_bcast_spec(a.shape) for a in weight_inputs])

    tok = jax.ShapeDtypeStruct((B, L, d_model), jnp.float32)
    att = jax.ShapeDtypeStruct((n_head, B, L, L), jnp.float32)
    out_shape = (tok, tok, tok, tok) + (att,) * 6

    attn_spec = pl.BlockSpec((n_head, None, L, L), lambda b: (0, b, 0, 0))
    out_specs = tuple(_batch_spec(s.shape) if len(s.shape) == 3 else attn_spec
                      for s in out_shape)

    outs = pl.pallas_call(
        kernel,
        grid=(B,),                                  # one batch element / step
        in_specs=in_specs,
        out_specs=out_specs,
        out_shape=out_shape,
        compiler_params=pltpu.CompilerParams(
            dimension_semantics=("parallel",)),
    )(*batched_inputs, *weight_inputs)

    dyn1, st1, dyn2, st2 = outs[:4]
    # (n_head, B, L, L) -> PyTorch's head-major (n_head*B, L, L) is a free
    # contiguous reshape.
    attns = [a.reshape(n_head * B, L, L) for a in outs[4:]]
    # PyTorch output_attn ordering: [lv1u, lv1v, lv2u, lv2v, cross_u, cross_v]
    a1u, a1v, a2u, a2v, acu, acv = attns
    return dyn1, st1, dyn2, st2, [a1u, a1v, a2u, a2v, acu, acv]


# ------------------------------ parameter init ------------------------------
def init_cross_attention_params(key, *, n_head, d_model, d_k, d_v,
                                bottle_neck):
    D = bottle_neck
    ks = jax.random.split(key, 9)
    std_qk = float(np.sqrt(2.0 / (d_model + d_k)))
    std_v = float(np.sqrt(2.0 / (d_model + d_v)))
    bfc = float(1.0 / np.sqrt(n_head * d_v))
    bnd = float(1.0 / np.sqrt(d_model))

    wq = std_qk * jax.random.normal(ks[0], (6, D, n_head * d_k), jnp.float32)
    wk = std_qk * jax.random.normal(ks[1], (6, D, n_head * d_k), jnp.float32)
    wv = std_v * jax.random.normal(ks[2], (6, D, n_head * d_v), jnp.float32)
    wfc1 = jax.random.uniform(ks[3], (6, n_head * d_v, d_model), jnp.float32,
                              -bfc, bfc)
    wfc2 = jax.random.uniform(ks[4], (2, n_head * d_v, d_model), jnp.float32,
                              -bfc, bfc)
    params = {
        # per-layer [q, k, v] LayerNorm params
        'ln_g': jnp.ones((6, 3, D), jnp.float32),
        'ln_b': jnp.zeros((6, 3, D), jnp.float32),
        # wide (all heads) projection weights, bf16 for the MXU
        'wq': wq.astype(BF16),
        'wk': wk.astype(BF16),
        'wv': wv.astype(BF16),
        # fc1 per-head (batched einsum + head reduce); fc2 packed (joint dot)
        'wfc1': wfc1.reshape(6, n_head, d_v, d_model).astype(BF16),
        'wfc2': wfc2.astype(BF16),
        # PFF stacks in order [U1, U2, V1, V2]
        'pw1': jax.random.uniform(ks[5], (4, d_model, d_model), jnp.float32,
                                  -bnd, bnd).astype(BF16),
        'pb1': jax.random.uniform(ks[6], (4, 1, d_model), jnp.float32,
                                  -bnd, bnd),
        'pw2': jax.random.uniform(ks[7], (4, d_model, d_model), jnp.float32,
                                  -bnd, bnd).astype(BF16),
        'pb2': jax.random.uniform(ks[8], (4, 1, d_model), jnp.float32,
                                  -bnd, bnd),
        'pg': jnp.ones((4, 1, d_model), jnp.float32),
        'pb': jnp.zeros((4, 1, d_model), jnp.float32),
    }
    return params


# ----------------------------------- main ------------------------------------
if __name__ == "__main__":
    B, L = 2, 8
    n_head, d_k, d_v = 2, 16, 16
    d_model = 32
    bottle_neck = 32      # must equal d_model for the stacked layers
    diag_mask = True

    key = jax.random.PRNGKey(0)
    k_inputs, k_params = jax.random.split(key)
    kd1, kd2, ks1, ks2, km1, km2, km3, km4 = jax.random.split(k_inputs, 8)

    dynamic_1 = jax.random.normal(kd1, (B, L, bottle_neck), jnp.float32)
    dynamic_2 = jax.random.normal(kd2, (B, L, bottle_neck), jnp.float32)
    static_1 = jax.random.normal(ks1, (B, L, bottle_neck), jnp.float32)
    static_2 = jax.random.normal(ks2, (B, L, bottle_neck), jnp.float32)

    slf_attn_mask1 = (jax.random.uniform(km1, (B, L, L)) > 0.8).astype(jnp.float32)
    slf_attn_mask2 = (jax.random.uniform(km2, (B, L, L)) > 0.8).astype(jnp.float32)
    crs_attn_mask1 = (jax.random.uniform(km3, (B, L, L)) > 0.8).astype(jnp.float32)
    crs_attn_mask2 = (jax.random.uniform(km4, (B, L, L)) > 0.8).astype(jnp.float32)

    non_pad_mask1 = jnp.ones((B, L, 1), jnp.float32).at[:, -1, :].set(0.0)
    non_pad_mask2 = jnp.ones((B, L, 1), jnp.float32).at[:, -1, :].set(0.0)

    params = init_cross_attention_params(
        k_params, n_head=n_head, d_model=d_model, d_k=d_k, d_v=d_v,
        bottle_neck=bottle_neck)

    fwd = jax.jit(functools.partial(
        cross_attention_forward, n_head=n_head, d_model=d_model, d_k=d_k,
        d_v=d_v, diag_mask=diag_mask, bottle_neck=bottle_neck))

    dyn1, st1, dyn2, st2, attns = fwd(
        params, dynamic_1, dynamic_2, static_1, static_2,
        crs_attn_mask1, crs_attn_mask2, slf_attn_mask1, slf_attn_mask2,
        non_pad_mask1, non_pad_mask2)

    jax.block_until_ready((dyn1, st1, dyn2, st2, attns))
    assert dyn1.shape == (B, L, d_model) and st2.shape == (B, L, d_model)
    assert attns[0].shape == (n_head * B, L, L)
    assert np.all(np.isfinite(np.asarray(dyn1)))
    assert np.all(np.isfinite(np.asarray(st1)))
    assert np.all(np.isfinite(np.asarray(dyn2)))
    assert np.all(np.isfinite(np.asarray(st2)))
    for a in attns:
        assert np.all(np.isfinite(np.asarray(a)))
    print("KERNEL_OK")
</pallas_src>

<mosaic_0001>
module attributes {stable_mosaic.version = 11 : i64} {
  func.func @_cross_attention_kernel(%arg0: i32, %arg1: memref<1x8x32xf32, #tpu.memory_space<vmem>>, %arg2: memref<1x8x32xf32, #tpu.memory_space<vmem>>, %arg3: memref<1x8x32xf32, #tpu.memory_space<vmem>>, %arg4: memref<1x8x32xf32, #tpu.memory_space<vmem>>, %arg5: memref<1x8x8xbf16, #tpu.memory_space<vmem>>, %arg6: memref<1x8x8xbf16, #tpu.memory_space<vmem>>, %arg7: memref<1x8x8xbf16, #tpu.memory_space<vmem>>, %arg8: memref<1x8x8xbf16, #tpu.memory_space<vmem>>, %arg9: memref<1x8x1xf32, #tpu.memory_space<vmem>>, %arg10: memref<1x8x1xf32, #tpu.memory_space<vmem>>, %arg11: memref<6x3x32xf32, #tpu.memory_space<vmem>>, %arg12: memref<6x3x32xf32, #tpu.memory_space<vmem>>, %arg13: memref<6x32x32xbf16, #tpu.memory_space<vmem>>, %arg14: memref<6x32x32xbf16, #tpu.memory_space<vmem>>, %arg15: memref<6x32x32xbf16, #tpu.memory_space<vmem>>, %arg16: memref<6x2x16x32xbf16, #tpu.memory_space<vmem>>, %arg17: memref<2x32x32xbf16, #tpu.memory_space<vmem>>, %arg18: memref<4x32x32xbf16, #tpu.memory_space<vmem>>, %arg19: memref<4x1x32xf32, #tpu.memory_space<vmem>>, %arg20: memref<4x32x32xbf16, #tpu.memory_space<vmem>>, %arg21: memref<4x1x32xf32, #tpu.memory_space<vmem>>, %arg22: memref<4x1x32xf32, #tpu.memory_space<vmem>>, %arg23: memref<4x1x32xf32, #tpu.memory_space<vmem>>, %arg24: memref<1x8x32xf32, #tpu.memory_space<vmem>>, %arg25: memref<1x8x32xf32, #tpu.memory_space<vmem>>, %arg26: memref<1x8x32xf32, #tpu.memory_space<vmem>>, %arg27: memref<1x8x32xf32, #tpu.memory_space<vmem>>, %arg28: memref<2x1x8x8xf32, #tpu.memory_space<vmem>>, %arg29: memref<2x1x8x8xf32, #tpu.memory_space<vmem>>, %arg30: memref<2x1x8x8xf32, #tpu.memory_space<vmem>>, %arg31: memref<2x1x8x8xf32, #tpu.memory_space<vmem>>, %arg32: memref<2x1x8x8xf32, #tpu.memory_space<vmem>>, %arg33: memref<2x1x8x8xf32, #tpu.memory_space<vmem>>) attributes {dimension_semantics = [#tpu.dimension_semantics<parallel>], iteration_bounds = array<i64: 2>, scalar_prefetch = 0 : i64, scratch_operands = 0 : i64, tpu.core_type = #tpu.core_type<tc>, window_params = [{transform_indices = @transform_0, window_bounds = array<i64: 1, 8, 32>}, {transform_indices = @transform_1, window_bounds = array<i64: 1, 8, 32>}, {transform_indices = @transform_2, window_bounds = array<i64: 1, 8, 32>}, {transform_indices = @transform_3, window_bounds = array<i64: 1, 8, 32>}, {transform_indices = @transform_4, window_bounds = array<i64: 1, 8, 8>}, {transform_indices = @transform_5, window_bounds = array<i64: 1, 8, 8>}, {transform_indices = @transform_6, window_bounds = array<i64: 1, 8, 8>}, {transform_indices = @transform_7, window_bounds = array<i64: 1, 8, 8>}, {transform_indices = @transform_8, window_bounds = array<i64: 1, 8, 1>}, {transform_indices = @transform_9, window_bounds = array<i64: 1, 8, 1>}, {pipeline_mode = #tpu.pipeline_mode<synchronous>, transform_indices = @transform_10, window_bounds = array<i64: 6, 3, 32>}, {pipeline_mode = #tpu.pipeline_mode<synchronous>, transform_indices = @transform_11, window_bounds = array<i64: 6, 3, 32>}, {pipeline_mode = #tpu.pipeline_mode<synchronous>, transform_indices = @transform_12, window_bounds = array<i64: 6, 32, 32>}, {pipeline_mode = #tpu.pipeline_mode<synchronous>, transform_indices = @transform_13, window_bounds = array<i64: 6, 32, 32>}, {pipeline_mode = #tpu.pipeline_mode<synchronous>, transform_indices = @transform_14, window_bounds = array<i64: 6, 32, 32>}, {pipeline_mode = #tpu.pipeline_mode<synchronous>, transform_indices = @transform_15, window_bounds = array<i64: 6, 2, 16, 32>}, {pipeline_mode = #tpu.pipeline_mode<synchronous>, transform_indices = @transform_16, window_bounds = array<i64: 2, 32, 32>}, {pipeline_mode = #tpu.pipeline_mode<synchronous>, transform_indices = @transform_17, window_bounds = array<i64: 4, 32, 32>}, {pipeline_mode = #tpu.pipeline_mode<synchronous>, transform_indices = @transform_18, window_bounds = array<i64: 4, 1, 32>}, {pipeline_mode = #tpu.pipeline_mode<synchronous>, transform_indices = @transform_19, window_bounds = array<i64: 4, 32, 32>}, {pipeline_mode = #tpu.pipeline_mode<synchronous>, transform_indices = @transform_20, window_bounds = array<i64: 4, 1, 32>}, {pipeline_mode = #tpu.pipeline_mode<synchronous>, transform_indices = @transform_21, window_bounds = array<i64: 4, 1, 32>}, {pipeline_mode = #tpu.pipeline_mode<synchronous>, transform_indices = @transform_22, window_bounds = array<i64: 4, 1, 32>}, {transform_indices = @transform_23, window_bounds = array<i64: 1, 8, 32>}, {transform_indices = @transform_24, window_bounds = array<i64: 1, 8, 32>}, {transform_indices = @transform_25, window_bounds = array<i64: 1, 8, 32>}, {transform_indices = @transform_26, window_bounds = array<i64: 1, 8, 32>}, {transform_indices = @transform_27, window_bounds = array<i64: 2, 1, 8, 8>}, {transform_indices = @transform_28, window_bounds = array<i64: 2, 1, 8, 8>}, {transform_indices = @transform_29, window_bounds = array<i64: 2, 1, 8, 8>}, {transform_indices = @transform_30, window_bounds = array<i64: 2, 1, 8, 8>}, {transform_indices = @transform_31, window_bounds = array<i64: 2, 1, 8, 8>}, {transform_indices = @transform_32, window_bounds = array<i64: 2, 1, 8, 8>}]} {
    %c0 = arith.constant 0 : index
    %c0_0 = arith.constant 0 : index
    %c0_1 = arith.constant 0 : index
    %0 = vector.load %arg1[%c0, %c0_0, %c0_1] : memref<1x8x32xf32, #tpu.memory_space<vmem>>, vector<1x8x32xf32>
    %1 = vector.shape_cast %0 : vector<1x8x32xf32> to vector<8x32xf32>
    %c0_2 = arith.constant 0 : index
    %c0_3 = arith.constant 0 : index
    %c0_4 = arith.constant 0 : index
    %2 = vector.load %arg2[%c0_2, %c0_3, %c0_4] : memref<1x8x32xf32, #tpu.memory_space<vmem>>, vector<1x8x32xf32>
    %3 = vector.shape_cast %2 : vector<1x8x32xf32> to vector<8x32xf32>
    %c0_5 = arith.constant 0 : index
    %c0_6 = arith.constant 0 : index
    %c0_7 = arith.constant 0 : index
    %4 = vector.load %arg3[%c0_5, %c0_6, %c0_7] : memref<1x8x32xf32, #tpu.memory_space<vmem>>, vector<1x8x32xf32>
    %5 = vector.shape_cast %4 : vector<1x8x32xf32> to vector<8x32xf32>
    %c0_8 = arith.constant 0 : index
    %c0_9 = arith.constant 0 : index
    %c0_10 = arith.constant 0 : index
    %6 = vector.load %arg4[%c0_8, %c0_9, %c0_10] : memref<1x8x32xf32, #tpu.memory_space<vmem>>, vector<1x8x32xf32>
    %7 = vector.shape_cast %6 : vector<1x8x32xf32> to vector<8x32xf32>
    %c0_11 = arith.constant 0 : index
    %c0_12 = arith.constant 0 : index
    %c0_13 = arith.constant 0 : index
    %8 = vector.load %arg9[%c0_11, %c0_12, %c0_13] : memref<1x8x1xf32, #tpu.memory_space<vmem>>, vector<1x8x1xf32>
    %9 = vector.shape_cast %8 : vector<1x8x1xf32> to vector<8x1xf32>
    %c0_14 = arith.constant 0 : index
    %c0_15 = arith.constant 0 : index
    %c0_16 = arith.constant 0 : index
    %10 = vector.load %arg10[%c0_14, %c0_15, %c0_16] : memref<1x8x1xf32, #tpu.memory_space<vmem>>, vector<1x8x1xf32>
    %11 = vector.shape_cast %10 : vector<1x8x1xf32> to vector<8x1xf32>
    %c0_17 = arith.constant 0 : index
    %c0_18 = arith.constant 0 : index
    %c0_19 = arith.constant 0 : index
    %12 = vector.load %arg5[%c0_17, %c0_18, %c0_19] : memref<1x8x8xbf16, #tpu.memory_space<vmem>>, vector<1x8x8xbf16>
    %13 = vector.shape_cast %12 : vector<1x8x8xbf16> to vector<8x8xbf16>
    %14 = arith.extf %13 : vector<8x8xbf16> to vector<8x8xf32>
    %15 = tpu.iota {dimensions = array<i32: 0>} : vector<8x8xi32>
    %16 = tpu.iota {dimensions = array<i32: 1>} : vector<8x8xi32>
    %17 = arith.cmpi eq, %15, %16 : vector<8x8xi32>
    %18 = arith.extui %17 : vector<8x8xi1> to vector<8x8xi32>
    %19 = arith.sitofp %18 : vector<8x8xi32> to vector<8x8xf32>
    %20 = arith.addf %14, %19 : vector<8x8xf32>
    %cst = arith.constant 0.000000e+00 : f32
    %21 = vector.broadcast %cst : f32 to vector<8x8xf32>
    %22 = arith.cmpf ogt, %20, %21 : vector<8x8xf32>
    %23 = arith.extui %22 : vector<8x8xi1> to vector<8x8xi32>
    %24 = arith.sitofp %23 : vector<8x8xi32> to vector<8x8xf32>
    %cst_20 = arith.constant 1.000000e+00 : f32
    %25 = vector.broadcast %cst_20 : f32 to vector<8x8xf32>
    %26 = arith.subf %25, %24 : vector<8x8xf32>
    %c0_21 = arith.constant 0 : index
    %c0_22 = arith.constant 0 : index
    %c0_23 = arith.constant 0 : index
    %27 = vector.load %arg6[%c0_21, %c0_22, %c0_23] : memref<1x8x8xbf16, #tpu.memory_space<vmem>>, vector<1x8x8xbf16>
    %28 = vector.shape_cast %27 : vector<1x8x8xbf16> to vector<8x8xbf16>
    %29 = arith.extf %28 : vector<8x8xbf16> to vector<8x8xf32>
    %30 = tpu.iota {dimensions = array<i32: 0>} : vector<8x8xi32>
    %31 = tpu.iota {dimensions = array<i32: 1>} : vector<8x8xi32>
    %32 = arith.cmpi eq, %30, %31 : vector<8x8xi32>
    %33 = arith.extui %32 : vector<8x8xi1> to vector<8x8xi32>
    %34 = arith.sitofp %33 : vector<8x8xi32> to vector<8x8xf32>
    %35 = arith.addf %29, %34 : vector<8x8xf32>
    %cst_24 = arith.constant 0.000000e+00 : f32
    %36 = vector.broadcast %cst_24 : f32 to vector<8x8xf32>
    %37 = arith.cmpf ogt, %35, %36 : vector<8x8xf32>
    %38 = arith.extui %37 : vector<8x8xi1> to vector<8x8xi32>
    %39 = arith.sitofp %38 : vector<8x8xi32> to vector<8x8xf32>
    %cst_25 = arith.constant 1.000000e+00 : f32
    %40 = vector.broadcast %cst_25 : f32 to vector<8x8xf32>
    %41 = arith.subf %40, %39 : vector<8x8xf32>
    %c0_26 = arith.constant 0 : index
    %c0_27 = arith.constant 0 : index
    %c0_28 = arith.constant 0 : index
    %42 = vector.load %arg7[%c0_26, %c0_27, %c0_28] : memref<1x8x8xbf16, #tpu.memory_space<vmem>>, vector<1x8x8xbf16>
    %43 = vector.shape_cast %42 : vector<1x8x8xbf16> to vector<8x8xbf16>
    %44 = arith.extf %43 : vector<8x8xbf16> to vector<8x8xf32>
    %45 = tpu.iota {dimensions = array<i32: 0>} : vector<8x8xi32>
    %46 = tpu.iota {dimensions = array<i32: 1>} : vector<8x8xi32>
    %47 = arith.cmpi eq, %45, %46 : vector<8x8xi32>
    %48 = arith.extui %47 : vector<8x8xi1> to vector<8x8xi32>
    %49 = arith.sitofp %48 : vector<8x8xi32> to vector<8x8xf32>
    %50 = arith.addf %44, %49 : vector<8x8xf32>
    %cst_29 = arith.constant 0.000000e+00 : f32
    %51 = vector.broadcast %cst_29 : f32 to vector<8x8xf32>
    %52 = arith.cmpf ogt, %50, %51 : vector<8x8xf32>
    %53 = arith.extui %52 : vector<8x8xi1> to vector<8x8xi32>
    %54 = arith.sitofp %53 : vector<8x8xi32> to vector<8x8xf32>
    %cst_30 = arith.constant 1.000000e+00 : f32
    %55 = vector.broadcast %cst_30 : f32 to vector<8x8xf32>
    %56 = arith.subf %55, %54 : vector<8x8xf32>
    %c0_31 = arith.constant 0 : index
    %c0_32 = arith.constant 0 : index
    %c0_33 = arith.constant 0 : index
    %57 = vector.load %arg8[%c0_31, %c0_32, %c0_33] : memref<1x8x8xbf16, #tpu.memory_space<vmem>>, vector<1x8x8xbf16>
    %58 = vector.shape_cast %57 : vector<1x8x8xbf16> to vector<8x8xbf16>
    %59 = arith.extf %58 : vector<8x8xbf16> to vector<8x8xf32>
    %60 = tpu.iota {dimensions = array<i32: 0>} : vector<8x8xi32>
    %61 = tpu.iota {dimensions = array<i32: 1>} : vector<8x8xi32>
    %62 = arith.cmpi eq, %60, %61 : vector<8x8xi32>
    %63 = arith.extui %62 : vector<8x8xi1> to vector<8x8xi32>
    %64 = arith.sitofp %63 : vector<8x8xi32> to vector<8x8xf32>
    %65 = arith.addf %59, %64 : vector<8x8xf32>
    %cst_34 = arith.constant 0.000000e+00 : f32
    %66 = vector.broadcast %cst_34 : f32 to vector<8x8xf32>
    %67 = arith.cmpf ogt, %65, %66 : vector<8x8xf32>
    %68 = arith.extui %67 : vector<8x8xi1> to vector<8x8xi32>
    %69 = arith.sitofp %68 : vector<8x8xi32> to vector<8x8xf32>
    %cst_35 = arith.constant 1.000000e+00 : f32
    %70 = vector.broadcast %cst_35 : f32 to vector<8x8xf32>
    %71 = arith.subf %70, %69 : vector<8x8xf32>
    %c0_36 = arith.constant 0 : index
    %c0_37 = arith.constant 0 : index
    %c0_38 = arith.constant 0 : index
    %72 = vector.load %arg11[%c0_36, %c0_37, %c0_38] : memref<6x3x32xf32, #tpu.memory_space<vmem>>, vector<1x3x32xf32>
    %73 = vector.shape_cast %72 : vector<1x3x32xf32> to vector<3x32xf32>
    %c0_39 = arith.constant 0 : index
    %c0_40 = arith.constant 0 : index
    %c0_41 = arith.constant 0 : index
    %74 = vector.load %arg12[%c0_39, %c0_40, %c0_41] : memref<6x3x32xf32, #tpu.memory_space<vmem>>, vector<1x3x32xf32>
    %75 = vector.shape_cast %74 : vector<1x3x32xf32> to vector<3x32xf32>
    %76 = vector.extract_strided_slice %73 {offsets = [0, 0], sizes = [1, 32], strides = [1, 1]} : vector<3x32xf32> to vector<1x32xf32>
    %77 = vector.extract_strided_slice %75 {offsets = [0, 0], sizes = [1, 32], strides = [1, 1]} : vector<3x32xf32> to vector<1x32xf32>
    %cst_42 = arith.constant dense<0.000000e+00> : vector<8xf32>
    %78 = vector.multi_reduction <add>, %1, %cst_42 [1] : vector<8x32xf32> to vector<8xf32>
    %79 = vector.shape_cast %78 : vector<8xf32> to vector<8x1xf32>
    %cst_43 = arith.constant 3.200000e+01 : f32
    %80 = vector.broadcast %cst_43 : f32 to vector<8x1xf32>
    %81 = arith.divf %79, %80 : vector<8x1xf32>
    %82 = vector.broadcast %81 : vector<8x1xf32> to vector<8x32xf32>
    %83 = arith.subf %1, %82 : vector<8x32xf32>
    %84 = arith.mulf %83, %83 : vector<8x32xf32>
    %cst_44 = arith.constant dense<0.000000e+00> : vector<8xf32>
    %85 = vector.multi_reduction <add>, %84, %cst_44 [1] : vector<8x32xf32> to vector<8xf32>
    %86 = vector.shape_cast %85 : vector<8xf32> to vector<8x1xf32>
    %cst_45 = arith.constant 3.200000e+01 : f32
    %87 = vector.broadcast %cst_45 : f32 to vector<8x1xf32>
    %88 = arith.divf %86, %87 : vector<8x1xf32>
    %89 = vector.broadcast %81 : vector<8x1xf32> to vector<8x32xf32>
    %90 = arith.subf %1, %89 : vector<8x32xf32>
    %cst_46 = arith.constant 9.99999974E-6 : f32
    %91 = vector.broadcast %cst_46 : f32 to vector<8x1xf32>
    %92 = arith.addf %88, %91 : vector<8x1xf32>
    %93 = math.rsqrt %92 : vector<8x1xf32>
    %94 = vector.broadcast %93 : vector<8x1xf32> to vector<8x32xf32>
    %95 = arith.mulf %90, %94 : vector<8x32xf32>
    %96 = vector.broadcast %76 : vector<1x32xf32> to vector<8x32xf32>
    %97 = arith.mulf %95, %96 : vector<8x32xf32>
    %98 = vector.broadcast %77 : vector<1x32xf32> to vector<8x32xf32>
    %99 = arith.addf %97, %98 : vector<8x32xf32>
    %100 = arith.truncf %99 : vector<8x32xf32> to vector<8x32xbf16>
    %101 = vector.extract_strided_slice %73 {offsets = [1, 0], sizes = [1, 32], strides = [1, 1]} : vector<3x32xf32> to vector<1x32xf32>
    %102 = vector.extract_strided_slice %75 {offsets = [1, 0], sizes = [1, 32], strides = [1, 1]} : vector<3x32xf32> to vector<1x32xf32>
    %cst_47 = arith.constant dense<0.000000e+00> : vector<8xf32>
    %103 = vector.multi_reduction <add>, %5, %cst_47 [1] : vector<8x32xf32> to vector<8xf32>
    %104 = vector.shape_cast %103 : vector<8xf32> to vector<8x1xf32>
    %cst_48 = arith.constant 3.200000e+01 : f32
    %105 = vector.broadcast %cst_48 : f32 to vector<8x1xf32>
    %106 = arith.divf %104, %105 : vector<8x1xf32>
    %107 = vector.broadcast %106 : vector<8x1xf32> to vector<8x32xf32>
    %108 = arith.subf %5, %107 : vector<8x32xf32>
    %109 = arith.mulf %108, %108 : vector<8x32xf32>
    %cst_49 = arith.constant dense<0.000000e+00> : vector<8xf32>
    %110 = vector.multi_reduction <add>, %109, %cst_49 [1] : vector<8x32xf32> to vector<8xf32>
    %111 = vector.shape_cast %110 : vector<8xf32> to vector<8x1xf32>
    %cst_50 = arith.constant 3.200000e+01 : f32
    %112 = vector.broadcast %cst_50 : f32 to vector<8x1xf32>
    %113 = arith.divf %111, %112 : vector<8x1xf32>
    %114 = vector.broadcast %106 : vector<8x1xf32> to vector<8x32xf32>
    %115 = arith.subf %5, %114 : vector<8x32xf32>
    %cst_51 = arith.constant 9.99999974E-6 : f32
    %116 = vector.broadcast %cst_51 : f32 to vector<8x1xf32>
    %117 = arith.addf %113, %116 : vector<8x1xf32>
    %118 = math.rsqrt %117 : vector<8x1xf32>
    %119 = vector.broadcast %118 : vector<8x1xf32> to vector<8x32xf32>
    %120 = arith.mulf %115, %119 : vector<8x32xf32>
    %121 = vector.broadcast %101 : vector<1x32xf32> to vector<8x32xf32>
    %122 = arith.mulf %120, %121 : vector<8x32xf32>
    %123 = vector.broadcast %102 : vector<1x32xf32> to vector<8x32xf32>
    %124 = arith.addf %122, %123 : vector<8x32xf32>
    %125 = arith.truncf %124 : vector<8x32xf32> to vector<8x32xbf16>
    %126 = vector.extract_strided_slice %73 {offsets = [2, 0], sizes = [1, 32], strides = [1, 1]} : vector<3x32xf32> to vector<1x32xf32>
    %127 = vector.extract_strided_slice %75 {offsets = [2, 0], sizes = [1, 32], strides = [1, 1]} : vector<3x32xf32> to vector<1x32xf32>
    %cst_52 = arith.constant dense<0.000000e+00> : vector<8xf32>
    %128 = vector.multi_reduction <add>, %5, %cst_52 [1] : vector<8x32xf32> to vector<8xf32>
    %129 = vector.shape_cast %128 : vector<8xf32> to vector<8x1xf32>
    %cst_53 = arith.constant 3.200000e+01 : f32
    %130 = vector.broadcast %cst_53 : f32 to vector<8x1xf32>
    %131 = arith.divf %129, %130 : vector<8x1xf32>
    %132 = vector.broadcast %131 : vector<8x1xf32> to vector<8x32xf32>
    %133 = arith.subf %5, %132 : vector<8x32xf32>
    %134 = arith.mulf %133, %133 : vector<8x32xf32>
    %cst_54 = arith.constant dense<0.000000e+00> : vector<8xf32>
    %135 = vector.multi_reduction <add>, %134, %cst_54 [1] : vector<8x32xf32> to vector<8xf32>
    %136 = vector.shape_cast %135 : vector<8xf32> to vector<8x1xf32>
    %cst_55 = arith.constant 3.200000e+01 : f32
    %137 = vector.broadcast %cst_55 : f32 to vector<8x1xf32>
    %138 = arith.divf %136, %137 : vector<8x1xf32>
    %139 = vector.broadcast %131 : vector<8x1xf32> to vector<8x32xf32>
    %140 = arith.subf %5, %139 : vector<8x32xf32>
    %cst_56 = arith.constant 9.99999974E-6 : f32
    %141 = vector.broadcast %cst_56 : f32 to vector<8x1xf32>
    %142 = arith.addf %138, %141 : vector<8x1xf32>
    %143 = math.rsqrt %142 : vector<8x1xf32>
    %144 = vector.broadcast %143 : vector<8x1xf32> to vector<8x32xf32>
    %145 = arith.mulf %140, %144 : vector<8x32xf32>
    %146 = vector.broadcast %126 : vector<1x32xf32> to vector<8x32xf32>
    %147 = arith.mulf %145, %146 : vector<8x32xf32>
    %148 = vector.broadcast %127 : vector<1x32xf32> to vector<8x32xf32>
    %149 = arith.addf %147, %148 : vector<8x32xf32>
    %150 = arith.truncf %149 : vector<8x32xf32> to vector<8x32xbf16>
    %c0_57 = arith.constant 0 : index
    %c0_58 = arith.constant 0 : index
    %c0_59 = arith.constant 0 : index
    %151 = vector.load %arg13[%c0_57, %c0_58, %c0_59] : memref<6x32x32xbf16, #tpu.memory_space<vmem>>, vector<1x32x32xbf16>
    %152 = vector.shape_cast %151 : vector<1x32x32xbf16> to vector<32x32xbf16>
    %cst_60 = arith.constant dense<0.000000e+00> : vector<8x32xf32>
    %153 = tpu.matmul %100, %152, %cst_60 {dimension_numbers = #tpu.dot_dimension_numbers<[1], [0], [0], [1], [0, 0, 1, 1], [], []>} : vector<8x32xbf16>, vector<32x32xbf16>, vector<8x32xf32> -> vector<8x32xf32>
    %cst_61 = arith.constant 2.500000e-01 : f32
    %154 = vector.broadcast %cst_61 : f32 to vector<8x32xf32>
    %155 = arith.mulf %153, %154 : vector<8x32xf32>
    %156 = arith.truncf %155 : vector<8x32xf32> to vector<8x32xbf16>
    %c0_62 = arith.constant 0 : index
    %c0_63 = arith.constant 0 : index
    %c0_64 = arith.constant 0 : index
    %157 = vector.load %arg14[%c0_62, %c0_63, %c0_64] : memref<6x32x32xbf16, #tpu.memory_space<vmem>>, vector<1x32x32xbf16>
    %158 = vector.shape_cast %157 : vector<1x32x32xbf16> to vector<32x32xbf16>
    %cst_65 = arith.constant dense<0.000000e+00> : vector<8x32xf32>
    %159 = tpu.matmul %125, %158, %cst_65 {dimension_numbers = #tpu.dot_dimension_numbers<[1], [0], [0], [1], [0, 0, 1, 1], [], []>} : vector<8x32xbf16>, vector<32x32xbf16>, vector<8x32xf32> -> vector<8x32xf32>
    %160 = arith.truncf %159 : vector<8x32xf32> to vector<8x32xbf16>
    %c0_66 = arith.constant 0 : index
    %c0_67 = arith.constant 0 : index
    %c0_68 = arith.constant 0 : index
    %161 = vector.load %arg15[%c0_66, %c0_67, %c0_68] : memref<6x32x32xbf16, #tpu.memory_space<vmem>>, vector<1x32x32xbf16>
    %162 = vector.shape_cast %161 : vector<1x32x32xbf16> to vector<32x32xbf16>
    %cst_69 = arith.constant dense<0.000000e+00> : vector<8x32xf32>
    %163 = tpu.matmul %150, %162, %cst_69 {dimension_numbers = #tpu.dot_dimension_numbers<[1], [0], [0], [1], [0, 0, 1, 1], [], []>} : vector<8x32xbf16>, vector<32x32xbf16>, vector<8x32xf32> -> vector<8x32xf32>
    %164 = arith.truncf %163 : vector<8x32xf32> to vector<8x32xbf16>
    %165 = vector.extract_strided_slice %156 {offsets = [0, 0], sizes = [8, 16], strides = [1, 1]} : vector<8x32xbf16> to vector<8x16xbf16>
    %166 = vector.extract_strided_slice %156 {offsets = [0, 16], sizes = [8, 16], strides = [1, 1]} : vector<8x32xbf16> to vector<8x16xbf16>
    %167 = vector.shape_cast %165 : vector<8x16xbf16> to vector<1x8x16xbf16>
    %168 = vector.shape_cast %166 : vector<8x16xbf16> to vector<1x8x16xbf16>
    %169 = tpu.concatenate %167, %168 in 0 : vector<1x8x16xbf16>, vector<1x8x16xbf16> -> vector<2x8x16xbf16>
    %170 = vector.extract_strided_slice %160 {offsets = [0, 0], sizes = [8, 16], strides = [1, 1]} : vector<8x32xbf16> to vector<8x16xbf16>
    %171 = vector.extract_strided_slice %160 {offsets = [0, 16], sizes = [8, 16], strides = [1, 1]} : vector<8x32xbf16> to vector<8x16xbf16>
    %172 = vector.shape_cast %170 : vector<8x16xbf16> to vector<1x8x16xbf16>
    %173 = vector.shape_cast %171 : vector<8x16xbf16> to vector<1x8x16xbf16>
    %174 = tpu.concatenate %172, %173 in 0 : vector<1x8x16xbf16>, vector<1x8x16xbf16> -> vector<2x8x16xbf16>
    %175 = vector.extract_strided_slice %164 {offsets = [0, 0], sizes = [8, 16], strides = [1, 1]} : vector<8x32xbf16> to vector<8x16xbf16>
    %176 = vector.extract_strided_slice %164 {offsets = [0, 16], sizes = [8, 16], strides = [1, 1]} : vector<8x32xbf16> to vector<8x16xbf16>
    %177 = vector.shape_cast %175 : vector<8x16xbf16> to vector<1x8x16xbf16>
    %178 = vector.shape_cast %176 : vector<8x16xbf16> to vector<1x8x16xbf16>
    %179 = tpu.concatenate %177, %178 in 0 : vector<1x8x16xbf16>, vector<1x8x16xbf16> -> vector<2x8x16xbf16>
    "tpu.trace_start"() <{level = 10 : i32, message = "hqd,hkd->hqk"}> : () -> ()
    %cst_70 = arith.constant dense<0.000000e+00> : vector<2x8x8xf32>
    %180 = tpu.matmul %169, %174, %cst_70 {dimension_numbers = #tpu.dot_dimension_numbers<[2], [2], [1], [1], [0, 0, 0, 1, 1, 1], [0], [0]>} : vector<2x8x16xbf16>, vector<2x8x16xbf16>, vector<2x8x8xf32> -> vector<2x8x8xf32>
    "tpu.trace_stop"() : () -> ()
    %181 = vector.shape_cast %26 : vector<8x8xf32> to vector<1x8x8xf32>
    %182 = vector.broadcast %181 : vector<1x8x8xf32> to vector<2x8x8xf32>
    %183 = arith.mulf %180, %182 : vector<2x8x8xf32>
    %cst_71 = arith.constant dense<0xFF800000> : vector<2x8xf32>
    %184 = vector.multi_reduction <maximumf>, %183, %cst_71 [2] : vector<2x8x8xf32> to vector<2x8xf32>
    %185 = vector.shape_cast %184 : vector<2x8xf32> to vector<2x8x1xf32>
    %186 = vector.broadcast %185 : vector<2x8x1xf32> to vector<2x8x8xf32>
    %187 = arith.subf %183, %186 : vector<2x8x8xf32>
    %188 = math.exp %187 : vector<2x8x8xf32>
    %189 = vector.broadcast %181 : vector<1x8x8xf32> to vector<2x8x8xf32>
    %190 = arith.mulf %188, %189 : vector<2x8x8xf32>
    %cst_72 = arith.constant dense<0.000000e+00> : vector<2x8xf32>
    %191 = vector.multi_reduction <add>, %190, %cst_72 [2] : vector<2x8x8xf32> to vector<2x8xf32>
    %192 = vector.shape_cast %191 : vector<2x8xf32> to vector<2x8x1xf32>
    %cst_73 = arith.constant 9.99999982E-14 : f32
    %193 = vector.broadcast %cst_73 : f32 to vector<2x8x1xf32>
    %194 = arith.addf %192, %193 : vector<2x8x1xf32>
    %195 = tpu.reciprocal %194 {approx = true} : vector<2x8x1xf32> -> vector<2x8x1xf32>
    %196 = vector.broadcast %195 : vector<2x8x1xf32> to vector<2x8x8xf32>
    %197 = arith.mulf %190, %196 : vector<2x8x8xf32>
    %c0_74 = arith.constant 0 : index
    %c0_75 = arith.constant 0 : index
    %c0_76 = arith.constant 0 : index
    %c0_77 = arith.constant 0 : index
    %198 = vector.load %arg28[%c0_74, %c0_75, %c0_76, %c0_77] : memref<2x1x8x8xf32, #tpu.memory_space<vmem>>, vector<2x1x8x8xf32>
    %199 = vector.shape_cast %198 : vector<2x1x8x8xf32> to vector<2x8x8xf32>
    %200 = vector.shape_cast %197 : vector<2x8x8xf32> to vector<2x1x8x8xf32>
    tpu.vector_store %arg28[%c0_74, %c0_75, %c0_76, %c0_77], %200 {strides = array<i32>} : memref<2x1x8x8xf32, #tpu.memory_space<vmem>>, vector<2x1x8x8xf32>,
    %201 = arith.truncf %197 : vector<2x8x8xf32> to vector<2x8x8xbf16>
    "tpu.trace_start"() <{level = 10 : i32, message = "hqk,hkd->hqd"}> : () -> ()
    %cst_78 = arith.constant dense<0.000000e+00> : vector<2x8x16xf32>
    %202 = tpu.matmul %201, %179, %cst_78 {dimension_numbers = #tpu.dot_dimension_numbers<[2], [1], [1], [2], [0, 0, 0, 1, 1, 2], [0], [0]>} : vector<2x8x8xbf16>, vector<2x8x16xbf16>, vector<2x8x16xf32> -> vector<2x8x16xf32>
    "tpu.trace_stop"() : () -> ()
    %203 = arith.truncf %202 : vector<2x8x16xf32> to vector<2x8x16xbf16>
    %c0_79 = arith.constant 0 : index
    %c0_80 = arith.constant 0 : index
    %c0_81 = arith.constant 0 : index
    %c0_82 = arith.constant 0 : index
    %204 = vector.load %arg16[%c0_79, %c0_80, %c0_81, %c0_82] : memref<6x2x16x32xbf16, #tpu.memory_space<vmem>>, vector<1x2x16x32xbf16>
    %205 = vector.shape_cast %204 : vector<1x2x16x32xbf16> to vector<2x16x32xbf16>
    "tpu.trace_start"() <{level = 10 : i32, message = "hqd,hdm->hqm"}> : () -> ()
    %cst_83 = arith.constant dense<0.000000e+00> : vector<2x8x32xf32>
    %206 = tpu.matmul %203, %205, %cst_83 {dimension_numbers = #tpu.dot_dimension_numbers<[2], [1], [1], [2], [0, 0, 0, 1, 1, 2], [0], [0]>} : vector<2x8x16xbf16>, vector<2x16x32xbf16>, vector<2x8x32xf32> -> vector<2x8x32xf32>
    "tpu.trace_stop"() : () -> ()
    %cst_84 = arith.constant dense<0.000000e+00> : vector<8x32xf32>
    %207 = vector.multi_reduction <add>, %206, %cst_84 [0] : vector<2x8x32xf32> to vector<8x32xf32>
    %c0_85 = arith.constant 0 : index
    %c0_86 = arith.constant 0 : index
    %c0_87 = arith.constant 0 : index
    %208 = vector.load %arg17[%c0_85, %c0_86, %c0_87] : memref<2x32x32xbf16, #tpu.memory_space<vmem>>, vector<1x32x32xbf16>
    %209 = vector.shape_cast %208 : vector<1x32x32xbf16> to vector<32x32xbf16>
    %cst_88 = arith.constant dense<0.000000e+00> : vector<8x32xf32>
    %210 = tpu.matmul %164, %209, %cst_88 {dimension_numbers = #tpu.dot_dimension_numbers<[1], [0], [0], [1], [0, 0, 1, 1], [], []>} : vector<8x32xbf16>, vector<32x32xbf16>, vector<8x32xf32> -> vector<8x32xf32>
    %c1 = arith.constant 1 : index
    %c0_89 = arith.constant 0 : index
    %c0_90 = arith.constant 0 : index
    %211 = vector.load %arg11[%c1, %c0_89, %c0_90] : memref<6x3x32xf32, #tpu.memory_space<vmem>>, vector<1x3x32xf32>
    %212 = vector.shape_cast %211 : vector<1x3x32xf32> to vector<3x32xf32>
    %c1_91 = arith.constant 1 : index
    %c0_92 = arith.constant 0 : index
    %c0_93 = arith.constant 0 : index
    %213 = vector.load %arg12[%c1_91, %c0_92, %c0_93] : memref<6x3x32xf32, #tpu.memory_space<vmem>>, vector<1x3x32xf32>
    %214 = vector.shape_cast %213 : vector<1x3x32xf32> to vector<3x32xf32>
    %215 = vector.extract_strided_slice %212 {offsets = [0, 0], sizes = [1, 32], strides = [1, 1]} : vector<3x32xf32> to vector<1x32xf32>
    %216 = vector.extract_strided_slice %214 {offsets = [0, 0], sizes = [1, 32], strides = [1, 1]} : vector<3x32xf32> to vector<1x32xf32>
    %cst_94 = arith.constant dense<0.000000e+00> : vector<8xf32>
    %217 = vector.multi_reduction <add>, %3, %cst_94 [1] : vector<8x32xf32> to vector<8xf32>
    %218 = vector.shape_cast %217 : vector<8xf32> to vector<8x1xf32>
    %cst_95 = arith.constant 3.200000e+01 : f32
    %219 = vector.broadcast %cst_95 : f32 to vector<8x1xf32>
    %220 = arith.divf %218, %219 : vector<8x1xf32>
    %221 = vector.broadcast %220 : vector<8x1xf32> to vector<8x32xf32>
    %222 = arith.subf %3, %221 : vector<8x32xf32>
    %223 = arith.mulf %222, %222 : vector<8x32xf32>
    %cst_96 = arith.constant dense<0.000000e+00> : vector<8xf32>
    %224 = vector.multi_reduction <add>, %223, %cst_96 [1] : vector<8x32xf32> to vector<8xf32>
    %225 = vector.shape_cast %224 : vector<8xf32> to vector<8x1xf32>
    %cst_97 = arith.constant 3.200000e+01 : f32
    %226 = vector.broadcast %cst_97 : f32 to vector<8x1xf32>
    %227 = arith.divf %225, %226 : vector<8x1xf32>
    %228 = vector.broadcast %220 : vector<8x1xf32> to vector<8x32xf32>
    %229 = arith.subf %3, %228 : vector<8x32xf32>
    %cst_98 = arith.constant 9.99999974E-6 : f32
    %230 = vector.broadcast %cst_98 : f32 to vector<8x1xf32>
    %231 = arith.addf %227, %230 : vector<8x1xf32>
    %232 = math.rsqrt %231 : vector<8x1xf32>
    %233 = vector.broadcast %232 : vector<8x1xf32> to vector<8x32xf32>
    %234 = arith.mulf %229, %233 : vector<8x32xf32>
    %235 = vector.broadcast %215 : vector<1x32xf32> to vector<8x32xf32>
    %236 = arith.mulf %234, %235 : vector<8x32xf32>
    %237 = vector.broadcast %216 : vector<1x32xf32> to vector<8x32xf32>
    %238 = arith.addf %236, %237 : vector<8x32xf32>
    %239 = arith.truncf %238 : vector<8x32xf32> to vector<8x32xbf16>
    %240 = vector.extract_strided_slice %212 {offsets = [1, 0], sizes = [1, 32], strides = [1, 1]} : vector<3x32xf32> to vector<1x32xf32>
    %241 = vector.extract_strided_slice %214 {offsets = [1, 0], sizes = [1, 32], strides = [1, 1]} : vector<3x32xf32> to vector<1x32xf32>
    %cst_99 = arith.constant dense<0.000000e+00> : vector<8xf32>
    %242 = vector.multi_reduction <add>, %7, %cst_99 [1] : vector<8x32xf32> to vector<8xf32>
    %243 = vector.shape_cast %242 : vector<8xf32> to vector<8x1xf32>
    %cst_100 = arith.constant 3.200000e+01 : f32
    %244 = vector.broadcast %cst_100 : f32 to vector<8x1xf32>
    %245 = arith.divf %243, %244 : vector<8x1xf32>
    %246 = vector.broadcast %245 : vector<8x1xf32> to vector<8x32xf32>
    %247 = arith.subf %7, %246 : vector<8x32xf32>
    %248 = arith.mulf %247, %247 : vector<8x32xf32>
    %cst_101 = arith.constant dense<0.000000e+00> : vector<8xf32>
    %249 = vector.multi_reduction <add>, %248, %cst_101 [1] : vector<8x32xf32> to vector<8xf32>
    %250 = vector.shape_cast %249 : vector<8xf32> to vector<8x1xf32>
    %cst_102 = arith.constant 3.200000e+01 : f32
    %251 = vector.broadcast %cst_102 : f32 to vector<8x1xf32>
    %252 = arith.divf %250, %251 : vector<8x1xf32>
    %253 = vector.broadcast %245 : vector<8x1xf32> to vector<8x32xf32>
    %254 = arith.subf %7, %253 : vector<8x32xf32>
    %cst_103 = arith.constant 9.99999974E-6 : f32
    %255 = vector.broadcast %cst_103 : f32 to vector<8x1xf32>
    %256 = arith.addf %252, %255 : vector<8x1xf32>
    %257 = math.rsqrt %256 : vector<8x1xf32>
    %258 = vector.broadcast %257 : vector<8x1xf32> to vector<8x32xf32>
    %259 = arith.mulf %254, %258 : vector<8x32xf32>
    %260 = vector.broadcast %240 : vector<1x32xf32> to vector<8x32xf32>
    %261 = arith.mulf %259, %260 : vector<8x32xf32>
    %262 = vector.broadcast %241 : vector<1x32xf32> to vector<8x32xf32>
    %263 = arith.addf %261, %262 : vector<8x32xf32>
    %264 = arith.truncf %263 : vector<8x32xf32> to vector<8x32xbf16>
    %265 = vector.extract_strided_slice %212 {offsets = [2, 0], sizes = [1, 32], strides = [1, 1]} : vector<3x32xf32> to vector<1x32xf32>
    %266 = vector.extract_strided_slice %214 {offsets = [2, 0], sizes = [1, 32], strides = [1, 1]} : vector<3x32xf32> to vector<1x32xf32>
    %cst_104 = arith.constant dense<0.000000e+00> : vector<8xf32>
    %267 = vector.multi_reduction <add>, %7, %cst_104 [1] : vector<8x32xf32> to vector<8xf32>
    %268 = vector.shape_cast %267 : vector<8xf32> to vector<8x1xf32>
    %cst_105 = arith.constant 3.200000e+01 : f32
    %269 = vector.broadcast %cst_105 : f32 to vector<8x1xf32>
    %270 = arith.divf %268, %269 : vector<8x1xf32>
    %271 = vector.broadcast %270 : vector<8x1xf32> to vector<8x32xf32>
    %272 = arith.subf %7, %271 : vector<8x32xf32>
    %273 = arith.mulf %272, %272 : vector<8x32xf32>
    %cst_106 = arith.constant dense<0.000000e+00> : vector<8xf32>
    %274 = vector.multi_reduction <add>, %273, %cst_106 [1] : vector<8x32xf32> to vector<8xf32>
    %275 = vector.shape_cast %274 : vector<8xf32> to vector<8x1xf32>
    %cst_107 = arith.constant 3.200000e+01 : f32
    %276 = vector.broadcast %cst_107 : f32 to vector<8x1xf32>
    %277 = arith.divf %275, %276 : vector<8x1xf32>
    %278 = vector.broadcast %270 : vector<8x1xf32> to vector<8x32xf32>
    %279 = arith.subf %7, %278 : vector<8x32xf32>
    %cst_108 = arith.constant 9.99999974E-6 : f32
    %280 = vector.broadcast %cst_108 : f32 to vector<8x1xf32>
    %281 = arith.addf %277, %280 : vector<8x1xf32>
    %282 = math.rsqrt %281 : vector<8x1xf32>
    %283 = vector.broadcast %282 : vector<8x1xf32> to vector<8x32xf32>
    %284 = arith.mulf %279, %283 : vector<8x32xf32>
    %285 = vector.broadcast %265 : vector<1x32xf32> to vector<8x32xf32>
    %286 = arith.mulf %284, %285 : vector<8x32xf32>
    %287 = vector.broadcast %266 : vector<1x32xf32> to vector<8x32xf32>
    %288 = arith.addf %286, %287 : vector<8x32xf32>
    %289 = arith.truncf %288 : vector<8x32xf32> to vector<8x32xbf16>
    %c1_109 = arith.constant 1 : index
    %c0_110 = arith.constant 0 : index
    %c0_111 = arith.constant 0 : index
    %290 = vector.load %arg13[%c1_109, %c0_110, %c0_111] : memref<6x32x32xbf16, #tpu.memory_space<vmem>>, vector<1x32x32xbf16>
    %291 = vector.shape_cast %290 : vector<1x32x32xbf16> to vector<32x32xbf16>
    %cst_112 = arith.constant dense<0.000000e+00> : vector<8x32xf32>
    %292 = tpu.matmul %239, %291, %cst_112 {dimension_numbers = #tpu.dot_dimension_numbers<[1], [0], [0], [1], [0, 0, 1, 1], [], []>} : vector<8x32xbf16>, vector<32x32xbf16>, vector<8x32xf32> -> vector<8x32xf32>
    %cst_113 = arith.constant 2.500000e-01 : f32
    %293 = vector.broadcast %cst_113 : f32 to vector<8x32xf32>
    %294 = arith.mulf %292, %293 : vector<8x32xf32>
    %295 = arith.truncf %294 : vector<8x32xf32> to vector<8x32xbf16>
    %c1_114 = arith.constant 1 : index
    %c0_115 = arith.constant 0 : index
    %c0_116 = arith.constant 0 : index
    %296 = vector.load %arg14[%c1_114, %c0_115, %c0_116] : memref<6x32x32xbf16, #tpu.memory_space<vmem>>, vector<1x32x32xbf16>
    %297 = vector.shape_cast %296 : vector<1x32x32xbf16> to vector<32x32xbf16>
    %cst_117 = arith.constant dense<0.000000e+00> : vector<8x32xf32>
    %298 = tpu.matmul %264, %297, %cst_117 {dimension_numbers = #tpu.dot_dimension_numbers<[1], [0], [0], [1], [0, 0, 1, 1], [], []>} : vector<8x32xbf16>, vector<32x32xbf16>, vector<8x32xf32> -> vector<8x32xf32>
    %299 = arith.truncf %298 : vector<8x32xf32> to vector<8x32xbf16>
    %c1_118 = arith.constant 1 : index
    %c0_119 = arith.constant 0 : index
    %c0_120 = arith.constant 0 : index
    %300 = vector.load %arg15[%c1_118, %c0_119, %c0_120] : memref<6x32x32xbf16, #tpu.memory_space<vmem>>, vector<1x32x32xbf16>
    %301 = vector.shape_cast %300 : vector<1x32x32xbf16> to vector<32x32xbf16>
    %cst_121 = arith.constant dense<0.000000e+00> : vector<8x32xf32>
    %302 = tpu.matmul %289, %301, %cst_121 {dimension_numbers = #tpu.dot_dimension_numbers<[1], [0], [0], [1], [0, 0, 1, 1], [], []>} : vector<8x32xbf16>, vector<32x32xbf16>, vector<8x32xf32> -> vector<8x32xf32>
    %303 = arith.truncf %302 : vector<8x32xf32> to vector<8x32xbf16>
    %304 = vector.extract_strided_slice %295 {offsets = [0, 0], sizes = [8, 16], strides = [1, 1]} : vector<8x32xbf16> to vector<8x16xbf16>
    %305 = vector.extract_strided_slice %295 {offsets = [0, 16], sizes = [8, 16], strides = [1, 1]} : vector<8x32xbf16> to vector<8x16xbf16>
    %306 = vector.shape_cast %304 : vector<8x16xbf16> to vector<1x8x16xbf16>
    %307 = vector.shape_cast %305 : vector<8x16xbf16> to vector<1x8x16xbf16>
    %308 = tpu.concatenate %306, %307 in 0 : vector<1x8x16xbf16>, vector<1x8x16xbf16> -> vector<2x8x16xbf16>
    %309 = vector.extract_strided_slice %299 {offsets = [0, 0], sizes = [8, 16], strides = [1, 1]} : vector<8x32xbf16> to vector<8x16xbf16>
    %310 = vector.extract_strided_slice %299 {offsets = [0, 16], sizes = [8, 16], strides = [1, 1]} : vector<8x32xbf16> to vector<8x16xbf16>
    %311 = vector.shape_cast %309 : vector<8x16xbf16> to vector<1x8x16xbf16>
    %312 = vector.shape_cast %310 : vector<8x16xbf16> to vector<1x8x16xbf16>
    %313 = tpu.concatenate %311, %312 in 0 : vector<1x8x16xbf16>, vector<1x8x16xbf16> -> vector<2x8x16xbf16>
    %314 = vector.extract_strided_slice %303 {offsets = [0, 0], sizes = [8, 16], strides = [1, 1]} : vector<8x32xbf16> to vector<8x16xbf16>
    %315 = vector.extract_strided_slice %303 {offsets = [0, 16], sizes = [8, 16], strides = [1, 1]} : vector<8x32xbf16> to vector<8x16xbf16>
    %316 = vector.shape_cast %314 : vector<8x16xbf16> to vector<1x8x16xbf16>
    %317 = vector.shape_cast %315 : vector<8x16xbf16> to vector<1x8x16xbf16>
    %318 = tpu.concatenate %316, %317 in 0 : vector<1x8x16xbf16>, vector<1x8x16xbf16> -> vector<2x8x16xbf16>
    "tpu.trace_start"() <{level = 10 : i32, message = "hqd,hkd->hqk"}> : () -> ()
    %cst_122 = arith.constant dense<0.000000e+00> : vector<2x8x8xf32>
    %319 = tpu.matmul %308, %313, %cst_122 {dimension_numbers = #tpu.dot_dimension_numbers<[2], [2], [1], [1], [0, 0, 0, 1, 1, 1], [0], [0]>} : vector<2x8x16xbf16>, vector<2x8x16xbf16>, vector<2x8x8xf32> -> vector<2x8x8xf32>
    "tpu.trace_stop"() : () -> ()
    %320 = vector.shape_cast %41 : vector<8x8xf32> to vector<1x8x8xf32>
    %321 = vector.broadcast %320 : vector<1x8x8xf32> to vector<2x8x8xf32>
    %322 = arith.mulf %319, %321 : vector<2x8x8xf32>
    %cst_123 = arith.constant dense<0xFF800000> : vector<2x8xf32>
    %323 = vector.multi_reduction <maximumf>, %322, %cst_123 [2] : vector<2x8x8xf32> to vector<2x8xf32>
    %324 = vector.shape_cast %323 : vector<2x8xf32> to vector<2x8x1xf32>
    %325 = vector.broadcast %324 : vector<2x8x1xf32> to vector<2x8x8xf32>
    %326 = arith.subf %322, %325 : vector<2x8x8xf32>
    %327 = math.exp %326 : vector<2x8x8xf32>
    %328 = vector.broadcast %320 : vector<1x8x8xf32> to vector<2x8x8xf32>
    %329 = arith.mulf %327, %328 : vector<2x8x8xf32>
    %cst_124 = arith.constant dense<0.000000e+00> : vector<2x8xf32>
    %330 = vector.multi_reduction <add>, %329, %cst_124 [2] : vector<2x8x8xf32> to vector<2x8xf32>
    %331 = vector.shape_cast %330 : vector<2x8xf32> to vector<2x8x1xf32>
    %cst_125 = arith.constant 9.99999982E-14 : f32
    %332 = vector.broadcast %cst_125 : f32 to vector<2x8x1xf32>
    %333 = arith.addf %331, %332 : vector<2x8x1xf32>
    %334 = tpu.reciprocal %333 {approx = true} : vector<2x8x1xf32> -> vector<2x8x1xf32>
    %335 = vector.broadcast %334 : vector<2x8x1xf32> to vector<2x8x8xf32>
    %336 = arith.mulf %329, %335 : vector<2x8x8xf32>
    %c0_126 = arith.constant 0 : index
    %c0_127 = arith.constant 0 : index
    %c0_128 = arith.constant 0 : index
    %c0_129 = arith.constant 0 : index
    %337 = vector.load %arg29[%c0_126, %c0_127, %c0_128, %c0_129] : memref<2x1x8x8xf32, #tpu.memory_space<vmem>>, vector<2x1x8x8xf32>
    %338 = vector.shape_cast %337 : vector<2x1x8x8xf32> to vector<2x8x8xf32>
    %339 = vector.shape_cast %336 : vector<2x8x8xf32> to vector<2x1x8x8xf32>
    tpu.vector_store %arg29[%c0_126, %c0_127, %c0_128, %c0_129], %339 {strides = array<i32>} : memref<2x1x8x8xf32, #tpu.memory_space<vmem>>, vector<2x1x8x8xf32>,
    %340 = arith.truncf %336 : vector<2x8x8xf32> to vector<2x8x8xbf16>
    "tpu.trace_start"() <{level = 10 : i32, message = "hqk,hkd->hqd"}> : () -> ()
    %cst_130 = arith.constant dense<0.000000e+00> : vector<2x8x16xf32>
    %341 = tpu.matmul %340, %318, %cst_130 {dimension_numbers = #tpu.dot_dimension_numbers<[2], [1], [1], [2], [0, 0, 0, 1, 1, 2], [0], [0]>} : vector<2x8x8xbf16>, vector<2x8x16xbf16>, vector<2x8x16xf32> -> vector<2x8x16xf32>
    "tpu.trace_stop"() : () -> ()
    %342 = arith.truncf %341 : vector<2x8x16xf32> to vector<2x8x16xbf16>
    %c1_131 = arith.constant 1 : index
    %c0_132 = arith.constant 0 : index
    %c0_133 = arith.constant 0 : index
    %c0_134 = arith.constant 0 : index
    %343 = vector.load %arg16[%c1_131, %c0_132, %c0_133, %c0_134] : memref<6x2x16x32xbf16, #tpu.memory_space<vmem>>, vector<1x2x16x32xbf16>
    %344 = vector.shape_cast %343 : vector<1x2x16x32xbf16> to vector<2x16x32xbf16>
    "tpu.trace_start"() <{level = 10 : i32, message = "hqd,hdm->hqm"}> : () -> ()
    %cst_135 = arith.constant dense<0.000000e+00> : vector<2x8x32xf32>
    %345 = tpu.matmul %342, %344, %cst_135 {dimension_numbers = #tpu.dot_dimension_numbers<[2], [1], [1], [2], [0, 0, 0, 1, 1, 2], [0], [0]>} : vector<2x8x16xbf16>, vector<2x16x32xbf16>, vector<2x8x32xf32> -> vector<2x8x32xf32>
    "tpu.trace_stop"() : () -> ()
    %cst_136 = arith.constant dense<0.000000e+00> : vector<8x32xf32>
    %346 = vector.multi_reduction <add>, %345, %cst_136 [0] : vector<2x8x32xf32> to vector<8x32xf32>
    %c1_137 = arith.constant 1 : index
    %c0_138 = arith.constant 0 : index
    %c0_139 = arith.constant 0 : index
    %347 = vector.load %arg17[%c1_137, %c0_138, %c0_139] : memref<2x32x32xbf16, #tpu.memory_space<vmem>>, vector<1x32x32xbf16>
    %348 = vector.shape_cast %347 : vector<1x32x32xbf16> to vector<32x32xbf16>
    %cst_140 = arith.constant dense<0.000000e+00> : vector<8x32xf32>
    %349 = tpu.matmul %303, %348, %cst_140 {dimension_numbers = #tpu.dot_dimension_numbers<[1], [0], [0], [1], [0, 0, 1, 1], [], []>} : vector<8x32xbf16>, vector<32x32xbf16>, vector<8x32xf32> -> vector<8x32xf32>
    %c2 = arith.constant 2 : index
    %c0_141 = arith.constant 0 : index
    %c0_142 = arith.constant 0 : index
    %350 = vector.load %arg11[%c2, %c0_141, %c0_142] : memref<6x3x32xf32, #tpu.memory_space<vmem>>, vector<1x3x32xf32>
    %351 = vector.shape_cast %350 : vector<1x3x32xf32> to vector<3x32xf32>
    %c2_143 = arith.constant 2 : index
    %c0_144 = arith.constant 0 : index
    %c0_145 = arith.constant 0 : index
    %352 = vector.load %arg12[%c2_143, %c0_144, %c0_145] : memref<6x3x32xf32, #tpu.memory_space<vmem>>, vector<1x3x32xf32>
    %353 = vector.shape_cast %352 : vector<1x3x32xf32> to vector<3x32xf32>
    %354 = vector.extract_strided_slice %351 {offsets = [0, 0], sizes = [1, 32], strides = [1, 1]} : vector<3x32xf32> to vector<1x32xf32>
    %355 = vector.extract_strided_slice %353 {offsets = [0, 0], sizes = [1, 32], strides = [1, 1]} : vector<3x32xf32> to vector<1x32xf32>
    %cst_146 = arith.constant dense<0.000000e+00> : vector<8xf32>
    %356 = vector.multi_reduction <add>, %207, %cst_146 [1] : vector<8x32xf32> to vector<8xf32>
    %357 = vector.shape_cast %356 : vector<8xf32> to vector<8x1xf32>
    %cst_147 = arith.constant 3.200000e+01 : f32
    %358 = vector.broadcast %cst_147 : f32 to vector<8x1xf32>
    %359 = arith.divf %357, %358 : vector<8x1xf32>
    %360 = vector.broadcast %359 : vector<8x1xf32> to vector<8x32xf32>
    %361 = arith.subf %207, %360 : vector<8x32xf32>
    %362 = arith.mulf %361, %361 : vector<8x32xf32>
    %cst_148 = arith.constant dense<0.000000e+00> : vector<8xf32>
    %363 = vector.multi_reduction <add>, %362, %cst_148 [1] : vector<8x32xf32> to vector<8xf32>
    %364 = vector.shape_cast %363 : vector<8xf32> to vector<8x1xf32>
    %cst_149 = arith.constant 3.200000e+01 : f32
    %365 = vector.broadcast %cst_149 : f32 to vector<8x1xf32>
    %366 = arith.divf %364, %365 : vector<8x1xf32>
    %367 = vector.broadcast %359 : vector<8x1xf32> to vector<8x32xf32>
    %368 = arith.subf %207, %367 : vector<8x32xf32>
    %cst_150 = arith.constant 9.99999974E-6 : f32
    %369 = vector.broadcast %cst_150 : f32 to vector<8x1xf32>
    %370 = arith.addf %366, %369 : vector<8x1xf32>
    %371 = math.rsqrt %370 : vector<8x1xf32>
    %372 = vector.broadcast %371 : vector<8x1xf32> to vector<8x32xf32>
    %373 = arith.mulf %368, %372 : vector<8x32xf32>
    %374 = vector.broadcast %354 : vector<1x32xf32> to vector<8x32xf32>
    %375 = arith.mulf %373, %374 : vector<8x32xf32>
    %376 = vector.broadcast %355 : vector<1x32xf32> to vector<8x32xf32>
    %377 = arith.addf %375, %376 : vector<8x32xf32>
    %378 = arith.truncf %377 : vector<8x32xf32> to vector<8x32xbf16>
    %379 = vector.extract_strided_slice %351 {offsets = [1, 0], sizes = [1, 32], strides = [1, 1]} : vector<3x32xf32> to vector<1x32xf32>
    %380 = vector.extract_strided_slice %353 {offsets = [1, 0], sizes = [1, 32], strides = [1, 1]} : vector<3x32xf32> to vector<1x32xf32>
    %cst_151 = arith.constant dense<0.000000e+00> : vector<8xf32>
    %381 = vector.multi_reduction <add>, %346, %cst_151 [1] : vector<8x32xf32> to vector<8xf32>
    %382 = vector.shape_cast %381 : vector<8xf32> to vector<8x1xf32>
    %cst_152 = arith.constant 3.200000e+01 : f32
    %383 = vector.broadcast %cst_152 : f32 to vector<8x1xf32>
    %384 = arith.divf %382, %383 : vector<8x1xf32>
    %385 = vector.broadcast %384 : vector<8x1xf32> to vector<8x32xf32>
    %386 = arith.subf %346, %385 : vector<8x32xf32>
    %387 = arith.mulf %386, %386 : vector<8x32xf32>
    %cst_153 = arith.constant dense<0.000000e+00> : vector<8xf32>
    %388 = vector.multi_reduction <add>, %387, %cst_153 [1] : vector<8x32xf32> to vector<8xf32>
    %389 = vector.shape_cast %388 : vector<8xf32> to vector<8x1xf32>
    %cst_154 = arith.constant 3.200000e+01 : f32
    %390 = vector.broadcast %cst_154 : f32 to vector<8x1xf32>
    %391 = arith.divf %389, %390 : vector<8x1xf32>
    %392 = vector.broadcast %384 : vector<8x1xf32> to vector<8x32xf32>
    %393 = arith.subf %346, %392 : vector<8x32xf32>
    %cst_155 = arith.constant 9.99999974E-6 : f32
    %394 = vector.broadcast %cst_155 : f32 to vector<8x1xf32>
    %395 = arith.addf %391, %394 : vector<8x1xf32>
    %396 = math.rsqrt %395 : vector<8x1xf32>
    %397 = vector.broadcast %396 : vector<8x1xf32> to vector<8x32xf32>
    %398 = arith.mulf %393, %397 : vector<8x32xf32>
    %399 = vector.broadcast %379 : vector<1x32xf32> to vector<8x32xf32>
    %400 = arith.mulf %398, %399 : vector<8x32xf32>
    %401 = vector.broadcast %380 : vector<1x32xf32> to vector<8x32xf32>
    %402 = arith.addf %400, %401 : vector<8x32xf32>
    %403 = arith.truncf %402 : vector<8x32xf32> to vector<8x32xbf16>
    %404 = vector.extract_strided_slice %351 {offsets = [2, 0], sizes = [1, 32], strides = [1, 1]} : vector<3x32xf32> to vector<1x32xf32>
    %405 = vector.extract_strided_slice %353 {offsets = [2, 0], sizes = [1, 32], strides = [1, 1]} : vector<3x32xf32> to vector<1x32xf32>
    %cst_156 = arith.constant dense<0.000000e+00> : vector<8xf32>
    %406 = vector.multi_reduction <add>, %346, %cst_156 [1] : vector<8x32xf32> to vector<8xf32>
    %407 = vector.shape_cast %406 : vector<8xf32> to vector<8x1xf32>
    %cst_157 = arith.constant 3.200000e+01 : f32
    %408 = vector.broadcast %cst_157 : f32 to vector<8x1xf32>
    %409 = arith.divf %407, %408 : vector<8x1xf32>
    %410 = vector.broadcast %409 : vector<8x1xf32> to vector<8x32xf32>
    %411 = arith.subf %346, %410 : vector<8x32xf32>
    %412 = arith.mulf %411, %411 : vector<8x32xf32>
    %cst_158 = arith.constant dense<0.000000e+00> : vector<8xf32>
    %413 = vector.multi_reduction <add>, %412, %cst_158 [1] : vector<8x32xf32> to vector<8xf32>
    %414 = vector.shape_cast %413 : vector<8xf32> to vector<8x1xf32>
    %cst_159 = arith.constant 3.200000e+01 : f32
    %415 = vector.broadcast %cst_159 : f32 to vector<8x1xf32>
    %416 = arith.divf %414, %415 : vector<8x1xf32>
    %417 = vector.broadcast %409 : vector<8x1xf32> to vector<8x32xf32>
    %418 = arith.subf %346, %417 : vector<8x32xf32>
    %cst_160 = arith.constant 9.99999974E-6 : f32
    %419 = vector.broadcast %cst_160 : f32 to vector<8x1xf32>
    %420 = arith.addf %416, %419 : vector<8x1xf32>
    %421 = math.rsqrt %420 : vector<8x1xf32>
    %422 = vector.broadcast %421 : vector<8x1xf32> to vector<8x32xf32>
    %423 = arith.mulf %418, %422 : vector<8x32xf32>
    %424 = vector.broadcast %404 : vector<1x32xf32> to vector<8x32xf32>
    %425 = arith.mulf %423, %424 : vector<8x32xf32>
    %426 = vector.broadcast %405 : vector<1x32xf32> to vector<8x32xf32>
    %427 = arith.addf %425, %426 : vector<8x32xf32>
    %428 = arith.truncf %427 : vector<8x32xf32> to vector<8x32xbf16>
    %c2_161 = arith.constant 2 : index
    %c0_162 = arith.constant 0 : index
    %c0_163 = arith.constant 0 : index
    %429 = vector.load %arg13[%c2_161, %c0_162, %c0_163] : memref<6x32x32xbf16, #tpu.memory_space<vmem>>, vector<1x32x32xbf16>
    %430 = vector.shape_cast %429 : vector<1x32x32xbf16> to vector<32x32xbf16>
    %cst_164 = arith.constant dense<0.000000e+00> : vector<8x32xf32>
    %431 = tpu.matmul %378, %430, %cst_164 {dimension_numbers = #tpu.dot_dimension_numbers<[1], [0], [0], [1], [0, 0, 1, 1], [], []>} : vector<8x32xbf16>, vector<32x32xbf16>, vector<8x32xf32> -> vector<8x32xf32>
    %cst_165 = arith.constant 2.500000e-01 : f32
    %432 = vector.broadcast %cst_165 : f32 to vector<8x32xf32>
    %433 = arith.mulf %431, %432 : vector<8x32xf32>
    %434 = arith.truncf %433 : vector<8x32xf32> to vector<8x32xbf16>
    %c2_166 = arith.constant 2 : index
    %c0_167 = arith.constant 0 : index
    %c0_168 = arith.constant 0 : index
    %435 = vector.load %arg14[%c2_166, %c0_167, %c0_168] : memref<6x32x32xbf16, #tpu.memory_space<vmem>>, vector<1x32x32xbf16>
    %436 = vector.shape_cast %435 : vector<1x32x32xbf16> to vector<32x32xbf16>
    %cst_169 = arith.constant dense<0.000000e+00> : vector<8x32xf32>
    %437 = tpu.matmul %403, %436, %cst_169 {dimension_numbers = #tpu.dot_dimension_numbers<[1], [0], [0], [1], [0, 0, 1, 1], [], []>} : vector<8x32xbf16>, vector<32x32xbf16>, vector<8x32xf32> -> vector<8x32xf32>
    %438 = arith.truncf %437 : vector<8x32xf32> to vector<8x32xbf16>
    %c2_170 = arith.constant 2 : index
    %c0_171 = arith.constant 0 : index
    %c0_172 = arith.constant 0 : index
    %439 = vector.load %arg15[%c2_170, %c0_171, %c0_172] : memref<6x32x32xbf16, #tpu.memory_space<vmem>>, vector<1x32x32xbf16>
    %440 = vector.shape_cast %439 : vector<1x32x32xbf16> to vector<32x32xbf16>
    %cst_173 = arith.constant dense<0.000000e+00> : vector<8x32xf32>
    %441 = tpu.matmul %428, %440, %cst_173 {dimension_numbers = #tpu.dot_dimension_numbers<[1], [0], [0], [1], [0, 0, 1, 1], [], []>} : vector<8x32xbf16>, vector<32x32xbf16>, vector<8x32xf32> -> vector<8x32xf32>
    %442 = arith.truncf %441 : vector<8x32xf32> to vector<8x32xbf16>
    %443 = vector.extract_strided_slice %434 {offsets = [0, 0], sizes = [8, 16], strides = [1, 1]} : vector<8x32xbf16> to vector<8x16xbf16>
    %444 = vector.extract_strided_slice %434 {offsets = [0, 16], sizes = [8, 16], strides = [1, 1]} : vector<8x32xbf16> to vector<8x16xbf16>
    %445 = vector.shape_cast %443 : vector<8x16xbf16> to vector<1x8x16xbf16>
    %446 = vector.shape_cast %444 : vector<8x16xbf16> to vector<1x8x16xbf16>
    %447 = tpu.concatenate %445, %446 in 0 : vector<1x8x16xbf16>, vector<1x8x16xbf16> -> vector<2x8x16xbf16>
    %448 = vector.extract_strided_slice %438 {offsets = [0, 0], sizes = [8, 16], strides = [1, 1]} : vector<8x32xbf16> to vector<8x16xbf16>
    %449 = vector.extract_strided_slice %438 {offsets = [0, 16], sizes = [8, 16], strides = [1, 1]} : vector<8x32xbf16> to vector<8x16xbf16>
    %450 = vector.shape_cast %448 : vector<8x16xbf16> to vector<1x8x16xbf16>
    %451 = vector.shape_cast %449 : vector<8x16xbf16> to vector<1x8x16xbf16>
    %452 = tpu.concatenate %450, %451 in 0 : vector<1x8x16xbf16>, vector<1x8x16xbf16> -> vector<2x8x16xbf16>
    %453 = vector.extract_strided_slice %442 {offsets = [0, 0], sizes = [8, 16], strides = [1, 1]} : vector<8x32xbf16> to vector<8x16xbf16>
    %454 = vector.extract_strided_slice %442 {offsets = [0, 16], sizes = [8, 16], strides = [1, 1]} : vector<8x32xbf16> to vector<8x16xbf16>
    %455 = vector.shape_cast %453 : vector<8x16xbf16> to vector<1x8x16xbf16>
    %456 = vector.shape_cast %454 : vector<8x16xbf16> to vector<1x8x16xbf16>
    %457 = tpu.concatenate %455, %456 in 0 : vector<1x8x16xbf16>, vector<1x8x16xbf16> -> vector<2x8x16xbf16>
    "tpu.trace_start"() <{level = 10 : i32, message = "hqd,hkd->hqk"}> : () -> ()
    %cst_174 = arith.constant dense<0.000000e+00> : vector<2x8x8xf32>
    %458 = tpu.matmul %447, %452, %cst_174 {dimension_numbers = #tpu.dot_dimension_numbers<[2], [2], [1], [1], [0, 0, 0, 1, 1, 1], [0], [0]>} : vector<2x8x16xbf16>, vector<2x8x16xbf16>, vector<2x8x8xf32> -> vector<2x8x8xf32>
    "tpu.trace_stop"() : () -> ()
    %459 = vector.shape_cast %56 : vector<8x8xf32> to vector<1x8x8xf32>
    %460 = vector.broadcast %459 : vector<1x8x8xf32> to vector<2x8x8xf32>
    %461 = arith.mulf %458, %460 : vector<2x8x8xf32>
    %cst_175 = arith.constant dense<0xFF800000> : vector<2x8xf32>
    %462 = vector.multi_reduction <maximumf>, %461, %cst_175 [2] : vector<2x8x8xf32> to vector<2x8xf32>
    %463 = vector.shape_cast %462 : vector<2x8xf32> to vector<2x8x1xf32>
    %464 = vector.broadcast %463 : vector<2x8x1xf32> to vector<2x8x8xf32>
    %465 = arith.subf %461, %464 : vector<2x8x8xf32>
    %466 = math.exp %465 : vector<2x8x8xf32>
    %467 = vector.broadcast %459 : vector<1x8x8xf32> to vector<2x8x8xf32>
    %468 = arith.mulf %466, %467 : vector<2x8x8xf32>
    %cst_176 = arith.constant dense<0.000000e+00> : vector<2x8xf32>
    %469 = vector.multi_reduction <add>, %468, %cst_176 [2] : vector<2x8x8xf32> to vector<2x8xf32>
    %470 = vector.shape_cast %469 : vector<2x8xf32> to vector<2x8x1xf32>
    %cst_177 = arith.constant 9.99999982E-14 : f32
    %471 = vector.broadcast %cst_177 : f32 to vector<2x8x1xf32>
    %472 = arith.addf %470, %471 : vector<2x8x1xf32>
    %473 = tpu.reciprocal %472 {approx = true} : vector<2x8x1xf32> -> vector<2x8x1xf32>
    %474 = vector.broadcast %473 : vector<2x8x1xf32> to vector<2x8x8xf32>
    %475 = arith.mulf %468, %474 : vector<2x8x8xf32>
    %c0_178 = arith.constant 0 : index
    %c0_179 = arith.constant 0 : index
    %c0_180 = arith.constant 0 : index
    %c0_181 = arith.constant 0 : index
    %476 = vector.load %arg32[%c0_178, %c0_179, %c0_180, %c0_181] : memref<2x1x8x8xf32, #tpu.memory_space<vmem>>, vector<2x1x8x8xf32>
    %477 = vector.shape_cast %476 : vector<2x1x8x8xf32> to vector<2x8x8xf32>
    %478 = vector.shape_cast %475 : vector<2x8x8xf32> to vector<2x1x8x8xf32>
    tpu.vector_store %arg32[%c0_178, %c0_179, %c0_180, %c0_181], %478 {strides = array<i32>} : memref<2x1x8x8xf32, #tpu.memory_space<vmem>>, vector<2x1x8x8xf32>,
    %479 = arith.truncf %475 : vector<2x8x8xf32> to vector<2x8x8xbf16>
    "tpu.trace_start"() <{level = 10 : i32, message = "hqk,hkd->hqd"}> : () -> ()
    %cst_182 = arith.constant dense<0.000000e+00> : vector<2x8x16xf32>
    %480 = tpu.matmul %479, %457, %cst_182 {dimension_numbers = #tpu.dot_dimension_numbers<[2], [1], [1], [2], [0, 0, 0, 1, 1, 2], [0], [0]>} : vector<2x8x8xbf16>, vector<2x8x16xbf16>, vector<2x8x16xf32> -> vector<2x8x16xf32>
    "tpu.trace_stop"() : () -> ()
    %481 = arith.truncf %480 : vector<2x8x16xf32> to vector<2x8x16xbf16>
    %c2_183 = arith.constant 2 : index
    %c0_184 = arith.constant 0 : index
    %c0_185 = arith.constant 0 : index
    %c0_186 = arith.constant 0 : index
    %482 = vector.load %arg16[%c2_183, %c0_184, %c0_185, %c0_186] : memref<6x2x16x32xbf16, #tpu.memory_space<vmem>>, vector<1x2x16x32xbf16>
    %483 = vector.shape_cast %482 : vector<1x2x16x32xbf16> to vector<2x16x32xbf16>
    "tpu.trace_start"() <{level = 10 : i32, message = "hqd,hdm->hqm"}> : () -> ()
    %cst_187 = arith.constant dense<0.000000e+00> : vector<2x8x32xf32>
    %484 = tpu.matmul %481, %483, %cst_187 {dimension_numbers = #tpu.dot_dimension_numbers<[2], [1], [1], [2], [0, 0, 0, 1, 1, 2], [0], [0]>} : vector<2x8x16xbf16>, vector<2x16x32xbf16>, vector<2x8x32xf32> -> vector<2x8x32xf32>
    "tpu.trace_stop"() : () -> ()
    %cst_188 = arith.constant dense<0.000000e+00> : vector<8x32xf32>
    %485 = vector.multi_reduction <add>, %484, %cst_188 [0] : vector<2x8x32xf32> to vector<8x32xf32>
    %c3 = arith.constant 3 : index
    %c0_189 = arith.constant 0 : index
    %c0_190 = arith.constant 0 : index
    %486 = vector.load %arg11[%c3, %c0_189, %c0_190] : memref<6x3x32xf32, #tpu.memory_space<vmem>>, vector<1x3x32xf32>
    %487 = vector.shape_cast %486 : vector<1x3x32xf32> to vector<3x32xf32>
    %c3_191 = arith.constant 3 : index
    %c0_192 = arith.constant 0 : index
    %c0_193 = arith.constant 0 : index
    %488 = vector.load %arg12[%c3_191, %c0_192, %c0_193] : memref<6x3x32xf32, #tpu.memory_space<vmem>>, vector<1x3x32xf32>
    %489 = vector.shape_cast %488 : vector<1x3x32xf32> to vector<3x32xf32>
    %490 = vector.extract_strided_slice %487 {offsets = [0, 0], sizes = [1, 32], strides = [1, 1]} : vector<3x32xf32> to vector<1x32xf32>
    %491 = vector.extract_strided_slice %489 {offsets = [0, 0], sizes = [1, 32], strides = [1, 1]} : vector<3x32xf32> to vector<1x32xf32>
    %cst_194 = arith.constant dense<0.000000e+00> : vector<8xf32>
    %492 = vector.multi_reduction <add>, %346, %cst_194 [1] : vector<8x32xf32> to vector<8xf32>
    %493 = vector.shape_cast %492 : vector<8xf32> to vector<8x1xf32>
    %cst_195 = arith.constant 3.200000e+01 : f32
    %494 = vector.broadcast %cst_195 : f32 to vector<8x1xf32>
    %495 = arith.divf %493, %494 : vector<8x1xf32>
    %496 = vector.broadcast %495 : vector<8x1xf32> to vector<8x32xf32>
    %497 = arith.subf %346, %496 : vector<8x32xf32>
    %498 = arith.mulf %497, %497 : vector<8x32xf32>
    %cst_196 = arith.constant dense<0.000000e+00> : vector<8xf32>
    %499 = vector.multi_reduction <add>, %498, %cst_196 [1] : vector<8x32xf32> to vector<8xf32>
    %500 = vector.shape_cast %499 : vector<8xf32> to vector<8x1xf32>
    %cst_197 = arith.constant 3.200000e+01 : f32
    %501 = vector.broadcast %cst_197 : f32 to vector<8x1xf32>
    %502 = arith.divf %500, %501 : vector<8x1xf32>
    %503 = vector.broadcast %495 : vector<8x1xf32> to vector<8x32xf32>
    %504 = arith.subf %346, %503 : vector<8x32xf32>
    %cst_198 = arith.constant 9.99999974E-6 : f32
    %505 = vector.broadcast %cst_198 : f32 to vector<8x1xf32>
    %506 = arith.addf %502, %505 : vector<8x1xf32>
    %507 = math.rsqrt %506 : vector<8x1xf32>
    %508 = vector.broadcast %507 : vector<8x1xf32> to vector<8x32xf32>
    %509 = arith.mulf %504, %508 : vector<8x32xf32>
    %510 = vector.broadcast %490 : vector<1x32xf32> to vector<8x32xf32>
    %511 = arith.mulf %509, %510 : vector<8x32xf32>
    %512 = vector.broadcast %491 : vector<1x32xf32> to vector<8x32xf32>
    %513 = arith.addf %511, %512 : vector<8x32xf32>
    %514 = arith.truncf %513 : vector<8x32xf32> to vector<8x32xbf16>
    %515 = vector.extract_strided_slice %487 {offsets = [1, 0], sizes = [1, 32], strides = [1, 1]} : vector<3x32xf32> to vector<1x32xf32>
    %516 = vector.extract_strided_slice %489 {offsets = [1, 0], sizes = [1, 32], strides = [1, 1]} : vector<3x32xf32> to vector<1x32xf32>
    %cst_199 = arith.constant dense<0.000000e+00> : vector<8xf32>
    %517 = vector.multi_reduction <add>, %207, %cst_199 [1] : vector<8x32xf32> to vector<8xf32>
    %518 = vector.shape_cast %517 : vector<8xf32> to vector<8x1xf32>
    %cst_200 = arith.constant 3.200000e+01 : f32
    %519 = vector.broadcast %cst_200 : f32 to vector<8x1xf32>
    %520 = arith.divf %518, %519 : vector<8x1xf32>
    %521 = vector.broadcast %520 : vector<8x1xf32> to vector<8x32xf32>
    %522 = arith.subf %207, %521 : vector<8x32xf32>
    %523 = arith.mulf %522, %522 : vector<8x32xf32>
    %cst_201 = arith.constant dense<0.000000e+00> : vector<8xf32>
    %524 = vector.multi_reduction <add>, %523, %cst_201 [1] : vector<8x32xf32> to vector<8xf32>
    %525 = vector.shape_cast %524 : vector<8xf32> to vector<8x1xf32>
    %cst_202 = arith.constant 3.200000e+01 : f32
    %526 = vector.broadcast %cst_202 : f32 to vector<8x1xf32>
    %527 = arith.divf %525, %526 : vector<8x1xf32>
    %528 = vector.broadcast %520 : vector<8x1xf32> to vector<8x32xf32>
    %529 = arith.subf %207, %528 : vector<8x32xf32>
    %cst_203 = arith.constant 9.99999974E-6 : f32
    %530 = vector.broadcast %cst_203 : f32 to vector<8x1xf32>
    %531 = arith.addf %527, %530 : vector<8x1xf32>
    %532 = math.rsqrt %531 : vector<8x1xf32>
    %533 = vector.broadcast %532 : vector<8x1xf32> to vector<8x32xf32>
    %534 = arith.mulf %529, %533 : vector<8x32xf32>
    %535 = vector.broadcast %515 : vector<1x32xf32> to vector<8x32xf32>
    %536 = arith.mulf %534, %535 : vector<8x32xf32>
    %537 = vector.broadcast %516 : vector<1x32xf32> to vector<8x32xf32>
    %538 = arith.addf %536, %537 : vector<8x32xf32>
    %539 = arith.truncf %538 : vector<8x32xf32> to vector<8x32xbf16>
    %540 = vector.extract_strided_slice %487 {offsets = [2, 0], sizes = [1, 32], strides = [1, 1]} : vector<3x32xf32> to vector<1x32xf32>
    %541 = vector.extract_strided_slice %489 {offsets = [2, 0], sizes = [1, 32], strides = [1, 1]} : vector<3x32xf32> to vector<1x32xf32>
    %cst_204 = arith.constant dense<0.000000e+00> : vector<8xf32>
    %542 = vector.multi_reduction <add>, %207, %cst_204 [1] : vector<8x32xf32> to vector<8xf32>
    %543 = vector.shape_cast %542 : vector<8xf32> to vector<8x1xf32>
    %cst_205 = arith.constant 3.200000e+01 : f32
    %544 = vector.broadcast %cst_205 : f32 to vector<8x1xf32>
    %545 = arith.divf %543, %544 : vector<8x1xf32>
    %546 = vector.broadcast %545 : vector<8x1xf32> to vector<8x32xf32>
    %547 = arith.subf %207, %546 : vector<8x32xf32>
    %548 = arith.mulf %547, %547 : vector<8x32xf32>
    %cst_206 = arith.constant dense<0.000000e+00> : vector<8xf32>
    %549 = vector.multi_reduction <add>, %548, %cst_206 [1] : vector<8x32xf32> to vector<8xf32>
    %550 = vector.shape_cast %549 : vector<8xf32> to vector<8x1xf32>
    %cst_207 = arith.constant 3.200000e+01 : f32
    %551 = vector.broadcast %cst_207 : f32 to vector<8x1xf32>
    %552 = arith.divf %550, %551 : vector<8x1xf32>
    %553 = vector.broadcast %545 : vector<8x1xf32> to vector<8x32xf32>
    %554 = arith.subf %207, %553 : vector<8x32xf32>
    %cst_208 = arith.constant 9.99999974E-6 : f32
    %555 = vector.broadcast %cst_208 : f32 to vector<8x1xf32>
    %556 = arith.addf %552, %555 : vector<8x1xf32>
    %557 = math.rsqrt %556 : vector<8x1xf32>
    %558 = vector.broadcast %557 : vector<8x1xf32> to vector<8x32xf32>
    %559 = arith.mulf %554, %558 : vector<8x32xf32>
    %560 = vector.broadcast %540 : vector<1x32xf32> to vector<8x32xf32>
    %561 = arith.mulf %559, %560 : vector<8x32xf32>
    %562 = vector.broadcast %541 : vector<1x32xf32> to vector<8x32xf32>
    %563 = arith.addf %561, %562 : vector<8x32xf32>
    %564 = arith.truncf %563 : vector<8x32xf32> to vector<8x32xbf16>
    %c3_209 = arith.constant 3 : index
    %c0_210 = arith.constant 0 : index
    %c0_211 = arith.constant 0 : index
    %565 = vector.load %arg13[%c3_209, %c0_210, %c0_211] : memref<6x32x32xbf16, #tpu.memory_space<vmem>>, vector<1x32x32xbf16>
    %566 = vector.shape_cast %565 : vector<1x32x32xbf16> to vector<32x32xbf16>
    %cst_212 = arith.constant dense<0.000000e+00> : vector<8x32xf32>
    %567 = tpu.matmul %514, %566, %cst_212 {dimension_numbers = #tpu.dot_dimension_numbers<[1], [0], [0], [1], [0, 0, 1, 1], [], []>} : vector<8x32xbf16>, vector<32x32xbf16>, vector<8x32xf32> -> vector<8x32xf32>
    %cst_213 = arith.constant 2.500000e-01 : f32
    %568 = vector.broadcast %cst_213 : f32 to vector<8x32xf32>
    %569 = arith.mulf %567, %568 : vector<8x32xf32>
    %570 = arith.truncf %569 : vector<8x32xf32> to vector<8x32xbf16>
    %c3_214 = arith.constant 3 : index
    %c0_215 = arith.constant 0 : index
    %c0_216 = arith.constant 0 : index
    %571 = vector.load %arg14[%c3_214, %c0_215, %c0_216] : memref<6x32x32xbf16, #tpu.memory_space<vmem>>, vector<1x32x32xbf16>
    %572 = vector.shape_cast %571 : vector<1x32x32xbf16> to vector<32x32xbf16>
    %cst_217 = arith.constant dense<0.000000e+00> : vector<8x32xf32>
    %573 = tpu.matmul %539, %572, %cst_217 {dimension_numbers = #tpu.dot_dimension_numbers<[1], [0], [0], [1], [0, 0, 1, 1], [], []>} : vector<8x32xbf16>, vector<32x32xbf16>, vector<8x32xf32> -> vector<8x32xf32>
    %574 = arith.truncf %573 : vector<8x32xf32> to vector<8x32xbf16>
    %c3_218 = arith.constant 3 : index
    %c0_219 = arith.constant 0 : index
    %c0_220 = arith.constant 0 : index
    %575 = vector.load %arg15[%c3_218, %c0_219, %c0_220] : memref<6x32x32xbf16, #tpu.memory_space<vmem>>, vector<1x32x32xbf16>
    %576 = vector.shape_cast %575 : vector<1x32x32xbf16> to vector<32x32xbf16>
    %cst_221 = arith.constant dense<0.000000e+00> : vector<8x32xf32>
    %577 = tpu.matmul %564, %576, %cst_221 {dimension_numbers = #tpu.dot_dimension_numbers<[1], [0], [0], [1], [0, 0, 1, 1], [], []>} : vector<8x32xbf16>, vector<32x32xbf16>, vector<8x32xf32> -> vector<8x32xf32>
    %578 = arith.truncf %577 : vector<8x32xf32> to vector<8x32xbf16>
    %579 = vector.extract_strided_slice %570 {offsets = [0, 0], sizes = [8, 16], strides = [1, 1]} : vector<8x32xbf16> to vector<8x16xbf16>
    %580 = vector.extract_strided_slice %570 {offsets = [0, 16], sizes = [8, 16], strides = [1, 1]} : vector<8x32xbf16> to vector<8x16xbf16>
    %581 = vector.shape_cast %579 : vector<8x16xbf16> to vector<1x8x16xbf16>
    %582 = vector.shape_cast %580 : vector<8x16xbf16> to vector<1x8x16xbf16>
    %583 = tpu.concatenate %581, %582 in 0 : vector<1x8x16xbf16>, vector<1x8x16xbf16> -> vector<2x8x16xbf16>
    %584 = vector.extract_strided_slice %574 {offsets = [0, 0], sizes = [8, 16], strides = [1, 1]} : vector<8x32xbf16> to vector<8x16xbf16>
    %585 = vector.extract_strided_slice %574 {offsets = [0, 16], sizes = [8, 16], strides = [1, 1]} : vector<8x32xbf16> to vector<8x16xbf16>
    %586 = vector.shape_cast %584 : vector<8x16xbf16> to vector<1x8x16xbf16>
    %587 = vector.shape_cast %585 : vector<8x16xbf16> to vector<1x8x16xbf16>
    %588 = tpu.concatenate %586, %587 in 0 : vector<1x8x16xbf16>, vector<1x8x16xbf16> -> vector<2x8x16xbf16>
    %589 = vector.extract_strided_slice %578 {offsets = [0, 0], sizes = [8, 16], strides = [1, 1]} : vector<8x32xbf16> to vector<8x16xbf16>
    %590 = vector.extract_strided_slice %578 {offsets = [0, 16], sizes = [8, 16], strides = [1, 1]} : vector<8x32xbf16> to vector<8x16xbf16>
    %591 = vector.shape_cast %589 : vector<8x16xbf16> to vector<1x8x16xbf16>
    %592 = vector.shape_cast %590 : vector<8x16xbf16> to vector<1x8x16xbf16>
    %593 = tpu.concatenate %591, %592 in 0 : vector<1x8x16xbf16>, vector<1x8x16xbf16> -> vector<2x8x16xbf16>
    "tpu.trace_start"() <{level = 10 : i32, message = "hqd,hkd->hqk"}> : () -> ()
    %cst_222 = arith.constant dense<0.000000e+00> : vector<2x8x8xf32>
    %594 = tpu.matmul %583, %588, %cst_222 {dimension_numbers = #tpu.dot_dimension_numbers<[2], [2], [1], [1], [0, 0, 0, 1, 1, 1], [0], [0]>} : vector<2x8x16xbf16>, vector<2x8x16xbf16>, vector<2x8x8xf32> -> vector<2x8x8xf32>
    "tpu.trace_stop"() : () -> ()
    %595 = vector.shape_cast %71 : vector<8x8xf32> to vector<1x8x8xf32>
    %596 = vector.broadcast %595 : vector<1x8x8xf32> to vector<2x8x8xf32>
    %597 = arith.mulf %594, %596 : vector<2x8x8xf32>
    %cst_223 = arith.constant dense<0xFF800000> : vector<2x8xf32>
    %598 = vector.multi_reduction <maximumf>, %597, %cst_223 [2] : vector<2x8x8xf32> to vector<2x8xf32>
    %599 = vector.shape_cast %598 : vector<2x8xf32> to vector<2x8x1xf32>
    %600 = vector.broadcast %599 : vector<2x8x1xf32> to vector<2x8x8xf32>
    %601 = arith.subf %597, %600 : vector<2x8x8xf32>
    %602 = math.exp %601 : vector<2x8x8xf32>
    %603 = vector.broadcast %595 : vector<1x8x8xf32> to vector<2x8x8xf32>
    %604 = arith.mulf %602, %603 : vector<2x8x8xf32>
    %cst_224 = arith.constant dense<0.000000e+00> : vector<2x8xf32>
    %605 = vector.multi_reduction <add>, %604, %cst_224 [2] : vector<2x8x8xf32> to vector<2x8xf32>
    %606 = vector.shape_cast %605 : vector<2x8xf32> to vector<2x8x1xf32>
    %cst_225 = arith.constant 9.99999982E-14 : f32
    %607 = vector.broadcast %cst_225 : f32 to vector<2x8x1xf32>
    %608 = arith.addf %606, %607 : vector<2x8x1xf32>
    %609 = tpu.reciprocal %608 {approx = true} : vector<2x8x1xf32> -> vector<2x8x1xf32>
    %610 = vector.broadcast %609 : vector<2x8x1xf32> to vector<2x8x8xf32>
    %611 = arith.mulf %604, %610 : vector<2x8x8xf32>
    %c0_226 = arith.constant 0 : index
    %c0_227 = arith.constant 0 : index
    %c0_228 = arith.constant 0 : index
    %c0_229 = arith.constant 0 : index
    %612 = vector.load %arg33[%c0_226, %c0_227, %c0_228, %c0_229] : memref<2x1x8x8xf32, #tpu.memory_space<vmem>>, vector<2x1x8x8xf32>
    %613 = vector.shape_cast %612 : vector<2x1x8x8xf32> to vector<2x8x8xf32>
    %614 = vector.shape_cast %611 : vector<2x8x8xf32> to vector<2x1x8x8xf32>
    tpu.vector_store %arg33[%c0_226, %c0_227, %c0_228, %c0_229], %614 {strides = array<i32>} : memref<2x1x8x8xf32, #tpu.memory_space<vmem>>, vector<2x1x8x8xf32>,
    %615 = arith.truncf %611 : vector<2x8x8xf32> to vector<2x8x8xbf16>
    "tpu.trace_start"() <{level = 10 : i32, message = "hqk,hkd->hqd"}> : () -> ()
    %cst_230 = arith.constant dense<0.000000e+00> : vector<2x8x16xf32>
    %616 = tpu.matmul %615, %593, %cst_230 {dimension_numbers = #tpu.dot_dimension_numbers<[2], [1], [1], [2], [0, 0, 0, 1, 1, 2], [0], [0]>} : vector<2x8x8xbf16>, vector<2x8x16xbf16>, vector<2x8x16xf32> -> vector<2x8x16xf32>
    "tpu.trace_stop"() : () -> ()
    %617 = arith.truncf %616 : vector<2x8x16xf32> to vector<2x8x16xbf16>
    %c3_231 = arith.constant 3 : index
    %c0_232 = arith.constant 0 : index
    %c0_233 = arith.constant 0 : index
    %c0_234 = arith.constant 0 : index
    %618 = vector.load %arg16[%c3_231, %c0_232, %c0_233, %c0_234] : memref<6x2x16x32xbf16, #tpu.memory_space<vmem>>, vector<1x2x16x32xbf16>
    %619 = vector.shape_cast %618 : vector<1x2x16x32xbf16> to vector<2x16x32xbf16>
    "tpu.trace_start"() <{level = 10 : i32, message = "hqd,hdm->hqm"}> : () -> ()
    %cst_235 = arith.constant dense<0.000000e+00> : vector<2x8x32xf32>
    %620 = tpu.matmul %617, %619, %cst_235 {dimension_numbers = #tpu.dot_dimension_numbers<[2], [1], [1], [2], [0, 0, 0, 1, 1, 2], [0], [0]>} : vector<2x8x16xbf16>, vector<2x16x32xbf16>, vector<2x8x32xf32> -> vector<2x8x32xf32>
    "tpu.trace_stop"() : () -> ()
    %cst_236 = arith.constant dense<0.000000e+00> : vector<8x32xf32>
    %621 = vector.multi_reduction <add>, %620, %cst_236 [0] : vector<2x8x32xf32> to vector<8x32xf32>
    %c4 = arith.constant 4 : index
    %c0_237 = arith.constant 0 : index
    %c0_238 = arith.constant 0 : index
    %622 = vector.load %arg11[%c4, %c0_237, %c0_238] : memref<6x3x32xf32, #tpu.memory_space<vmem>>, vector<1x3x32xf32>
    %623 = vector.shape_cast %622 : vector<1x3x32xf32> to vector<3x32xf32>
    %c4_239 = arith.constant 4 : index
    %c0_240 = arith.constant 0 : index
    %c0_241 = arith.constant 0 : index
    %624 = vector.load %arg12[%c4_239, %c0_240, %c0_241] : memref<6x3x32xf32, #tpu.memory_space<vmem>>, vector<1x3x32xf32>
    %625 = vector.shape_cast %624 : vector<1x3x32xf32> to vector<3x32xf32>
    %626 = vector.extract_strided_slice %623 {offsets = [0, 0], sizes = [1, 32], strides = [1, 1]} : vector<3x32xf32> to vector<1x32xf32>
    %627 = vector.extract_strided_slice %625 {offsets = [0, 0], sizes = [1, 32], strides = [1, 1]} : vector<3x32xf32> to vector<1x32xf32>
    %cst_242 = arith.constant dense<0.000000e+00> : vector<8xf32>
    %628 = vector.multi_reduction <add>, %485, %cst_242 [1] : vector<8x32xf32> to vector<8xf32>
    %629 = vector.shape_cast %628 : vector<8xf32> to vector<8x1xf32>
    %cst_243 = arith.constant 3.200000e+01 : f32
    %630 = vector.broadcast %cst_243 : f32 to vector<8x1xf32>
    %631 = arith.divf %629, %630 : vector<8x1xf32>
    %632 = vector.broadcast %631 : vector<8x1xf32> to vector<8x32xf32>
    %633 = arith.subf %485, %632 : vector<8x32xf32>
    %634 = arith.mulf %633, %633 : vector<8x32xf32>
    %cst_244 = arith.constant dense<0.000000e+00> : vector<8xf32>
    %635 = vector.multi_reduction <add>, %634, %cst_244 [1] : vector<8x32xf32> to vector<8xf32>
    %636 = vector.shape_cast %635 : vector<8xf32> to vector<8x1xf32>
    %cst_245 = arith.constant 3.200000e+01 : f32
    %637 = vector.broadcast %cst_245 : f32 to vector<8x1xf32>
    %638 = arith.divf %636, %637 : vector<8x1xf32>
    %639 = vector.broadcast %631 : vector<8x1xf32> to vector<8x32xf32>
    %640 = arith.subf %485, %639 : vector<8x32xf32>
    %cst_246 = arith.constant 9.99999974E-6 : f32
    %641 = vector.broadcast %cst_246 : f32 to vector<8x1xf32>
    %642 = arith.addf %638, %641 : vector<8x1xf32>
    %643 = math.rsqrt %642 : vector<8x1xf32>
    %644 = vector.broadcast %643 : vector<8x1xf32> to vector<8x32xf32>
    %645 = arith.mulf %640, %644 : vector<8x32xf32>
    %646 = vector.broadcast %626 : vector<1x32xf32> to vector<8x32xf32>
    %647 = arith.mulf %645, %646 : vector<8x32xf32>
    %648 = vector.broadcast %627 : vector<1x32xf32> to vector<8x32xf32>
    %649 = arith.addf %647, %648 : vector<8x32xf32>
    %650 = arith.truncf %649 : vector<8x32xf32> to vector<8x32xbf16>
    %651 = vector.extract_strided_slice %623 {offsets = [1, 0], sizes = [1, 32], strides = [1, 1]} : vector<3x32xf32> to vector<1x32xf32>
    %652 = vector.extract_strided_slice %625 {offsets = [1, 0], sizes = [1, 32], strides = [1, 1]} : vector<3x32xf32> to vector<1x32xf32>
    %cst_247 = arith.constant dense<0.000000e+00> : vector<8xf32>
    %653 = vector.multi_reduction <add>, %485, %cst_247 [1] : vector<8x32xf32> to vector<8xf32>
    %654 = vector.shape_cast %653 : vector<8xf32> to vector<8x1xf32>
    %cst_248 = arith.constant 3.200000e+01 : f32
    %655 = vector.broadcast %cst_248 : f32 to vector<8x1xf32>
    %656 = arith.divf %654, %655 : vector<8x1xf32>
    %657 = vector.broadcast %656 : vector<8x1xf32> to vector<8x32xf32>
    %658 = arith.subf %485, %657 : vector<8x32xf32>
    %659 = arith.mulf %658, %658 : vector<8x32xf32>
    %cst_249 = arith.constant dense<0.000000e+00> : vector<8xf32>
    %660 = vector.multi_reduction <add>, %659, %cst_249 [1] : vector<8x32xf32> to vector<8xf32>
    %661 = vector.shape_cast %660 : vector<8xf32> to vector<8x1xf32>
    %cst_250 = arith.constant 3.200000e+01 : f32
    %662 = vector.broadcast %cst_250 : f32 to vector<8x1xf32>
    %663 = arith.divf %661, %662 : vector<8x1xf32>
    %664 = vector.broadcast %656 : vector<8x1xf32> to vector<8x32xf32>
    %665 = arith.subf %485, %664 : vector<8x32xf32>
    %cst_251 = arith.constant 9.99999974E-6 : f32
    %666 = vector.broadcast %cst_251 : f32 to vector<8x1xf32>
    %667 = arith.addf %663, %666 : vector<8x1xf32>
    %668 = math.rsqrt %667 : vector<8x1xf32>
    %669 = vector.broadcast %668 : vector<8x1xf32> to vector<8x32xf32>
    %670 = arith.mulf %665, %669 : vector<8x32xf32>
    %671 = vector.broadcast %651 : vector<1x32xf32> to vector<8x32xf32>
    %672 = arith.mulf %670, %671 : vector<8x32xf32>
    %673 = vector.broadcast %652 : vector<1x32xf32> to vector<8x32xf32>
    %674 = arith.addf %672, %673 : vector<8x32xf32>
    %675 = arith.truncf %674 : vector<8x32xf32> to vector<8x32xbf16>
    %676 = vector.extract_strided_slice %623 {offsets = [2, 0], sizes = [1, 32], strides = [1, 1]} : vector<3x32xf32> to vector<1x32xf32>
    %677 = vector.extract_strided_slice %625 {offsets = [2, 0], sizes = [1, 32], strides = [1, 1]} : vector<3x32xf32> to vector<1x32xf32>
    %cst_252 = arith.constant dense<0.000000e+00> : vector<8xf32>
    %678 = vector.multi_reduction <add>, %485, %cst_252 [1] : vector<8x32xf32> to vector<8xf32>
    %679 = vector.shape_cast %678 : vector<8xf32> to vector<8x1xf32>
    %cst_253 = arith.constant 3.200000e+01 : f32
    %680 = vector.broadcast %cst_253 : f32 to vector<8x1xf32>
    %681 = arith.divf %679, %680 : vector<8x1xf32>
    %682 = vector.broadcast %681 : vector<8x1xf32> to vector<8x32xf32>
    %683 = arith.subf %485, %682 : vector<8x32xf32>
    %684 = arith.mulf %683, %683 : vector<8x32xf32>
    %cst_254 = arith.constant dense<0.000000e+00> : vector<8xf32>
    %685 = vector.multi_reduction <add>, %684, %cst_254 [1] : vector<8x32xf32> to vector<8xf32>
    %686 = vector.shape_cast %685 : vector<8xf32> to vector<8x1xf32>
    %cst_255 = arith.constant 3.200000e+01 : f32
    %687 = vector.broadcast %cst_255 : f32 to vector<8x1xf32>
    %688 = arith.divf %686, %687 : vector<8x1xf32>
    %689 = vector.broadcast %681 : vector<8x1xf32> to vector<8x32xf32>
    %690 = arith.subf %485, %689 : vector<8x32xf32>
    %cst_256 = arith.constant 9.99999974E-6 : f32
    %691 = vector.broadcast %cst_256 : f32 to vector<8x1xf32>
    %692 = arith.addf %688, %691 : vector<8x1xf32>
    %693 = math.rsqrt %692 : vector<8x1xf32>
    %694 = vector.broadcast %693 : vector<8x1xf32> to vector<8x32xf32>
    %695 = arith.mulf %690, %694 : vector<8x32xf32>
    %696 = vector.broadcast %676 : vector<1x32xf32> to vector<8x32xf32>
    %697 = arith.mulf %695, %696 : vector<8x32xf32>
    %698 = vector.broadcast %677 : vector<1x32xf32> to vector<8x32xf32>
    %699 = arith.addf %697, %698 : vector<8x32xf32>
    %700 = arith.truncf %699 : vector<8x32xf32> to vector<8x32xbf16>
    %c4_257 = arith.constant 4 : index
    %c0_258 = arith.constant 0 : index
    %c0_259 = arith.constant 0 : index
    %701 = vector.load %arg13[%c4_257, %c0_258, %c0_259] : memref<6x32x32xbf16, #tpu.memory_space<vmem>>, vector<1x32x32xbf16>
    %702 = vector.shape_cast %701 : vector<1x32x32xbf16> to vector<32x32xbf16>
    %cst_260 = arith.constant dense<0.000000e+00> : vector<8x32xf32>
    %703 = tpu.matmul %650, %702, %cst_260 {dimension_numbers = #tpu.dot_dimension_numbers<[1], [0], [0], [1], [0, 0, 1, 1], [], []>} : vector<8x32xbf16>, vector<32x32xbf16>, vector<8x32xf32> -> vector<8x32xf32>
    %cst_261 = arith.constant 2.500000e-01 : f32
    %704 = vector.broadcast %cst_261 : f32 to vector<8x32xf32>
    %705 = arith.mulf %703, %704 : vector<8x32xf32>
    %706 = arith.truncf %705 : vector<8x32xf32> to vector<8x32xbf16>
    %c4_262 = arith.constant 4 : index
    %c0_263 = arith.constant 0 : index
    %c0_264 = arith.constant 0 : index
    %707 = vector.load %arg14[%c4_262, %c0_263, %c0_264] : memref<6x32x32xbf16, #tpu.memory_space<vmem>>, vector<1x32x32xbf16>
    %708 = vector.shape_cast %707 : vector<1x32x32xbf16> to vector<32x32xbf16>
    %cst_265 = arith.constant dense<0.000000e+00> : vector<8x32xf32>
    %709 = tpu.matmul %675, %708, %cst_265 {dimension_numbers = #tpu.dot_dimension_numbers<[1], [0], [0], [1], [0, 0, 1, 1], [], []>} : vector<8x32xbf16>, vector<32x32xbf16>, vector<8x32xf32> -> vector<8x32xf32>
    %710 = arith.truncf %709 : vector<8x32xf32> to vector<8x32xbf16>
    %c4_266 = arith.constant 4 : index
    %c0_267 = arith.constant 0 : index
    %c0_268 = arith.constant 0 : index
    %711 = vector.load %arg15[%c4_266, %c0_267, %c0_268] : memref<6x32x32xbf16, #tpu.memory_space<vmem>>, vector<1x32x32xbf16>
    %712 = vector.shape_cast %711 : vector<1x32x32xbf16> to vector<32x32xbf16>
    %cst_269 = arith.constant dense<0.000000e+00> : vector<8x32xf32>
    %713 = tpu.matmul %700, %712, %cst_269 {dimension_numbers = #tpu.dot_dimension_numbers<[1], [0], [0], [1], [0, 0, 1, 1], [], []>} : vector<8x32xbf16>, vector<32x32xbf16>, vector<8x32xf32> -> vector<8x32xf32>
    %714 = arith.truncf %713 : vector<8x32xf32> to vector<8x32xbf16>
    %715 = vector.extract_strided_slice %706 {offsets = [0, 0], sizes = [8, 16], strides = [1, 1]} : vector<8x32xbf16> to vector<8x16xbf16>
    %716 = vector.extract_strided_slice %706 {offsets = [0, 16], sizes = [8, 16], strides = [1, 1]} : vector<8x32xbf16> to vector<8x16xbf16>
    %717 = vector.shape_cast %715 : vector<8x16xbf16> to vector<1x8x16xbf16>
    %718 = vector.shape_cast %716 : vector<8x16xbf16> to vector<1x8x16xbf16>
    %719 = tpu.concatenate %717, %718 in 0 : vector<1x8x16xbf16>, vector<1x8x16xbf16> -> vector<2x8x16xbf16>
    %720 = vector.extract_strided_slice %710 {offsets = [0, 0], sizes = [8, 16], strides = [1, 1]} : vector<8x32xbf16> to vector<8x16xbf16>
    %721 = vector.extract_strided_slice %710 {offsets = [0, 16], sizes = [8, 16], strides = [1, 1]} : vector<8x32xbf16> to vector<8x16xbf16>
    %722 = vector.shape_cast %720 : vector<8x16xbf16> to vector<1x8x16xbf16>
    %723 = vector.shape_cast %721 : vector<8x16xbf16> to vector<1x8x16xbf16>
    %724 = tpu.concatenate %722, %723 in 0 : vector<1x8x16xbf16>, vector<1x8x16xbf16> -> vector<2x8x16xbf16>
    %725 = vector.extract_strided_slice %714 {offsets = [0, 0], sizes = [8, 16], strides = [1, 1]} : vector<8x32xbf16> to vector<8x16xbf16>
    %726 = vector.extract_strided_slice %714 {offsets = [0, 16], sizes = [8, 16], strides = [1, 1]} : vector<8x32xbf16> to vector<8x16xbf16>
    %727 = vector.shape_cast %725 : vector<8x16xbf16> to vector<1x8x16xbf16>
    %728 = vector.shape_cast %726 : vector<8x16xbf16> to vector<1x8x16xbf16>
    %729 = tpu.concatenate %727, %728 in 0 : vector<1x8x16xbf16>, vector<1x8x16xbf16> -> vector<2x8x16xbf16>
    "tpu.trace_start"() <{level = 10 : i32, message = "hqd,hkd->hqk"}> : () -> ()
    %cst_270 = arith.constant dense<0.000000e+00> : vector<2x8x8xf32>
    %730 = tpu.matmul %719, %724, %cst_270 {dimension_numbers = #tpu.dot_dimension_numbers<[2], [2], [1], [1], [0, 0, 0, 1, 1, 1], [0], [0]>} : vector<2x8x16xbf16>, vector<2x8x16xbf16>, vector<2x8x8xf32> -> vector<2x8x8xf32>
    "tpu.trace_stop"() : () -> ()
    %731 = vector.shape_cast %26 : vector<8x8xf32> to vector<1x8x8xf32>
    %732 = vector.broadcast %731 : vector<1x8x8xf32> to vector<2x8x8xf32>
    %733 = arith.mulf %730, %732 : vector<2x8x8xf32>
    %cst_271 = arith.constant dense<0xFF800000> : vector<2x8xf32>
    %734 = vector.multi_reduction <maximumf>, %733, %cst_271 [2] : vector<2x8x8xf32> to vector<2x8xf32>
    %735 = vector.shape_cast %734 : vector<2x8xf32> to vector<2x8x1xf32>
    %736 = vector.broadcast %735 : vector<2x8x1xf32> to vector<2x8x8xf32>
    %737 = arith.subf %733, %736 : vector<2x8x8xf32>
    %738 = math.exp %737 : vector<2x8x8xf32>
    %739 = vector.broadcast %731 : vector<1x8x8xf32> to vector<2x8x8xf32>
    %740 = arith.mulf %738, %739 : vector<2x8x8xf32>
    %cst_272 = arith.constant dense<0.000000e+00> : vector<2x8xf32>
    %741 = vector.multi_reduction <add>, %740, %cst_272 [2] : vector<2x8x8xf32> to vector<2x8xf32>
    %742 = vector.shape_cast %741 : vector<2x8xf32> to vector<2x8x1xf32>
    %cst_273 = arith.constant 9.99999982E-14 : f32
    %743 = vector.broadcast %cst_273 : f32 to vector<2x8x1xf32>
    %744 = arith.addf %742, %743 : vector<2x8x1xf32>
    %745 = tpu.reciprocal %744 {approx = true} : vector<2x8x1xf32> -> vector<2x8x1xf32>
    %746 = vector.broadcast %745 : vector<2x8x1xf32> to vector<2x8x8xf32>
    %747 = arith.mulf %740, %746 : vector<2x8x8xf32>
    %c0_274 = arith.constant 0 : index
    %c0_275 = arith.constant 0 : index
    %c0_276 = arith.constant 0 : index
    %c0_277 = arith.constant 0 : index
    %748 = vector.load %arg30[%c0_274, %c0_275, %c0_276, %c0_277] : memref<2x1x8x8xf32, #tpu.memory_space<vmem>>, vector<2x1x8x8xf32>
    %749 = vector.shape_cast %748 : vector<2x1x8x8xf32> to vector<2x8x8xf32>
    %750 = vector.shape_cast %747 : vector<2x8x8xf32> to vector<2x1x8x8xf32>
    tpu.vector_store %arg30[%c0_274, %c0_275, %c0_276, %c0_277], %750 {strides = array<i32>} : memref<2x1x8x8xf32, #tpu.memory_space<vmem>>, vector<2x1x8x8xf32>,
    %751 = arith.truncf %747 : vector<2x8x8xf32> to vector<2x8x8xbf16>
    "tpu.trace_start"() <{level = 10 : i32, message = "hqk,hkd->hqd"}> : () -> ()
    %cst_278 = arith.constant dense<0.000000e+00> : vector<2x8x16xf32>
    %752 = tpu.matmul %751, %729, %cst_278 {dimension_numbers = #tpu.dot_dimension_numbers<[2], [1], [1], [2], [0, 0, 0, 1, 1, 2], [0], [0]>} : vector<2x8x8xbf16>, vector<2x8x16xbf16>, vector<2x8x16xf32> -> vector<2x8x16xf32>
    "tpu.trace_stop"() : () -> ()
    %753 = arith.truncf %752 : vector<2x8x16xf32> to vector<2x8x16xbf16>
    %c4_279 = arith.constant 4 : index
    %c0_280 = arith.constant 0 : index
    %c0_281 = arith.constant 0 : index
    %c0_282 = arith.constant 0 : index
    %754 = vector.load %arg16[%c4_279, %c0_280, %c0_281, %c0_282] : memref<6x2x16x32xbf16, #tpu.memory_space<vmem>>, vector<1x2x16x32xbf16>
    %755 = vector.shape_cast %754 : vector<1x2x16x32xbf16> to vector<2x16x32xbf16>
    "tpu.trace_start"() <{level = 10 : i32, message = "hqd,hdm->hqm"}> : () -> ()
    %cst_283 = arith.constant dense<0.000000e+00> : vector<2x8x32xf32>
    %756 = tpu.matmul %753, %755, %cst_283 {dimension_numbers = #tpu.dot_dimension_numbers<[2], [1], [1], [2], [0, 0, 0, 1, 1, 2], [0], [0]>} : vector<2x8x16xbf16>, vector<2x16x32xbf16>, vector<2x8x32xf32> -> vector<2x8x32xf32>
    "tpu.trace_stop"() : () -> ()
    %cst_284 = arith.constant dense<0.000000e+00> : vector<8x32xf32>
    %757 = vector.multi_reduction <add>, %756, %cst_284 [0] : vector<2x8x32xf32> to vector<8x32xf32>
    %c5 = arith.constant 5 : index
    %c0_285 = arith.constant 0 : index
    %c0_286 = arith.constant 0 : index
    %758 = vector.load %arg11[%c5, %c0_285, %c0_286] : memref<6x3x32xf32, #tpu.memory_space<vmem>>, vector<1x3x32xf32>
    %759 = vector.shape_cast %758 : vector<1x3x32xf32> to vector<3x32xf32>
    %c5_287 = arith.constant 5 : index
    %c0_288 = arith.constant 0 : index
    %c0_289 = arith.constant 0 : index
    %760 = vector.load %arg12[%c5_287, %c0_288, %c0_289] : memref<6x3x32xf32, #tpu.memory_space<vmem>>, vector<1x3x32xf32>
    %761 = vector.shape_cast %760 : vector<1x3x32xf32> to vector<3x32xf32>
    %762 = vector.extract_strided_slice %759 {offsets = [0, 0], sizes = [1, 32], strides = [1, 1]} : vector<3x32xf32> to vector<1x32xf32>
    %763 = vector.extract_strided_slice %761 {offsets = [0, 0], sizes = [1, 32], strides = [1, 1]} : vector<3x32xf32> to vector<1x32xf32>
    %cst_290 = arith.constant dense<0.000000e+00> : vector<8xf32>
    %764 = vector.multi_reduction <add>, %621, %cst_290 [1] : vector<8x32xf32> to vector<8xf32>
    %765 = vector.shape_cast %764 : vector<8xf32> to vector<8x1xf32>
    %cst_291 = arith.constant 3.200000e+01 : f32
    %766 = vector.broadcast %cst_291 : f32 to vector<8x1xf32>
    %767 = arith.divf %765, %766 : vector<8x1xf32>
    %768 = vector.broadcast %767 : vector<8x1xf32> to vector<8x32xf32>
    %769 = arith.subf %621, %768 : vector<8x32xf32>
    %770 = arith.mulf %769, %769 : vector<8x32xf32>
    %cst_292 = arith.constant dense<0.000000e+00> : vector<8xf32>
    %771 = vector.multi_reduction <add>, %770, %cst_292 [1] : vector<8x32xf32> to vector<8xf32>
    %772 = vector.shape_cast %771 : vector<8xf32> to vector<8x1xf32>
    %cst_293 = arith.constant 3.200000e+01 : f32
    %773 = vector.broadcast %cst_293 : f32 to vector<8x1xf32>
    %774 = arith.divf %772, %773 : vector<8x1xf32>
    %775 = vector.broadcast %767 : vector<8x1xf32> to vector<8x32xf32>
    %776 = arith.subf %621, %775 : vector<8x32xf32>
    %cst_294 = arith.constant 9.99999974E-6 : f32
    %777 = vector.broadcast %cst_294 : f32 to vector<8x1xf32>
    %778 = arith.addf %774, %777 : vector<8x1xf32>
    %779 = math.rsqrt %778 : vector<8x1xf32>
    %780 = vector.broadcast %779 : vector<8x1xf32> to vector<8x32xf32>
    %781 = arith.mulf %776, %780 : vector<8x32xf32>
    %782 = vector.broadcast %762 : vector<1x32xf32> to vector<8x32xf32>
    %783 = arith.mulf %781, %782 : vector<8x32xf32>
    %784 = vector.broadcast %763 : vector<1x32xf32> to vector<8x32xf32>
    %785 = arith.addf %783, %784 : vector<8x32xf32>
    %786 = arith.truncf %785 : vector<8x32xf32> to vector<8x32xbf16>
    %787 = vector.extract_strided_slice %759 {offsets = [1, 0], sizes = [1, 32], strides = [1, 1]} : vector<3x32xf32> to vector<1x32xf32>
    %788 = vector.extract_strided_slice %761 {offsets = [1, 0], sizes = [1, 32], strides = [1, 1]} : vector<3x32xf32> to vector<1x32xf32>
    %cst_295 = arith.constant dense<0.000000e+00> : vector<8xf32>
    %789 = vector.multi_reduction <add>, %621, %cst_295 [1] : vector<8x32xf32> to vector<8xf32>
    %790 = vector.shape_cast %789 : vector<8xf32> to vector<8x1xf32>
    %cst_296 = arith.constant 3.200000e+01 : f32
    %791 = vector.broadcast %cst_296 : f32 to vector<8x1xf32>
    %792 = arith.divf %790, %791 : vector<8x1xf32>
    %793 = vector.broadcast %792 : vector<8x1xf32> to vector<8x32xf32>
    %794 = arith.subf %621, %793 : vector<8x32xf32>
    %795 = arith.mulf %794, %794 : vector<8x32xf32>
    %cst_297 = arith.constant dense<0.000000e+00> : vector<8xf32>
    %796 = vector.multi_reduction <add>, %795, %cst_297 [1] : vector<8x32xf32> to vector<8xf32>
    %797 = vector.shape_cast %796 : vector<8xf32> to vector<8x1xf32>
    %cst_298 = arith.constant 3.200000e+01 : f32
    %798 = vector.broadcast %cst_298 : f32 to vector<8x1xf32>
    %799 = arith.divf %797, %798 : vector<8x1xf32>
    %800 = vector.broadcast %792 : vector<8x1xf32> to vector<8x32xf32>
    %801 = arith.subf %621, %800 : vector<8x32xf32>
    %cst_299 = arith.constant 9.99999974E-6 : f32
    %802 = vector.broadcast %cst_299 : f32 to vector<8x1xf32>
    %803 = arith.addf %799, %802 : vector<8x1xf32>
    %804 = math.rsqrt %803 : vector<8x1xf32>
    %805 = vector.broadcast %804 : vector<8x1xf32> to vector<8x32xf32>
    %806 = arith.mulf %801, %805 : vector<8x32xf32>
    %807 = vector.broadcast %787 : vector<1x32xf32> to vector<8x32xf32>
    %808 = arith.mulf %806, %807 : vector<8x32xf32>
    %809 = vector.broadcast %788 : vector<1x32xf32> to vector<8x32xf32>
    %810 = arith.addf %808, %809 : vector<8x32xf32>
    %811 = arith.truncf %810 : vector<8x32xf32> to vector<8x32xbf16>
    %812 = vector.extract_strided_slice %759 {offsets = [2, 0], sizes = [1, 32], strides = [1, 1]} : vector<3x32xf32> to vector<1x32xf32>
    %813 = vector.extract_strided_slice %761 {offsets = [2, 0], sizes = [1, 32], strides = [1, 1]} : vector<3x32xf32> to vector<1x32xf32>
    %cst_300 = arith.constant dense<0.000000e+00> : vector<8xf32>
    %814 = vector.multi_reduction <add>, %621, %cst_300 [1] : vector<8x32xf32> to vector<8xf32>
    %815 = vector.shape_cast %814 : vector<8xf32> to vector<8x1xf32>
    %cst_301 = arith.constant 3.200000e+01 : f32
    %816 = vector.broadcast %cst_301 : f32 to vector<8x1xf32>
    %817 = arith.divf %815, %816 : vector<8x1xf32>
    %818 = vector.broadcast %817 : vector<8x1xf32> to vector<8x32xf32>
    %819 = arith.subf %621, %818 : vector<8x32xf32>
    %820 = arith.mulf %819, %819 : vector<8x32xf32>
    %cst_302 = arith.constant dense<0.000000e+00> : vector<8xf32>
    %821 = vector.multi_reduction <add>, %820, %cst_302 [1] : vector<8x32xf32> to vector<8xf32>
    %822 = vector.shape_cast %821 : vector<8xf32> to vector<8x1xf32>
    %cst_303 = arith.constant 3.200000e+01 : f32
    %823 = vector.broadcast %cst_303 : f32 to vector<8x1xf32>
    %824 = arith.divf %822, %823 : vector<8x1xf32>
    %825 = vector.broadcast %817 : vector<8x1xf32> to vector<8x32xf32>
    %826 = arith.subf %621, %825 : vector<8x32xf32>
    %cst_304 = arith.constant 9.99999974E-6 : f32
    %827 = vector.broadcast %cst_304 : f32 to vector<8x1xf32>
    %828 = arith.addf %824, %827 : vector<8x1xf32>
    %829 = math.rsqrt %828 : vector<8x1xf32>
    %830 = vector.broadcast %829 : vector<8x1xf32> to vector<8x32xf32>
    %831 = arith.mulf %826, %830 : vector<8x32xf32>
    %832 = vector.broadcast %812 : vector<1x32xf32> to vector<8x32xf32>
    %833 = arith.mulf %831, %832 : vector<8x32xf32>
    %834 = vector.broadcast %813 : vector<1x32xf32> to vector<8x32xf32>
    %835 = arith.addf %833, %834 : vector<8x32xf32>
    %836 = arith.truncf %835 : vector<8x32xf32> to vector<8x32xbf16>
    %c5_305 = arith.constant 5 : index
    %c0_306 = arith.constant 0 : index
    %c0_307 = arith.constant 0 : index
    %837 = vector.load %arg13[%c5_305, %c0_306, %c0_307] : memref<6x32x32xbf16, #tpu.memory_space<vmem>>, vector<1x32x32xbf16>
    %838 = vector.shape_cast %837 : vector<1x32x32xbf16> to vector<32x32xbf16>
    %cst_308 = arith.constant dense<0.000000e+00> : vector<8x32xf32>
    %839 = tpu.matmul %786, %838, %cst_308 {dimension_numbers = #tpu.dot_dimension_numbers<[1], [0], [0], [1], [0, 0, 1, 1], [], []>} : vector<8x32xbf16>, vector<32x32xbf16>, vector<8x32xf32> -> vector<8x32xf32>
    %cst_309 = arith.constant 2.500000e-01 : f32
    %840 = vector.broadcast %cst_309 : f32 to vector<8x32xf32>
    %841 = arith.mulf %839, %840 : vector<8x32xf32>
    %842 = arith.truncf %841 : vector<8x32xf32> to vector<8x32xbf16>
    %c5_310 = arith.constant 5 : index
    %c0_311 = arith.constant 0 : index
    %c0_312 = arith.constant 0 : index
    %843 = vector.load %arg14[%c5_310, %c0_311, %c0_312] : memref<6x32x32xbf16, #tpu.memory_space<vmem>>, vector<1x32x32xbf16>
    %844 = vector.shape_cast %843 : vector<1x32x32xbf16> to vector<32x32xbf16>
    %cst_313 = arith.constant dense<0.000000e+00> : vector<8x32xf32>
    %845 = tpu.matmul %811, %844, %cst_313 {dimension_numbers = #tpu.dot_dimension_numbers<[1], [0], [0], [1], [0, 0, 1, 1], [], []>} : vector<8x32xbf16>, vector<32x32xbf16>, vector<8x32xf32> -> vector<8x32xf32>
    %846 = arith.truncf %845 : vector<8x32xf32> to vector<8x32xbf16>
    %c5_314 = arith.constant 5 : index
    %c0_315 = arith.constant 0 : index
    %c0_316 = arith.constant 0 : index
    %847 = vector.load %arg15[%c5_314, %c0_315, %c0_316] : memref<6x32x32xbf16, #tpu.memory_space<vmem>>, vector<1x32x32xbf16>
    %848 = vector.shape_cast %847 : vector<1x32x32xbf16> to vector<32x32xbf16>
    %cst_317 = arith.constant dense<0.000000e+00> : vector<8x32xf32>
    %849 = tpu.matmul %836, %848, %cst_317 {dimension_numbers = #tpu.dot_dimension_numbers<[1], [0], [0], [1], [0, 0, 1, 1], [], []>} : vector<8x32xbf16>, vector<32x32xbf16>, vector<8x32xf32> -> vector<8x32xf32>
    %850 = arith.truncf %849 : vector<8x32xf32> to vector<8x32xbf16>
    %851 = vector.extract_strided_slice %842 {offsets = [0, 0], sizes = [8, 16], strides = [1, 1]} : vector<8x32xbf16> to vector<8x16xbf16>
    %852 = vector.extract_strided_slice %842 {offsets = [0, 16], sizes = [8, 16], strides = [1, 1]} : vector<8x32xbf16> to vector<8x16xbf16>
    %853 = vector.shape_cast %851 : vector<8x16xbf16> to vector<1x8x16xbf16>
    %854 = vector.shape_cast %852 : vector<8x16xbf16> to vector<1x8x16xbf16>
    %855 = tpu.concatenate %853, %854 in 0 : vector<1x8x16xbf16>, vector<1x8x16xbf16> -> vector<2x8x16xbf16>
    %856 = vector.extract_strided_slice %846 {offsets = [0, 0], sizes = [8, 16], strides = [1, 1]} : vector<8x32xbf16> to vector<8x16xbf16>
    %857 = vector.extract_strided_slice %846 {offsets = [0, 16], sizes = [8, 16], strides = [1, 1]} : vector<8x32xbf16> to vector<8x16xbf16>
    %858 = vector.shape_cast %856 : vector<8x16xbf16> to vector<1x8x16xbf16>
    %859 = vector.shape_cast %857 : vector<8x16xbf16> to vector<1x8x16xbf16>
    %860 = tpu.concatenate %858, %859 in 0 : vector<1x8x16xbf16>, vector<1x8x16xbf16> -> vector<2x8x16xbf16>
    %861 = vector.extract_strided_slice %850 {offsets = [0, 0], sizes = [8, 16], strides = [1, 1]} : vector<8x32xbf16> to vector<8x16xbf16>
    %862 = vector.extract_strided_slice %850 {offsets = [0, 16], sizes = [8, 16], strides = [1, 1]} : vector<8x32xbf16> to vector<8x16xbf16>
    %863 = vector.shape_cast %861 : vector<8x16xbf16> to vector<1x8x16xbf16>
    %864 = vector.shape_cast %862 : vector<8x16xbf16> to vector<1x8x16xbf16>
    %865 = tpu.concatenate %863, %864 in 0 : vector<1x8x16xbf16>, vector<1x8x16xbf16> -> vector<2x8x16xbf16>
    "tpu.trace_start"() <{level = 10 : i32, message = "hqd,hkd->hqk"}> : () -> ()
    %cst_318 = arith.constant dense<0.000000e+00> : vector<2x8x8xf32>
    %866 = tpu.matmul %855, %860, %cst_318 {dimension_numbers = #tpu.dot_dimension_numbers<[2], [2], [1], [1], [0, 0, 0, 1, 1, 1], [0], [0]>} : vector<2x8x16xbf16>, vector<2x8x16xbf16>, vector<2x8x8xf32> -> vector<2x8x8xf32>
    "tpu.trace_stop"() : () -> ()
    %867 = vector.shape_cast %41 : vector<8x8xf32> to vector<1x8x8xf32>
    %868 = vector.broadcast %867 : vector<1x8x8xf32> to vector<2x8x8xf32>
    %869 = arith.mulf %866, %868 : vector<2x8x8xf32>
    %cst_319 = arith.constant dense<0xFF800000> : vector<2x8xf32>
    %870 = vector.multi_reduction <maximumf>, %869, %cst_319 [2] : vector<2x8x8xf32> to vector<2x8xf32>
    %871 = vector.shape_cast %870 : vector<2x8xf32> to vector<2x8x1xf32>
    %872 = vector.broadcast %871 : vector<2x8x1xf32> to vector<2x8x8xf32>
    %873 = arith.subf %869, %872 : vector<2x8x8xf32>
    %874 = math.exp %873 : vector<2x8x8xf32>
    %875 = vector.broadcast %867 : vector<1x8x8xf32> to vector<2x8x8xf32>
    %876 = arith.mulf %874, %875 : vector<2x8x8xf32>
    %cst_320 = arith.constant dense<0.000000e+00> : vector<2x8xf32>
    %877 = vector.multi_reduction <add>, %876, %cst_320 [2] : vector<2x8x8xf32> to vector<2x8xf32>
    %878 = vector.shape_cast %877 : vector<2x8xf32> to vector<2x8x1xf32>
    %cst_321 = arith.constant 9.99999982E-14 : f32
    %879 = vector.broadcast %cst_321 : f32 to vector<2x8x1xf32>
    %880 = arith.addf %878, %879 : vector<2x8x1xf32>
    %881 = tpu.reciprocal %880 {approx = true} : vector<2x8x1xf32> -> vector<2x8x1xf32>
    %882 = vector.broadcast %881 : vector<2x8x1xf32> to vector<2x8x8xf32>
    %883 = arith.mulf %876, %882 : vector<2x8x8xf32>
    %c0_322 = arith.constant 0 : index
    %c0_323 = arith.constant 0 : index
    %c0_324 = arith.constant 0 : index
    %c0_325 = arith.constant 0 : index
    %884 = vector.load %arg31[%c0_322, %c0_323, %c0_324, %c0_325] : memref<2x1x8x8xf32, #tpu.memory_space<vmem>>, vector<2x1x8x8xf32>
    %885 = vector.shape_cast %884 : vector<2x1x8x8xf32> to vector<2x8x8xf32>
    %886 = vector.shape_cast %883 : vector<2x8x8xf32> to vector<2x1x8x8xf32>
    tpu.vector_store %arg31[%c0_322, %c0_323, %c0_324, %c0_325], %886 {strides = array<i32>} : memref<2x1x8x8xf32, #tpu.memory_space<vmem>>, vector<2x1x8x8xf32>,
    %887 = arith.truncf %883 : vector<2x8x8xf32> to vector<2x8x8xbf16>
    "tpu.trace_start"() <{level = 10 : i32, message = "hqk,hkd->hqd"}> : () -> ()
    %cst_326 = arith.constant dense<0.000000e+00> : vector<2x8x16xf32>
    %888 = tpu.matmul %887, %865, %cst_326 {dimension_numbers = #tpu.dot_dimension_numbers<[2], [1], [1], [2], [0, 0, 0, 1, 1, 2], [0], [0]>} : vector<2x8x8xbf16>, vector<2x8x16xbf16>, vector<2x8x16xf32> -> vector<2x8x16xf32>
    "tpu.trace_stop"() : () -> ()
    %889 = arith.truncf %888 : vector<2x8x16xf32> to vector<2x8x16xbf16>
    %c5_327 = arith.constant 5 : index
    %c0_328 = arith.constant 0 : index
    %c0_329 = arith.constant 0 : index
    %c0_330 = arith.constant 0 : index
    %890 = vector.load %arg16[%c5_327, %c0_328, %c0_329, %c0_330] : memref<6x2x16x32xbf16, #tpu.memory_space<vmem>>, vector<1x2x16x32xbf16>
    %891 = vector.shape_cast %890 : vector<1x2x16x32xbf16> to vector<2x16x32xbf16>
    "tpu.trace_start"() <{level = 10 : i32, message = "hqd,hdm->hqm"}> : () -> ()
    %cst_331 = arith.constant dense<0.000000e+00> : vector<2x8x32xf32>
    %892 = tpu.matmul %889, %891, %cst_331 {dimension_numbers = #tpu.dot_dimension_numbers<[2], [1], [1], [2], [0, 0, 0, 1, 1, 2], [0], [0]>} : vector<2x8x16xbf16>, vector<2x16x32xbf16>, vector<2x8x32xf32> -> vector<2x8x32xf32>
    "tpu.trace_stop"() : () -> ()
    %cst_332 = arith.constant dense<0.000000e+00> : vector<8x32xf32>
    %893 = vector.multi_reduction <add>, %892, %cst_332 [0] : vector<2x8x32xf32> to vector<8x32xf32>
    %894 = vector.broadcast %9 : vector<8x1xf32> to vector<8x32xf32>
    %895 = arith.mulf %757, %894 : vector<8x32xf32>
    %896 = arith.truncf %895 : vector<8x32xf32> to vector<8x32xbf16>
    %c0_333 = arith.constant 0 : index
    %c0_334 = arith.constant 0 : index
    %c0_335 = arith.constant 0 : index
    %897 = vector.load %arg18[%c0_333, %c0_334, %c0_335] : memref<4x32x32xbf16, #tpu.memory_space<vmem>>, vector<1x32x32xbf16>
    %898 = vector.shape_cast %897 : vector<1x32x32xbf16> to vector<32x32xbf16>
    %cst_336 = arith.constant dense<0.000000e+00> : vector<8x32xf32>
    %899 = tpu.matmul %896, %898, %cst_336 {dimension_numbers = #tpu.dot_dimension_numbers<[1], [0], [0], [1], [0, 0, 1, 1], [], []>} : vector<8x32xbf16>, vector<32x32xbf16>, vector<8x32xf32> -> vector<8x32xf32>
    %c0_337 = arith.constant 0 : index
    %c0_338 = arith.constant 0 : index
    %c0_339 = arith.constant 0 : index
    %900 = vector.load %arg19[%c0_337, %c0_338, %c0_339] : memref<4x1x32xf32, #tpu.memory_space<vmem>>, vector<1x1x32xf32>
    %901 = vector.shape_cast %900 : vector<1x1x32xf32> to vector<1x32xf32>
    %902 = vector.broadcast %901 : vector<1x32xf32> to vector<8x32xf32>
    %903 = arith.addf %899, %902 : vector<8x32xf32>
    %904 = math.tanh %903 : vector<8x32xf32>
    %905 = arith.truncf %904 : vector<8x32xf32> to vector<8x32xbf16>
    %c0_340 = arith.constant 0 : index
    %c0_341 = arith.constant 0 : index
    %c0_342 = arith.constant 0 : index
    %906 = vector.load %arg20[%c0_340, %c0_341, %c0_342] : memref<4x32x32xbf16, #tpu.memory_space<vmem>>, vector<1x32x32xbf16>
    %907 = vector.shape_cast %906 : vector<1x32x32xbf16> to vector<32x32xbf16>
    %cst_343 = arith.constant dense<0.000000e+00> : vector<8x32xf32>
    %908 = tpu.matmul %905, %907, %cst_343 {dimension_numbers = #tpu.dot_dimension_numbers<[1], [0], [0], [1], [0, 0, 1, 1], [], []>} : vector<8x32xbf16>, vector<32x32xbf16>, vector<8x32xf32> -> vector<8x32xf32>
    %c0_344 = arith.constant 0 : index
    %c0_345 = arith.constant 0 : index
    %c0_346 = arith.constant 0 : index
    %909 = vector.load %arg21[%c0_344, %c0_345, %c0_346] : memref<4x1x32xf32, #tpu.memory_space<vmem>>, vector<1x1x32xf32>
    %910 = vector.shape_cast %909 : vector<1x1x32xf32> to vector<1x32xf32>
    %911 = vector.broadcast %910 : vector<1x32xf32> to vector<8x32xf32>
    %912 = arith.addf %908, %911 : vector<8x32xf32>
    %913 = arith.addf %912, %895 : vector<8x32xf32>
    %c0_347 = arith.constant 0 : index
    %c0_348 = arith.constant 0 : index
    %c0_349 = arith.constant 0 : index
    %914 = vector.load %arg22[%c0_347, %c0_348, %c0_349] : memref<4x1x32xf32, #tpu.memory_space<vmem>>, vector<1x1x32xf32>
    %915 = vector.shape_cast %914 : vector<1x1x32xf32> to vector<1x32xf32>
    %c0_350 = arith.constant 0 : index
    %c0_351 = arith.constant 0 : index
    %c0_352 = arith.constant 0 : index
    %916 = vector.load %arg23[%c0_350, %c0_351, %c0_352] : memref<4x1x32xf32, #tpu.memory_space<vmem>>, vector<1x1x32xf32>
    %917 = vector.shape_cast %916 : vector<1x1x32xf32> to vector<1x32xf32>
    %cst_353 = arith.constant dense<0.000000e+00> : vector<8xf32>
    %918 = vector.multi_reduction <add>, %913, %cst_353 [1] : vector<8x32xf32> to vector<8xf32>
    %919 = vector.shape_cast %918 : vector<8xf32> to vector<8x1xf32>
    %cst_354 = arith.constant 3.200000e+01 : f32
    %920 = vector.broadcast %cst_354 : f32 to vector<8x1xf32>
    %921 = arith.divf %919, %920 : vector<8x1xf32>
    %922 = vector.broadcast %921 : vector<8x1xf32> to vector<8x32xf32>
    %923 = arith.subf %913, %922 : vector<8x32xf32>
    %924 = arith.mulf %923, %923 : vector<8x32xf32>
    %cst_355 = arith.constant dense<0.000000e+00> : vector<8xf32>
    %925 = vector.multi_reduction <add>, %924, %cst_355 [1] : vector<8x32xf32> to vector<8xf32>
    %926 = vector.shape_cast %925 : vector<8xf32> to vector<8x1xf32>
    %cst_356 = arith.constant 3.200000e+01 : f32
    %927 = vector.broadcast %cst_356 : f32 to vector<8x1xf32>
    %928 = arith.divf %926, %927 : vector<8x1xf32>
    %929 = vector.broadcast %921 : vector<8x1xf32> to vector<8x32xf32>
    %930 = arith.subf %913, %929 : vector<8x32xf32>
    %cst_357 = arith.constant 9.99999974E-6 : f32
    %931 = vector.broadcast %cst_357 : f32 to vector<8x1xf32>
    %932 = arith.addf %928, %931 : vector<8x1xf32>
    %933 = math.rsqrt %932 : vector<8x1xf32>
    %934 = vector.broadcast %933 : vector<8x1xf32> to vector<8x32xf32>
    %935 = arith.mulf %930, %934 : vector<8x32xf32>
    %936 = vector.broadcast %915 : vector<1x32xf32> to vector<8x32xf32>
    %937 = arith.mulf %935, %936 : vector<8x32xf32>
    %938 = vector.broadcast %917 : vector<1x32xf32> to vector<8x32xf32>
    %939 = arith.addf %937, %938 : vector<8x32xf32>
    %940 = vector.broadcast %9 : vector<8x1xf32> to vector<8x32xf32>
    %941 = arith.mulf %939, %940 : vector<8x32xf32>
    %c0_358 = arith.constant 0 : index
    %c0_359 = arith.constant 0 : index
    %c0_360 = arith.constant 0 : index
    %942 = vector.load %arg24[%c0_358, %c0_359, %c0_360] : memref<1x8x32xf32, #tpu.memory_space<vmem>>, vector<1x8x32xf32>
    %943 = vector.shape_cast %942 : vector<1x8x32xf32> to vector<8x32xf32>
    %944 = vector.shape_cast %941 : vector<8x32xf32> to vector<1x8x32xf32>
    tpu.vector_store %arg24[%c0_358, %c0_359, %c0_360], %944 {strides = array<i32>} : memref<1x8x32xf32, #tpu.memory_space<vmem>>, vector<1x8x32xf32>,
    %945 = vector.broadcast %9 : vector<8x1xf32> to vector<8x32xf32>
    %946 = arith.mulf %210, %945 : vector<8x32xf32>
    %947 = arith.truncf %946 : vector<8x32xf32> to vector<8x32xbf16>
    %c1_361 = arith.constant 1 : index
    %c0_362 = arith.constant 0 : index
    %c0_363 = arith.constant 0 : index
    %948 = vector.load %arg18[%c1_361, %c0_362, %c0_363] : memref<4x32x32xbf16, #tpu.memory_space<vmem>>, vector<1x32x32xbf16>
    %949 = vector.shape_cast %948 : vector<1x32x32xbf16> to vector<32x32xbf16>
    %cst_364 = arith.constant dense<0.000000e+00> : vector<8x32xf32>
    %950 = tpu.matmul %947, %949, %cst_364 {dimension_numbers = #tpu.dot_dimension_numbers<[1], [0], [0], [1], [0, 0, 1, 1], [], []>} : vector<8x32xbf16>, vector<32x32xbf16>, vector<8x32xf32> -> vector<8x32xf32>
    %c1_365 = arith.constant 1 : index
    %c0_366 = arith.constant 0 : index
    %c0_367 = arith.constant 0 : index
    %951 = vector.load %arg19[%c1_365, %c0_366, %c0_367] : memref<4x1x32xf32, #tpu.memory_space<vmem>>, vector<1x1x32xf32>
    %952 = vector.shape_cast %951 : vector<1x1x32xf32> to vector<1x32xf32>
    %953 = vector.broadcast %952 : vector<1x32xf32> to vector<8x32xf32>
    %954 = arith.addf %950, %953 : vector<8x32xf32>
    %955 = math.tanh %954 : vector<8x32xf32>
    %956 = arith.truncf %955 : vector<8x32xf32> to vector<8x32xbf16>
    %c1_368 = arith.constant 1 : index
    %c0_369 = arith.constant 0 : index
    %c0_370 = arith.constant 0 : index
    %957 = vector.load %arg20[%c1_368, %c0_369, %c0_370] : memref<4x32x32xbf16, #tpu.memory_space<vmem>>, vector<1x32x32xbf16>
    %958 = vector.shape_cast %957 : vector<1x32x32xbf16> to vector<32x32xbf16>
    %cst_371 = arith.constant dense<0.000000e+00> : vector<8x32xf32>
    %959 = tpu.matmul %956, %958, %cst_371 {dimension_numbers = #tpu.dot_dimension_numbers<[1], [0], [0], [1], [0, 0, 1, 1], [], []>} : vector<8x32xbf16>, vector<32x32xbf16>, vector<8x32xf32> -> vector<8x32xf32>
    %c1_372 = arith.constant 1 : index
    %c0_373 = arith.constant 0 : index
    %c0_374 = arith.constant 0 : index
    %960 = vector.load %arg21[%c1_372, %c0_373, %c0_374] : memref<4x1x32xf32, #tpu.memory_space<vmem>>, vector<1x1x32xf32>
    %961 = vector.shape_cast %960 : vector<1x1x32xf32> to vector<1x32xf32>
    %962 = vector.broadcast %961 : vector<1x32xf32> to vector<8x32xf32>
    %963 = arith.addf %959, %962 : vector<8x32xf32>
    %c1_375 = arith.constant 1 : index
    %c0_376 = arith.constant 0 : index
    %c0_377 = arith.constant 0 : index
    %964 = vector.load %arg22[%c1_375, %c0_376, %c0_377] : memref<4x1x32xf32, #tpu.memory_space<vmem>>, vector<1x1x32xf32>
    %965 = vector.shape_cast %964 : vector<1x1x32xf32> to vector<1x32xf32>
    %c1_378 = arith.constant 1 : index
    %c0_379 = arith.constant 0 : index
    %c0_380 = arith.constant 0 : index
    %966 = vector.load %arg23[%c1_378, %c0_379, %c0_380] : memref<4x1x32xf32, #tpu.memory_space<vmem>>, vector<1x1x32xf32>
    %967 = vector.shape_cast %966 : vector<1x1x32xf32> to vector<1x32xf32>
    %cst_381 = arith.constant dense<0.000000e+00> : vector<8xf32>
    %968 = vector.multi_reduction <add>, %963, %cst_381 [1] : vector<8x32xf32> to vector<8xf32>
    %969 = vector.shape_cast %968 : vector<8xf32> to vector<8x1xf32>
    %cst_382 = arith.constant 3.200000e+01 : f32
    %970 = vector.broadcast %cst_382 : f32 to vector<8x1xf32>
    %971 = arith.divf %969, %970 : vector<8x1xf32>
    %972 = vector.broadcast %971 : vector<8x1xf32> to vector<8x32xf32>
    %973 = arith.subf %963, %972 : vector<8x32xf32>
    %974 = arith.mulf %973, %973 : vector<8x32xf32>
    %cst_383 = arith.constant dense<0.000000e+00> : vector<8xf32>
    %975 = vector.multi_reduction <add>, %974, %cst_383 [1] : vector<8x32xf32> to vector<8xf32>
    %976 = vector.shape_cast %975 : vector<8xf32> to vector<8x1xf32>
    %cst_384 = arith.constant 3.200000e+01 : f32
    %977 = vector.broadcast %cst_384 : f32 to vector<8x1xf32>
    %978 = arith.divf %976, %977 : vector<8x1xf32>
    %979 = vector.broadcast %971 : vector<8x1xf32> to vector<8x32xf32>
    %980 = arith.subf %963, %979 : vector<8x32xf32>
    %cst_385 = arith.constant 9.99999974E-6 : f32
    %981 = vector.broadcast %cst_385 : f32 to vector<8x1xf32>
    %982 = arith.addf %978, %981 : vector<8x1xf32>
    %983 = math.rsqrt %982 : vector<8x1xf32>
    %984 = vector.broadcast %983 : vector<8x1xf32> to vector<8x32xf32>
    %985 = arith.mulf %980, %984 : vector<8x32xf32>
    %986 = vector.broadcast %965 : vector<1x32xf32> to vector<8x32xf32>
    %987 = arith.mulf %985, %986 : vector<8x32xf32>
    %988 = vector.broadcast %967 : vector<1x32xf32> to vector<8x32xf32>
    %989 = arith.addf %987, %988 : vector<8x32xf32>
    %990 = vector.broadcast %9 : vector<8x1xf32> to vector<8x32xf32>
    %991 = arith.mulf %989, %990 : vector<8x32xf32>
    %c0_386 = arith.constant 0 : index
    %c0_387 = arith.constant 0 : index
    %c0_388 = arith.constant 0 : index
    %992 = vector.load %arg25[%c0_386, %c0_387, %c0_388] : memref<1x8x32xf32, #tpu.memory_space<vmem>>, vector<1x8x32xf32>
    %993 = vector.shape_cast %992 : vector<1x8x32xf32> to vector<8x32xf32>
    %994 = vector.shape_cast %991 : vector<8x32xf32> to vector<1x8x32xf32>
    tpu.vector_store %arg25[%c0_386, %c0_387, %c0_388], %994 {strides = array<i32>} : memref<1x8x32xf32, #tpu.memory_space<vmem>>, vector<1x8x32xf32>,
    %995 = vector.broadcast %11 : vector<8x1xf32> to vector<8x32xf32>
    %996 = arith.mulf %893, %995 : vector<8x32xf32>
    %997 = arith.truncf %996 : vector<8x32xf32> to vector<8x32xbf16>
    %c2_389 = arith.constant 2 : index
    %c0_390 = arith.constant 0 : index
    %c0_391 = arith.constant 0 : index
    %998 = vector.load %arg18[%c2_389, %c0_390, %c0_391] : memref<4x32x32xbf16, #tpu.memory_space<vmem>>, vector<1x32x32xbf16>
    %999 = vector.shape_cast %998 : vector<1x32x32xbf16> to vector<32x32xbf16>
    %cst_392 = arith.constant dense<0.000000e+00> : vector<8x32xf32>
    %1000 = tpu.matmul %997, %999, %cst_392 {dimension_numbers = #tpu.dot_dimension_numbers<[1], [0], [0], [1], [0, 0, 1, 1], [], []>} : vector<8x32xbf16>, vector<32x32xbf16>, vector<8x32xf32> -> vector<8x32xf32>
    %c2_393 = arith.constant 2 : index
    %c0_394 = arith.constant 0 : index
    %c0_395 = arith.constant 0 : index
    %1001 = vector.load %arg19[%c2_393, %c0_394, %c0_395] : memref<4x1x32xf32, #tpu.memory_space<vmem>>, vector<1x1x32xf32>
    %1002 = vector.shape_cast %1001 : vector<1x1x32xf32> to vector<1x32xf32>
    %1003 = vector.broadcast %1002 : vector<1x32xf32> to vector<8x32xf32>
    %1004 = arith.addf %1000, %1003 : vector<8x32xf32>
    %1005 = math.tanh %1004 : vector<8x32xf32>
    %1006 = arith.truncf %1005 : vector<8x32xf32> to vector<8x32xbf16>
    %c2_396 = arith.constant 2 : index
    %c0_397 = arith.constant 0 : index
    %c0_398 = arith.constant 0 : index
    %1007 = vector.load %arg20[%c2_396, %c0_397, %c0_398] : memref<4x32x32xbf16, #tpu.memory_space<vmem>>, vector<1x32x32xbf16>
    %1008 = vector.shape_cast %1007 : vector<1x32x32xbf16> to vector<32x32xbf16>
    %cst_399 = arith.constant dense<0.000000e+00> : vector<8x32xf32>
    %1009 = tpu.matmul %1006, %1008, %cst_399 {dimension_numbers = #tpu.dot_dimension_numbers<[1], [0], [0], [1], [0, 0, 1, 1], [], []>} : vector<8x32xbf16>, vector<32x32xbf16>, vector<8x32xf32> -> vector<8x32xf32>
    %c2_400 = arith.constant 2 : index
    %c0_401 = arith.constant 0 : index
    %c0_402 = arith.constant 0 : index
    %1010 = vector.load %arg21[%c2_400, %c0_401, %c0_402] : memref<4x1x32xf32, #tpu.memory_space<vmem>>, vector<1x1x32xf32>
    %1011 = vector.shape_cast %1010 : vector<1x1x32xf32> to vector<1x32xf32>
    %1012 = vector.broadcast %1011 : vector<1x32xf32> to vector<8x32xf32>
    %1013 = arith.addf %1009, %1012 : vector<8x32xf32>
    %1014 = arith.addf %1013, %996 : vector<8x32xf32>
    %c2_403 = arith.constant 2 : index
    %c0_404 = arith.constant 0 : index
    %c0_405 = arith.constant 0 : index
    %1015 = vector.load %arg22[%c2_403, %c0_404, %c0_405] : memref<4x1x32xf32, #tpu.memory_space<vmem>>, vector<1x1x32xf32>
    %1016 = vector.shape_cast %1015 : vector<1x1x32xf32> to vector<1x32xf32>
    %c2_406 = arith.constant 2 : index
    %c0_407 = arith.constant 0 : index
    %c0_408 = arith.constant 0 : index
    %1017 = vector.load %arg23[%c2_406, %c0_407, %c0_408] : memref<4x1x32xf32, #tpu.memory_space<vmem>>, vector<1x1x32xf32>
    %1018 = vector.shape_cast %1017 : vector<1x1x32xf32> to vector<1x32xf32>
    %cst_409 = arith.constant dense<0.000000e+00> : vector<8xf32>
    %1019 = vector.multi_reduction <add>, %1014, %cst_409 [1] : vector<8x32xf32> to vector<8xf32>
    %1020 = vector.shape_cast %1019 : vector<8xf32> to vector<8x1xf32>
    %cst_410 = arith.constant 3.200000e+01 : f32
    %1021 = vector.broadcast %cst_410 : f32 to vector<8x1xf32>
    %1022 = arith.divf %1020, %1021 : vector<8x1xf32>
    %1023 = vector.broadcast %1022 : vector<8x1xf32> to vector<8x32xf32>
    %1024 = arith.subf %1014, %1023 : vector<8x32xf32>
    %1025 = arith.mulf %1024, %1024 : vector<8x32xf32>
    %cst_411 = arith.constant dense<0.000000e+00> : vector<8xf32>
    %1026 = vector.multi_reduction <add>, %1025, %cst_411 [1] : vector<8x32xf32> to vector<8xf32>
    %1027 = vector.shape_cast %1026 : vector<8xf32> to vector<8x1xf32>
    %cst_412 = arith.constant 3.200000e+01 : f32
    %1028 = vector.broadcast %cst_412 : f32 to vector<8x1xf32>
    %1029 = arith.divf %1027, %1028 : vector<8x1xf32>
    %1030 = vector.broadcast %1022 : vector<8x1xf32> to vector<8x32xf32>
    %1031 = arith.subf %1014, %1030 : vector<8x32xf32>
    %cst_413 = arith.constant 9.99999974E-6 : f32
    %1032 = vector.broadcast %cst_413 : f32 to vector<8x1xf32>
    %1033 = arith.addf %1029, %1032 : vector<8x1xf32>
    %1034 = math.rsqrt %1033 : vector<8x1xf32>
    %1035 = vector.broadcast %1034 : vector<8x1xf32> to vector<8x32xf32>
    %1036 = arith.mulf %1031, %1035 : vector<8x32xf32>
    %1037 = vector.broadcast %1016 : vector<1x32xf32> to vector<8x32xf32>
    %1038 = arith.mulf %1036, %1037 : vector<8x32xf32>
    %1039 = vector.broadcast %1018 : vector<1x32xf32> to vector<8x32xf32>
    %1040 = arith.addf %1038, %1039 : vector<8x32xf32>
    %1041 = vector.broadcast %11 : vector<8x1xf32> to vector<8x32xf32>
    %1042 = arith.mulf %1040, %1041 : vector<8x32xf32>
    %c0_414 = arith.constant 0 : index
    %c0_415 = arith.constant 0 : index
    %c0_416 = arith.constant 0 : index
    %1043 = vector.load %arg26[%c0_414, %c0_415, %c0_416] : memref<1x8x32xf32, #tpu.memory_space<vmem>>, vector<1x8x32xf32>
    %1044 = vector.shape_cast %1043 : vector<1x8x32xf32> to vector<8x32xf32>
    %1045 = vector.shape_cast %1042 : vector<8x32xf32> to vector<1x8x32xf32>
    tpu.vector_store %arg26[%c0_414, %c0_415, %c0_416], %1045 {strides = array<i32>} : memref<1x8x32xf32, #tpu.memory_space<vmem>>, vector<1x8x32xf32>,
    %1046 = vector.broadcast %11 : vector<8x1xf32> to vector<8x32xf32>
    %1047 = arith.mulf %349, %1046 : vector<8x32xf32>
    %1048 = arith.truncf %1047 : vector<8x32xf32> to vector<8x32xbf16>
    %c3_417 = arith.constant 3 : index
    %c0_418 = arith.constant 0 : index
    %c0_419 = arith.constant 0 : index
    %1049 = vector.load %arg18[%c3_417, %c0_418, %c0_419] : memref<4x32x32xbf16, #tpu.memory_space<vmem>>, vector<1x32x32xbf16>
    %1050 = vector.shape_cast %1049 : vector<1x32x32xbf16> to vector<32x32xbf16>
    %cst_420 = arith.constant dense<0.000000e+00> : vector<8x32xf32>
    %1051 = tpu.matmul %1048, %1050, %cst_420 {dimension_numbers = #tpu.dot_dimension_numbers<[1], [0], [0], [1], [0, 0, 1, 1], [], []>} : vector<8x32xbf16>, vector<32x32xbf16>, vector<8x32xf32> -> vector<8x32xf32>
    %c3_421 = arith.constant 3 : index
    %c0_422 = arith.constant 0 : index
    %c0_423 = arith.constant 0 : index
    %1052 = vector.load %arg19[%c3_421, %c0_422, %c0_423] : memref<4x1x32xf32, #tpu.memory_space<vmem>>, vector<1x1x32xf32>
    %1053 = vector.shape_cast %1052 : vector<1x1x32xf32> to vector<1x32xf32>
    %1054 = vector.broadcast %1053 : vector<1x32xf32> to vector<8x32xf32>
    %1055 = arith.addf %1051, %1054 : vector<8x32xf32>
    %1056 = math.tanh %1055 : vector<8x32xf32>
    %1057 = arith.truncf %1056 : vector<8x32xf32> to vector<8x32xbf16>
    %c3_424 = arith.constant 3 : index
    %c0_425 = arith.constant 0 : index
    %c0_426 = arith.constant 0 : index
    %1058 = vector.load %arg20[%c3_424, %c0_425, %c0_426] : memref<4x32x32xbf16, #tpu.memory_space<vmem>>, vector<1x32x32xbf16>
    %1059 = vector.shape_cast %1058 : vector<1x32x32xbf16> to vector<32x32xbf16>
    %cst_427 = arith.constant dense<0.000000e+00> : vector<8x32xf32>
    %1060 = tpu.matmul %1057, %1059, %cst_427 {dimension_numbers = #tpu.dot_dimension_numbers<[1], [0], [0], [1], [0, 0, 1, 1], [], []>} : vector<8x32xbf16>, vector<32x32xbf16>, vector<8x32xf32> -> vector<8x32xf32>
    %c3_428 = arith.constant 3 : index
    %c0_429 = arith.constant 0 : index
    %c0_430 = arith.constant 0 : index
    %1061 = vector.load %arg21[%c3_428, %c0_429, %c0_430] : memref<4x1x32xf32, #tpu.memory_space<vmem>>, vector<1x1x32xf32>
    %1062 = vector.shape_cast %1061 : vector<1x1x32xf32> to vector<1x32xf32>
    %1063 = vector.broadcast %1062 : vector<1x32xf32> to vector<8x32xf32>
    %1064 = arith.addf %1060, %1063 : vector<8x32xf32>
    %c3_431 = arith.constant 3 : index
    %c0_432 = arith.constant 0 : index
    %c0_433 = arith.constant 0 : index
    %1065 = vector.load %arg22[%c3_431, %c0_432, %c0_433] : memref<4x1x32xf32, #tpu.memory_space<vmem>>, vector<1x1x32xf32>
    %1066 = vector.shape_cast %1065 : vector<1x1x32xf32> to vector<1x32xf32>
    %c3_434 = arith.constant 3 : index
    %c0_435 = arith.constant 0 : index
    %c0_436 = arith.constant 0 : index
    %1067 = vector.load %arg23[%c3_434, %c0_435, %c0_436] : memref<4x1x32xf32, #tpu.memory_space<vmem>>, vector<1x1x32xf32>
    %1068 = vector.shape_cast %1067 : vector<1x1x32xf32> to vector<1x32xf32>
    %cst_437 = arith.constant dense<0.000000e+00> : vector<8xf32>
    %1069 = vector.multi_reduction <add>, %1064, %cst_437 [1] : vector<8x32xf32> to vector<8xf32>
    %1070 = vector.shape_cast %1069 : vector<8xf32> to vector<8x1xf32>
    %cst_438 = arith.constant 3.200000e+01 : f32
    %1071 = vector.broadcast %cst_438 : f32 to vector<8x1xf32>
    %1072 = arith.divf %1070, %1071 : vector<8x1xf32>
    %1073 = vector.broadcast %1072 : vector<8x1xf32> to vector<8x32xf32>
    %1074 = arith.subf %1064, %1073 : vector<8x32xf32>
    %1075 = arith.mulf %1074, %1074 : vector<8x32xf32>
    %cst_439 = arith.constant dense<0.000000e+00> : vector<8xf32>
    %1076 = vector.multi_reduction <add>, %1075, %cst_439 [1] : vector<8x32xf32> to vector<8xf32>
    %1077 = vector.shape_cast %1076 : vector<8xf32> to vector<8x1xf32>
    %cst_440 = arith.constant 3.200000e+01 : f32
    %1078 = vector.broadcast %cst_440 : f32 to vector<8x1xf32>
    %1079 = arith.divf %1077, %1078 : vector<8x1xf32>
    %1080 = vector.broadcast %1072 : vector<8x1xf32> to vector<8x32xf32>
    %1081 = arith.subf %1064, %1080 : vector<8x32xf32>
    %cst_441 = arith.constant 9.99999974E-6 : f32
    %1082 = vector.broadcast %cst_441 : f32 to vector<8x1xf32>
    %1083 = arith.addf %1079, %1082 : vector<8x1xf32>
    %1084 = math.rsqrt %1083 : vector<8x1xf32>
    %1085 = vector.broadcast %1084 : vector<8x1xf32> to vector<8x32xf32>
    %1086 = arith.mulf %1081, %1085 : vector<8x32xf32>
    %1087 = vector.broadcast %1066 : vector<1x32xf32> to vector<8x32xf32>
    %1088 = arith.mulf %1086, %1087 : vector<8x32xf32>
    %1089 = vector.broadcast %1068 : vector<1x32xf32> to vector<8x32xf32>
    %1090 = arith.addf %1088, %1089 : vector<8x32xf32>
    %1091 = vector.broadcast %11 : vector<8x1xf32> to vector<8x32xf32>
    %1092 = arith.mulf %1090, %1091 : vector<8x32xf32>
    %c0_442 = arith.constant 0 : index
    %c0_443 = arith.constant 0 : index
    %c0_444 = arith.constant 0 : index
    %1093 = vector.load %arg27[%c0_442, %c0_443, %c0_444] : memref<1x8x32xf32, #tpu.memory_space<vmem>>, vector<1x8x32xf32>
    %1094 = vector.shape_cast %1093 : vector<1x8x32xf32> to vector<8x32xf32>
    %1095 = vector.shape_cast %1092 : vector<8x32xf32> to vector<1x8x32xf32>
    tpu.vector_store %arg27[%c0_442, %c0_443, %c0_444], %1095 {strides = array<i32>} : memref<1x8x32xf32, #tpu.memory_space<vmem>>, vector<1x8x32xf32>,
    return
  }
  func.func @transform_0(%arg0: i32) -> (i32, i32, i32) {
    %c0_i32 = arith.constant 0 : i32
    %c0_i32_0 = arith.constant 0 : i32
    %c0_i32_1 = arith.constant 0 : i32
    return %arg0, %c0_i32, %c0_i32_0 : i32, i32, i32
  }
  func.func @transform_1(%arg0: i32) -> (i32, i32, i32) {
    %c0_i32 = arith.constant 0 : i32
    %c0_i32_0 = arith.constant 0 : i32
    %c0_i32_1 = arith.constant 0 : i32
    return %arg0, %c0_i32, %c0_i32_0 : i32, i32, i32
  }
  func.func @transform_2(%arg0: i32) -> (i32, i32, i32) {
    %c0_i32 = arith.constant 0 : i32
    %c0_i32_0 = arith.constant 0 : i32
    %c0_i32_1 = arith.constant 0 : i32
    return %arg0, %c0_i32, %c0_i32_0 : i32, i32, i32
  }
  func.func @transform_3(%arg0: i32) -> (i32, i32, i32) {
    %c0_i32 = arith.constant 0 : i32
    %c0_i32_0 = arith.constant 0 : i32
    %c0_i32_1 = arith.constant 0 : i32
    return %arg0, %c0_i32, %c0_i32_0 : i32, i32, i32
  }
  func.func @transform_4(%arg0: i32) -> (i32, i32, i32) {
    %c0_i32 = arith.constant 0 : i32
    %c0_i32_0 = arith.constant 0 : i32
    %c0_i32_1 = arith.constant 0 : i32
    return %arg0, %c0_i32, %c0_i32_0 : i32, i32, i32
  }
  func.func @transform_5(%arg0: i32) -> (i32, i32, i32) {
    %c0_i32 = arith.constant 0 : i32
    %c0_i32_0 = arith.constant 0 : i32
    %c0_i32_1 = arith.constant 0 : i32
    return %arg0, %c0_i32, %c0_i32_0 : i32, i32, i32
  }
  func.func @transform_6(%arg0: i32) -> (i32, i32, i32) {
    %c0_i32 = arith.constant 0 : i32
    %c0_i32_0 = arith.constant 0 : i32
    %c0_i32_1 = arith.constant 0 : i32
    return %arg0, %c0_i32, %c0_i32_0 : i32, i32, i32
  }
  func.func @transform_7(%arg0: i32) -> (i32, i32, i32) {
    %c0_i32 = arith.constant 0 : i32
    %c0_i32_0 = arith.constant 0 : i32
    %c0_i32_1 = arith.constant 0 : i32
    return %arg0, %c0_i32, %c0_i32_0 : i32, i32, i32
  }
  func.func @transform_8(%arg0: i32) -> (i32, i32, i32) {
    %c0_i32 = arith.constant 0 : i32
    %c0_i32_0 = arith.constant 0 : i32
    %c0_i32_1 = arith.constant 0 : i32
    return %arg0, %c0_i32, %c0_i32_0 : i32, i32, i32
  }
  func.func @transform_9(%arg0: i32) -> (i32, i32, i32) {
    %c0_i32 = arith.constant 0 : i32
    %c0_i32_0 = arith.constant 0 : i32
    %c0_i32_1 = arith.constant 0 : i32
    return %arg0, %c0_i32, %c0_i32_0 : i32, i32, i32
  }
  func.func @transform_10(%arg0: i32) -> (i32, i32, i32) {
    %c0_i32 = arith.constant 0 : i32
    %c0_i32_0 = arith.constant 0 : i32
    %c0_i32_1 = arith.constant 0 : i32
    %c0_i32_2 = arith.constant 0 : i32
    return %c0_i32, %c0_i32_0, %c0_i32_1 : i32, i32, i32
  }
  func.func @transform_11(%arg0: i32) -> (i32, i32, i32) {
    %c0_i32 = arith.constant 0 : i32
    %c0_i32_0 = arith.constant 0 : i32
    %c0_i32_1 = arith.constant 0 : i32
    %c0_i32_2 = arith.constant 0 : i32
    return %c0_i32, %c0_i32_0, %c0_i32_1 : i32, i32, i32
  }
  func.func @transform_12(%arg0: i32) -> (i32, i32, i32) {
    %c0_i32 = arith.constant 0 : i32
    %c0_i32_0 = arith.constant 0 : i32
    %c0_i32_1 = arith.constant 0 : i32
    %c0_i32_2 = arith.constant 0 : i32
    return %c0_i32, %c0_i32_0, %c0_i32_1 : i32, i32, i32
  }
  func.func @transform_13(%arg0: i32) -> (i32, i32, i32) {
    %c0_i32 = arith.constant 0 : i32
    %c0_i32_0 = arith.constant 0 : i32
    %c0_i32_1 = arith.constant 0 : i32
    %c0_i32_2 = arith.constant 0 : i32
    return %c0_i32, %c0_i32_0, %c0_i32_1 : i32, i32, i32
  }
  func.func @transform_14(%arg0: i32) -> (i32, i32, i32) {
    %c0_i32 = arith.constant 0 : i32
    %c0_i32_0 = arith.constant 0 : i32
    %c0_i32_1 = arith.constant 0 : i32
    %c0_i32_2 = arith.constant 0 : i32
    return %c0_i32, %c0_i32_0, %c0_i32_1 : i32, i32, i32
  }
  func.func @transform_15(%arg0: i32) -> (i32, i32, i32, i32) {
    %c0_i32 = arith.constant 0 : i32
    %c0_i32_0 = arith.constant 0 : i32
    %c0_i32_1 = arith.constant 0 : i32
    %c0_i32_2 = arith.constant 0 : i32
    %c0_i32_3 = arith.constant 0 : i32
    return %c0_i32, %c0_i32_0, %c0_i32_1, %c0_i32_2 : i32, i32, i32, i32
  }
  func.func @transform_16(%arg0: i32) -> (i32, i32, i32) {
    %c0_i32 = arith.constant 0 : i32
    %c0_i32_0 = arith.constant 0 : i32
    %c0_i32_1 = arith.constant 0 : i32
    %c0_i32_2 = arith.constant 0 : i32
    return %c0_i32, %c0_i32_0, %c0_i32_1 : i32, i32, i32
  }
  func.func @transform_17(%arg0: i32) -> (i32, i32, i32) {
    %c0_i32 = arith.constant 0 : i32
    %c0_i32_0 = arith.constant 0 : i32
    %c0_i32_1 = arith.constant 0 : i32
    %c0_i32_2 = arith.constant 0 : i32
    return %c0_i32, %c0_i32_0, %c0_i32_1 : i32, i32, i32
  }
  func.func @transform_18(%arg0: i32) -> (i32, i32, i32) {
    %c0_i32 = arith.constant 0 : i32
    %c0_i32_0 = arith.constant 0 : i32
    %c0_i32_1 = arith.constant 0 : i32
    %c0_i32_2 = arith.constant 0 : i32
    return %c0_i32, %c0_i32_0, %c0_i32_1 : i32, i32, i32
  }
  func.func @transform_19(%arg0: i32) -> (i32, i32, i32) {
    %c0_i32 = arith.constant 0 : i32
    %c0_i32_0 = arith.constant 0 : i32
    %c0_i32_1 = arith.constant 0 : i32
    %c0_i32_2 = arith.constant 0 : i32
    return %c0_i32, %c0_i32_0, %c0_i32_1 : i32, i32, i32
  }
  func.func @transform_20(%arg0: i32) -> (i32, i32, i32) {
    %c0_i32 = arith.constant 0 : i32
    %c0_i32_0 = arith.constant 0 : i32
    %c0_i32_1 = arith.constant 0 : i32
    %c0_i32_2 = arith.constant 0 : i32
    return %c0_i32, %c0_i32_0, %c0_i32_1 : i32, i32, i32
  }
  func.func @transform_21(%arg0: i32) -> (i32, i32, i32) {
    %c0_i32 = arith.constant 0 : i32
    %c0_i32_0 = arith.constant 0 : i32
    %c0_i32_1 = arith.constant 0 : i32
    %c0_i32_2 = arith.constant 0 : i32
    return %c0_i32, %c0_i32_0, %c0_i32_1 : i32, i32, i32
  }
  func.func @transform_22(%arg0: i32) -> (i32, i32, i32) {
    %c0_i32 = arith.constant 0 : i32
    %c0_i32_0 = arith.constant 0 : i32
    %c0_i32_1 = arith.constant 0 : i32
    %c0_i32_2 = arith.constant 0 : i32
    return %c0_i32, %c0_i32_0, %c0_i32_1 : i32, i32, i32
  }
  func.func @transform_23(%arg0: i32) -> (i32, i32, i32) {
    %c0_i32 = arith.constant 0 : i32
    %c0_i32_0 = arith.constant 0 : i32
    %c0_i32_1 = arith.constant 0 : i32
    return %arg0, %c0_i32, %c0_i32_0 : i32, i32, i32
  }
  func.func @transform_24(%arg0: i32) -> (i32, i32, i32) {
    %c0_i32 = arith.constant 0 : i32
    %c0_i32_0 = arith.constant 0 : i32
    %c0_i32_1 = arith.constant 0 : i32
    return %arg0, %c0_i32, %c0_i32_0 : i32, i32, i32
  }
  func.func @transform_25(%arg0: i32) -> (i32, i32, i32) {
    %c0_i32 = arith.constant 0 : i32
    %c0_i32_0 = arith.constant 0 : i32
    %c0_i32_1 = arith.constant 0 : i32
    return %arg0, %c0_i32, %c0_i32_0 : i32, i32, i32
  }
  func.func @transform_26(%arg0: i32) -> (i32, i32, i32) {
    %c0_i32 = arith.constant 0 : i32
    %c0_i32_0 = arith.constant 0 : i32
    %c0_i32_1 = arith.constant 0 : i32
    return %arg0, %c0_i32, %c0_i32_0 : i32, i32, i32
  }
  func.func @transform_27(%arg0: i32) -> (i32, i32, i32, i32) {
    %c0_i32 = arith.constant 0 : i32
    %c0_i32_0 = arith.constant 0 : i32
    %c0_i32_1 = arith.constant 0 : i32
    %c0_i32_2 = arith.constant 0 : i32
    return %c0_i32, %arg0, %c0_i32_0, %c0_i32_1 : i32, i32, i32, i32
  }
  func.func @transform_28(%arg0: i32) -> (i32, i32, i32, i32) {
    %c0_i32 = arith.constant 0 : i32
    %c0_i32_0 = arith.constant 0 : i32
    %c0_i32_1 = arith.constant 0 : i32
    %c0_i32_2 = arith.constant 0 : i32
    return %c0_i32, %arg0, %c0_i32_0, %c0_i32_1 : i32, i32, i32, i32
  }
  func.func @transform_29(%arg0: i32) -> (i32, i32, i32, i32) {
    %c0_i32 = arith.constant 0 : i32
    %c0_i32_0 = arith.constant 0 : i32
    %c0_i32_1 = arith.constant 0 : i32
    %c0_i32_2 = arith.constant 0 : i32
    return %c0_i32, %arg0, %c0_i32_0, %c0_i32_1 : i32, i32, i32, i32
  }
  func.func @transform_30(%arg0: i32) -> (i32, i32, i32, i32) {
    %c0_i32 = arith.constant 0 : i32
    %c0_i32_0 = arith.constant 0 : i32
    %c0_i32_1 = arith.constant 0 : i32
    %c0_i32_2 = arith.constant 0 : i32
    return %c0_i32, %arg0, %c0_i32_0, %c0_i32_1 : i32, i32, i32, i32
  }
  func.func @transform_31(%arg0: i32) -> (i32, i32, i32, i32) {
    %c0_i32 = arith.constant 0 : i32
    %c0_i32_0 = arith.constant 0 : i32
    %c0_i32_1 = arith.constant 0 : i32
    %c0_i32_2 = arith.constant 0 : i32
    return %c0_i32, %arg0, %c0_i32_0, %c0_i32_1 : i32, i32, i32, i32
  }
  func.func @transform_32(%arg0: i32) -> (i32, i32, i32, i32) {
    %c0_i32 = arith.constant 0 : i32
    %c0_i32_0 = arith.constant 0 : i32
    %c0_i32_1 = arith.constant 0 : i32
    %c0_i32_2 = arith.constant 0 : i32
    return %c0_i32, %arg0, %c0_i32_0, %c0_i32_1 : i32, i32, i32, i32
  }
}

</mosaic_0001>

<llo_original>
// kernel: cross_attention_forward.1
$region0: #{cross_attention_forward.1}
  #allocation0 [shape = 'u32[]', space=smem, size = 0x4, offset = 0x4, fixed_abs, tag = 'smem constant byte address 0x4 - core index']
  #allocation1 [shape = 'u32[144,128]{1,0:T(1,128)}', space=vmem, size = 0x12000, scoped, tag = 'internal scratch']
  %s0 = inlined_call_operand.smem [shape: u32[33], index: -1, kind: input, shape index: {}]
  %s1 = sld [smem:[%s0]]
  %s2 = scalar_lea.smem %s0, 1
  %s3 = sld [smem:[%s2]]
  %s4 = scalar_lea.smem %s0, 2
  %s5 = sld [smem:[%s4]]
  %s6 = scalar_lea.smem %s0, 3
  %s7 = sld [smem:[%s6]]
  %s8 = scalar_lea.smem %s0, 4
  %s9 = sld [smem:[%s8]]
  %s10 = scalar_lea.smem %s0, 5
  %s11 = sld [smem:[%s10]]
  %s12 = scalar_lea.smem %s0, 6
  %s13 = sld [smem:[%s12]]
  %s14 = scalar_lea.smem %s0, 7
  %s15 = sld [smem:[%s14]]
  %s16 = scalar_lea.smem %s0, 8
  %s17 = sld [smem:[%s16]]
  %s18 = scalar_lea.smem %s0, 9
  %s19 = sld [smem:[%s18]]
  %s20 = scalar_lea.smem %s0, 10
  %s21 = sld [smem:[%s20]]
  %s22 = scalar_lea.smem %s0, 11
  %s23 = sld [smem:[%s22]]
  %s24 = scalar_lea.smem %s0, 12
  %s25 = sld [smem:[%s24]]
  %s26 = scalar_lea.smem %s0, 13
  %s27 = sld [smem:[%s26]]
  %s28 = scalar_lea.smem %s0, 14
  %s29 = sld [smem:[%s28]]
  %s30 = scalar_lea.smem %s0, 15
  %s31 = sld [smem:[%s30]]
  %s32 = scalar_lea.smem %s0, 16
  %s33 = sld [smem:[%s32]]
  %s34 = scalar_lea.smem %s0, 17
  %s35 = sld [smem:[%s34]]
  %s36 = scalar_lea.smem %s0, 18
  %s37 = sld [smem:[%s36]]
  %s38 = scalar_lea.smem %s0, 19
  %s39 = sld [smem:[%s38]]
  %s40 = scalar_lea.smem %s0, 20
  %s41 = sld [smem:[%s40]]
  %s42 = scalar_lea.smem %s0, 21
  %s43 = sld [smem:[%s42]]
  %s44 = scalar_lea.smem %s0, 22
  %s45 = sld [smem:[%s44]]
  %s46 = scalar_lea.smem %s0, 23
  %s47 = sld [smem:[%s46]]
  %s48 = scalar_lea.smem %s0, 24
  %s49 = sld [smem:[%s48]]
  %s50 = scalar_lea.smem %s0, 25
  %s51 = sld [smem:[%s50]]
  %s52 = scalar_lea.smem %s0, 26
  %s53 = sld [smem:[%s52]]
  %s54 = scalar_lea.smem %s0, 27
  %s55 = sld [smem:[%s54]]
  %s56 = scalar_lea.smem %s0, 28
  %s57 = sld [smem:[%s56]]
  %s58 = scalar_lea.smem %s0, 29
  %s59 = sld [smem:[%s58]]
  %s60 = scalar_lea.smem %s0, 30
  %s61 = sld [smem:[%s60]]
  %s62 = scalar_lea.smem %s0, 31
  %s63 = sld [smem:[%s62]]
  %s64 = scalar_lea.smem %s0, 32
  %s65 = sld [smem:[%s64]]
  %66 = xla_tuple %s47, %s49, %s51, %s53, %s55, %s57, %s59, %s61, %s63, %s65
  %s67 = sld [smem:[#allocation0]]
  $region249: #{cross_attention_forward.1} parent=0
    _
  %s69 = ssub.s32 1, %s67
  %s70 = scalar_select 0, %s69, %s67
  $region1: #{cross_attention_forward.1} parent=0
    #allocation2 [shape = 'u8[8192]{0}', space=vmem, size = 0x2000, scoped, tag = 'input window, operand 1']
    #allocation3 [shape = 's32[2]{0}', space=sflag, size = 0x8, scoped, tag = 'scoped memory for cross_attention_forward.1']
    #allocation4 [shape = 's32[2]{0}', space=sflag, size = 0x8, scoped, tag = 'scoped memory for cross_attention_forward.1']
    #allocation5 [shape = 'u8[8192]{0}', space=vmem, size = 0x2000, scoped, tag = 'input window, operand 2']
    #allocation6 [shape = 's32[2]{0}', space=sflag, size = 0x8, scoped, tag = 'scoped memory for cross_attention_forward.1']
    #allocation7 [shape = 'u8[12288]{0}', space=vmem, size = 0x3000, scoped, tag = 'input window, operand 10, single buffered']
    #allocation8 [shape = 'u8[12288]{0}', space=vmem, size = 0x3000, scoped, tag = 'input window, operand 11, single buffered']
    #allocation9 [shape = 's32[1]{0}', space=sflag, size = 0x4, scoped, tag = 'scoped memory for cross_attention_forward.1']
    #allocation10 [shape = 'u8[49152]{0}', space=vmem, size = 0xc000, scoped, tag = 'input window, operand 13, single buffered']
    #allocation11 [shape = 'u8[49152]{0}', space=vmem, size = 0xc000, scoped, tag = 'input window, operand 14, single buffered']
    #allocation12 [shape = 's32[1]{0}', space=sflag, size = 0x4, scoped, tag = 'scoped memory for cross_attention_forward.1']
    #allocation13 [shape = 'u8[49152]{0}', space=vmem, size = 0xc000, scoped, tag = 'input window, operand 15, single buffered']
    #allocation14 [shape = 'u8[16384]{0}', space=vmem, size = 0x4000, scoped, tag = 'input window, operand 16, single buffered']
    #allocation15 [shape = 's32[1]{0}', space=sflag, size = 0x4, scoped, tag = 'scoped memory for cross_attention_forward.1']
    #allocation16 [shape = 'u8[2048]{0}', space=vmem, size = 0x800, scoped, tag = 'input window, operand 18, single buffered']
    #allocation17 [shape = 'u8[32768]{0}', space=vmem, size = 0x8000, scoped, tag = 'input window, operand 19, single buffered']
    #allocation18 [shape = 's32[1]{0}', space=sflag, size = 0x4, scoped, tag = 'scoped memory for cross_attention_forward.1']
    #allocation19 [shape = 'u8[2048]{0}', space=vmem, size = 0x800, scoped, tag = 'input window, operand 20, single buffered']
    #allocation20 [shape = 'u8[2048]{0}', space=vmem, size = 0x800, scoped, tag = 'input window, operand 21, single buffered']
    #allocation21 [shape = 's32[1]{0}', space=sflag, size = 0x4, scoped, tag = 'scoped memory for cross_attention_forward.1']
    #allocation22 [shape = 'u8[2048]{0}', space=vmem, size = 0x800, scoped, tag = 'input window, operand 22, single buffered']
    #allocation23 [shape = 'u8[8192]{0}', space=vmem, size = 0x2000, scoped, tag = 'output window, operand 0']
    #allocation24 [shape = 'u8[8192]{0}', space=vmem, size = 0x2000, scoped, tag = 'output window, operand 1']
    #allocation25 [shape = 's32[2]{0}', space=sflag, size = 0x8, scoped, tag = 'scoped memory for cross_attention_forward.1']
    #allocation26 [shape = 'u8[8192]{0}', space=vmem, size = 0x2000, scoped, tag = 'output window, operand 2']
    #allocation27 [shape = 'u8[8192]{0}', space=vmem, size = 0x2000, scoped, tag = 'output window, operand 3']
    #allocation28 [shape = 's32[2]{0}', space=sflag, size = 0x8, scoped, tag = 'scoped memory for cross_attention_forward.1']
    #allocation29 [shape = 'u8[16384]{0}', space=vmem, size = 0x4000, scoped, tag = 'output window, operand 4']
    #allocation30 [shape = 'u8[16384]{0}', space=vmem, size = 0x4000, scoped, tag = 'output window, operand 5']
    #allocation31 [shape = 's32[2]{0}', space=sflag, size = 0x8, scoped, tag = 'scoped memory for cross_attention_forward.1']
    #allocation32 [shape = 'u8[16384]{0}', space=vmem, size = 0x4000, scoped, tag = 'output window, operand 6']
    #allocation33 [shape = 'u8[16384]{0}', space=vmem, size = 0x4000, scoped, tag = 'output window, operand 7']
    #allocation34 [shape = 's32[2]{0}', space=sflag, size = 0x8, scoped, tag = 'scoped memory for cross_attention_forward.1']
    #allocation35 [shape = 'u8[16384]{0}', space=vmem, size = 0x4000, scoped, tag = 'output window, operand 8']
    #allocation36 [shape = 'u8[16384]{0}', space=vmem, size = 0x4000, scoped, tag = 'output window, operand 9']
    #allocation37 [shape = 's32[2]{0}', space=sflag, size = 0x8, scoped, tag = 'scoped memory for cross_attention_forward.1']
    %71 = vsyncpa [#allocation3], 0
    %s72 = scalar_lea.sflag [#allocation3], 1
    %73 = vsyncpa %s72, 0
    %74 = vsyncpa [#allocation6], 0
    %s75 = scalar_lea.sflag [#allocation6], 1
    %76 = vsyncpa %s75, 0
    %77 = vsyncpa [#allocation9], 0
    %78 = vsyncpa [#allocation12], 0
    %79 = vsyncpa [#allocation15], 0
    %80 = vsyncpa [#allocation18], 0
    %81 = vsyncpa [#allocation21], 0
    %82 = vsyncpa [#allocation4], 0
    %s83 = scalar_lea.sflag [#allocation4], 1
    %84 = vsyncpa %s83, 0
    %85 = vsyncpa [#allocation25], 0
    %s86 = scalar_lea.sflag [#allocation25], 1
    %87 = vsyncpa %s86, 0
    %88 = vsyncpa [#allocation28], 0
    %s89 = scalar_lea.sflag [#allocation28], 1
    %90 = vsyncpa %s89, 0
    %91 = vsyncpa [#allocation31], 0
    %s92 = scalar_lea.sflag [#allocation31], 1
    %93 = vsyncpa %s92, 0
    %94 = vsyncpa [#allocation34], 0
    %s95 = scalar_lea.sflag [#allocation34], 1
    %96 = vsyncpa %s95, 0
    %97 = vsyncpa [#allocation37], 0
    %s98 = scalar_lea.sflag [#allocation37], 1
    %99 = vsyncpa %s98, 0
    loop: start=0, step=1, limit=4
    $region2: #{cross_attention_forward.1} parent=1 // loop_pre_header
      _
    $region3: #{cross_attention_forward.1} parent=1 // loop_header
      %s101 = sphi 0, %s105
      %p102 = scmp.ge.s32.totalorder %s101, 4
      %s111 = sphi 0, %s113
      %s114 = sphi 0, %s111
      %s115 = sphi 0, %s114
      %s131 = sphi 0, %s115
      %s137 = sphi 0, %s139
      %s140 = sphi 0, %s137
      %s141 = sphi 0, %s140
      %s157 = sphi 0, %s141
      %s163 = sphi 0, %s165
      %s166 = sphi 0, %s163
      %s167 = sphi 0, %s166
      %s183 = sphi 0, %s167
      %s189 = sphi 0, %s191
      %s192 = sphi 0, %s189
      %s193 = sphi 0, %s192
      %s209 = sphi 0, %s193
      %s215 = sphi 0, %s217
      %s218 = sphi 0, %s215
      %s219 = sphi 0, %s218
      %s235 = sphi 0, %s219
      %s241 = sphi 0, %s243
      %s244 = sphi 0, %s241
      %s245 = sphi 0, %s244
      %s261 = sphi 0, %s245
      %s267 = sphi 0, %s269
      %s270 = sphi 0, %s267
      %s271 = sphi 0, %s270
      %s287 = sphi 0, %s271
      %s293 = sphi 0, %s295
      %s296 = sphi 0, %s293
      %s297 = sphi 0, %s296
      %s313 = sphi 0, %s297
      %s319 = sphi 0, %s321
      %s322 = sphi 0, %s319
      %s323 = sphi 0, %s322
      %s339 = sphi 0, %s323
      %s345 = sphi 0, %s347
      %s348 = sphi 0, %s345
      %s349 = sphi 0, %s348
      %s365 = sphi 0, %s349
      %s369 = sphi 0, %s369
      %s371 = sphi 0, %s369
      %s372 = sphi 0, %s371
      %s386 = sphi 0, %s372
      %s390 = sphi 0, %s390
      %s392 = sphi 0, %s390
      %s393 = sphi 0, %s392
      %s407 = sphi 0, %s393
      %s411 = sphi 0, %s411
      %s413 = sphi 0, %s411
      %s414 = sphi 0, %s413
      %s428 = sphi 0, %s414
      %s432 = sphi 0, %s432
      %s434 = sphi 0, %s432
      %s435 = sphi 0, %s434
      %s449 = sphi 0, %s435
      %s453 = sphi 0, %s453
      %s455 = sphi 0, %s453
      %s456 = sphi 0, %s455
      %s470 = sphi 0, %s456
      %s474 = sphi 0, %s474
      %s476 = sphi 0, %s474
      %s477 = sphi 0, %s476
      %s491 = sphi 0, %s477
      %s495 = sphi 0, %s495
      %s497 = sphi 0, %s495
      %s498 = sphi 0, %s497
      %s512 = sphi 0, %s498
      %s516 = sphi 0, %s516
      %s518 = sphi 0, %s516
      %s519 = sphi 0, %s518
      %s533 = sphi 0, %s519
      %s537 = sphi 0, %s537
      %s539 = sphi 0, %s537
      %s540 = sphi 0, %s539
      %s554 = sphi 0, %s540
      %s558 = sphi 0, %s558
      %s560 = sphi 0, %s558
      %s561 = sphi 0, %s560
      %s575 = sphi 0, %s561
      %s579 = sphi 0, %s579
      %s581 = sphi 0, %s579
      %s582 = sphi 0, %s581
      %s596 = sphi 0, %s582
      %s600 = sphi 0, %s600
      %s602 = sphi 0, %s600
      %s603 = sphi 0, %s602
      %s617 = sphi 0, %s603
      %s621 = sphi 0, %s621
      %s623 = sphi 0, %s621
      %s624 = sphi 0, %s623
      %s638 = sphi 0, %s624
      %s644 = sphi 0, %s646
      %s647 = sphi 0, %s644
      %s648 = sphi 0, %s647
      %s664 = sphi 0, %s648
      %s670 = sphi 0, %s672
      %s673 = sphi 0, %s670
      %s674 = sphi 0, %s673
      %s690 = sphi 0, %s674
      %s696 = sphi 0, %s698
      %s699 = sphi 0, %s696
      %s700 = sphi 0, %s699
      %s716 = sphi 0, %s700
      %s722 = sphi 0, %s724
      %s725 = sphi 0, %s722
      %s726 = sphi 0, %s725
      %s742 = sphi 0, %s726
      %s748 = sphi 0, %s750
      %s751 = sphi 0, %s748
      %s752 = sphi 0, %s751
      %s768 = sphi 0, %s752
      %s774 = sphi 0, %s776
      %s777 = sphi 0, %s774
      %s778 = sphi 0, %s777
      %s794 = sphi 0, %s778
      %s800 = sphi 0, %s802
      %s803 = sphi 0, %s800
      %s804 = sphi 0, %s803
      %s820 = sphi 0, %s804
      %s826 = sphi 0, %s828
      %s829 = sphi 0, %s826
      %s830 = sphi 0, %s829
      %s846 = sphi 0, %s830
      %s852 = sphi 0, %s854
      %s855 = sphi 0, %s852
      %s856 = sphi 0, %s855
      %s872 = sphi 0, %s856
      %s878 = sphi 0, %s880
      %s881 = sphi 0, %s878
      %s882 = sphi 0, %s881
      %s898 = sphi 0, %s882
    $region4: #{cross_attention_forward.1} parent=1 // loop_header_branch
      %104 = sbr.rel (%p102) target = $region8
    $region5: #{cross_attention_forward.1} parent=1 // loop_body
      %s106 = ssub.s32 %s101, 1
      %s107 = ssub.s32 %s101, 2
      %s108 = sadd.s32 %s101, 1
      %s109 = ssub.s32 %s101, %s108
      %p110 = scmp.eq.s32.totalorder %s109, 0
      %s112 = sadd.s32 %s111, 1
      %s113 = scalar_select %p110, %s111, %s112
      %p116 = pneg %p110
      %p117 = scmp.eq.s32.totalorder %s101, 1
      %p118 = por %p116, %p117
      %p119 = scmp.ne.s32.totalorder %s111, %s114
      %p120 = scmp.eq.s32.totalorder %s101, 0
      %p121 = por %p119, %p120
      %p122 = scmp.ne.s32.totalorder %s111, %s114
      %p123 = scmp.eq.s32.totalorder %s106, 1
      %p124 = por %p122, %p123
      %p125 = scmp.ne.s32.totalorder %s114, %s115
      %p126 = scmp.eq.s32.totalorder %s106, 0
      %p127 = por %p125, %p126
      %p128 = scmp.ne.s32.totalorder %s114, %s115
      %p129 = scmp.eq.s32.totalorder %s107, 1
      %p130 = por %p128, %p129
      %p132 = scmp.ne.s32.totalorder %s115, %s131
      %p133 = scmp.eq.s32.totalorder %s107, 0
      %p134 = por %p132, %p133
      %s135 = ssub.s32 %s101, %s108
      %p136 = scmp.eq.s32.totalorder %s135, 0
      %s138 = sadd.s32 %s137, 1
      %s139 = scalar_select %p136, %s137, %s138
      %p142 = pneg %p136
      %p143 = scmp.eq.s32.totalorder %s101, 1
      %p144 = por %p142, %p143
      %p145 = scmp.ne.s32.totalorder %s137, %s140
      %p146 = scmp.eq.s32.totalorder %s101, 0
      %p147 = por %p145, %p146
      %p148 = scmp.ne.s32.totalorder %s137, %s140
      %p149 = scmp.eq.s32.totalorder %s106, 1
      %p150 = por %p148, %p149
      %p151 = scmp.ne.s32.totalorder %s140, %s141
      %p152 = scmp.eq.s32.totalorder %s106, 0
      %p153 = por %p151, %p152
      %p154 = scmp.ne.s32.totalorder %s140, %s141
      %p155 = scmp.eq.s32.totalorder %s107, 1
      %p156 = por %p154, %p155
      %p158 = scmp.ne.s32.totalorder %s141, %s157
      %p159 = scmp.eq.s32.totalorder %s107, 0
      %p160 = por %p158, %p159
      %s161 = ssub.s32 %s101, %s108
      %p162 = scmp.eq.s32.totalorder %s161, 0
      %s164 = sadd.s32 %s163, 1
      %s165 = scalar_select %p162, %s163, %s164
      %p168 = pneg %p162
      %p169 = scmp.eq.s32.totalorder %s101, 1
      %p170 = por %p168, %p169
      %p171 = scmp.ne.s32.totalorder %s163, %s166
      %p172 = scmp.eq.s32.totalorder %s101, 0
      %p173 = por %p171, %p172
      %p174 = scmp.ne.s32.totalorder %s163, %s166
      %p175 = scmp.eq.s32.totalorder %s106, 1
      %p176 = por %p174, %p175
      %p177 = scmp.ne.s32.totalorder %s166, %s167
      %p178 = scmp.eq.s32.totalorder %s106, 0
      %p179 = por %p177, %p178
      %p180 = scmp.ne.s32.totalorder %s166, %s167
      %p181 = scmp.eq.s32.totalorder %s107, 1
      %p182 = por %p180, %p181
      %p184 = scmp.ne.s32.totalorder %s167, %s183
      %p185 = scmp.eq.s32.totalorder %s107, 0
      %p186 = por %p184, %p185
      %s187 = ssub.s32 %s101, %s108
      %p188 = scmp.eq.s32.totalorder %s187, 0
      %s190 = sadd.s32 %s189, 1
      %s191 = scalar_select %p188, %s189, %s190
      %p194 = pneg %p188
      %p195 = scmp.eq.s32.totalorder %s101, 1
      %p196 = por %p194, %p195
      %p197 = scmp.ne.s32.totalorder %s189, %s192
      %p198 = scmp.eq.s32.totalorder %s101, 0
      %p199 = por %p197, %p198
      %p200 = scmp.ne.s32.totalorder %s189, %s192
      %p201 = scmp.eq.s32.totalorder %s106, 1
      %p202 = por %p200, %p201
      %p203 = scmp.ne.s32.totalorder %s192, %s193
      %p204 = scmp.eq.s32.totalorder %s106, 0
      %p205 = por %p203, %p204
      %p206 = scmp.ne.s32.totalorder %s192, %s193
      %p207 = scmp.eq.s32.totalorder %s107, 1
      %p208 = por %p206, %p207
      %p210 = scmp.ne.s32.totalorder %s193, %s209
      %p211 = scmp.eq.s32.totalorder %s107, 0
      %p212 = por %p210, %p211
      %s213 = ssub.s32 %s101, %s108
      %p214 = scmp.eq.s32.totalorder %s213, 0
      %s216 = sadd.s32 %s215, 1
      %s217 = scalar_select %p214, %s215, %s216
      %p220 = pneg %p214
      %p221 = scmp.eq.s32.totalorder %s101, 1
      %p222 = por %p220, %p221
      %p223 = scmp.ne.s32.totalorder %s215, %s218
      %p224 = scmp.eq.s32.totalorder %s101, 0
      %p225 = por %p223, %p224
      %p226 = scmp.ne.s32.totalorder %s215, %s218
      %p227 = scmp.eq.s32.totalorder %s106, 1
      %p228 = por %p226, %p227
      %p229 = scmp.ne.s32.totalorder %s218, %s219
      %p230 = scmp.eq.s32.totalorder %s106, 0
      %p231 = por %p229, %p230
      %p232 = scmp.ne.s32.totalorder %s218, %s219
      %p233 = scmp.eq.s32.totalorder %s107, 1
      %p234 = por %p232, %p233
      %p236 = scmp.ne.s32.totalorder %s219, %s235
      %p237 = scmp.eq.s32.totalorder %s107, 0
      %p238 = por %p236, %p237
      %s239 = ssub.s32 %s101, %s108
      %p240 = scmp.eq.s32.totalorder %s239, 0
      %s242 = sadd.s32 %s241, 1
      %s243 = scalar_select %p240, %s241, %s242
      %p246 = pneg %p240
      %p247 = scmp.eq.s32.totalorder %s101, 1
      %p248 = por %p246, %p247
      %p249 = scmp.ne.s32.totalorder %s241, %s244
      %p250 = scmp.eq.s32.totalorder %s101, 0
      %p251 = por %p249, %p250
      %p252 = scmp.ne.s32.totalorder %s241, %s244
      %p253 = scmp.eq.s32.totalorder %s106, 1
      %p254 = por %p252, %p253
      %p255 = scmp.ne.s32.totalorder %s244, %s245
      %p256 = scmp.eq.s32.totalorder %s106, 0
      %p257 = por %p255, %p256
      %p258 = scmp.ne.s32.totalorder %s244, %s245
      %p259 = scmp.eq.s32.totalorder %s107, 1
      %p260 = por %p258, %p259
      %p262 = scmp.ne.s32.totalorder %s245, %s261
      %p263 = scmp.eq.s32.totalorder %s107, 0
      %p264 = por %p262, %p263
      %s265 = ssub.s32 %s101, %s108
      %p266 = scmp.eq.s32.totalorder %s265, 0
      %s268 = sadd.s32 %s267, 1
      %s269 = scalar_select %p266, %s267, %s268
      %p272 = pneg %p266
      %p273 = scmp.eq.s32.totalorder %s101, 1
      %p274 = por %p272, %p273
      %p275 = scmp.ne.s32.totalorder %s267, %s270
      %p276 = scmp.eq.s32.totalorder %s101, 0
      %p277 = por %p275, %p276
      %p278 = scmp.ne.s32.totalorder %s267, %s270
      %p279 = scmp.eq.s32.totalorder %s106, 1
      %p280 = por %p278, %p279
      %p281 = scmp.ne.s32.totalorder %s270, %s271
      %p282 = scmp.eq.s32.totalorder %s106, 0
      %p283 = por %p281, %p282
      %p284 = scmp.ne.s32.totalorder %s270, %s271
      %p285 = scmp.eq.s32.totalorder %s107, 1
      %p286 = por %p284, %p285
      %p288 = scmp.ne.s32.totalorder %s271, %s287
      %p289 = scmp.eq.s32.totalorder %s107, 0
      %p290 = por %p288, %p289
      %s291 = ssub.s32 %s101, %s108
      %p292 = scmp.eq.s32.totalorder %s291, 0
      %s294 = sadd.s32 %s293, 1
      %s295 = scalar_select %p292, %s293, %s294
      %p298 = pneg %p292
      %p299 = scmp.eq.s32.totalorder %s101, 1
      %p300 = por %p298, %p299
      %p301 = scmp.ne.s32.totalorder %s293, %s296
      %p302 = scmp.eq.s32.totalorder %s101, 0
      %p303 = por %p301, %p302
      %p304 = scmp.ne.s32.totalorder %s293, %s296
      %p305 = scmp.eq.s32.totalorder %s106, 1
      %p306 = por %p304, %p305
      %p307 = scmp.ne.s32.totalorder %s296, %s297
      %p308 = scmp.eq.s32.totalorder %s106, 0
      %p309 = por %p307, %p308
      %p310 = scmp.ne.s32.totalorder %s296, %s297
      %p311 = scmp.eq.s32.totalorder %s107, 1
      %p312 = por %p310, %p311
      %p314 = scmp.ne.s32.totalorder %s297, %s313
      %p315 = scmp.eq.s32.totalorder %s107, 0
      %p316 = por %p314, %p315
      %s317 = ssub.s32 %s101, %s108
      %p318 = scmp.eq.s32.totalorder %s317, 0
      %s320 = sadd.s32 %s319, 1
      %s321 = scalar_select %p318, %s319, %s320
      %p324 = pneg %p318
      %p325 = scmp.eq.s32.totalorder %s101, 1
      %p326 = por %p324, %p325
      %p327 = scmp.ne.s32.totalorder %s319, %s322
      %p328 = scmp.eq.s32.totalorder %s101, 0
      %p329 = por %p327, %p328
      %p330 = scmp.ne.s32.totalorder %s319, %s322
      %p331 = scmp.eq.s32.totalorder %s106, 1
      %p332 = por %p330, %p331
      %p333 = scmp.ne.s32.totalorder %s322, %s323
      %p334 = scmp.eq.s32.totalorder %s106, 0
      %p335 = por %p333, %p334
      %p336 = scmp.ne.s32.totalorder %s322, %s323
      %p337 = scmp.eq.s32.totalorder %s107, 1
      %p338 = por %p336, %p337
      %p340 = scmp.ne.s32.totalorder %s323, %s339
      %p341 = scmp.eq.s32.totalorder %s107, 0
      %p342 = por %p340, %p341
      %s343 = ssub.s32 %s101, %s108
      %p344 = scmp.eq.s32.totalorder %s343, 0
      %s346 = sadd.s32 %s345, 1
      %s347 = scalar_select %p344, %s345, %s346
      %p350 = pneg %p344
      %p351 = scmp.eq.s32.totalorder %s101, 1
      %p352 = por %p350, %p351
      %p353 = scmp.ne.s32.totalorder %s345, %s348
      %p354 = scmp.eq.s32.totalorder %s101, 0
      %p355 = por %p353, %p354
      %p356 = scmp.ne.s32.totalorder %s345, %s348
      %p357 = scmp.eq.s32.totalorder %s106, 1
      %p358 = por %p356, %p357
      %p359 = scmp.ne.s32.totalorder %s348, %s349
      %p360 = scmp.eq.s32.totalorder %s106, 0
      %p361 = por %p359, %p360
      %p362 = scmp.ne.s32.totalorder %s348, %s349
      %p363 = scmp.eq.s32.totalorder %s107, 1
      %p364 = por %p362, %p363
      %p366 = scmp.ne.s32.totalorder %s349, %s365
      %p367 = scmp.eq.s32.totalorder %s107, 0
      %p368 = por %p366, %p367
      %s370 = sadd.s32 %s369, 1
      %p373 = scmp.eq.s32.totalorder %s101, 1
      %p374 = scmp.ne.s32.totalorder %s369, %s371
      %p375 = scmp.eq.s32.totalorder %s101, 0
      %p376 = por %p374, %p375
      %p377 = scmp.ne.s32.totalorder %s369, %s371
      %p378 = scmp.eq.s32.totalorder %s106, 1
      %p379 = por %p377, %p378
      %p380 = scmp.ne.s32.totalorder %s371, %s372
      %p381 = scmp.eq.s32.totalorder %s106, 0
      %p382 = por %p380, %p381
      %p383 = scmp.ne.s32.totalorder %s371, %s372
      %p384 = scmp.eq.s32.totalorder %s107, 1
      %p385 = por %p383, %p384
      %p387 = scmp.ne.s32.totalorder %s372, %s386
      %p388 = scmp.eq.s32.totalorder %s107, 0
      %p389 = por %p387, %p388
      %s391 = sadd.s32 %s390, 1
      %p394 = scmp.eq.s32.totalorder %s101, 1
      %p395 = scmp.ne.s32.totalorder %s390, %s392
      %p396 = scmp.eq.s32.totalorder %s101, 0
      %p397 = por %p395, %p396
      %p398 = scmp.ne.s32.totalorder %s390, %s392
      %p399 = scmp.eq.s32.totalorder %s106, 1
      %p400 = por %p398, %p399
      %p401 = scmp.ne.s32.totalorder %s392, %s393
      %p402 = scmp.eq.s32.totalorder %s106, 0
      %p403 = por %p401, %p402
      %p404 = scmp.ne.s32.totalorder %s392, %s393
      %p405 = scmp.eq.s32.totalorder %s107, 1
      %p406 = por %p404, %p405
      %p408 = scmp.ne.s32.totalorder %s393, %s407
      %p409 = scmp.eq.s32.totalorder %s107, 0
      %p410 = por %p408, %p409
      %s412 = sadd.s32 %s411, 1
      %p415 = scmp.eq.s32.totalorder %s101, 1
      %p416 = scmp.ne.s32.totalorder %s411, %s413
      %p417 = scmp.eq.s32.totalorder %s101, 0
      %p418 = por %p416, %p417
      %p419 = scmp.ne.s32.totalorder %s411, %s413
      %p420 = scmp.eq.s32.totalorder %s106, 1
      %p421 = por %p419, %p420
      %p422 = scmp.ne.s32.totalorder %s413, %s414
      %p423 = scmp.eq.s32.totalorder %s106, 0
      %p424 = por %p422, %p423
      %p425 = scmp.ne.s32.totalorder %s413, %s414
      %p426 = scmp.eq.s32.totalorder %s107, 1
      %p427 = por %p425, %p426
      %p429 = scmp.ne.s32.totalorder %s414, %s428
      %p430 = scmp.eq.s32.totalorder %s107, 0
      %p431 = por %p429, %p430
      %s433 = sadd.s32 %s432, 1
      %p436 = scmp.eq.s32.totalorder %s101, 1
      %p437 = scmp.ne.s32.totalorder %s432, %s434
      %p438 = scmp.eq.s32.totalorder %s101, 0
      %p439 = por %p437, %p438
      %p440 = scmp.ne.s32.totalorder %s432, %s434
      %p441 = scmp.eq.s32.totalorder %s106, 1
      %p442 = por %p440, %p441
      %p443 = scmp.ne.s32.totalorder %s434, %s435
      %p444 = scmp.eq.s32.totalorder %s106, 0
      %p445 = por %p443, %p444
      %p446 = scmp.ne.s32.totalorder %s434, %s435
      %p447 = scmp.eq.s32.totalorder %s107, 1
      %p448 = por %p446, %p447
      %p450 = scmp.ne.s32.totalorder %s435, %s449
      %p451 = scmp.eq.s32.totalorder %s107, 0
      %p452 = por %p450, %p451
      %s454 = sadd.s32 %s453, 1
      %p457 = scmp.eq.s32.totalorder %s101, 1
      %p458 = scmp.ne.s32.totalorder %s453, %s455
      %p459 = scmp.eq.s32.totalorder %s101, 0
      %p460 = por %p458, %p459
      %p461 = scmp.ne.s32.totalorder %s453, %s455
      %p462 = scmp.eq.s32.totalorder %s106, 1
      %p463 = por %p461, %p462
      %p464 = scmp.ne.s32.totalorder %s455, %s456
      %p465 = scmp.eq.s32.totalorder %s106, 0
      %p466 = por %p464, %p465
      %p467 = scmp.ne.s32.totalorder %s455, %s456
      %p468 = scmp.eq.s32.totalorder %s107, 1
      %p469 = por %p467, %p468
      %p471 = scmp.ne.s32.totalorder %s456, %s470
      %p472 = scmp.eq.s32.totalorder %s107, 0
      %p473 = por %p471, %p472
      %s475 = sadd.s32 %s474, 1
      %p478 = scmp.eq.s32.totalorder %s101, 1
      %p479 = scmp.ne.s32.totalorder %s474, %s476
      %p480 = scmp.eq.s32.totalorder %s101, 0
      %p481 = por %p479, %p480
      %p482 = scmp.ne.s32.totalorder %s474, %s476
      %p483 = scmp.eq.s32.totalorder %s106, 1
      %p484 = por %p482, %p483
      %p485 = scmp.ne.s32.totalorder %s476, %s477
      %p486 = scmp.eq.s32.totalorder %s106, 0
      %p487 = por %p485, %p486
      %p488 = scmp.ne.s32.totalorder %s476, %s477
      %p489 = scmp.eq.s32.totalorder %s107, 1
      %p490 = por %p488, %p489
      %p492 = scmp.ne.s32.totalorder %s477, %s491
      %p493 = scmp.eq.s32.totalorder %s107, 0
      %p494 = por %p492, %p493
      %s496 = sadd.s32 %s495, 1
      %p499 = scmp.eq.s32.totalorder %s101, 1
      %p500 = scmp.ne.s32.totalorder %s495, %s497
      %p501 = scmp.eq.s32.totalorder %s101, 0
      %p502 = por %p500, %p501
      %p503 = scmp.ne.s32.totalorder %s495, %s497
      %p504 = scmp.eq.s32.totalorder %s106, 1
      %p505 = por %p503, %p504
      %p506 = scmp.ne.s32.totalorder %s497, %s498
      %p507 = scmp.eq.s32.totalorder %s106, 0
      %p508 = por %p506, %p507
      %p509 = scmp.ne.s32.totalorder %s497, %s498
      %p510 = scmp.eq.s32.totalorder %s107, 1
      %p511 = por %p509, %p510
      %p513 = scmp.ne.s32.totalorder %s498, %s512
      %p514 = scmp.eq.s32.totalorder %s107, 0
      %p515 = por %p513, %p514
      %s517 = sadd.s32 %s516, 1
      %p520 = scmp.eq.s32.totalorder %s101, 1
      %p521 = scmp.ne.s32.totalorder %s516, %s518
      %p522 = scmp.eq.s32.totalorder %s101, 0
      %p523 = por %p521, %p522
      %p524 = scmp.ne.s32.totalorder %s516, %s518
      %p525 = scmp.eq.s32.totalorder %s106, 1
      %p526 = por %p524, %p525
      %p527 = scmp.ne.s32.totalorder %s518, %s519
      %p528 = scmp.eq.s32.totalorder %s106, 0
      %p529 = por %p527, %p528
      %p530 = scmp.ne.s32.totalorder %s518, %s519
      %p531 = scmp.eq.s32.totalorder %s107, 1
      %p532 = por %p530, %p531
      %p534 = scmp.ne.s32.totalorder %s519, %s533
      %p535 = scmp.eq.s32.totalorder %s107, 0
      %p536 = por %p534, %p535
      %s538 = sadd.s32 %s537, 1
      %p541 = scmp.eq.s32.totalorder %s101, 1
      %p542 = scmp.ne.s32.totalorder %s537, %s539
      %p543 = scmp.eq.s32.totalorder %s101, 0
      %p544 = por %p542, %p543
      %p545 = scmp.ne.s32.totalorder %s537, %s539
      %p546 = scmp.eq.s32.totalorder %s106, 1
      %p547 = por %p545, %p546
      %p548 = scmp.ne.s32.totalorder %s539, %s540
      %p549 = scmp.eq.s32.totalorder %s106, 0
      %p550 = por %p548, %p549
      %p551 = scmp.ne.s32.totalorder %s539, %s540
      %p552 = scmp.eq.s32.totalorder %s107, 1
      %p553 = por %p551, %p552
      %p555 = scmp.ne.s32.totalorder %s540, %s554
      %p556 = scmp.eq.s32.totalorder %s107, 0
      %p557 = por %p555, %p556
      %s559 = sadd.s32 %s558, 1
      %p562 = scmp.eq.s32.totalorder %s101, 1
      %p563 = scmp.ne.s32.totalorder %s558, %s560
      %p564 = scmp.eq.s32.totalorder %s101, 0
      %p565 = por %p563, %p564
      %p566 = scmp.ne.s32.totalorder %s558, %s560
      %p567 = scmp.eq.s32.totalorder %s106, 1
      %p568 = por %p566, %p567
      %p569 = scmp.ne.s32.totalorder %s560, %s561
      %p570 = scmp.eq.s32.totalorder %s106, 0
      %p571 = por %p569, %p570
      %p572 = scmp.ne.s32.totalorder %s560, %s561
      %p573 = scmp.eq.s32.totalorder %s107, 1
      %p574 = por %p572, %p573
      %p576 = scmp.ne.s32.totalorder %s561, %s575
      %p577 = scmp.eq.s32.totalorder %s107, 0
      %p578 = por %p576, %p577
      %s580 = sadd.s32 %s579, 1
      %p583 = scmp.eq.s32.totalorder %s101, 1
      %p584 = scmp.ne.s32.totalorder %s579, %s581
      %p585 = scmp.eq.s32.totalorder %s101, 0
      %p586 = por %p584, %p585
      %p587 = scmp.ne.s32.totalorder %s579, %s581
      %p588 = scmp.eq.s32.totalorder %s106, 1
      %p589 = por %p587, %p588
      %p590 = scmp.ne.s32.totalorder %s581, %s582
      %p591 = scmp.eq.s32.totalorder %s106, 0
      %p592 = por %p590, %p591
      %p593 = scmp.ne.s32.totalorder %s581, %s582
      %p594 = scmp.eq.s32.totalorder %s107, 1
      %p595 = por %p593, %p594
      %p597 = scmp.ne.s32.totalorder %s582, %s596
      %p598 = scmp.eq.s32.totalorder %s107, 0
      %p599 = por %p597, %p598
      %s601 = sadd.s32 %s600, 1
      %p604 = scmp.eq.s32.totalorder %s101, 1
      %p605 = scmp.ne.s32.totalorder %s600, %s602
      %p606 = scmp.eq.s32.totalorder %s101, 0
      %p607 = por %p605, %p606
      %p608 = scmp.ne.s32.totalorder %s600, %s602
      %p609 = scmp.eq.s32.totalorder %s106, 1
      %p610 = por %p608, %p609
      %p611 = scmp.ne.s32.totalorder %s602, %s603
      %p612 = scmp.eq.s32.totalorder %s106, 0
      %p613 = por %p611, %p612
      %p614 = scmp.ne.s32.totalorder %s602, %s603
      %p615 = scmp.eq.s32.totalorder %s107, 1
      %p616 = por %p614, %p615
      %p618 = scmp.ne.s32.totalorder %s603, %s617
      %p619 = scmp.eq.s32.totalorder %s107, 0
      %p620 = por %p618, %p619
      %s622 = sadd.s32 %s621, 1
      %p625 = scmp.eq.s32.totalorder %s101, 1
      %p626 = scmp.ne.s32.totalorder %s621, %s623
      %p627 = scmp.eq.s32.totalorder %s101, 0
      %p628 = por %p626, %p627
      %p629 = scmp.ne.s32.totalorder %s621, %s623
      %p630 = scmp.eq.s32.totalorder %s106, 1
      %p631 = por %p629, %p630
      %p632 = scmp.ne.s32.totalorder %s623, %s624
      %p633 = scmp.eq.s32.totalorder %s106, 0
      %p634 = por %p632, %p633
      %p635 = scmp.ne.s32.totalorder %s623, %s624
      %p636 = scmp.eq.s32.totalorder %s107, 1
      %p637 = por %p635, %p636
      %p639 = scmp.ne.s32.totalorder %s624, %s638
      %p640 = scmp.eq.s32.totalorder %s107, 0
      %p641 = por %p639, %p640
      %s642 = ssub.s32 %s101, %s108
      %p643 = scmp.eq.s32.totalorder %s642, 0
      %s645 = sadd.s32 %s644, 1
      %s646 = scalar_select %p643, %s644, %s645
      %p649 = pneg %p643
      %p650 = scmp.eq.s32.totalorder %s101, 1
      %p651 = por %p649, %p650
      %p652 = scmp.ne.s32.totalorder %s644, %s647
      %p653 = scmp.eq.s32.totalorder %s101, 0
      %p654 = por %p652, %p653
      %p655 = scmp.ne.s32.totalorder %s644, %s647
      %p656 = scmp.eq.s32.totalorder %s106, 1
      %p657 = por %p655, %p656
      %p658 = scmp.ne.s32.totalorder %s647, %s648
      %p659 = scmp.eq.s32.totalorder %s106, 0
      %p660 = por %p658, %p659
      %p661 = scmp.ne.s32.totalorder %s647, %s648
      %p662 = scmp.eq.s32.totalorder %s107, 1
      %p663 = por %p661, %p662
      %p665 = scmp.ne.s32.totalorder %s648, %s664
      %p666 = scmp.eq.s32.totalorder %s107, 0
      %p667 = por %p665, %p666
      %s668 = ssub.s32 %s101, %s108
      %p669 = scmp.eq.s32.totalorder %s668, 0
      %s671 = sadd.s32 %s670, 1
      %s672 = scalar_select %p669, %s670, %s671
      %p675 = pneg %p669
      %p676 = scmp.eq.s32.totalorder %s101, 1
      %p677 = por %p675, %p676
      %p678 = scmp.ne.s32.totalorder %s670, %s673
      %p679 = scmp.eq.s32.totalorder %s101, 0
      %p680 = por %p678, %p679
      %p681 = scmp.ne.s32.totalorder %s670, %s673
      %p682 = scmp.eq.s32.totalorder %s106, 1
      %p683 = por %p681, %p682
      %p684 = scmp.ne.s32.totalorder %s673, %s674
      %p685 = scmp.eq.s32.totalorder %s106, 0
      %p686 = por %p684, %p685
      %p687 = scmp.ne.s32.totalorder %s673, %s674
      %p688 = scmp.eq.s32.totalorder %s107, 1
      %p689 = por %p687, %p688
      %p691 = scmp.ne.s32.totalorder %s674, %s690
      %p692 = scmp.eq.s32.totalorder %s107, 0
      %p693 = por %p691, %p692
      %s694 = ssub.s32 %s101, %s108
      %p695 = scmp.eq.s32.totalorder %s694, 0
      %s697 = sadd.s32 %s696, 1
      %s698 = scalar_select %p695, %s696, %s697
      %p701 = pneg %p695
      %p702 = scmp.eq.s32.totalorder %s101, 1
      %p703 = por %p701, %p702
      %p704 = scmp.ne.s32.totalorder %s696, %s699
      %p705 = scmp.eq.s32.totalorder %s101, 0
      %p706 = por %p704, %p705
      %p707 = scmp.ne.s32.totalorder %s696, %s699
      %p708 = scmp.eq.s32.totalorder %s106, 1
      %p709 = por %p707, %p708
      %p710 = scmp.ne.s32.totalorder %s699, %s700
      %p711 = scmp.eq.s32.totalorder %s106, 0
      %p712 = por %p710, %p711
      %p713 = scmp.ne.s32.totalorder %s699, %s700
      %p714 = scmp.eq.s32.totalorder %s107, 1
      %p715 = por %p713, %p714
      %p717 = scmp.ne.s32.totalorder %s700, %s716
      %p718 = scmp.eq.s32.totalorder %s107, 0
      %p719 = por %p717, %p718
      %s720 = ssub.s32 %s101, %s108
      %p721 = scmp.eq.s32.totalorder %s720, 0
      %s723 = sadd.s32 %s722, 1
      %s724 = scalar_select %p721, %s722, %s723
      %p727 = pneg %p721
      %p728 = scmp.eq.s32.totalorder %s101, 1
      %p729 = por %p727, %p728
      %p730 = scmp.ne.s32.totalorder %s722, %s725
      %p731 = scmp.eq.s32.totalorder %s101, 0
      %p732 = por %p730, %p731
      %p733 = scmp.ne.s32.totalorder %s722, %s725
      %p734 = scmp.eq.s32.totalorder %s106, 1
      %p735 = por %p733, %p734
      %p736 = scmp.ne.s32.totalorder %s725, %s726
      %p737 = scmp.eq.s32.totalorder %s106, 0
      %p738 = por %p736, %p737
      %p739 = scmp.ne.s32.totalorder %s725, %s726
      %p740 = scmp.eq.s32.totalorder %s107, 1
      %p741 = por %p739, %p740
      %p743 = scmp.ne.s32.totalorder %s726, %s742
      %p744 = scmp.eq.s32.totalorder %s107, 0
      %p745 = por %p743, %p744
      %s746 = ssub.s32 %s101, %s108
      %p747 = scmp.eq.s32.totalorder %s746, 0
      %s749 = sadd.s32 %s748, 1
      %s750 = scalar_select %p747, %s748, %s749
      %p753 = pneg %p747
      %p754 = scmp.eq.s32.totalorder %s101, 1
      %p755 = por %p753, %p754
      %p756 = scmp.ne.s32.totalorder %s748, %s751
      %p757 = scmp.eq.s32.totalorder %s101, 0
      %p758 = por %p756, %p757
      %p759 = scmp.ne.s32.totalorder %s748, %s751
      %p760 = scmp.eq.s32.totalorder %s106, 1
      %p761 = por %p759, %p760
      %p762 = scmp.ne.s32.totalorder %s751, %s752
      %p763 = scmp.eq.s32.totalorder %s106, 0
      %p764 = por %p762, %p763
      %p765 = scmp.ne.s32.totalorder %s751, %s752
      %p766 = scmp.eq.s32.totalorder %s107, 1
      %p767 = por %p765, %p766
      %p769 = scmp.ne.s32.totalorder %s752, %s768
      %p770 = scmp.eq.s32.totalorder %s107, 0
      %p771 = por %p769, %p770
      %s772 = ssub.s32 %s101, %s108
      %p773 = scmp.eq.s32.totalorder %s772, 0
      %s775 = sadd.s32 %s774, 1
      %s776 = scalar_select %p773, %s774, %s775
      %p779 = pneg %p773
      %p780 = scmp.eq.s32.totalorder %s101, 1
      %p781 = por %p779, %p780
      %p782 = scmp.ne.s32.totalorder %s774, %s777
      %p783 = scmp.eq.s32.totalorder %s101, 0
      %p784 = por %p782, %p783
      %p785 = scmp.ne.s32.totalorder %s774, %s777
      %p786 = scmp.eq.s32.totalorder %s106, 1
      %p787 = por %p785, %p786
      %p788 = scmp.ne.s32.totalorder %s777, %s778
      %p789 = scmp.eq.s32.totalorder %s106, 0
      %p790 = por %p788, %p789
      %p791 = scmp.ne.s32.totalorder %s777, %s778
      %p792 = scmp.eq.s32.totalorder %s107, 1
      %p793 = por %p791, %p792
      %p795 = scmp.ne.s32.totalorder %s778, %s794
      %p796 = scmp.eq.s32.totalorder %s107, 0
      %p797 = por %p795, %p796
      %s798 = ssub.s32 %s101, %s108
      %p799 = scmp.eq.s32.totalorder %s798, 0
      %s801 = sadd.s32 %s800, 1
      %s802 = scalar_select %p799, %s800, %s801
      %p805 = pneg %p799
      %p806 = scmp.eq.s32.totalorder %s101, 1
      %p807 = por %p805, %p806
      %p808 = scmp.ne.s32.totalorder %s800, %s803
      %p809 = scmp.eq.s32.totalorder %s101, 0
      %p810 = por %p808, %p809
      %p811 = scmp.ne.s32.totalorder %s800, %s803
      %p812 = scmp.eq.s32.totalorder %s106, 1
      %p813 = por %p811, %p812
      %p814 = scmp.ne.s32.totalorder %s803, %s804
      %p815 = scmp.eq.s32.totalorder %s106, 0
      %p816 = por %p814, %p815
      %p817 = scmp.ne.s32.totalorder %s803, %s804
      %p818 = scmp.eq.s32.totalorder %s107, 1
      %p819 = por %p817, %p818
      %p821 = scmp.ne.s32.totalorder %s804, %s820
      %p822 = scmp.eq.s32.totalorder %s107, 0
      %p823 = por %p821, %p822
      %s824 = ssub.s32 %s101, %s108
      %p825 = scmp.eq.s32.totalorder %s824, 0
      %s827 = sadd.s32 %s826, 1
      %s828 = scalar_select %p825, %s826, %s827
      %p831 = pneg %p825
      %p832 = scmp.eq.s32.totalorder %s101, 1
      %p833 = por %p831, %p832
      %p834 = scmp.ne.s32.totalorder %s826, %s829
      %p835 = scmp.eq.s32.totalorder %s101, 0
      %p836 = por %p834, %p835
      %p837 = scmp.ne.s32.totalorder %s826, %s829
      %p838 = scmp.eq.s32.totalorder %s106, 1
      %p839 = por %p837, %p838
      %p840 = scmp.ne.s32.totalorder %s829, %s830
      %p841 = scmp.eq.s32.totalorder %s106, 0
      %p842 = por %p840, %p841
      %p843 = scmp.ne.s32.totalorder %s829, %s830
      %p844 = scmp.eq.s32.totalorder %s107, 1
      %p845 = por %p843, %p844
      %p847 = scmp.ne.s32.totalorder %s830, %s846
      %p848 = scmp.eq.s32.totalorder %s107, 0
      %p849 = por %p847, %p848
      %s850 = ssub.s32 %s101, %s108
      %p851 = scmp.eq.s32.totalorder %s850, 0
      %s853 = sadd.s32 %s852, 1
      %s854 = scalar_select %p851, %s852, %s853
      %p857 = pneg %p851
      %p858 = scmp.eq.s32.totalorder %s101, 1
      %p859 = por %p857, %p858
      %p860 = scmp.ne.s32.totalorder %s852, %s855
      %p861 = scmp.eq.s32.totalorder %s101, 0
      %p862 = por %p860, %p861
      %p863 = scmp.ne.s32.totalorder %s852, %s855
      %p864 = scmp.eq.s32.totalorder %s106, 1
      %p865 = por %p863, %p864
      %p866 = scmp.ne.s32.totalorder %s855, %s856
      %p867 = scmp.eq.s32.totalorder %s106, 0
      %p868 = por %p866, %p867
      %p869 = scmp.ne.s32.totalorder %s855, %s856
      %p870 = scmp.eq.s32.totalorder %s107, 1
      %p871 = por %p869, %p870
      %p873 = scmp.ne.s32.totalorder %s856, %s872
      %p874 = scmp.eq.s32.totalorder %s107, 0
      %p875 = por %p873, %p874
      %s876 = ssub.s32 %s101, %s108
      %p877 = scmp.eq.s32.totalorder %s876, 0
      %s879 = sadd.s32 %s878, 1
      %s880 = scalar_select %p877, %s878, %s879
      %p883 = pneg %p877
      %p884 = scmp.eq.s32.totalorder %s101, 1
      %p885 = por %p883, %p884
      %p886 = scmp.ne.s32.totalorder %s878, %s881
      %p887 = scmp.eq.s32.totalorder %s101, 0
      %p888 = por %p886, %p887
      %p889 = scmp.ne.s32.totalorder %s878, %s881
      %p890 = scmp.eq.s32.totalorder %s106, 1
      %p891 = por %p889, %p890
      %p892 = scmp.ne.s32.totalorder %s881, %s882
      %p893 = scmp.eq.s32.totalorder %s106, 0
      %p894 = por %p892, %p893
      %p895 = scmp.ne.s32.totalorder %s881, %s882
      %p896 = scmp.eq.s32.totalorder %s107, 1
      %p897 = por %p895, %p896
      %p899 = scmp.ne.s32.totalorder %s882, %s898
      %p900 = scmp.eq.s32.totalorder %s107, 0
      %p901 = por %p899, %p900
      %p902 = scmp.le.s32.totalorder 1, %s101
      %p903 = scmp.lt.s32.totalorder %s101, 3
      %p904 = pnand %p902, %p903
      %p905 = pneg %p904
      // Predicated region
      $region9: #{cross_attention_forward.1} parent=5 // pred_check
        _
      $region10: #{cross_attention_forward.1} parent=5 // pred_check_branch
        %907 = sbr.rel (%p904) target = $region12
      $region11: #{cross_attention_forward.1} parent=5 // pred_region
        %s908 = ssub.s32 %s101, 1
        // Predicated region
        $region13: #{cross_attention_forward.1} parent=11 // pred_check
          %p909 = pneg %p382
        $region14: #{cross_attention_forward.1} parent=11 // pred_check_branch
          %911 = sbr.rel (%p909) target = $region16
        $region15: #{cross_attention_forward.1} parent=11 // pred_region
          %s913 = ssub.s32 384, 384
          %914 = vsyncadd [#allocation6], %s913
          %s915 = sshll.u32 [#allocation7], 4
          %s916 = int_to_ptr.vmem [resolvable:$true] %s915
          %921 = dma.hbm_to_vmem [thread:$0]  %s21, 384, %s916, [#allocation6], 64, 64, 4
        $region16: #{cross_attention_forward.1} parent=11 // pred_fallthru
          _
        // Predicated region
        $region17: #{cross_attention_forward.1} parent=11 // pred_check
          %p922 = pneg %p403
        $region18: #{cross_attention_forward.1} parent=11 // pred_check_branch
          %924 = sbr.rel (%p922) target = $region20
        $region19: #{cross_attention_forward.1} parent=11 // pred_region
          %s926 = ssub.s32 384, 384
          %927 = vsyncadd [#allocation9], %s926
          %s928 = sshll.u32 [#allocation8], 4
          %s929 = int_to_ptr.vmem [resolvable:$true] %s928
          %934 = dma.hbm_to_vmem [thread:$0]  %s23, 384, %s929, [#allocation9], 64, 64, 4
        $region20: #{cross_attention_forward.1} parent=11 // pred_fallthru
          _
        // Predicated region
        $region21: #{cross_attention_forward.1} parent=11 // pred_check
          %p935 = pneg %p424
        $region22: #{cross_attention_forward.1} parent=11 // pred_check_branch
          %937 = sbr.rel (%p935) target = $region24
        $region23: #{cross_attention_forward.1} parent=11 // pred_region
          _
        $region24: #{cross_attention_forward.1} parent=11 // pred_fallthru
          _
        // Predicated region
        $region25: #{cross_attention_forward.1} parent=11 // pred_check
          %p938 = pneg %p445
        $region26: #{cross_attention_forward.1} parent=11 // pred_check_branch
          %940 = sbr.rel (%p938) target = $region28
        $region27: #{cross_attention_forward.1} parent=11 // pred_region
          %s942 = ssub.s32 1536, 1536
          %943 = vsyncadd [#allocation9], %s942
          %s944 = sshll.u32 [#allocation10], 4
          %s945 = int_to_ptr.vmem [resolvable:$true] %s944
          %950 = dma.hbm_to_vmem [thread:$0]  %s27, 1536, %s945, [#allocation9], 64, 64, 4
        $region28: #{cross_attention_forward.1} parent=11 // pred_fallthru
          _
        // Predicated region
        $region29: #{cross_attention_forward.1} parent=11 // pred_check
          %p951 = pneg %p466
        $region30: #{cross_attention_forward.1} parent=11 // pred_check_branch
          %953 = sbr.rel (%p951) target = $region32
        $region31: #{cross_attention_forward.1} parent=11 // pred_region
          %s955 = ssub.s32 1536, 1536
          %956 = vsyncadd [#allocation12], %s955
          %s957 = sshll.u32 [#allocation11], 4
          %s958 = int_to_ptr.vmem [resolvable:$true] %s957
          %963 = dma.hbm_to_vmem [thread:$0]  %s29, 1536, %s958, [#allocation12], 64, 64, 4
        $region32: #{cross_attention_forward.1} parent=11 // pred_fallthru
          _
        // Predicated region
        $region33: #{cross_attention_forward.1} parent=11 // pred_check
          %p964 = pneg %p487
        $region34: #{cross_attention_forward.1} parent=11 // pred_check_branch
          %966 = sbr.rel (%p964) target = $region36
        $region35: #{cross_attention_forward.1} parent=11 // pred_region
          %s968 = ssub.s32 1536, 1536
          %969 = vsyncadd [#allocation12], %s968
          %s970 = sshll.u32 [#allocation13], 4
          %s971 = int_to_ptr.vmem [resolvable:$true] %s970
          %976 = dma.hbm_to_vmem [thread:$0]  %s31, 1536, %s971, [#allocation12], 64, 64, 4
        $region36: #{cross_attention_forward.1} parent=11 // pred_fallthru
          _
        // Predicated region
        $region37: #{cross_attention_forward.1} parent=11 // pred_check
          %p977 = pneg %p508
        $region38: #{cross_attention_forward.1} parent=11 // pred_check_branch
          %979 = sbr.rel (%p977) target = $region40
        $region39: #{cross_attention_forward.1} parent=11 // pred_region
          %s981 = ssub.s32 512, 512
          %982 = vsyncadd [#allocation15], %s981
          %s983 = sshll.u32 [#allocation14], 4
          %s984 = int_to_ptr.vmem [resolvable:$true] %s983
          %989 = dma.hbm_to_vmem [thread:$0]  %s33, 512, %s984, [#allocation15], 64, 64, 4
        $region40: #{cross_attention_forward.1} parent=11 // pred_fallthru
          _
        // Predicated region
        $region41: #{cross_attention_forward.1} parent=11 // pred_check
          %p990 = pneg %p529
        $region42: #{cross_attention_forward.1} parent=11 // pred_check_branch
          %992 = sbr.rel (%p990) target = $region44
        $region43: #{cross_attention_forward.1} parent=11 // pred_region
          _
        $region44: #{cross_attention_forward.1} parent=11 // pred_fallthru
          _
        // Predicated region
        $region45: #{cross_attention_forward.1} parent=11 // pred_check
          %p993 = pneg %p550
        $region46: #{cross_attention_forward.1} parent=11 // pred_check_branch
          %995 = sbr.rel (%p993) target = $region48
        $region47: #{cross_attention_forward.1} parent=11 // pred_region
          %s997 = ssub.s32 64, 64
          %998 = vsyncadd [#allocation15], %s997
          %s999 = sshll.u32 [#allocation16], 4
          %s1000 = int_to_ptr.vmem [resolvable:$true] %s999
          %1005 = dma.hbm_to_vmem [thread:$0]  %s37, 64, %s1000, [#allocation15], 16, 16, 1
        $region48: #{cross_attention_forward.1} parent=11 // pred_fallthru
          _
        // Predicated region
        $region49: #{cross_attention_forward.1} parent=11 // pred_check
          %p1006 = pneg %p571
        $region50: #{cross_attention_forward.1} parent=11 // pred_check_branch
          %1008 = sbr.rel (%p1006) target = $region52
        $region51: #{cross_attention_forward.1} parent=11 // pred_region
          %s1010 = ssub.s32 1024, 1024
          %1011 = vsyncadd [#allocation18], %s1010
          %s1012 = sshll.u32 [#allocation17], 4
          %s1013 = int_to_ptr.vmem [resolvable:$true] %s1012
          %1018 = dma.hbm_to_vmem [thread:$0]  %s39, 1024, %s1013, [#allocation18], 64, 64, 4
        $region52: #{cross_attention_forward.1} parent=11 // pred_fallthru
          _
        // Predicated region
        $region53: #{cross_attention_forward.1} parent=11 // pred_check
          %p1019 = pneg %p592
        $region54: #{cross_attention_forward.1} parent=11 // pred_check_branch
          %1021 = sbr.rel (%p1019) target = $region56
        $region55: #{cross_attention_forward.1} parent=11 // pred_region
          %s1023 = ssub.s32 64, 64
          %1024 = vsyncadd [#allocation18], %s1023
          %s1025 = sshll.u32 [#allocation19], 4
          %s1026 = int_to_ptr.vmem [resolvable:$true] %s1025
          %1031 = dma.hbm_to_vmem [thread:$0]  %s41, 64, %s1026, [#allocation18], 16, 16, 1
        $region56: #{cross_attention_forward.1} parent=11 // pred_fallthru
          _
        // Predicated region
        $region57: #{cross_attention_forward.1} parent=11 // pred_check
          %p1032 = pneg %p613
        $region58: #{cross_attention_forward.1} parent=11 // pred_check_branch
          %1034 = sbr.rel (%p1032) target = $region60
        $region59: #{cross_attention_forward.1} parent=11 // pred_region
          %s1036 = ssub.s32 64, 64
          %1037 = vsyncadd [#allocation21], %s1036
          %s1038 = sshll.u32 [#allocation20], 4
          %s1039 = int_to_ptr.vmem [resolvable:$true] %s1038
          %1044 = dma.hbm_to_vmem [thread:$0]  %s43, 64, %s1039, [#allocation21], 16, 16, 1
        $region60: #{cross_attention_forward.1} parent=11 // pred_fallthru
          _
        // Predicated region
        $region61: #{cross_attention_forward.1} parent=11 // pred_check
          %p1045 = pneg %p634
        $region62: #{cross_attention_forward.1} parent=11 // pred_check_branch
          %1047 = sbr.rel (%p1045) target = $region64
        $region63: #{cross_attention_forward.1} parent=11 // pred_region
          %s1049 = ssub.s32 64, 64
          %1050 = vsyncadd [#allocation21], %s1049
          %s1051 = sshll.u32 [#allocation22], 4
          %s1052 = int_to_ptr.vmem [resolvable:$true] %s1051
          %1057 = dma.hbm_to_vmem [thread:$0]  %s45, 64, %s1052, [#allocation21], 16, 16, 1
        $region64: #{cross_attention_forward.1} parent=11 // pred_fallthru
          _
      $region12: #{cross_attention_forward.1} parent=5 // pred_fallthru
        _
      %p1058 = scmp.lt.s32.totalorder %s101, 2
      // Predicated region
      $region65: #{cross_attention_forward.1} parent=5 // pred_check
        %p1059 = pneg %p1058
      $region66: #{cross_attention_forward.1} parent=5 // pred_check_branch
        %1061 = sbr.rel (%p1059) target = $region68
      $region67: #{cross_attention_forward.1} parent=5 // pred_region
        // Predicated region
        $region69: #{cross_attention_forward.1} parent=67 // pred_check
          %p1062 = pneg %p121
        $region70: #{cross_attention_forward.1} parent=67 // pred_check_branch
          %1064 = sbr.rel (%p1062) target = $region72
        $region71: #{cross_attention_forward.1} parent=67 // pred_region
          %p1065 = scmp.lt.s32.totalorder %s101, 1
          %s1066 = scalar_select %p1065, %s101, 1
          %s1067 = smul.addr %s1066, 8
          %s1068 = scalar_lea.vmem %s1, %s1067
        $region72: #{cross_attention_forward.1} parent=67 // pred_fallthru
          _
        // Predicated region
        $region73: #{cross_attention_forward.1} parent=67 // pred_check
          %p1069 = pneg %p147
        $region74: #{cross_attention_forward.1} parent=67 // pred_check_branch
          %1071 = sbr.rel (%p1069) target = $region76
        $region75: #{cross_attention_forward.1} parent=67 // pred_region
          %s1072 = sand.u32 %s137, 1
          %s1073 = scalar_lea.sflag [#allocation3], %s1072
          %s1074 = sand.u32 %s137, 1
          %s1075 = smul.addr %s1074, 8
          %s1076 = scalar_lea.vmem [#allocation2], %s1075
          %s1078 = ssub.s32 128, 128
          %1079 = vsyncadd %s1073, %s1078
          %s1080 = smul.addr %s101, 128
          %s1081 = scalar_lea.hbm %s3, %s1080
          %s1083 = sshll.u32 %s1076, 4
          %s1084 = int_to_ptr.vmem [resolvable:$true] %s1083
          %1086 = dma.hbm_to_vmem [thread:$0]  %s1081, 128, %s1084, %s1073
        $region76: #{cross_attention_forward.1} parent=67 // pred_fallthru
          _
        // Predicated region
        $region77: #{cross_attention_forward.1} parent=67 // pred_check
          %p1087 = pneg %p173
        $region78: #{cross_attention_forward.1} parent=67 // pred_check_branch
          %1089 = sbr.rel (%p1087) target = $region80
        $region79: #{cross_attention_forward.1} parent=67 // pred_region
          %s1090 = sand.u32 %s101, 1
          %s1091 = scalar_lea.sflag [#allocation6], %s1090
          %s1092 = sand.u32 %s163, 1
          %s1093 = smul.addr %s1092, 8
          %s1094 = scalar_lea.vmem [#allocation5], %s1093
          %s1096 = ssub.s32 128, 128
          %1097 = vsyncadd %s1091, %s1096
          %s1098 = smul.addr %s101, 128
          %s1099 = scalar_lea.hbm %s5, %s1098
          %s1101 = sshll.u32 %s1094, 4
          %s1102 = int_to_ptr.vmem [resolvable:$true] %s1101
          %1104 = dma.hbm_to_vmem [thread:$0]  %s1099, 128, %s1102, %s1091
        $region80: #{cross_attention_forward.1} parent=67 // pred_fallthru
          _
        // Predicated region
        $region81: #{cross_attention_forward.1} parent=67 // pred_check
          %p1105 = pneg %p199
        $region82: #{cross_attention_forward.1} parent=67 // pred_check_branch
          %1107 = sbr.rel (%p1105) target = $region84
        $region83: #{cross_attention_forward.1} parent=67 // pred_region
          %p1108 = scmp.lt.s32.totalorder %s101, 1
          %s1109 = scalar_select %p1108, %s101, 1
          %s1110 = smul.addr %s1109, 8
          %s1111 = scalar_lea.vmem %s7, %s1110
        $region84: #{cross_attention_forward.1} parent=67 // pred_fallthru
          _
        // Predicated region
        $region85: #{cross_attention_forward.1} parent=67 // pred_check
          %p1112 = pneg %p225
        $region86: #{cross_attention_forward.1} parent=67 // pred_check_branch
          %1114 = sbr.rel (%p1112) target = $region88
        $region87: #{cross_attention_forward.1} parent=67 // pred_region
          %p1115 = scmp.lt.s32.totalorder %s101, 1
          %s1116 = scalar_select %p1115, %s101, 1
          %s1117 = smul.addr %s1116, 4
          %s1118 = scalar_lea.vmem %s9, %s1117
        $region88: #{cross_attention_forward.1} parent=67 // pred_fallthru
          _
        // Predicated region
        $region89: #{cross_attention_forward.1} parent=67 // pred_check
          %p1119 = pneg %p251
        $region90: #{cross_attention_forward.1} parent=67 // pred_check_branch
          %1121 = sbr.rel (%p1119) target = $region92
        $region91: #{cross_attention_forward.1} parent=67 // pred_region
          %p1122 = scmp.lt.s32.totalorder %s101, 1
          %s1123 = scalar_select %p1122, %s101, 1
          %s1124 = smul.addr %s1123, 4
          %s1125 = scalar_lea.vmem %s11, %s1124
        $region92: #{cross_attention_forward.1} parent=67 // pred_fallthru
          _
        // Predicated region
        $region93: #{cross_attention_forward.1} parent=67 // pred_check
          %p1126 = pneg %p277
        $region94: #{cross_attention_forward.1} parent=67 // pred_check_branch
          %1128 = sbr.rel (%p1126) target = $region96
        $region95: #{cross_attention_forward.1} parent=67 // pred_region
          %p1129 = scmp.lt.s32.totalorder %s101, 1
          %s1130 = scalar_select %p1129, %s101, 1
          %s1131 = smul.addr %s1130, 4
          %s1132 = scalar_lea.vmem %s13, %s1131
        $region96: #{cross_attention_forward.1} parent=67 // pred_fallthru
          _
        // Predicated region
        $region97: #{cross_attention_forward.1} parent=67 // pred_check
          %p1133 = pneg %p303
        $region98: #{cross_attention_forward.1} parent=67 // pred_check_branch
          %1135 = sbr.rel (%p1133) target = $region100
        $region99: #{cross_attention_forward.1} parent=67 // pred_region
          %p1136 = scmp.lt.s32.totalorder %s101, 1
          %s1137 = scalar_select %p1136, %s101, 1
          %s1138 = smul.addr %s1137, 4
          %s1139 = scalar_lea.vmem %s15, %s1138
        $region100: #{cross_attention_forward.1} parent=67 // pred_fallthru
          _
        // Predicated region
        $region101: #{cross_attention_forward.1} parent=67 // pred_check
          %p1140 = pneg %p329
        $region102: #{cross_attention_forward.1} parent=67 // pred_check_branch
          %1142 = sbr.rel (%p1140) target = $region104
        $region103: #{cross_attention_forward.1} parent=67 // pred_region
          %p1143 = scmp.lt.s32.totalorder %s101, 1
          %s1144 = scalar_select %p1143, %s101, 1
          %s1145 = smul.addr %s1144, 8
          %s1146 = scalar_lea.vmem %s17, %s1145
        $region104: #{cross_attention_forward.1} parent=67 // pred_fallthru
          _
        // Predicated region
        $region105: #{cross_attention_forward.1} parent=67 // pred_check
          %p1147 = pneg %p355
        $region106: #{cross_attention_forward.1} parent=67 // pred_check_branch
          %1149 = sbr.rel (%p1147) target = $region108
        $region107: #{cross_attention_forward.1} parent=67 // pred_region
          %p1150 = scmp.lt.s32.totalorder %s101, 1
          %s1151 = scalar_select %p1150, %s101, 1
          %s1152 = smul.addr %s1151, 8
          %s1153 = scalar_lea.vmem %s19, %s1152
        $region108: #{cross_attention_forward.1} parent=67 // pred_fallthru
          _
      $region68: #{cross_attention_forward.1} parent=5 // pred_fallthru
        _
      %p1154 = scmp.le.s32.totalorder 1, %s101
      %p1155 = scmp.lt.s32.totalorder %s101, 3
      %p1156 = pnand %p1154, %p1155
      %p1157 = pneg %p1156
      // Predicated region
      $region109: #{cross_attention_forward.1} parent=5 // pred_check
        _
      $region110: #{cross_attention_forward.1} parent=5 // pred_check_branch
        %1159 = sbr.rel (%p1156) target = $region112
      $region111: #{cross_attention_forward.1} parent=5 // pred_region
        %s1160 = ssub.s32 %s101, 1
        %s1161 = sand.u32 %s140, 1
        %s1162 = scalar_lea.sflag [#allocation3], %s1161
        %s1163 = sand.u32 %s140, 1
        %s1164 = smul.addr %s1163, 8
        %s1165 = scalar_lea.vmem [#allocation2], %s1164
        // Predicated region
        $region113: #{cross_attention_forward.1} parent=111 // pred_check
          %p1166 = pneg %p153
        $region114: #{cross_attention_forward.1} parent=111 // pred_check_branch
          %1168 = sbr.rel (%p1166) target = $region116
        $region115: #{cross_attention_forward.1} parent=111 // pred_region
          %1169 = dma.done %s1162, 128
        $region116: #{cross_attention_forward.1} parent=111 // pred_fallthru
          _
        %s1170 = sand.u32 %s106, 1
        %s1171 = scalar_lea.sflag [#allocation6], %s1170
        %s1172 = sand.u32 %s166, 1
        %s1173 = smul.addr %s1172, 8
        %s1174 = scalar_lea.vmem [#allocation5], %s1173
        // Predicated region
        $region117: #{cross_attention_forward.1} parent=111 // pred_check
          %p1175 = pneg %p179
        $region118: #{cross_attention_forward.1} parent=111 // pred_check_branch
          %1177 = sbr.rel (%p1175) target = $region120
        $region119: #{cross_attention_forward.1} parent=111 // pred_region
          %1178 = dma.done %s1171, 128
        $region120: #{cross_attention_forward.1} parent=111 // pred_fallthru
          _
        // Predicated region
        $region121: #{cross_attention_forward.1} parent=111 // pred_check
          %p1179 = pneg %p382
        $region122: #{cross_attention_forward.1} parent=111 // pred_check_branch
          %1181 = sbr.rel (%p1179) target = $region124
        $region123: #{cross_attention_forward.1} parent=111 // pred_region
          %1182 = dma.done [#allocation6], 384
        $region124: #{cross_attention_forward.1} parent=111 // pred_fallthru
          _
        // Predicated region
        $region125: #{cross_attention_forward.1} parent=111 // pred_check
          %p1183 = pneg %p403
        $region126: #{cross_attention_forward.1} parent=111 // pred_check_branch
          %1185 = sbr.rel (%p1183) target = $region128
        $region127: #{cross_attention_forward.1} parent=111 // pred_region
          %1186 = dma.done [#allocation9], 384
        $region128: #{cross_attention_forward.1} parent=111 // pred_fallthru
          _
        // Predicated region
        $region129: #{cross_attention_forward.1} parent=111 // pred_check
          %p1187 = pneg %p445
        $region130: #{cross_attention_forward.1} parent=111 // pred_check_branch
          %1189 = sbr.rel (%p1187) target = $region132
        $region131: #{cross_attention_forward.1} parent=111 // pred_region
          %1190 = dma.done [#allocation9], 1536
        $region132: #{cross_attention_forward.1} parent=111 // pred_fallthru
          _
        // Predicated region
        $region133: #{cross_attention_forward.1} parent=111 // pred_check
          %p1191 = pneg %p466
        $region134: #{cross_attention_forward.1} parent=111 // pred_check_branch
          %1193 = sbr.rel (%p1191) target = $region136
        $region135: #{cross_attention_forward.1} parent=111 // pred_region
          %1194 = dma.done [#allocation12], 1536
        $region136: #{cross_attention_forward.1} parent=111 // pred_fallthru
          _
        // Predicated region
        $region137: #{cross_attention_forward.1} parent=111 // pred_check
          %p1195 = pneg %p487
        $region138: #{cross_attention_forward.1} parent=111 // pred_check_branch
          %1197 = sbr.rel (%p1195) target = $region140
        $region139: #{cross_attention_forward.1} parent=111 // pred_region
          %1198 = dma.done [#allocation12], 1536
        $region140: #{cross_attention_forward.1} parent=111 // pred_fallthru
          _
        // Predicated region
        $region141: #{cross_attention_forward.1} parent=111 // pred_check
          %p1199 = pneg %p508
        $region142: #{cross_attention_forward.1} parent=111 // pred_check_branch
          %1201 = sbr.rel (%p1199) target = $region144
        $region143: #{cross_attention_forward.1} parent=111 // pred_region
          %1202 = dma.done [#allocation15], 512
        $region144: #{cross_attention_forward.1} parent=111 // pred_fallthru
          _
        // Predicated region
        $region145: #{cross_attention_forward.1} parent=111 // pred_check
          %p1203 = pneg %p550
        $region146: #{cross_attention_forward.1} parent=111 // pred_check_branch
          %1205 = sbr.rel (%p1203) target = $region148
        $region147: #{cross_attention_forward.1} parent=111 // pred_region
          %1206 = dma.done [#allocation15], 64
        $region148: #{cross_attention_forward.1} parent=111 // pred_fallthru
          _
        // Predicated region
        $region149: #{cross_attention_forward.1} parent=111 // pred_check
          %p1207 = pneg %p571
        $region150: #{cross_attention_forward.1} parent=111 // pred_check_branch
          %1209 = sbr.rel (%p1207) target = $region152
        $region151: #{cross_attention_forward.1} parent=111 // pred_region
          %1210 = dma.done [#allocation18], 1024
        $region152: #{cross_attention_forward.1} parent=111 // pred_fallthru
          _
        // Predicated region
        $region153: #{cross_attention_forward.1} parent=111 // pred_check
          %p1211 = pneg %p592
        $region154: #{cross_attention_forward.1} parent=111 // pred_check_branch
          %1213 = sbr.rel (%p1211) target = $region156
        $region155: #{cross_attention_forward.1} parent=111 // pred_region
          %1214 = dma.done [#allocation18], 64
        $region156: #{cross_attention_forward.1} parent=111 // pred_fallthru
          _
        // Predicated region
        $region157: #{cross_attention_forward.1} parent=111 // pred_check
          %p1215 = pneg %p613
        $region158: #{cross_attention_forward.1} parent=111 // pred_check_branch
          %1217 = sbr.rel (%p1215) target = $region160
        $region159: #{cross_attention_forward.1} parent=111 // pred_region
          %1218 = dma.done [#allocation21], 64
        $region160: #{cross_attention_forward.1} parent=111 // pred_fallthru
          _
        // Predicated region
        $region161: #{cross_attention_forward.1} parent=111 // pred_check
          %p1219 = pneg %p634
        $region162: #{cross_attention_forward.1} parent=111 // pred_check_branch
          %1221 = sbr.rel (%p1219) target = $region164
        $region163: #{cross_attention_forward.1} parent=111 // pred_region
          %1222 = dma.done [#allocation21], 64
        $region164: #{cross_attention_forward.1} parent=111 // pred_fallthru
          _
        %p1223 = scmp.lt.s32.totalorder %s106, 1
        %s1224 = scalar_select %p1223, %s106, 1
        %s1225 = smul.addr %s1224, 8
        %s1226 = scalar_lea.vmem %s1, %s1225
        %p1227 = pneg %p127
        %p1228 = pneg %p124
        %s1229 = sand.u32 %s140, 1
        %s1230 = scalar_lea.sflag [#allocation3], %s1229
        %s1231 = sand.u32 %s140, 1
        %s1232 = smul.addr %s1231, 8
        %s1233 = scalar_lea.vmem [#allocation2], %s1232
        %p1234 = pneg %p153
        %p1235 = pneg %p150
        %s1236 = sand.u32 %s106, 1
        %s1237 = scalar_lea.sflag [#allocation6], %s1236
        %s1238 = sand.u32 %s166, 1
        %s1239 = smul.addr %s1238, 8
        %s1240 = scalar_lea.vmem [#allocation5], %s1239
        %p1241 = pneg %p179
        %p1242 = pneg %p176
        %p1243 = scmp.lt.s32.totalorder %s106, 1
        %s1244 = scalar_select %p1243, %s106, 1
        %s1245 = smul.addr %s1244, 8
        %s1246 = scalar_lea.vmem %s7, %s1245
        %p1247 = pneg %p205
        %p1248 = pneg %p202
        %p1249 = scmp.lt.s32.totalorder %s106, 1
        %s1250 = scalar_select %p1249, %s106, 1
        %s1251 = smul.addr %s1250, 4
        %s1252 = scalar_lea.vmem %s9, %s1251
        %p1253 = pneg %p231
        %p1254 = pneg %p228
        %p1255 = scmp.lt.s32.totalorder %s106, 1
        %s1256 = scalar_select %p1255, %s106, 1
        %s1257 = smul.addr %s1256, 4
        %s1258 = scalar_lea.vmem %s11, %s1257
        %p1259 = pneg %p257
        %p1260 = pneg %p254
        %p1261 = scmp.lt.s32.totalorder %s106, 1
        %s1262 = scalar_select %p1261, %s106, 1
        %s1263 = smul.addr %s1262, 4
        %s1264 = scalar_lea.vmem %s13, %s1263
        %p1265 = pneg %p283
        %p1266 = pneg %p280
        %p1267 = scmp.lt.s32.totalorder %s106, 1
        %s1268 = scalar_select %p1267, %s106, 1
        %s1269 = smul.addr %s1268, 4
        %s1270 = scalar_lea.vmem %s15, %s1269
        %p1271 = pneg %p309
        %p1272 = pneg %p306
        %p1273 = scmp.lt.s32.totalorder %s106, 1
        %s1274 = scalar_select %p1273, %s106, 1
        %s1275 = smul.addr %s1274, 8
        %s1276 = scalar_lea.vmem %s17, %s1275
        %p1277 = pneg %p335
        %p1278 = pneg %p332
        %p1279 = scmp.lt.s32.totalorder %s106, 1
        %s1280 = scalar_select %p1279, %s106, 1
        %s1281 = smul.addr %s1280, 8
        %s1282 = scalar_lea.vmem %s19, %s1281
        %p1283 = pneg %p361
        %p1284 = pneg %p358
        %p1285 = pneg %p382
        %p1286 = pneg %p379
        %p1287 = pneg %p403
        %p1288 = pneg %p400
        %p1289 = pneg %p424
        %p1290 = pneg %p421
        %p1291 = pneg %p445
        %p1292 = pneg %p442
        %p1293 = pneg %p466
        %p1294 = pneg %p463
        %p1295 = pneg %p487
        %p1296 = pneg %p484
        %p1297 = pneg %p508
        %p1298 = pneg %p505
        %p1299 = pneg %p529
        %p1300 = pneg %p526
        %p1301 = pneg %p550
        %p1302 = pneg %p547
        %p1303 = pneg %p571
        %p1304 = pneg %p568
        %p1305 = pneg %p592
        %p1306 = pneg %p589
        %p1307 = pneg %p613
        %p1308 = pneg %p610
        %p1309 = pneg %p634
        %p1310 = pneg %p631
        %p1311 = pneg %p660
        %p1312 = pneg %p657
        %s1313 = sand.u32 %s647, 1
        %s1314 = scalar_lea.sflag [#allocation4], %s1313
        %s1315 = sand.u32 %s647, 1
        %s1316 = smul.addr %s1315, 8
        %s1317 = scalar_lea.vmem [#allocation23], %s1316
        %p1318 = pneg %p686
        %p1319 = pneg %p683
        %s1320 = sand.u32 %s106, 1
        %s1321 = scalar_lea.sflag [#allocation25], %s1320
        %s1322 = sand.u32 %s673, 1
        %s1323 = smul.addr %s1322, 8
        %s1324 = scalar_lea.vmem [#allocation24], %s1323
        %p1325 = pneg %p712
        %p1326 = pneg %p709
        %s1327 = sand.u32 %s106, 1
        %s1328 = scalar_lea.sflag [#allocation25], %s1327
        %s1329 = sand.u32 %s699, 1
        %s1330 = smul.addr %s1329, 8
        %s1331 = scalar_lea.vmem [#allocation26], %s1330
        %p1332 = pneg %p738
        %p1333 = pneg %p735
        %s1334 = sand.u32 %s106, 1
        %s1335 = scalar_lea.sflag [#allocation28], %s1334
        %s1336 = sand.u32 %s725, 1
        %s1337 = smul.addr %s1336, 8
        %s1338 = scalar_lea.vmem [#allocation27], %s1337
        %p1339 = pneg %p764
        %p1340 = pneg %p761
        %s1341 = sand.u32 %s106, 1
        %s1342 = scalar_lea.sflag [#allocation28], %s1341
        %s1343 = sand.u32 %s751, 1
        %s1344 = smul.addr %s1343, 16
        %s1345 = scalar_lea.vmem [#allocation29], %s1344
        %p1346 = pneg %p790
        %p1347 = pneg %p787
        %s1348 = sand.u32 %s106, 1
        %s1349 = scalar_lea.sflag [#allocation31], %s1348
        %s1350 = sand.u32 %s777, 1
        %s1351 = smul.addr %s1350, 16
        %s1352 = scalar_lea.vmem [#allocation30], %s1351
        %p1353 = pneg %p816
        %p1354 = pneg %p813
        %s1355 = sand.u32 %s106, 1
        %s1356 = scalar_lea.sflag [#allocation31], %s1355
        %s1357 = sand.u32 %s803, 1
        %s1358 = smul.addr %s1357, 16
        %s1359 = scalar_lea.vmem [#allocation32], %s1358
        %p1360 = pneg %p842
        %p1361 = pneg %p839
        %s1362 = sand.u32 %s106, 1
        %s1363 = scalar_lea.sflag [#allocation34], %s1362
        %s1364 = sand.u32 %s829, 1
        %s1365 = smul.addr %s1364, 16
        %s1366 = scalar_lea.vmem [#allocation33], %s1365
        %p1367 = pneg %p868
        %p1368 = pneg %p865
        %s1369 = sand.u32 %s106, 1
        %s1370 = scalar_lea.sflag [#allocation34], %s1369
        %s1371 = sand.u32 %s855, 1
        %s1372 = smul.addr %s1371, 16
        %s1373 = scalar_lea.vmem [#allocation35], %s1372
        %p1374 = pneg %p894
        %p1375 = pneg %p891
        %s1376 = sand.u32 %s881, 1
        %s1377 = scalar_lea.sflag [#allocation37], %s1376
        %s1378 = sand.u32 %s881, 1
        %s1379 = smul.addr %s1378, 16
        %s1380 = scalar_lea.vmem [#allocation36], %s1379
        %p1381 = scmp.lt.s32.totalorder %s106, 1
        %s1382 = scalar_select %p1381, %s106, 1
        %s1383 = smul.addr %s1382, 8
        %s1384 = scalar_lea.vmem %s1, %s1383
        %p1385 = scmp.lt.s32.totalorder %s106, 1
        %s1386 = scalar_select %p1385, %s106, 1
        %s1387 = smul.addr %s1386, 8
        %s1388 = scalar_lea.vmem %s7, %s1387
        %p1389 = scmp.lt.s32.totalorder %s106, 1
        %s1390 = scalar_select %p1389, %s106, 1
        %s1391 = smul.addr %s1390, 4
        %s1392 = scalar_lea.vmem %s9, %s1391
        %p1393 = scmp.lt.s32.totalorder %s106, 1
        %s1394 = scalar_select %p1393, %s106, 1
        %s1395 = smul.addr %s1394, 4
        %s1396 = scalar_lea.vmem %s11, %s1395
        %p1397 = scmp.lt.s32.totalorder %s106, 1
        %s1398 = scalar_select %p1397, %s106, 1
        %s1399 = smul.addr %s1398, 4
        %s1400 = scalar_lea.vmem %s13, %s1399
        %p1401 = scmp.lt.s32.totalorder %s106, 1
        %s1402 = scalar_select %p1401, %s106, 1
        %s1403 = smul.addr %s1402, 4
        %s1404 = scalar_lea.vmem %s15, %s1403
        %p1405 = scmp.lt.s32.totalorder %s106, 1
        %s1406 = scalar_select %p1405, %s106, 1
        %s1407 = smul.addr %s1406, 8
        %s1408 = scalar_lea.vmem %s17, %s1407
        %p1409 = scmp.lt.s32.totalorder %s106, 1
        %s1410 = scalar_select %p1409, %s106, 1
        %s1411 = smul.addr %s1410, 8
        %s1412 = scalar_lea.vmem %s19, %s1411
        %v1414 = vld [vmem:[%s1384] sm:$0xff]
        %v1415 = vld [vmem:[%s1165] sm:$0xff]
        %v1416 = vld [vmem:[%s1174] sm:$0xff]
        %v1417 = vld [vmem:[%s1388] sm:$0xff]
        %v1418 = vld [vmem:[%s1408] sm:$0xff]
        %v1419 = vld [vmem:[%s1412] sm:$0xff]
        %v1420 = vld [vmem:[%s1392] sm:$0xf]
        %v1421 = vunpack.c.l.bf16 %v1420
        %v1422 = vlaneseq
        %v1423 = vshrl.u32 %v1422, 7
        %v1424 = vlaneseq
        %v1425 = vand.u32 %v1424, 127
        %vm1426 = vcmp.eq.s32.totalorder %v1423, %v1425
        %v1427 = vsel %vm1426, 1, 0
        %v1428 = vcvt.s32.f32 %v1427
        %v1429 = vadd.f32 %v1421, %v1428
        %vm1430 = vcmp.gt.f32.partialorder %v1429, 0.0
        %v1431 = vsel %vm1430, 1, 0
        %v1432 = vcvt.s32.f32 %v1431
        %v1433 = vsub.f32 1.0, %v1432
        %v1434 = vld [vmem:[%s1396] sm:$0xf]
        %v1435 = vunpack.c.l.bf16 %v1434
        %v1436 = vadd.f32 %v1435, %v1428
        %vm1437 = vcmp.gt.f32.partialorder %v1436, 0.0
        %v1438 = vsel %vm1437, 1, 0
        %v1439 = vcvt.s32.f32 %v1438
        %v1440 = vsub.f32 1.0, %v1439
        %v1441 = vld [vmem:[%s1400] sm:$0xf]
        %v1442 = vunpack.c.l.bf16 %v1441
        %v1443 = vadd.f32 %v1442, %v1428
        %vm1444 = vcmp.gt.f32.partialorder %v1443, 0.0
        %v1445 = vsel %vm1444, 1, 0
        %v1446 = vcvt.s32.f32 %v1445
        %v1447 = vsub.f32 1.0, %v1446
        %v1448 = vld [vmem:[%s1404] sm:$0xf]
        %v1449 = vunpack.c.l.bf16 %v1448
        %v1450 = vadd.f32 %v1449, %v1428
        %vm1451 = vcmp.gt.f32.partialorder %v1450, 0.0
        %v1452 = vsel %vm1451, 1, 0
        %v1453 = vcvt.s32.f32 %v1452
        %v1454 = vsub.f32 1.0, %v1453
        %v1455 = vld [vmem:[#allocation7] sm:$0x7]
        %v1456 = vld [vmem:[#allocation8] sm:$0x7]
        %vm1457 = vcmask 261120
        %v1458 = vsel %vm1457, %v1414, 0.0
        %1459 = vadd.xlane.f32.xlu0 %v1458
        %v1460 = vpop.xlane.xlu0 %1459
        %v1461 = vrcp.pop 32.0
        %v1462 = vmul.f32 %v1460, %v1461
        %v1463 = vsub.f32 %v1414, %v1462
        %v1464 = vmul.f32 %v1463, %v1463
        %v1465 = vsel %vm1457, %v1464, 0.0
        %1466 = vadd.xlane.f32.xlu0 %v1465
        %v1467 = vpop.xlane.xlu0 %1466
        %v1468 = vmul.f32 %v1467, %v1461
        %v1469 = vadd.f32 %v1468, 1e-05
        %v1470 = vrsqrt.pop %v1469
        %v1471 = vmul.f32 %v1463, %v1470
        %v1472 = vlaneseq
        %v1473 = vshrl.u32 %v1472, 7
        %v1474 = vsub.s32 0, %v1473
        %v1475 = vrot.slane %v1455, %v1474
        %v1476 = vmul.f32 %v1471, %v1475
        %v1477 = vlaneseq
        %v1478 = vshrl.u32 %v1477, 7
        %v1479 = vsub.s32 0, %v1478
        %v1480 = vrot.slane %v1456, %v1479
        %v1481 = vadd.f32 %v1476, %v1480
        %v1482 = vpack.c.bf16 %v1481, %v1481
        %v1483 = vsel %vm1457, %v1416, 0.0
        %1484 = vadd.xlane.f32.xlu0 %v1483
        %v1485 = vpop.xlane.xlu0 %1484
        %v1486 = vmul.f32 %v1485, %v1461
        %v1487 = vsub.f32 %v1416, %v1486
        %v1488 = vmul.f32 %v1487, %v1487
        %v1489 = vsel %vm1457, %v1488, 0.0
        %1490 = vadd.xlane.f32.xlu0 %v1489
        %v1491 = vpop.xlane.xlu0 %1490
        %v1492 = vmul.f32 %v1491, %v1461
        %v1493 = vadd.f32 %v1492, 1e-05
        %v1494 = vrsqrt.pop %v1493
        %v1495 = vmul.f32 %v1487, %v1494
        %v1496 = vlaneseq
        %v1497 = vshrl.u32 %v1496, 7
        %v1498 = vsub.s32 1, %v1497
        %v1499 = vrot.slane %v1455, %v1498
        %v1500 = vmul.f32 %v1495, %v1499
        %v1501 = vlaneseq
        %v1502 = vshrl.u32 %v1501, 7
        %v1503 = vsub.s32 1, %v1502
        %v1504 = vrot.slane %v1456, %v1503
        %v1505 = vadd.f32 %v1500, %v1504
        %v1506 = vpack.c.bf16 %v1505, %v1505
        %v1507 = vlaneseq
        %v1508 = vshrl.u32 %v1507, 7
        %v1509 = vsub.s32 2, %v1508
        %v1510 = vrot.slane %v1455, %v1509
        %v1511 = vmul.f32 %v1495, %v1510
        %v1512 = vlaneseq
        %v1513 = vshrl.u32 %v1512, 7
        %v1514 = vsub.s32 2, %v1513
        %v1515 = vrot.slane %v1456, %v1514
        %v1516 = vadd.f32 %v1511, %v1515
        %v1517 = vpack.c.bf16 %v1516, %v1516
        %v1518 = vld [vmem:[%s25] sm:$0xf]
        %v1519 = vld [vmem:[%s25 + $0x4] sm:$0xf]
        %v1520 = vld [vmem:[%s25 + $0x8] sm:$0xf]
        %v1521 = vld [vmem:[%s25 + $0xc] sm:$0xf]
        %v1526 = vunpack.c.l.b16 %v1518
        %v1527 = vunpack.c.l.b16 %v1519
        %v1528 = vunpack.c.l.b16 %v1520
        %v1529 = vunpack.c.l.b16 %v1521
        %v1530 = vpack.c.b16 %v1527, %v1526
        %v1531 = vpack.c.b16 %v1529, %v1528
        %v1535 = vsel %vm1457, %v1482, 0
        %1537 = vmatprep.subr.bf16.mxu0 0
        %1538 = vmatpush1.bf16.msra.mxu0 %v1530
        %1539 = vmatprep.subr.bf16.mxu0 0
        %1540 = vmatpush1.bf16.msra.mxu0 %v1531
        %1541 = vmatprep.subr.bf16.mxu0 0
        %1542 = vmatpush1.bf16.msra.mxu0 0
        %1543 = vmatprep.subr.bf16.mxu0 0
        %1544 = vmatpush1.bf16.msra.mxu0 0
        %1545 = vmatprep.subr.bf16.mxu0 0
        %1546 = vmatpush1.bf16.msra.mxu0 0
        %1547 = vmatprep.subr.bf16.mxu0 0
        %1548 = vmatpush1.bf16.msra.mxu0 0
        %1549 = vmatprep.subr.bf16.mxu0 0
        %1550 = vmatpush1.bf16.msra.mxu0 0
        %1551 = vmatprep.subr.bf16.mxu0 0
        %1552 = vmatpush1.bf16.msra.mxu0 0
        %1553 = vmatprep.subr.bf16.mxu0 0
        %1554 = vmatpush1.bf16.msra.mxu0 0
        %1555 = vmatprep.subr.bf16.mxu0 0
        %1556 = vmatpush1.bf16.msra.mxu0 0
        %1557 = vmatprep.subr.bf16.mxu0 0
        %1558 = vmatpush1.bf16.msra.mxu0 0
        %1559 = vmatprep.subr.bf16.mxu0 0
        %1560 = vmatpush1.bf16.msra.mxu0 0
        %1561 = vmatprep.subr.bf16.mxu0 0
        %1562 = vmatpush1.bf16.msra.mxu0 0
        %1563 = vmatprep.subr.bf16.mxu0 0
        %1564 = vmatpush1.bf16.msra.mxu0 0
        %1565 = vmatprep.subr.bf16.mxu0 0
        %1566 = vmatpush1.bf16.msra.mxu0 0
        %1567 = vmatprep.subr.bf16.mxu0 0
        %1568 = vmatpush1.bf16.msra.mxu0 0
        %1569 = vmatprep.mubr.bf16.mxu0 0
        %1570 = vmatmul.mubr.bf16.gmra.mrb[0].mxu0 %v1535
        %v1571 = vpop.f32.mrb[0].mxu0
        %v1572 = vadd.f32 0.0, %v1571
        %v1573 = vpop.f32.mrb[0].mxu0
        %v1574 = vpop.f32.mrb[0].mxu0
        %v1575 = vpop.f32.mrb[0].mxu0
        %1576 = vdwg.mxu0
        %v1577 = vmul.f32 %v1572, 0.25
        %v1578 = vpack.c.bf16 %v1577, %v1577
        %v1579 = vld [vmem:[#allocation10] sm:$0xf]
        %v1580 = vld [vmem:[#allocation10 + $0x4] sm:$0xf]
        %v1581 = vld [vmem:[#allocation10 + $0x8] sm:$0xf]
        %v1582 = vld [vmem:[#allocation10 + $0xc] sm:$0xf]
        %v1587 = vunpack.c.l.b16 %v1579
        %v1588 = vunpack.c.l.b16 %v1580
        %v1589 = vunpack.c.l.b16 %v1581
        %v1590 = vunpack.c.l.b16 %v1582
        %v1591 = vpack.c.b16 %v1588, %v1587
        %v1592 = vpack.c.b16 %v1590, %v1589
        %v1596 = vsel %vm1457, %v1506, 0
        %1598 = vmatprep.subr.bf16.mxu0 0
        %1599 = vmatpush1.bf16.msra.mxu0 %v1591
        %1600 = vmatprep.subr.bf16.mxu0 0
        %1601 = vmatpush1.bf16.msra.mxu0 %v1592
        %1602 = vmatprep.subr.bf16.mxu0 0
        %1603 = vmatpush1.bf16.msra.mxu0 0
        %1604 = vmatprep.subr.bf16.mxu0 0
        %1605 = vmatpush1.bf16.msra.mxu0 0
        %1606 = vmatprep.subr.bf16.mxu0 0
        %1607 = vmatpush1.bf16.msra.mxu0 0
        %1608 = vmatprep.subr.bf16.mxu0 0
        %1609 = vmatpush1.bf16.msra.mxu0 0
        %1610 = vmatprep.subr.bf16.mxu0 0
        %1611 = vmatpush1.bf16.msra.mxu0 0
        %1612 = vmatprep.subr.bf16.mxu0 0
        %1613 = vmatpush1.bf16.msra.mxu0 0
        %1614 = vmatprep.subr.bf16.mxu0 0
        %1615 = vmatpush1.bf16.msra.mxu0 0
        %1616 = vmatprep.subr.bf16.mxu0 0
        %1617 = vmatpush1.bf16.msra.mxu0 0
        %1618 = vmatprep.subr.bf16.mxu0 0
        %1619 = vmatpush1.bf16.msra.mxu0 0
        %1620 = vmatprep.subr.bf16.mxu0 0
        %1621 = vmatpush1.bf16.msra.mxu0 0
        %1622 = vmatprep.subr.bf16.mxu0 0
        %1623 = vmatpush1.bf16.msra.mxu0 0
        %1624 = vmatprep.subr.bf16.mxu0 0
        %1625 = vmatpush1.bf16.msra.mxu0 0
        %1626 = vmatprep.subr.bf16.mxu0 0
        %1627 = vmatpush1.bf16.msra.mxu0 0
        %1628 = vmatprep.subr.bf16.mxu0 0
        %1629 = vmatpush1.bf16.msra.mxu0 0
        %1630 = vmatprep.mubr.bf16.mxu0 0
        %1631 = vmatmul.mubr.bf16.gmra.mrb[0].mxu0 %v1596
        %v1632 = vpop.f32.mrb[0].mxu0
        %v1633 = vadd.f32 0.0, %v1632
        %v1634 = vpop.f32.mrb[0].mxu0
        %v1635 = vpop.f32.mrb[0].mxu0
        %v1636 = vpop.f32.mrb[0].mxu0
        %1637 = vdwg.mxu0
        %v1638 = vpack.c.bf16 %v1633, %v1633
        %v1639 = vld [vmem:[#allocation11] sm:$0xf]
        %v1640 = vld [vmem:[#allocation11 + $0x4] sm:$0xf]
        %v1641 = vld [vmem:[#allocation11 + $0x8] sm:$0xf]
        %v1642 = vld [vmem:[#allocation11 + $0xc] sm:$0xf]
        %v1647 = vunpack.c.l.b16 %v1639
        %v1648 = vunpack.c.l.b16 %v1640
        %v1649 = vunpack.c.l.b16 %v1641
        %v1650 = vunpack.c.l.b16 %v1642
        %v1651 = vpack.c.b16 %v1648, %v1647
        %v1652 = vpack.c.b16 %v1650, %v1649
        %v1656 = vsel %vm1457, %v1517, 0
        %1658 = vmatprep.subr.bf16.mxu0 0
        %1659 = vmatpush1.bf16.msra.mxu0 %v1651
        %1660 = vmatprep.subr.bf16.mxu0 0
        %1661 = vmatpush1.bf16.msra.mxu0 %v1652
        %1662 = vmatprep.subr.bf16.mxu0 0
        %1663 = vmatpush1.bf16.msra.mxu0 0
        %1664 = vmatprep.subr.bf16.mxu0 0
        %1665 = vmatpush1.bf16.msra.mxu0 0
        %1666 = vmatprep.subr.bf16.mxu0 0
        %1667 = vmatpush1.bf16.msra.mxu0 0
        %1668 = vmatprep.subr.bf16.mxu0 0
        %1669 = vmatpush1.bf16.msra.mxu0 0
        %1670 = vmatprep.subr.bf16.mxu0 0
        %1671 = vmatpush1.bf16.msra.mxu0 0
        %1672 = vmatprep.subr.bf16.mxu0 0
        %1673 = vmatpush1.bf16.msra.mxu0 0
        %1674 = vmatprep.subr.bf16.mxu0 0
        %1675 = vmatpush1.bf16.msra.mxu0 0
        %1676 = vmatprep.subr.bf16.mxu0 0
        %1677 = vmatpush1.bf16.msra.mxu0 0
        %1678 = vmatprep.subr.bf16.mxu0 0
        %1679 = vmatpush1.bf16.msra.mxu0 0
        %1680 = vmatprep.subr.bf16.mxu0 0
        %1681 = vmatpush1.bf16.msra.mxu0 0
        %1682 = vmatprep.subr.bf16.mxu0 0
        %1683 = vmatpush1.bf16.msra.mxu0 0
        %1684 = vmatprep.subr.bf16.mxu0 0
        %1685 = vmatpush1.bf16.msra.mxu0 0
        %1686 = vmatprep.subr.bf16.mxu0 0
        %1687 = vmatpush1.bf16.msra.mxu0 0
        %1688 = vmatprep.subr.bf16.mxu0 0
        %1689 = vmatpush1.bf16.msra.mxu0 0
        %1690 = vmatprep.mubr.bf16.mxu0 0
        %1691 = vmatmul.mubr.bf16.gmra.mrb[0].mxu0 %v1656
        %v1692 = vpop.f32.mrb[0].mxu0
        %v1693 = vadd.f32 0.0, %v1692
        %v1694 = vpop.f32.mrb[0].mxu0
        %v1695 = vpop.f32.mrb[0].mxu0
        %v1696 = vpop.f32.mrb[0].mxu0
        %1697 = vdwg.mxu0
        %v1698 = vpack.c.bf16 %v1693, %v1693
        %1700 = vrot.lane.b32.xlu0 %v1578, 112
        %v1701 = vpop.permute.xlu0 %1700
        %1703 = vrot.lane.b32.xlu0 %v1638, 112
        %v1704 = vpop.permute.xlu0 %1703
        %1706 = vrot.lane.b32.xlu0 %v1698, 112
        %v1707 = vpop.permute.xlu0 %1706
        %vm1708 = vcmask 130048
        %v1710 = vsel %vm1708, %v1578, 0
        %v1713 = vsel %vm1708, %v1638, 0
        %1715 = vmatprep.subr.bf16.mxu0 0
        %1716 = vmatpush1.bf16.xpose.msra.mxu0 %v1713
        %1717 = vmatprep.subr.bf16.mxu0 0
        %1718 = vmatpush1.bf16.xpose.msra.mxu0 0
        %1719 = vmatprep.subr.bf16.mxu0 0
        %1720 = vmatpush1.bf16.xpose.msra.mxu0 0
        %1721 = vmatprep.subr.bf16.mxu0 0
        %1722 = vmatpush1.bf16.xpose.msra.mxu0 0
        %1723 = vmatprep.subr.bf16.mxu0 0
        %1724 = vmatpush1.bf16.xpose.msra.mxu0 0
        %1725 = vmatprep.subr.bf16.mxu0 0
        %1726 = vmatpush1.bf16.xpose.msra.mxu0 0
        %1727 = vmatprep.subr.bf16.mxu0 0
        %1728 = vmatpush1.bf16.xpose.msra.mxu0 0
        %1729 = vmatprep.subr.bf16.mxu0 0
        %1730 = vmatpush1.bf16.xpose.msra.mxu0 0
        %1731 = vmatprep.subr.bf16.mxu0 0
        %1732 = vmatpush1.bf16.xpose.msra.mxu0 0
        %1733 = vmatprep.subr.bf16.mxu0 0
        %1734 = vmatpush1.bf16.xpose.msra.mxu0 0
        %1735 = vmatprep.subr.bf16.mxu0 0
        %1736 = vmatpush1.bf16.xpose.msra.mxu0 0
        %1737 = vmatprep.subr.bf16.mxu0 0
        %1738 = vmatpush1.bf16.xpose.msra.mxu0 0
        %1739 = vmatprep.subr.bf16.mxu0 0
        %1740 = vmatpush1.bf16.xpose.msra.mxu0 0
        %1741 = vmatprep.subr.bf16.mxu0 0
        %1742 = vmatpush1.bf16.xpose.msra.mxu0 0
        %1743 = vmatprep.subr.bf16.mxu0 0
        %1744 = vmatpush1.bf16.xpose.msra.mxu0 0
        %1745 = vmatprep.subr.bf16.mxu0 0
        %1746 = vmatpush1.bf16.xpose.msra.mxu0 0
        %1747 = vmatprep.mubr.bf16.mxu0 0
        %1748 = vmatmul.mubr.bf16.gmra.mrb[0].mxu0 %v1710
        %v1749 = vpop.f32.mrb[0].mxu0
        %v1750 = vadd.f32 0.0, %v1749
        %v1751 = vpop.f32.mrb[0].mxu0
        %v1752 = vpop.f32.mrb[0].mxu0
        %v1753 = vpop.f32.mrb[0].mxu0
        %1754 = vdwg.mxu0
        %v1756 = vsel %vm1708, %v1701, 0
        %v1759 = vsel %vm1708, %v1704, 0
        %1761 = vmatprep.subr.bf16.mxu0 0
        %1762 = vmatpush1.bf16.xpose.msra.mxu0 %v1759
        %1763 = vmatprep.subr.bf16.mxu0 0
        %1764 = vmatpush1.bf16.xpose.msra.mxu0 0
        %1765 = vmatprep.subr.bf16.mxu0 0
        %1766 = vmatpush1.bf16.xpose.msra.mxu0 0
        %1767 = vmatprep.subr.bf16.mxu0 0
        %1768 = vmatpush1.bf16.xpose.msra.mxu0 0
        %1769 = vmatprep.subr.bf16.mxu0 0
        %1770 = vmatpush1.bf16.xpose.msra.mxu0 0
        %1771 = vmatprep.subr.bf16.mxu0 0
        %1772 = vmatpush1.bf16.xpose.msra.mxu0 0
        %1773 = vmatprep.subr.bf16.mxu0 0
        %1774 = vmatpush1.bf16.xpose.msra.mxu0 0
        %1775 = vmatprep.subr.bf16.mxu0 0
        %1776 = vmatpush1.bf16.xpose.msra.mxu0 0
        %1777 = vmatprep.subr.bf16.mxu0 0
        %1778 = vmatpush1.bf16.xpose.msra.mxu0 0
        %1779 = vmatprep.subr.bf16.mxu0 0
        %1780 = vmatpush1.bf16.xpose.msra.mxu0 0
        %1781 = vmatprep.subr.bf16.mxu0 0
        %1782 = vmatpush1.bf16.xpose.msra.mxu0 0
        %1783 = vmatprep.subr.bf16.mxu0 0
        %1784 = vmatpush1.bf16.xpose.msra.mxu0 0
        %1785 = vmatprep.subr.bf16.mxu0 0
        %1786 = vmatpush1.bf16.xpose.msra.mxu0 0
        %1787 = vmatprep.subr.bf16.mxu0 0
        %1788 = vmatpush1.bf16.xpose.msra.mxu0 0
        %1789 = vmatprep.subr.bf16.mxu0 0
        %1790 = vmatpush1.bf16.xpose.msra.mxu0 0
        %1791 = vmatprep.subr.bf16.mxu0 0
        %1792 = vmatpush1.bf16.xpose.msra.mxu0 0
        %1793 = vmatprep.mubr.bf16.mxu0 0
        %1794 = vmatmul.mubr.bf16.gmra.mrb[0].mxu0 %v1756
        %v1795 = vpop.f32.mrb[0].mxu0
        %v1796 = vadd.f32 0.0, %v1795
        %v1797 = vpop.f32.mrb[0].mxu0
        %v1798 = vpop.f32.mrb[0].mxu0
        %v1799 = vpop.f32.mrb[0].mxu0
        %1800 = vdwg.mxu0
        %v1801 = vmul.f32 %v1750, %v1433
        %v1802 = vmul.f32 %v1796, %v1433
        %vm1803 = vcmask 64512
        %v1804 = vsel %vm1803, %v1801, -inf
        %1805 = vmax.xlane.f32.xlu0 %v1804
        %v1806 = vpop.xlane.xlu0 %1805
        %v1807 = vsel %vm1803, %v1802, -inf
        %1808 = vmax.xlane.f32.xlu0 %v1807
        %v1809 = vpop.xlane.xlu0 %1808
        %v1810 = vsub.f32 %v1801, %v1806
        %v1811 = vsub.f32 %v1802, %v1809
        %v1812 = vmul.f32 %v1810, 1.442695
        %v1813 = vpow.pop %v1812
        %v1814 = vmul.f32 %v1811, 1.442695
        %v1815 = vpow.pop %v1814
        %v1816 = vmul.f32 %v1813, %v1433
        %v1817 = vmul.f32 %v1815, %v1433
        %v1818 = vsel %vm1803, %v1816, 0.0
        %1819 = vadd.xlane.f32.xlu0 %v1818
        %v1820 = vpop.xlane.xlu0 %1819
        %v1821 = vsel %vm1803, %v1817, 0.0
        %1822 = vadd.xlane.f32.xlu0 %v1821
        %v1823 = vpop.xlane.xlu0 %1822
        %v1824 = vadd.f32 %v1820, 1e-13
        %v1825 = vadd.f32 %v1823, 1e-13
        %v1826 = vrcp.pop %v1824
        %v1827 = vrcp.pop %v1825
        %v1828 = vmul.f32 %v1816, %v1826
        %v1829 = vmul.f32 %v1817, %v1827
        %1830 = vst.msk [vmem:[%s1345] sm:$0xff] %vm1803, %v1828
        %1831 = vst.msk [vmem:[%s1345 + $0x8] sm:$0xff] %vm1803, %v1829
        %v1832 = vpack.c.bf16 %v1828, %v1828
        %v1833 = vpack.c.bf16 %v1829, %v1829
        %v1835 = vsel %vm1803, %v1832, 0
        %vm1837 = vcmask 1043456
        %v1839 = vsel %vm1837, %v1698, 0
        %1841 = vmatprep.subr.bf16.mxu0 0
        %1842 = vmatpush1.bf16.msra.mxu0 %v1839
        %1843 = vmatprep.subr.bf16.mxu0 0
        %1844 = vmatpush1.bf16.msra.mxu0 0
        %1845 = vmatprep.subr.bf16.mxu0 0
        %1846 = vmatpush1.bf16.msra.mxu0 0
        %1847 = vmatprep.subr.bf16.mxu0 0
        %1848 = vmatpush1.bf16.msra.mxu0 0
        %1849 = vmatprep.subr.bf16.mxu0 0
        %1850 = vmatpush1.bf16.msra.mxu0 0
        %1851 = vmatprep.subr.bf16.mxu0 0
        %1852 = vmatpush1.bf16.msra.mxu0 0
        %1853 = vmatprep.subr.bf16.mxu0 0
        %1854 = vmatpush1.bf16.msra.mxu0 0
        %1855 = vmatprep.subr.bf16.mxu0 0
        %1856 = vmatpush1.bf16.msra.mxu0 0
        %1857 = vmatprep.subr.bf16.mxu0 0
        %1858 = vmatpush1.bf16.msra.mxu0 0
        %1859 = vmatprep.subr.bf16.mxu0 0
        %1860 = vmatpush1.bf16.msra.mxu0 0
        %1861 = vmatprep.subr.bf16.mxu0 0
        %1862 = vmatpush1.bf16.msra.mxu0 0
        %1863 = vmatprep.subr.bf16.mxu0 0
        %1864 = vmatpush1.bf16.msra.mxu0 0
        %1865 = vmatprep.subr.bf16.mxu0 0
        %1866 = vmatpush1.bf16.msra.mxu0 0
        %1867 = vmatprep.subr.bf16.mxu0 0
        %1868 = vmatpush1.bf16.msra.mxu0 0
        %1869 = vmatprep.subr.bf16.mxu0 0
        %1870 = vmatpush1.bf16.msra.mxu0 0
        %1871 = vmatprep.subr.bf16.mxu0 0
        %1872 = vmatpush1.bf16.msra.mxu0 0
        %1873 = vmatprep.mubr.bf16.mxu0 0
        %1874 = vmatmul.mubr.bf16.gmra.mrb[0].mxu0 %v1835
        %v1875 = vpop.f32.mrb[0].mxu0
        %v1876 = vadd.f32 0.0, %v1875
        %v1877 = vpop.f32.mrb[0].mxu0
        %v1878 = vpop.f32.mrb[0].mxu0
        %v1879 = vpop.f32.mrb[0].mxu0
        %1880 = vdwg.mxu0
        %v1882 = vsel %vm1803, %v1833, 0
        %v1885 = vsel %vm1837, %v1707, 0
        %1887 = vmatprep.subr.bf16.mxu0 0
        %1888 = vmatpush1.bf16.msra.mxu0 %v1885
        %1889 = vmatprep.subr.bf16.mxu0 0
        %1890 = vmatpush1.bf16.msra.mxu0 0
        %1891 = vmatprep.subr.bf16.mxu0 0
        %1892 = vmatpush1.bf16.msra.mxu0 0
        %1893 = vmatprep.subr.bf16.mxu0 0
        %1894 = vmatpush1.bf16.msra.mxu0 0
        %1895 = vmatprep.subr.bf16.mxu0 0
        %1896 = vmatpush1.bf16.msra.mxu0 0
        %1897 = vmatprep.subr.bf16.mxu0 0
        %1898 = vmatpush1.bf16.msra.mxu0 0
        %1899 = vmatprep.subr.bf16.mxu0 0
        %1900 = vmatpush1.bf16.msra.mxu0 0
        %1901 = vmatprep.subr.bf16.mxu0 0
        %1902 = vmatpush1.bf16.msra.mxu0 0
        %1903 = vmatprep.subr.bf16.mxu0 0
        %1904 = vmatpush1.bf16.msra.mxu0 0
        %1905 = vmatprep.subr.bf16.mxu0 0
        %1906 = vmatpush1.bf16.msra.mxu0 0
        %1907 = vmatprep.subr.bf16.mxu0 0
        %1908 = vmatpush1.bf16.msra.mxu0 0
        %1909 = vmatprep.subr.bf16.mxu0 0
        %1910 = vmatpush1.bf16.msra.mxu0 0
        %1911 = vmatprep.subr.bf16.mxu0 0
        %1912 = vmatpush1.bf16.msra.mxu0 0
        %1913 = vmatprep.subr.bf16.mxu0 0
        %1914 = vmatpush1.bf16.msra.mxu0 0
        %1915 = vmatprep.subr.bf16.mxu0 0
        %1916 = vmatpush1.bf16.msra.mxu0 0
        %1917 = vmatprep.subr.bf16.mxu0 0
        %1918 = vmatpush1.bf16.msra.mxu0 0
        %1919 = vmatprep.mubr.bf16.mxu0 0
        %1920 = vmatmul.mubr.bf16.gmra.mrb[0].mxu0 %v1882
        %v1921 = vpop.f32.mrb[0].mxu0
        %v1922 = vadd.f32 0.0, %v1921
        %v1923 = vpop.f32.mrb[0].mxu0
        %v1924 = vpop.f32.mrb[0].mxu0
        %v1925 = vpop.f32.mrb[0].mxu0
        %1926 = vdwg.mxu0
        %v1927 = vpack.c.bf16 %v1876, %v1876
        %v1928 = vpack.c.bf16 %v1922, %v1922
        %v1929 = vld [vmem:[#allocation13] sm:$0xf]
        %v1930 = vld [vmem:[#allocation13 + $0x4] sm:$0xf]
        %v1931 = vld [vmem:[#allocation13 + $0x8] sm:$0xf]
        %v1932 = vld [vmem:[#allocation13 + $0xc] sm:$0xf]
        %v1935 = vunpack.c.l.b16 %v1929
        %v1936 = vunpack.c.l.b16 %v1930
        %v1937 = vpack.c.b16 %v1936, %v1935
        %v1940 = vsel %vm1708, %v1927, 0
        %1942 = vmatprep.subr.bf16.mxu0 0
        %1943 = vmatpush1.bf16.msra.mxu0 %v1937
        %1944 = vmatprep.subr.bf16.mxu0 0
        %1945 = vmatpush1.bf16.msra.mxu0 0
        %1946 = vmatprep.subr.bf16.mxu0 0
        %1947 = vmatpush1.bf16.msra.mxu0 0
        %1948 = vmatprep.subr.bf16.mxu0 0
        %1949 = vmatpush1.bf16.msra.mxu0 0
        %1950 = vmatprep.subr.bf16.mxu0 0
        %1951 = vmatpush1.bf16.msra.mxu0 0
        %1952 = vmatprep.subr.bf16.mxu0 0
        %1953 = vmatpush1.bf16.msra.mxu0 0
        %1954 = vmatprep.subr.bf16.mxu0 0
        %1955 = vmatpush1.bf16.msra.mxu0 0
        %1956 = vmatprep.subr.bf16.mxu0 0
        %1957 = vmatpush1.bf16.msra.mxu0 0
        %1958 = vmatprep.subr.bf16.mxu0 0
        %1959 = vmatpush1.bf16.msra.mxu0 0
        %1960 = vmatprep.subr.bf16.mxu0 0
        %1961 = vmatpush1.bf16.msra.mxu0 0
        %1962 = vmatprep.subr.bf16.mxu0 0
        %1963 = vmatpush1.bf16.msra.mxu0 0
        %1964 = vmatprep.subr.bf16.mxu0 0
        %1965 = vmatpush1.bf16.msra.mxu0 0
        %1966 = vmatprep.subr.bf16.mxu0 0
        %1967 = vmatpush1.bf16.msra.mxu0 0
        %1968 = vmatprep.subr.bf16.mxu0 0
        %1969 = vmatpush1.bf16.msra.mxu0 0
        %1970 = vmatprep.subr.bf16.mxu0 0
        %1971 = vmatpush1.bf16.msra.mxu0 0
        %1972 = vmatprep.subr.bf16.mxu0 0
        %1973 = vmatpush1.bf16.msra.mxu0 0
        %1974 = vmatprep.mubr.bf16.mxu0 0
        %1975 = vmatmul.mubr.bf16.gmra.mrb[0].mxu0 %v1940
        %v1976 = vpop.f32.mrb[0].mxu0
        %v1977 = vadd.f32 0.0, %v1976
        %v1978 = vpop.f32.mrb[0].mxu0
        %v1979 = vpop.f32.mrb[0].mxu0
        %v1980 = vpop.f32.mrb[0].mxu0
        %1981 = vdwg.mxu0
        %v1984 = vunpack.c.l.b16 %v1931
        %v1985 = vunpack.c.l.b16 %v1932
        %v1986 = vpack.c.b16 %v1985, %v1984
        %v1989 = vsel %vm1708, %v1928, 0
        %1991 = vmatprep.subr.bf16.mxu0 0
        %1992 = vmatpush1.bf16.msra.mxu0 %v1986
        %1993 = vmatprep.subr.bf16.mxu0 0
        %1994 = vmatpush1.bf16.msra.mxu0 0
        %1995 = vmatprep.subr.bf16.mxu0 0
        %1996 = vmatpush1.bf16.msra.mxu0 0
        %1997 = vmatprep.subr.bf16.mxu0 0
        %1998 = vmatpush1.bf16.msra.mxu0 0
        %1999 = vmatprep.subr.bf16.mxu0 0
        %2000 = vmatpush1.bf16.msra.mxu0 0
        %2001 = vmatprep.subr.bf16.mxu0 0
        %2002 = vmatpush1.bf16.msra.mxu0 0
        %2003 = vmatprep.subr.bf16.mxu0 0
        %2004 = vmatpush1.bf16.msra.mxu0 0
        %2005 = vmatprep.subr.bf16.mxu0 0
        %2006 = vmatpush1.bf16.msra.mxu0 0
        %2007 = vmatprep.subr.bf16.mxu0 0
        %2008 = vmatpush1.bf16.msra.mxu0 0
        %2009 = vmatprep.subr.bf16.mxu0 0
        %2010 = vmatpush1.bf16.msra.mxu0 0
        %2011 = vmatprep.subr.bf16.mxu0 0
        %2012 = vmatpush1.bf16.msra.mxu0 0
        %2013 = vmatprep.subr.bf16.mxu0 0
        %2014 = vmatpush1.bf16.msra.mxu0 0
        %2015 = vmatprep.subr.bf16.mxu0 0
        %2016 = vmatpush1.bf16.msra.mxu0 0
        %2017 = vmatprep.subr.bf16.mxu0 0
        %2018 = vmatpush1.bf16.msra.mxu0 0
        %2019 = vmatprep.subr.bf16.mxu0 0
        %2020 = vmatpush1.bf16.msra.mxu0 0
        %2021 = vmatprep.subr.bf16.mxu0 0
        %2022 = vmatpush1.bf16.msra.mxu0 0
        %2023 = vmatprep.mubr.bf16.mxu0 0
        %2024 = vmatmul.mubr.bf16.gmra.mrb[0].mxu0 %v1989
        %v2025 = vpop.f32.mrb[0].mxu0
        %v2026 = vadd.f32 0.0, %v2025
        %v2027 = vpop.f32.mrb[0].mxu0
        %v2028 = vpop.f32.mrb[0].mxu0
        %v2029 = vpop.f32.mrb[0].mxu0
        %2030 = vdwg.mxu0
        %v2031 = vsel %vm1457, %v1977, 0.0
        %v2032 = vsel %vm1457, %v2026, 0.0
        %v2033 = vadd.f32 %v2031, %v2032
        %v2034 = vld [vmem:[#allocation14] sm:$0xf]
        %v2035 = vld [vmem:[#allocation14 + $0x4] sm:$0xf]
        %v2036 = vld [vmem:[#allocation14 + $0x8] sm:$0xf]
        %v2037 = vld [vmem:[#allocation14 + $0xc] sm:$0xf]
        %v2042 = vunpack.c.l.b16 %v2034
        %v2043 = vunpack.c.l.b16 %v2035
        %v2044 = vunpack.c.l.b16 %v2036
        %v2045 = vunpack.c.l.b16 %v2037
        %v2046 = vpack.c.b16 %v2043, %v2042
        %v2047 = vpack.c.b16 %v2045, %v2044
        %v2050 = vsel %vm1457, %v1698, 0
        %2052 = vmatprep.subr.bf16.mxu0 0
        %2053 = vmatpush1.bf16.msra.mxu0 %v2046
        %2054 = vmatprep.subr.bf16.mxu0 0
        %2055 = vmatpush1.bf16.msra.mxu0 %v2047
        %2056 = vmatprep.subr.bf16.mxu0 0
        %2057 = vmatpush1.bf16.msra.mxu0 0
        %2058 = vmatprep.subr.bf16.mxu0 0
        %2059 = vmatpush1.bf16.msra.mxu0 0
        %2060 = vmatprep.subr.bf16.mxu0 0
        %2061 = vmatpush1.bf16.msra.mxu0 0
        %2062 = vmatprep.subr.bf16.mxu0 0
        %2063 = vmatpush1.bf16.msra.mxu0 0
        %2064 = vmatprep.subr.bf16.mxu0 0
        %2065 = vmatpush1.bf16.msra.mxu0 0
        %2066 = vmatprep.subr.bf16.mxu0 0
        %2067 = vmatpush1.bf16.msra.mxu0 0
        %2068 = vmatprep.subr.bf16.mxu0 0
        %2069 = vmatpush1.bf16.msra.mxu0 0
        %2070 = vmatprep.subr.bf16.mxu0 0
        %2071 = vmatpush1.bf16.msra.mxu0 0
        %2072 = vmatprep.subr.bf16.mxu0 0
        %2073 = vmatpush1.bf16.msra.mxu0 0
        %2074 = vmatprep.subr.bf16.mxu0 0
        %2075 = vmatpush1.bf16.msra.mxu0 0
        %2076 = vmatprep.subr.bf16.mxu0 0
        %2077 = vmatpush1.bf16.msra.mxu0 0
        %2078 = vmatprep.subr.bf16.mxu0 0
        %2079 = vmatpush1.bf16.msra.mxu0 0
        %2080 = vmatprep.subr.bf16.mxu0 0
        %2081 = vmatpush1.bf16.msra.mxu0 0
        %2082 = vmatprep.subr.bf16.mxu0 0
        %2083 = vmatpush1.bf16.msra.mxu0 0
        %2084 = vmatprep.mubr.bf16.mxu0 0
        %2085 = vmatmul.mubr.bf16.gmra.mrb[0].mxu0 %v2050
        %v2086 = vpop.f32.mrb[0].mxu0
        %v2087 = vadd.f32 0.0, %v2086
        %v2088 = vpop.f32.mrb[0].mxu0
        %v2089 = vpop.f32.mrb[0].mxu0
        %v2090 = vpop.f32.mrb[0].mxu0
        %2091 = vdwg.mxu0
        %s2092 = scalar_lea.vmem [#allocation7], 4
        %v2093 = vld [vmem:[%s2092] sm:$0x7]
        %s2094 = scalar_lea.vmem [#allocation8], 4
        %v2095 = vld [vmem:[%s2094] sm:$0x7]
        %v2096 = vsel %vm1457, %v1415, 0.0
        %2097 = vadd.xlane.f32.xlu0 %v2096
        %v2098 = vpop.xlane.xlu0 %2097
        %v2099 = vmul.f32 %v2098, %v1461
        %v2100 = vsub.f32 %v1415, %v2099
        %v2101 = vmul.f32 %v2100, %v2100
        %v2102 = vsel %vm1457, %v2101, 0.0
        %2103 = vadd.xlane.f32.xlu0 %v2102
        %v2104 = vpop.xlane.xlu0 %2103
        %v2105 = vmul.f32 %v2104, %v1461
        %v2106 = vadd.f32 %v2105, 1e-05
        %v2107 = vrsqrt.pop %v2106
        %v2108 = vmul.f32 %v2100, %v2107
        %v2109 = vlaneseq
        %v2110 = vshrl.u32 %v2109, 7
        %v2111 = vsub.s32 0, %v2110
        %v2112 = vrot.slane %v2093, %v2111
        %v2113 = vmul.f32 %v2108, %v2112
        %v2114 = vlaneseq
        %v2115 = vshrl.u32 %v2114, 7
        %v2116 = vsub.s32 0, %v2115
        %v2117 = vrot.slane %v2095, %v2116
        %v2118 = vadd.f32 %v2113, %v2117
        %v2119 = vpack.c.bf16 %v2118, %v2118
        %v2120 = vsel %vm1457, %v1417, 0.0
        %2121 = vadd.xlane.f32.xlu0 %v2120
        %v2122 = vpop.xlane.xlu0 %2121
        %v2123 = vmul.f32 %v2122, %v1461
        %v2124 = vsub.f32 %v1417, %v2123
        %v2125 = vmul.f32 %v2124, %v2124
        %v2126 = vsel %vm1457, %v2125, 0.0
        %2127 = vadd.xlane.f32.xlu0 %v2126
        %v2128 = vpop.xlane.xlu0 %2127
        %v2129 = vmul.f32 %v2128, %v1461
        %v2130 = vadd.f32 %v2129, 1e-05
        %v2131 = vrsqrt.pop %v2130
        %v2132 = vmul.f32 %v2124, %v2131
        %v2133 = vlaneseq
        %v2134 = vshrl.u32 %v2133, 7
        %v2135 = vsub.s32 1, %v2134
        %v2136 = vrot.slane %v2093, %v2135
        %v2137 = vmul.f32 %v2132, %v2136
        %v2138 = vlaneseq
        %v2139 = vshrl.u32 %v2138, 7
        %v2140 = vsub.s32 1, %v2139
        %v2141 = vrot.slane %v2095, %v2140
        %v2142 = vadd.f32 %v2137, %v2141
        %v2143 = vpack.c.bf16 %v2142, %v2142
        %v2144 = vlaneseq
        %v2145 = vshrl.u32 %v2144, 7
        %v2146 = vsub.s32 2, %v2145
        %v2147 = vrot.slane %v2093, %v2146
        %v2148 = vmul.f32 %v2132, %v2147
        %v2149 = vlaneseq
        %v2150 = vshrl.u32 %v2149, 7
        %v2151 = vsub.s32 2, %v2150
        %v2152 = vrot.slane %v2095, %v2151
        %v2153 = vadd.f32 %v2148, %v2152
        %v2154 = vpack.c.bf16 %v2153, %v2153
        %s2155 = scalar_lea.vmem %s25, 16
        %v2156 = vld [vmem:[%s2155] sm:$0xf]
        %v2157 = vld [vmem:[%s2155 + $0x4] sm:$0xf]
        %v2158 = vld [vmem:[%s2155 + $0x8] sm:$0xf]
        %v2159 = vld [vmem:[%s2155 + $0xc] sm:$0xf]
        %v2164 = vunpack.c.l.b16 %v2156
        %v2165 = vunpack.c.l.b16 %v2157
        %v2166 = vunpack.c.l.b16 %v2158
        %v2167 = vunpack.c.l.b16 %v2159
        %v2168 = vpack.c.b16 %v2165, %v2164
        %v2169 = vpack.c.b16 %v2167, %v2166
        %v2173 = vsel %vm1457, %v2119, 0
        %2175 = vmatprep.subr.bf16.mxu0 0
        %2176 = vmatpush1.bf16.msra.mxu0 %v2168
        %2177 = vmatprep.subr.bf16.mxu0 0
        %2178 = vmatpush1.bf16.msra.mxu0 %v2169
        %2179 = vmatprep.subr.bf16.mxu0 0
        %2180 = vmatpush1.bf16.msra.mxu0 0
        %2181 = vmatprep.subr.bf16.mxu0 0
        %2182 = vmatpush1.bf16.msra.mxu0 0
        %2183 = vmatprep.subr.bf16.mxu0 0
        %2184 = vmatpush1.bf16.msra.mxu0 0
        %2185 = vmatprep.subr.bf16.mxu0 0
        %2186 = vmatpush1.bf16.msra.mxu0 0
        %2187 = vmatprep.subr.bf16.mxu0 0
        %2188 = vmatpush1.bf16.msra.mxu0 0
        %2189 = vmatprep.subr.bf16.mxu0 0
        %2190 = vmatpush1.bf16.msra.mxu0 0
        %2191 = vmatprep.subr.bf16.mxu0 0
        %2192 = vmatpush1.bf16.msra.mxu0 0
        %2193 = vmatprep.subr.bf16.mxu0 0
        %2194 = vmatpush1.bf16.msra.mxu0 0
        %2195 = vmatprep.subr.bf16.mxu0 0
        %2196 = vmatpush1.bf16.msra.mxu0 0
        %2197 = vmatprep.subr.bf16.mxu0 0
        %2198 = vmatpush1.bf16.msra.mxu0 0
        %2199 = vmatprep.subr.bf16.mxu0 0
        %2200 = vmatpush1.bf16.msra.mxu0 0
        %2201 = vmatprep.subr.bf16.mxu0 0
        %2202 = vmatpush1.bf16.msra.mxu0 0
        %2203 = vmatprep.subr.bf16.mxu0 0
        %2204 = vmatpush1.bf16.msra.mxu0 0
        %2205 = vmatprep.subr.bf16.mxu0 0
        %2206 = vmatpush1.bf16.msra.mxu0 0
        %2207 = vmatprep.mubr.bf16.mxu0 0
        %2208 = vmatmul.mubr.bf16.gmra.mrb[0].mxu0 %v2173
        %v2209 = vpop.f32.mrb[0].mxu0
        %v2210 = vadd.f32 0.0, %v2209
        %v2211 = vpop.f32.mrb[0].mxu0
        %v2212 = vpop.f32.mrb[0].mxu0
        %v2213 = vpop.f32.mrb[0].mxu0
        %2214 = vdwg.mxu0
        %v2215 = vmul.f32 %v2210, 0.25
        %v2216 = vpack.c.bf16 %v2215, %v2215
        %s2217 = scalar_lea.vmem [#allocation10], 16
        %v2218 = vld [vmem:[%s2217] sm:$0xf]
        %v2219 = vld [vmem:[%s2217 + $0x4] sm:$0xf]
        %v2220 = vld [vmem:[%s2217 + $0x8] sm:$0xf]
        %v2221 = vld [vmem:[%s2217 + $0xc] sm:$0xf]
        %v2226 = vunpack.c.l.b16 %v2218
        %v2227 = vunpack.c.l.b16 %v2219
        %v2228 = vunpack.c.l.b16 %v2220
        %v2229 = vunpack.c.l.b16 %v2221
        %v2230 = vpack.c.b16 %v2227, %v2226
        %v2231 = vpack.c.b16 %v2229, %v2228
        %v2235 = vsel %vm1457, %v2143, 0
        %2237 = vmatprep.subr.bf16.mxu0 0
        %2238 = vmatpush1.bf16.msra.mxu0 %v2230
        %2239 = vmatprep.subr.bf16.mxu0 0
        %2240 = vmatpush1.bf16.msra.mxu0 %v2231
        %2241 = vmatprep.subr.bf16.mxu0 0
        %2242 = vmatpush1.bf16.msra.mxu0 0
        %2243 = vmatprep.subr.bf16.mxu0 0
        %2244 = vmatpush1.bf16.msra.mxu0 0
        %2245 = vmatprep.subr.bf16.mxu0 0
        %2246 = vmatpush1.bf16.msra.mxu0 0
        %2247 = vmatprep.subr.bf16.mxu0 0
        %2248 = vmatpush1.bf16.msra.mxu0 0
        %2249 = vmatprep.subr.bf16.mxu0 0
        %2250 = vmatpush1.bf16.msra.mxu0 0
        %2251 = vmatprep.subr.bf16.mxu0 0
        %2252 = vmatpush1.bf16.msra.mxu0 0
        %2253 = vmatprep.subr.bf16.mxu0 0
        %2254 = vmatpush1.bf16.msra.mxu0 0
        %2255 = vmatprep.subr.bf16.mxu0 0
        %2256 = vmatpush1.bf16.msra.mxu0 0
        %2257 = vmatprep.subr.bf16.mxu0 0
        %2258 = vmatpush1.bf16.msra.mxu0 0
        %2259 = vmatprep.subr.bf16.mxu0 0
        %2260 = vmatpush1.bf16.msra.mxu0 0
        %2261 = vmatprep.subr.bf16.mxu0 0
        %2262 = vmatpush1.bf16.msra.mxu0 0
        %2263 = vmatprep.subr.bf16.mxu0 0
        %2264 = vmatpush1.bf16.msra.mxu0 0
        %2265 = vmatprep.subr.bf16.mxu0 0
        %2266 = vmatpush1.bf16.msra.mxu0 0
        %2267 = vmatprep.subr.bf16.mxu0 0
        %2268 = vmatpush1.bf16.msra.mxu0 0
        %2269 = vmatprep.mubr.bf16.mxu0 0
        %2270 = vmatmul.mubr.bf16.gmra.mrb[0].mxu0 %v2235
        %v2271 = vpop.f32.mrb[0].mxu0
        %v2272 = vadd.f32 0.0, %v2271
        %v2273 = vpop.f32.mrb[0].mxu0
        %v2274 = vpop.f32.mrb[0].mxu0
        %v2275 = vpop.f32.mrb[0].mxu0
        %2276 = vdwg.mxu0
        %v2277 = vpack.c.bf16 %v2272, %v2272
        %s2278 = scalar_lea.vmem [#allocation11], 16
        %v2279 = vld [vmem:[%s2278] sm:$0xf]
        %v2280 = vld [vmem:[%s2278 + $0x4] sm:$0xf]
        %v2281 = vld [vmem:[%s2278 + $0x8] sm:$0xf]
        %v2282 = vld [vmem:[%s2278 + $0xc] sm:$0xf]
        %v2287 = vunpack.c.l.b16 %v2279
        %v2288 = vunpack.c.l.b16 %v2280
        %v2289 = vunpack.c.l.b16 %v2281
        %v2290 = vunpack.c.l.b16 %v2282
        %v2291 = vpack.c.b16 %v2288, %v2287
        %v2292 = vpack.c.b16 %v2290, %v2289
        %v2296 = vsel %vm1457, %v2154, 0
        %2298 = vmatprep.subr.bf16.mxu0 0
        %2299 = vmatpush1.bf16.msra.mxu0 %v2291
        %2300 = vmatprep.subr.bf16.mxu0 0
        %2301 = vmatpush1.bf16.msra.mxu0 %v2292
        %2302 = vmatprep.subr.bf16.mxu0 0
        %2303 = vmatpush1.bf16.msra.mxu0 0
        %2304 = vmatprep.subr.bf16.mxu0 0
        %2305 = vmatpush1.bf16.msra.mxu0 0
        %2306 = vmatprep.subr.bf16.mxu0 0
        %2307 = vmatpush1.bf16.msra.mxu0 0
        %2308 = vmatprep.subr.bf16.mxu0 0
        %2309 = vmatpush1.bf16.msra.mxu0 0
        %2310 = vmatprep.subr.bf16.mxu0 0
        %2311 = vmatpush1.bf16.msra.mxu0 0
        %2312 = vmatprep.subr.bf16.mxu0 0
        %2313 = vmatpush1.bf16.msra.mxu0 0
        %2314 = vmatprep.subr.bf16.mxu0 0
        %2315 = vmatpush1.bf16.msra.mxu0 0
        %2316 = vmatprep.subr.bf16.mxu0 0
        %2317 = vmatpush1.bf16.msra.mxu0 0
        %2318 = vmatprep.subr.bf16.mxu0 0
        %2319 = vmatpush1.bf16.msra.mxu0 0
        %2320 = vmatprep.subr.bf16.mxu0 0
        %2321 = vmatpush1.bf16.msra.mxu0 0
        %2322 = vmatprep.subr.bf16.mxu0 0
        %2323 = vmatpush1.bf16.msra.mxu0 0
        %2324 = vmatprep.subr.bf16.mxu0 0
        %2325 = vmatpush1.bf16.msra.mxu0 0
        %2326 = vmatprep.subr.bf16.mxu0 0
        %2327 = vmatpush1.bf16.msra.mxu0 0
        %2328 = vmatprep.subr.bf16.mxu0 0
        %2329 = vmatpush1.bf16.msra.mxu0 0
        %2330 = vmatprep.mubr.bf16.mxu0 0
        %2331 = vmatmul.mubr.bf16.gmra.mrb[0].mxu0 %v2296
        %v2332 = vpop.f32.mrb[0].mxu0
        %v2333 = vadd.f32 0.0, %v2332
        %v2334 = vpop.f32.mrb[0].mxu0
        %v2335 = vpop.f32.mrb[0].mxu0
        %v2336 = vpop.f32.mrb[0].mxu0
        %2337 = vdwg.mxu0
        %v2338 = vpack.c.bf16 %v2333, %v2333
        %2340 = vrot.lane.b32.xlu0 %v2216, 112
        %v2341 = vpop.permute.xlu0 %2340
        %2343 = vrot.lane.b32.xlu0 %v2277, 112
        %v2344 = vpop.permute.xlu0 %2343
        %2346 = vrot.lane.b32.xlu0 %v2338, 112
        %v2347 = vpop.permute.xlu0 %2346
        %v2349 = vsel %vm1708, %v2216, 0
        %v2352 = vsel %vm1708, %v2277, 0
        %2354 = vmatprep.subr.bf16.mxu0 0
        %2355 = vmatpush1.bf16.xpose.msra.mxu0 %v2352
        %2356 = vmatprep.subr.bf16.mxu0 0
        %2357 = vmatpush1.bf16.xpose.msra.mxu0 0
        %2358 = vmatprep.subr.bf16.mxu0 0
        %2359 = vmatpush1.bf16.xpose.msra.mxu0 0
        %2360 = vmatprep.subr.bf16.mxu0 0
        %2361 = vmatpush1.bf16.xpose.msra.mxu0 0
        %2362 = vmatprep.subr.bf16.mxu0 0
        %2363 = vmatpush1.bf16.xpose.msra.mxu0 0
        %2364 = vmatprep.subr.bf16.mxu0 0
        %2365 = vmatpush1.bf16.xpose.msra.mxu0 0
        %2366 = vmatprep.subr.bf16.mxu0 0
        %2367 = vmatpush1.bf16.xpose.msra.mxu0 0
        %2368 = vmatprep.subr.bf16.mxu0 0
        %2369 = vmatpush1.bf16.xpose.msra.mxu0 0
        %2370 = vmatprep.subr.bf16.mxu0 0
        %2371 = vmatpush1.bf16.xpose.msra.mxu0 0
        %2372 = vmatprep.subr.bf16.mxu0 0
        %2373 = vmatpush1.bf16.xpose.msra.mxu0 0
        %2374 = vmatprep.subr.bf16.mxu0 0
        %2375 = vmatpush1.bf16.xpose.msra.mxu0 0
        %2376 = vmatprep.subr.bf16.mxu0 0
        %2377 = vmatpush1.bf16.xpose.msra.mxu0 0
        %2378 = vmatprep.subr.bf16.mxu0 0
        %2379 = vmatpush1.bf16.xpose.msra.mxu0 0
        %2380 = vmatprep.subr.bf16.mxu0 0
        %2381 = vmatpush1.bf16.xpose.msra.mxu0 0
        %2382 = vmatprep.subr.bf16.mxu0 0
        %2383 = vmatpush1.bf16.xpose.msra.mxu0 0
        %2384 = vmatprep.subr.bf16.mxu0 0
        %2385 = vmatpush1.bf16.xpose.msra.mxu0 0
        %2386 = vmatprep.mubr.bf16.mxu0 0
        %2387 = vmatmul.mubr.bf16.gmra.mrb[0].mxu0 %v2349
        %v2388 = vpop.f32.mrb[0].mxu0
        %v2389 = vadd.f32 0.0, %v2388
        %v2390 = vpop.f32.mrb[0].mxu0
        %v2391 = vpop.f32.mrb[0].mxu0
        %v2392 = vpop.f32.mrb[0].mxu0
        %2393 = vdwg.mxu0
        %v2395 = vsel %vm1708, %v2341, 0
        %v2398 = vsel %vm1708, %v2344, 0
        %2400 = vmatprep.subr.bf16.mxu0 0
        %2401 = vmatpush1.bf16.xpose.msra.mxu0 %v2398
        %2402 = vmatprep.subr.bf16.mxu0 0
        %2403 = vmatpush1.bf16.xpose.msra.mxu0 0
        %2404 = vmatprep.subr.bf16.mxu0 0
        %2405 = vmatpush1.bf16.xpose.msra.mxu0 0
        %2406 = vmatprep.subr.bf16.mxu0 0
        %2407 = vmatpush1.bf16.xpose.msra.mxu0 0
        %2408 = vmatprep.subr.bf16.mxu0 0
        %2409 = vmatpush1.bf16.xpose.msra.mxu0 0
        %2410 = vmatprep.subr.bf16.mxu0 0
        %2411 = vmatpush1.bf16.xpose.msra.mxu0 0
        %2412 = vmatprep.subr.bf16.mxu0 0
        %2413 = vmatpush1.bf16.xpose.msra.mxu0 0
        %2414 = vmatprep.subr.bf16.mxu0 0
        %2415 = vmatpush1.bf16.xpose.msra.mxu0 0
        %2416 = vmatprep.subr.bf16.mxu0 0
        %2417 = vmatpush1.bf16.xpose.msra.mxu0 0
        %2418 = vmatprep.subr.bf16.mxu0 0
        %2419 = vmatpush1.bf16.xpose.msra.mxu0 0
        %2420 = vmatprep.subr.bf16.mxu0 0
        %2421 = vmatpush1.bf16.xpose.msra.mxu0 0
        %2422 = vmatprep.subr.bf16.mxu0 0
        %2423 = vmatpush1.bf16.xpose.msra.mxu0 0
        %2424 = vmatprep.subr.bf16.mxu0 0
        %2425 = vmatpush1.bf16.xpose.msra.mxu0 0
        %2426 = vmatprep.subr.bf16.mxu0 0
        %2427 = vmatpush1.bf16.xpose.msra.mxu0 0
        %2428 = vmatprep.subr.bf16.mxu0 0
        %2429 = vmatpush1.bf16.xpose.msra.mxu0 0
        %2430 = vmatprep.subr.bf16.mxu0 0
        %2431 = vmatpush1.bf16.xpose.msra.mxu0 0
        %2432 = vmatprep.mubr.bf16.mxu0 0
        %2433 = vmatmul.mubr.bf16.gmra.mrb[0].mxu0 %v2395
        %v2434 = vpop.f32.mrb[0].mxu0
        %v2435 = vadd.f32 0.0, %v2434
        %v2436 = vpop.f32.mrb[0].mxu0
        %v2437 = vpop.f32.mrb[0].mxu0
        %v2438 = vpop.f32.mrb[0].mxu0
        %2439 = vdwg.mxu0
        %v2440 = vmul.f32 %v2389, %v1440
        %v2441 = vmul.f32 %v2435, %v1440
        %v2442 = vsel %vm1803, %v2440, -inf
        %2443 = vmax.xlane.f32.xlu0 %v2442
        %v2444 = vpop.xlane.xlu0 %2443
        %v2445 = vsel %vm1803, %v2441, -inf
        %2446 = vmax.xlane.f32.xlu0 %v2445
        %v2447 = vpop.xlane.xlu0 %2446
        %v2448 = vsub.f32 %v2440, %v2444
        %v2449 = vsub.f32 %v2441, %v2447
        %v2450 = vmul.f32 %v2448, 1.442695
        %v2451 = vpow.pop %v2450
        %v2452 = vmul.f32 %v2449, 1.442695
        %v2453 = vpow.pop %v2452
        %v2454 = vmul.f32 %v2451, %v1440
        %v2455 = vmul.f32 %v2453, %v1440
        %v2456 = vsel %vm1803, %v2454, 0.0
        %2457 = vadd.xlane.f32.xlu0 %v2456
        %v2458 = vpop.xlane.xlu0 %2457
        %v2459 = vsel %vm1803, %v2455, 0.0
        %2460 = vadd.xlane.f32.xlu0 %v2459
        %v2461 = vpop.xlane.xlu0 %2460
        %v2462 = vadd.f32 %v2458, 1e-13
        %v2463 = vadd.f32 %v2461, 1e-13
        %v2464 = vrcp.pop %v2462
        %v2465 = vrcp.pop %v2463
        %v2466 = vmul.f32 %v2454, %v2464
        %v2467 = vmul.f32 %v2455, %v2465
        %2468 = vst.msk [vmem:[%s1352] sm:$0xff] %vm1803, %v2466
        %2469 = vst.msk [vmem:[%s1352 + $0x8] sm:$0xff] %vm1803, %v2467
        %v2470 = vpack.c.bf16 %v2466, %v2466
        %v2471 = vpack.c.bf16 %v2467, %v2467
        %v2473 = vsel %vm1803, %v2470, 0
        %v2476 = vsel %vm1837, %v2338, 0
        %2478 = vmatprep.subr.bf16.mxu0 0
        %2479 = vmatpush1.bf16.msra.mxu0 %v2476
        %2480 = vmatprep.subr.bf16.mxu0 0
        %2481 = vmatpush1.bf16.msra.mxu0 0
        %2482 = vmatprep.subr.bf16.mxu0 0
        %2483 = vmatpush1.bf16.msra.mxu0 0
        %2484 = vmatprep.subr.bf16.mxu0 0
        %2485 = vmatpush1.bf16.msra.mxu0 0
        %2486 = vmatprep.subr.bf16.mxu0 0
        %2487 = vmatpush1.bf16.msra.mxu0 0
        %2488 = vmatprep.subr.bf16.mxu0 0
        %2489 = vmatpush1.bf16.msra.mxu0 0
        %2490 = vmatprep.subr.bf16.mxu0 0
        %2491 = vmatpush1.bf16.msra.mxu0 0
        %2492 = vmatprep.subr.bf16.mxu0 0
        %2493 = vmatpush1.bf16.msra.mxu0 0
        %2494 = vmatprep.subr.bf16.mxu0 0
        %2495 = vmatpush1.bf16.msra.mxu0 0
        %2496 = vmatprep.subr.bf16.mxu0 0
        %2497 = vmatpush1.bf16.msra.mxu0 0
        %2498 = vmatprep.subr.bf16.mxu0 0
        %2499 = vmatpush1.bf16.msra.mxu0 0
        %2500 = vmatprep.subr.bf16.mxu0 0
        %2501 = vmatpush1.bf16.msra.mxu0 0
        %2502 = vmatprep.subr.bf16.mxu0 0
        %2503 = vmatpush1.bf16.msra.mxu0 0
        %2504 = vmatprep.subr.bf16.mxu0 0
        %2505 = vmatpush1.bf16.msra.mxu0 0
        %2506 = vmatprep.subr.bf16.mxu0 0
        %2507 = vmatpush1.bf16.msra.mxu0 0
        %2508 = vmatprep.subr.bf16.mxu0 0
        %2509 = vmatpush1.bf16.msra.mxu0 0
        %2510 = vmatprep.mubr.bf16.mxu0 0
        %2511 = vmatmul.mubr.bf16.gmra.mrb[0].mxu0 %v2473
        %v2512 = vpop.f32.mrb[0].mxu0
        %v2513 = vadd.f32 0.0, %v2512
        %v2514 = vpop.f32.mrb[0].mxu0
        %v2515 = vpop.f32.mrb[0].mxu0
        %v2516 = vpop.f32.mrb[0].mxu0
        %2517 = vdwg.mxu0
        %v2519 = vsel %vm1803, %v2471, 0
        %v2522 = vsel %vm1837, %v2347, 0
        %2524 = vmatprep.subr.bf16.mxu0 0
        %2525 = vmatpush1.bf16.msra.mxu0 %v2522
        %2526 = vmatprep.subr.bf16.mxu0 0
        %2527 = vmatpush1.bf16.msra.mxu0 0
        %2528 = vmatprep.subr.bf16.mxu0 0
        %2529 = vmatpush1.bf16.msra.mxu0 0
        %2530 = vmatprep.subr.bf16.mxu0 0
        %2531 = vmatpush1.bf16.msra.mxu0 0
        %2532 = vmatprep.subr.bf16.mxu0 0
        %2533 = vmatpush1.bf16.msra.mxu0 0
        %2534 = vmatprep.subr.bf16.mxu0 0
        %2535 = vmatpush1.bf16.msra.mxu0 0
        %2536 = vmatprep.subr.bf16.mxu0 0
        %2537 = vmatpush1.bf16.msra.mxu0 0
        %2538 = vmatprep.subr.bf16.mxu0 0
        %2539 = vmatpush1.bf16.msra.mxu0 0
        %2540 = vmatprep.subr.bf16.mxu0 0
        %2541 = vmatpush1.bf16.msra.mxu0 0
        %2542 = vmatprep.subr.bf16.mxu0 0
        %2543 = vmatpush1.bf16.msra.mxu0 0
        %2544 = vmatprep.subr.bf16.mxu0 0
        %2545 = vmatpush1.bf16.msra.mxu0 0
        %2546 = vmatprep.subr.bf16.mxu0 0
        %2547 = vmatpush1.bf16.msra.mxu0 0
        %2548 = vmatprep.subr.bf16.mxu0 0
        %2549 = vmatpush1.bf16.msra.mxu0 0
        %2550 = vmatprep.subr.bf16.mxu0 0
        %2551 = vmatpush1.bf16.msra.mxu0 0
        %2552 = vmatprep.subr.bf16.mxu0 0
        %2553 = vmatpush1.bf16.msra.mxu0 0
        %2554 = vmatprep.subr.bf16.mxu0 0
        %2555 = vmatpush1.bf16.msra.mxu0 0
        %2556 = vmatprep.mubr.bf16.mxu0 0
        %2557 = vmatmul.mubr.bf16.gmra.mrb[0].mxu0 %v2519
        %v2558 = vpop.f32.mrb[0].mxu0
        %v2559 = vadd.f32 0.0, %v2558
        %v2560 = vpop.f32.mrb[0].mxu0
        %v2561 = vpop.f32.mrb[0].mxu0
        %v2562 = vpop.f32.mrb[0].mxu0
        %2563 = vdwg.mxu0
        %v2564 = vpack.c.bf16 %v2513, %v2513
        %v2565 = vpack.c.bf16 %v2559, %v2559
        %s2566 = scalar_lea.vmem [#allocation13], 16
        %v2567 = vld [vmem:[%s2566] sm:$0xf]
        %v2568 = vld [vmem:[%s2566 + $0x4] sm:$0xf]
        %v2569 = vld [vmem:[%s2566 + $0x8] sm:$0xf]
        %v2570 = vld [vmem:[%s2566 + $0xc] sm:$0xf]
        %v2573 = vunpack.c.l.b16 %v2567
        %v2574 = vunpack.c.l.b16 %v2568
        %v2575 = vpack.c.b16 %v2574, %v2573
        %v2578 = vsel %vm1708, %v2564, 0
        %2580 = vmatprep.subr.bf16.mxu0 0
        %2581 = vmatpush1.bf16.msra.mxu0 %v2575
        %2582 = vmatprep.subr.bf16.mxu0 0
        %2583 = vmatpush1.bf16.msra.mxu0 0
        %2584 = vmatprep.subr.bf16.mxu0 0
        %2585 = vmatpush1.bf16.msra.mxu0 0
        %2586 = vmatprep.subr.bf16.mxu0 0
        %2587 = vmatpush1.bf16.msra.mxu0 0
        %2588 = vmatprep.subr.bf16.mxu0 0
        %2589 = vmatpush1.bf16.msra.mxu0 0
        %2590 = vmatprep.subr.bf16.mxu0 0
        %2591 = vmatpush1.bf16.msra.mxu0 0
        %2592 = vmatprep.subr.bf16.mxu0 0
        %2593 = vmatpush1.bf16.msra.mxu0 0
        %2594 = vmatprep.subr.bf16.mxu0 0
        %2595 = vmatpush1.bf16.msra.mxu0 0
        %2596 = vmatprep.subr.bf16.mxu0 0
        %2597 = vmatpush1.bf16.msra.mxu0 0
        %2598 = vmatprep.subr.bf16.mxu0 0
        %2599 = vmatpush1.bf16.msra.mxu0 0
        %2600 = vmatprep.subr.bf16.mxu0 0
        %2601 = vmatpush1.bf16.msra.mxu0 0
        %2602 = vmatprep.subr.bf16.mxu0 0
        %2603 = vmatpush1.bf16.msra.mxu0 0
        %2604 = vmatprep.subr.bf16.mxu0 0
        %2605 = vmatpush1.bf16.msra.mxu0 0
        %2606 = vmatprep.subr.bf16.mxu0 0
        %2607 = vmatpush1.bf16.msra.mxu0 0
        %2608 = vmatprep.subr.bf16.mxu0 0
        %2609 = vmatpush1.bf16.msra.mxu0 0
        %2610 = vmatprep.subr.bf16.mxu0 0
        %2611 = vmatpush1.bf16.msra.mxu0 0
        %2612 = vmatprep.mubr.bf16.mxu0 0
        %2613 = vmatmul.mubr.bf16.gmra.mrb[0].mxu0 %v2578
        %v2614 = vpop.f32.mrb[0].mxu0
        %v2615 = vadd.f32 0.0, %v2614
        %v2616 = vpop.f32.mrb[0].mxu0
        %v2617 = vpop.f32.mrb[0].mxu0
        %v2618 = vpop.f32.mrb[0].mxu0
        %2619 = vdwg.mxu0
        %v2622 = vunpack.c.l.b16 %v2569
        %v2623 = vunpack.c.l.b16 %v2570
        %v2624 = vpack.c.b16 %v2623, %v2622
        %v2627 = vsel %vm1708, %v2565, 0
        %2629 = vmatprep.subr.bf16.mxu0 0
        %2630 = vmatpush1.bf16.msra.mxu0 %v2624
        %2631 = vmatprep.subr.bf16.mxu0 0
        %2632 = vmatpush1.bf16.msra.mxu0 0
        %2633 = vmatprep.subr.bf16.mxu0 0
        %2634 = vmatpush1.bf16.msra.mxu0 0
        %2635 = vmatprep.subr.bf16.mxu0 0
        %2636 = vmatpush1.bf16.msra.mxu0 0
        %2637 = vmatprep.subr.bf16.mxu0 0
        %2638 = vmatpush1.bf16.msra.mxu0 0
        %2639 = vmatprep.subr.bf16.mxu0 0
        %2640 = vmatpush1.bf16.msra.mxu0 0
        %2641 = vmatprep.subr.bf16.mxu0 0
        %2642 = vmatpush1.bf16.msra.mxu0 0
        %2643 = vmatprep.subr.bf16.mxu0 0
        %2644 = vmatpush1.bf16.msra.mxu0 0
        %2645 = vmatprep.subr.bf16.mxu0 0
        %2646 = vmatpush1.bf16.msra.mxu0 0
        %2647 = vmatprep.subr.bf16.mxu0 0
        %2648 = vmatpush1.bf16.msra.mxu0 0
        %2649 = vmatprep.subr.bf16.mxu0 0
        %2650 = vmatpush1.bf16.msra.mxu0 0
        %2651 = vmatprep.subr.bf16.mxu0 0
        %2652 = vmatpush1.bf16.msra.mxu0 0
        %2653 = vmatprep.subr.bf16.mxu0 0
        %2654 = vmatpush1.bf16.msra.mxu0 0
        %2655 = vmatprep.subr.bf16.mxu0 0
        %2656 = vmatpush1.bf16.msra.mxu0 0
        %2657 = vmatprep.subr.bf16.mxu0 0
        %2658 = vmatpush1.bf16.msra.mxu0 0
        %2659 = vmatprep.subr.bf16.mxu0 0
        %2660 = vmatpush1.bf16.msra.mxu0 0
        %2661 = vmatprep.mubr.bf16.mxu0 0
        %2662 = vmatmul.mubr.bf16.gmra.mrb[0].mxu0 %v2627
        %v2663 = vpop.f32.mrb[0].mxu0
        %v2664 = vadd.f32 0.0, %v2663
        %v2665 = vpop.f32.mrb[0].mxu0
        %v2666 = vpop.f32.mrb[0].mxu0
        %v2667 = vpop.f32.mrb[0].mxu0
        %2668 = vdwg.mxu0
        %v2669 = vsel %vm1457, %v2615, 0.0
        %v2670 = vsel %vm1457, %v2664, 0.0
        %v2671 = vadd.f32 %v2669, %v2670
        %s2672 = scalar_lea.vmem [#allocation14], 16
        %v2673 = vld [vmem:[%s2672] sm:$0xf]
        %v2674 = vld [vmem:[%s2672 + $0x4] sm:$0xf]
        %v2675 = vld [vmem:[%s2672 + $0x8] sm:$0xf]
        %v2676 = vld [vmem:[%s2672 + $0xc] sm:$0xf]
        %v2681 = vunpack.c.l.b16 %v2673
        %v2682 = vunpack.c.l.b16 %v2674
        %v2683 = vunpack.c.l.b16 %v2675
        %v2684 = vunpack.c.l.b16 %v2676
        %v2685 = vpack.c.b16 %v2682, %v2681
        %v2686 = vpack.c.b16 %v2684, %v2683
        %v2689 = vsel %vm1457, %v2338, 0
        %2691 = vmatprep.subr.bf16.mxu0 0
        %2692 = vmatpush1.bf16.msra.mxu0 %v2685
        %2693 = vmatprep.subr.bf16.mxu0 0
        %2694 = vmatpush1.bf16.msra.mxu0 %v2686
        %2695 = vmatprep.subr.bf16.mxu0 0
        %2696 = vmatpush1.bf16.msra.mxu0 0
        %2697 = vmatprep.subr.bf16.mxu0 0
        %2698 = vmatpush1.bf16.msra.mxu0 0
        %2699 = vmatprep.subr.bf16.mxu0 0
        %2700 = vmatpush1.bf16.msra.mxu0 0
        %2701 = vmatprep.subr.bf16.mxu0 0
        %2702 = vmatpush1.bf16.msra.mxu0 0
        %2703 = vmatprep.subr.bf16.mxu0 0
        %2704 = vmatpush1.bf16.msra.mxu0 0
        %2705 = vmatprep.subr.bf16.mxu0 0
        %2706 = vmatpush1.bf16.msra.mxu0 0
        %2707 = vmatprep.subr.bf16.mxu0 0
        %2708 = vmatpush1.bf16.msra.mxu0 0
        %2709 = vmatprep.subr.bf16.mxu0 0
        %2710 = vmatpush1.bf16.msra.mxu0 0
        %2711 = vmatprep.subr.bf16.mxu0 0
        %2712 = vmatpush1.bf16.msra.mxu0 0
        %2713 = vmatprep.subr.bf16.mxu0 0
        %2714 = vmatpush1.bf16.msra.mxu0 0
        %2715 = vmatprep.subr.bf16.mxu0 0
        %2716 = vmatpush1.bf16.msra.mxu0 0
        %2717 = vmatprep.subr.bf16.mxu0 0
        %2718 = vmatpush1.bf16.msra.mxu0 0
        %2719 = vmatprep.subr.bf16.mxu0 0
        %2720 = vmatpush1.bf16.msra.mxu0 0
        %2721 = vmatprep.subr.bf16.mxu0 0
        %2722 = vmatpush1.bf16.msra.mxu0 0
        %2723 = vmatprep.mubr.bf16.mxu0 0
        %2724 = vmatmul.mubr.bf16.gmra.mrb[0].mxu0 %v2689
        %v2725 = vpop.f32.mrb[0].mxu0
        %v2726 = vadd.f32 0.0, %v2725
        %v2727 = vpop.f32.mrb[0].mxu0
        %v2728 = vpop.f32.mrb[0].mxu0
        %v2729 = vpop.f32.mrb[0].mxu0
        %2730 = vdwg.mxu0
        %s2731 = scalar_lea.vmem [#allocation7], 8
        %v2732 = vld [vmem:[%s2731] sm:$0x7]
        %s2733 = scalar_lea.vmem [#allocation8], 8
        %v2734 = vld [vmem:[%s2733] sm:$0x7]
        %v2735 = vsel %vm1457, %v2033, 0.0
        %2736 = vadd.xlane.f32.xlu0 %v2735
        %v2737 = vpop.xlane.xlu0 %2736
        %v2738 = vmul.f32 %v2737, %v1461
        %v2739 = vsub.f32 %v2033, %v2738
        %v2740 = vmul.f32 %v2739, %v2739
        %v2741 = vsel %vm1457, %v2740, 0.0
        %2742 = vadd.xlane.f32.xlu0 %v2741
        %v2743 = vpop.xlane.xlu0 %2742
        %v2744 = vmul.f32 %v2743, %v1461
        %v2745 = vadd.f32 %v2744, 1e-05
        %v2746 = vrsqrt.pop %v2745
        %v2747 = vmul.f32 %v2739, %v2746
        %v2748 = vlaneseq
        %v2749 = vshrl.u32 %v2748, 7
        %v2750 = vsub.s32 0, %v2749
        %v2751 = vrot.slane %v2732, %v2750
        %v2752 = vmul.f32 %v2747, %v2751
        %v2753 = vlaneseq
        %v2754 = vshrl.u32 %v2753, 7
        %v2755 = vsub.s32 0, %v2754
        %v2756 = vrot.slane %v2734, %v2755
        %v2757 = vadd.f32 %v2752, %v2756
        %v2758 = vpack.c.bf16 %v2757, %v2757
        %v2759 = vsel %vm1457, %v2671, 0.0
        %2760 = vadd.xlane.f32.xlu0 %v2759
        %v2761 = vpop.xlane.xlu0 %2760
        %v2762 = vmul.f32 %v2761, %v1461
        %v2763 = vsub.f32 %v2671, %v2762
        %v2764 = vmul.f32 %v2763, %v2763
        %v2765 = vsel %vm1457, %v2764, 0.0
        %2766 = vadd.xlane.f32.xlu0 %v2765
        %v2767 = vpop.xlane.xlu0 %2766
        %v2768 = vmul.f32 %v2767, %v1461
        %v2769 = vadd.f32 %v2768, 1e-05
        %v2770 = vrsqrt.pop %v2769
        %v2771 = vmul.f32 %v2763, %v2770
        %v2772 = vlaneseq
        %v2773 = vshrl.u32 %v2772, 7
        %v2774 = vsub.s32 1, %v2773
        %v2775 = vrot.slane %v2732, %v2774
        %v2776 = vmul.f32 %v2771, %v2775
        %v2777 = vlaneseq
        %v2778 = vshrl.u32 %v2777, 7
        %v2779 = vsub.s32 1, %v2778
        %v2780 = vrot.slane %v2734, %v2779
        %v2781 = vadd.f32 %v2776, %v2780
        %v2782 = vpack.c.bf16 %v2781, %v2781
        %v2783 = vlaneseq
        %v2784 = vshrl.u32 %v2783, 7
        %v2785 = vsub.s32 2, %v2784
        %v2786 = vrot.slane %v2732, %v2785
        %v2787 = vmul.f32 %v2771, %v2786
        %v2788 = vlaneseq
        %v2789 = vshrl.u32 %v2788, 7
        %v2790 = vsub.s32 2, %v2789
        %v2791 = vrot.slane %v2734, %v2790
        %v2792 = vadd.f32 %v2787, %v2791
        %v2793 = vpack.c.bf16 %v2792, %v2792
        %s2794 = scalar_lea.vmem %s25, 32
        %v2795 = vld [vmem:[%s2794] sm:$0xf]
        %v2796 = vld [vmem:[%s2794 + $0x4] sm:$0xf]
        %v2797 = vld [vmem:[%s2794 + $0x8] sm:$0xf]
        %v2798 = vld [vmem:[%s2794 + $0xc] sm:$0xf]
        %v2803 = vunpack.c.l.b16 %v2795
        %v2804 = vunpack.c.l.b16 %v2796
        %v2805 = vunpack.c.l.b16 %v2797
        %v2806 = vunpack.c.l.b16 %v2798
        %v2807 = vpack.c.b16 %v2804, %v2803
        %v2808 = vpack.c.b16 %v2806, %v2805
        %v2812 = vsel %vm1457, %v2758, 0
        %2814 = vmatprep.subr.bf16.mxu0 0
        %2815 = vmatpush1.bf16.msra.mxu0 %v2807
        %2816 = vmatprep.subr.bf16.mxu0 0
        %2817 = vmatpush1.bf16.msra.mxu0 %v2808
        %2818 = vmatprep.subr.bf16.mxu0 0
        %2819 = vmatpush1.bf16.msra.mxu0 0
        %2820 = vmatprep.subr.bf16.mxu0 0
        %2821 = vmatpush1.bf16.msra.mxu0 0
        %2822 = vmatprep.subr.bf16.mxu0 0
        %2823 = vmatpush1.bf16.msra.mxu0 0
        %2824 = vmatprep.subr.bf16.mxu0 0
        %2825 = vmatpush1.bf16.msra.mxu0 0
        %2826 = vmatprep.subr.bf16.mxu0 0
        %2827 = vmatpush1.bf16.msra.mxu0 0
        %2828 = vmatprep.subr.bf16.mxu0 0
        %2829 = vmatpush1.bf16.msra.mxu0 0
        %2830 = vmatprep.subr.bf16.mxu0 0
        %2831 = vmatpush1.bf16.msra.mxu0 0
        %2832 = vmatprep.subr.bf16.mxu0 0
        %2833 = vmatpush1.bf16.msra.mxu0 0
        %2834 = vmatprep.subr.bf16.mxu0 0
        %2835 = vmatpush1.bf16.msra.mxu0 0
        %2836 = vmatprep.subr.bf16.mxu0 0
        %2837 = vmatpush1.bf16.msra.mxu0 0
        %2838 = vmatprep.subr.bf16.mxu0 0
        %2839 = vmatpush1.bf16.msra.mxu0 0
        %2840 = vmatprep.subr.bf16.mxu0 0
        %2841 = vmatpush1.bf16.msra.mxu0 0
        %2842 = vmatprep.subr.bf16.mxu0 0
        %2843 = vmatpush1.bf16.msra.mxu0 0
        %2844 = vmatprep.subr.bf16.mxu0 0
        %2845 = vmatpush1.bf16.msra.mxu0 0
        %2846 = vmatprep.mubr.bf16.mxu0 0
        %2847 = vmatmul.mubr.bf16.gmra.mrb[0].mxu0 %v2812
        %v2848 = vpop.f32.mrb[0].mxu0
        %v2849 = vadd.f32 0.0, %v2848
        %v2850 = vpop.f32.mrb[0].mxu0
        %v2851 = vpop.f32.mrb[0].mxu0
        %v2852 = vpop.f32.mrb[0].mxu0
        %2853 = vdwg.mxu0
        %v2854 = vmul.f32 %v2849, 0.25
        %v2855 = vpack.c.bf16 %v2854, %v2854
        %s2856 = scalar_lea.vmem [#allocation10], 32
        %v2857 = vld [vmem:[%s2856] sm:$0xf]
        %v2858 = vld [vmem:[%s2856 + $0x4] sm:$0xf]
        %v2859 = vld [vmem:[%s2856 + $0x8] sm:$0xf]
        %v2860 = vld [vmem:[%s2856 + $0xc] sm:$0xf]
        %v2865 = vunpack.c.l.b16 %v2857
        %v2866 = vunpack.c.l.b16 %v2858
        %v2867 = vunpack.c.l.b16 %v2859
        %v2868 = vunpack.c.l.b16 %v2860
        %v2869 = vpack.c.b16 %v2866, %v2865
        %v2870 = vpack.c.b16 %v2868, %v2867
        %v2874 = vsel %vm1457, %v2782, 0
        %2876 = vmatprep.subr.bf16.mxu0 0
        %2877 = vmatpush1.bf16.msra.mxu0 %v2869
        %2878 = vmatprep.subr.bf16.mxu0 0
        %2879 = vmatpush1.bf16.msra.mxu0 %v2870
        %2880 = vmatprep.subr.bf16.mxu0 0
        %2881 = vmatpush1.bf16.msra.mxu0 0
        %2882 = vmatprep.subr.bf16.mxu0 0
        %2883 = vmatpush1.bf16.msra.mxu0 0
        %2884 = vmatprep.subr.bf16.mxu0 0
        %2885 = vmatpush1.bf16.msra.mxu0 0
        %2886 = vmatprep.subr.bf16.mxu0 0
        %2887 = vmatpush1.bf16.msra.mxu0 0
        %2888 = vmatprep.subr.bf16.mxu0 0
        %2889 = vmatpush1.bf16.msra.mxu0 0
        %2890 = vmatprep.subr.bf16.mxu0 0
        %2891 = vmatpush1.bf16.msra.mxu0 0
        %2892 = vmatprep.subr.bf16.mxu0 0
        %2893 = vmatpush1.bf16.msra.mxu0 0
        %2894 = vmatprep.subr.bf16.mxu0 0
        %2895 = vmatpush1.bf16.msra.mxu0 0
        %2896 = vmatprep.subr.bf16.mxu0 0
        %2897 = vmatpush1.bf16.msra.mxu0 0
        %2898 = vmatprep.subr.bf16.mxu0 0
        %2899 = vmatpush1.bf16.msra.mxu0 0
        %2900 = vmatprep.subr.bf16.mxu0 0
        %2901 = vmatpush1.bf16.msra.mxu0 0
        %2902 = vmatprep.subr.bf16.mxu0 0
        %2903 = vmatpush1.bf16.msra.mxu0 0
        %2904 = vmatprep.subr.bf16.mxu0 0
        %2905 = vmatpush1.bf16.msra.mxu0 0
        %2906 = vmatprep.subr.bf16.mxu0 0
        %2907 = vmatpush1.bf16.msra.mxu0 0
        %2908 = vmatprep.mubr.bf16.mxu0 0
        %2909 = vmatmul.mubr.bf16.gmra.mrb[0].mxu0 %v2874
        %v2910 = vpop.f32.mrb[0].mxu0
        %v2911 = vadd.f32 0.0, %v2910
        %v2912 = vpop.f32.mrb[0].mxu0
        %v2913 = vpop.f32.mrb[0].mxu0
        %v2914 = vpop.f32.mrb[0].mxu0
        %2915 = vdwg.mxu0
        %v2916 = vpack.c.bf16 %v2911, %v2911
        %s2917 = scalar_lea.vmem [#allocation11], 32
        %v2918 = vld [vmem:[%s2917] sm:$0xf]
        %v2919 = vld [vmem:[%s2917 + $0x4] sm:$0xf]
        %v2920 = vld [vmem:[%s2917 + $0x8] sm:$0xf]
        %v2921 = vld [vmem:[%s2917 + $0xc] sm:$0xf]
        %v2926 = vunpack.c.l.b16 %v2918
        %v2927 = vunpack.c.l.b16 %v2919
        %v2928 = vunpack.c.l.b16 %v2920
        %v2929 = vunpack.c.l.b16 %v2921
        %v2930 = vpack.c.b16 %v2927, %v2926
        %v2931 = vpack.c.b16 %v2929, %v2928
        %v2935 = vsel %vm1457, %v2793, 0
        %2937 = vmatprep.subr.bf16.mxu0 0
        %2938 = vmatpush1.bf16.msra.mxu0 %v2930
        %2939 = vmatprep.subr.bf16.mxu0 0
        %2940 = vmatpush1.bf16.msra.mxu0 %v2931
        %2941 = vmatprep.subr.bf16.mxu0 0
        %2942 = vmatpush1.bf16.msra.mxu0 0
        %2943 = vmatprep.subr.bf16.mxu0 0
        %2944 = vmatpush1.bf16.msra.mxu0 0
        %2945 = vmatprep.subr.bf16.mxu0 0
        %2946 = vmatpush1.bf16.msra.mxu0 0
        %2947 = vmatprep.subr.bf16.mxu0 0
        %2948 = vmatpush1.bf16.msra.mxu0 0
        %2949 = vmatprep.subr.bf16.mxu0 0
        %2950 = vmatpush1.bf16.msra.mxu0 0
        %2951 = vmatprep.subr.bf16.mxu0 0
        %2952 = vmatpush1.bf16.msra.mxu0 0
        %2953 = vmatprep.subr.bf16.mxu0 0
        %2954 = vmatpush1.bf16.msra.mxu0 0
        %2955 = vmatprep.subr.bf16.mxu0 0
        %2956 = vmatpush1.bf16.msra.mxu0 0
        %2957 = vmatprep.subr.bf16.mxu0 0
        %2958 = vmatpush1.bf16.msra.mxu0 0
        %2959 = vmatprep.subr.bf16.mxu0 0
        %2960 = vmatpush1.bf16.msra.mxu0 0
        %2961 = vmatprep.subr.bf16.mxu0 0
        %2962 = vmatpush1.bf16.msra.mxu0 0
        %2963 = vmatprep.subr.bf16.mxu0 0
        %2964 = vmatpush1.bf16.msra.mxu0 0
        %2965 = vmatprep.subr.bf16.mxu0 0
        %2966 = vmatpush1.bf16.msra.mxu0 0
        %2967 = vmatprep.subr.bf16.mxu0 0
        %2968 = vmatpush1.bf16.msra.mxu0 0
        %2969 = vmatprep.mubr.bf16.mxu0 0
        %2970 = vmatmul.mubr.bf16.gmra.mrb[0].mxu0 %v2935
        %v2971 = vpop.f32.mrb[0].mxu0
        %v2972 = vadd.f32 0.0, %v2971
        %v2973 = vpop.f32.mrb[0].mxu0
        %v2974 = vpop.f32.mrb[0].mxu0
        %v2975 = vpop.f32.mrb[0].mxu0
        %2976 = vdwg.mxu0
        %v2977 = vpack.c.bf16 %v2972, %v2972
        %2979 = vrot.lane.b32.xlu0 %v2855, 112
        %v2980 = vpop.permute.xlu0 %2979
        %2982 = vrot.lane.b32.xlu0 %v2916, 112
        %v2983 = vpop.permute.xlu0 %2982
        %2985 = vrot.lane.b32.xlu0 %v2977, 112
        %v2986 = vpop.permute.xlu0 %2985
        %v2988 = vsel %vm1708, %v2855, 0
        %v2991 = vsel %vm1708, %v2916, 0
        %2993 = vmatprep.subr.bf16.mxu0 0
        %2994 = vmatpush1.bf16.xpose.msra.mxu0 %v2991
        %2995 = vmatprep.subr.bf16.mxu0 0
        %2996 = vmatpush1.bf16.xpose.msra.mxu0 0
        %2997 = vmatprep.subr.bf16.mxu0 0
        %2998 = vmatpush1.bf16.xpose.msra.mxu0 0
        %2999 = vmatprep.subr.bf16.mxu0 0
        %3000 = vmatpush1.bf16.xpose.msra.mxu0 0
        %3001 = vmatprep.subr.bf16.mxu0 0
        %3002 = vmatpush1.bf16.xpose.msra.mxu0 0
        %3003 = vmatprep.subr.bf16.mxu0 0
        %3004 = vmatpush1.bf16.xpose.msra.mxu0 0
        %3005 = vmatprep.subr.bf16.mxu0 0
        %3006 = vmatpush1.bf16.xpose.msra.mxu0 0
        %3007 = vmatprep.subr.bf16.mxu0 0
        %3008 = vmatpush1.bf16.xpose.msra.mxu0 0
        %3009 = vmatprep.subr.bf16.mxu0 0
        %3010 = vmatpush1.bf16.xpose.msra.mxu0 0
        %3011 = vmatprep.subr.bf16.mxu0 0
        %3012 = vmatpush1.bf16.xpose.msra.mxu0 0
        %3013 = vmatprep.subr.bf16.mxu0 0
        %3014 = vmatpush1.bf16.xpose.msra.mxu0 0
        %3015 = vmatprep.subr.bf16.mxu0 0
        %3016 = vmatpush1.bf16.xpose.msra.mxu0 0
        %3017 = vmatprep.subr.bf16.mxu0 0
        %3018 = vmatpush1.bf16.xpose.msra.mxu0 0
        %3019 = vmatprep.subr.bf16.mxu0 0
        %3020 = vmatpush1.bf16.xpose.msra.mxu0 0
        %3021 = vmatprep.subr.bf16.mxu0 0
        %3022 = vmatpush1.bf16.xpose.msra.mxu0 0
        %3023 = vmatprep.subr.bf16.mxu0 0
        %3024 = vmatpush1.bf16.xpose.msra.mxu0 0
        %3025 = vmatprep.mubr.bf16.mxu0 0
        %3026 = vmatmul.mubr.bf16.gmra.mrb[0].mxu0 %v2988
        %v3027 = vpop.f32.mrb[0].mxu0
        %v3028 = vadd.f32 0.0, %v3027
        %v3029 = vpop.f32.mrb[0].mxu0
        %v3030 = vpop.f32.mrb[0].mxu0
        %v3031 = vpop.f32.mrb[0].mxu0
        %3032 = vdwg.mxu0
        %v3034 = vsel %vm1708, %v2980, 0
        %v3037 = vsel %vm1708, %v2983, 0
        %3039 = vmatprep.subr.bf16.mxu0 0
        %3040 = vmatpush1.bf16.xpose.msra.mxu0 %v3037
        %3041 = vmatprep.subr.bf16.mxu0 0
        %3042 = vmatpush1.bf16.xpose.msra.mxu0 0
        %3043 = vmatprep.subr.bf16.mxu0 0
        %3044 = vmatpush1.bf16.xpose.msra.mxu0 0
        %3045 = vmatprep.subr.bf16.mxu0 0
        %3046 = vmatpush1.bf16.xpose.msra.mxu0 0
        %3047 = vmatprep.subr.bf16.mxu0 0
        %3048 = vmatpush1.bf16.xpose.msra.mxu0 0
        %3049 = vmatprep.subr.bf16.mxu0 0
        %3050 = vmatpush1.bf16.xpose.msra.mxu0 0
        %3051 = vmatprep.subr.bf16.mxu0 0
        %3052 = vmatpush1.bf16.xpose.msra.mxu0 0
        %3053 = vmatprep.subr.bf16.mxu0 0
        %3054 = vmatpush1.bf16.xpose.msra.mxu0 0
        %3055 = vmatprep.subr.bf16.mxu0 0
        %3056 = vmatpush1.bf16.xpose.msra.mxu0 0
        %3057 = vmatprep.subr.bf16.mxu0 0
        %3058 = vmatpush1.bf16.xpose.msra.mxu0 0
        %3059 = vmatprep.subr.bf16.mxu0 0
        %3060 = vmatpush1.bf16.xpose.msra.mxu0 0
        %3061 = vmatprep.subr.bf16.mxu0 0
        %3062 = vmatpush1.bf16.xpose.msra.mxu0 0
        %3063 = vmatprep.subr.bf16.mxu0 0
        %3064 = vmatpush1.bf16.xpose.msra.mxu0 0
        %3065 = vmatprep.subr.bf16.mxu0 0
        %3066 = vmatpush1.bf16.xpose.msra.mxu0 0
        %3067 = vmatprep.subr.bf16.mxu0 0
        %3068 = vmatpush1.bf16.xpose.msra.mxu0 0
        %3069 = vmatprep.subr.bf16.mxu0 0
        %3070 = vmatpush1.bf16.xpose.msra.mxu0 0
        %3071 = vmatprep.mubr.bf16.mxu0 0
        %3072 = vmatmul.mubr.bf16.gmra.mrb[0].mxu0 %v3034
        %v3073 = vpop.f32.mrb[0].mxu0
        %v3074 = vadd.f32 0.0, %v3073
        %v3075 = vpop.f32.mrb[0].mxu0
        %v3076 = vpop.f32.mrb[0].mxu0
        %v3077 = vpop.f32.mrb[0].mxu0
        %3078 = vdwg.mxu0
        %v3079 = vmul.f32 %v3028, %v1447
        %v3080 = vmul.f32 %v3074, %v1447
        %v3081 = vsel %vm1803, %v3079, -inf
        %3082 = vmax.xlane.f32.xlu0 %v3081
        %v3083 = vpop.xlane.xlu0 %3082
        %v3084 = vsel %vm1803, %v3080, -inf
        %3085 = vmax.xlane.f32.xlu0 %v3084
        %v3086 = vpop.xlane.xlu0 %3085
        %v3087 = vsub.f32 %v3079, %v3083
        %v3088 = vsub.f32 %v3080, %v3086
        %v3089 = vmul.f32 %v3087, 1.442695
        %v3090 = vpow.pop %v3089
        %v3091 = vmul.f32 %v3088, 1.442695
        %v3092 = vpow.pop %v3091
        %v3093 = vmul.f32 %v3090, %v1447
        %v3094 = vmul.f32 %v3092, %v1447
        %v3095 = vsel %vm1803, %v3093, 0.0
        %3096 = vadd.xlane.f32.xlu0 %v3095
        %v3097 = vpop.xlane.xlu0 %3096
        %v3098 = vsel %vm1803, %v3094, 0.0
        %3099 = vadd.xlane.f32.xlu0 %v3098
        %v3100 = vpop.xlane.xlu0 %3099
        %v3101 = vadd.f32 %v3097, 1e-13
        %v3102 = vadd.f32 %v3100, 1e-13
        %v3103 = vrcp.pop %v3101
        %v3104 = vrcp.pop %v3102
        %v3105 = vmul.f32 %v3093, %v3103
        %v3106 = vmul.f32 %v3094, %v3104
        %3107 = vst.msk [vmem:[%s1373] sm:$0xff] %vm1803, %v3105
        %3108 = vst.msk [vmem:[%s1373 + $0x8] sm:$0xff] %vm1803, %v3106
        %v3109 = vpack.c.bf16 %v3105, %v3105
        %v3110 = vpack.c.bf16 %v3106, %v3106
        %v3112 = vsel %vm1803, %v3109, 0
        %v3115 = vsel %vm1837, %v2977, 0
        %3117 = vmatprep.subr.bf16.mxu0 0
        %3118 = vmatpush1.bf16.msra.mxu0 %v3115
        %3119 = vmatprep.subr.bf16.mxu0 0
        %3120 = vmatpush1.bf16.msra.mxu0 0
        %3121 = vmatprep.subr.bf16.mxu0 0
        %3122 = vmatpush1.bf16.msra.mxu0 0
        %3123 = vmatprep.subr.bf16.mxu0 0
        %3124 = vmatpush1.bf16.msra.mxu0 0
        %3125 = vmatprep.subr.bf16.mxu0 0
        %3126 = vmatpush1.bf16.msra.mxu0 0
        %3127 = vmatprep.subr.bf16.mxu0 0
        %3128 = vmatpush1.bf16.msra.mxu0 0
        %3129 = vmatprep.subr.bf16.mxu0 0
        %3130 = vmatpush1.bf16.msra.mxu0 0
        %3131 = vmatprep.subr.bf16.mxu0 0
        %3132 = vmatpush1.bf16.msra.mxu0 0
        %3133 = vmatprep.subr.bf16.mxu0 0
        %3134 = vmatpush1.bf16.msra.mxu0 0
        %3135 = vmatprep.subr.bf16.mxu0 0
        %3136 = vmatpush1.bf16.msra.mxu0 0
        %3137 = vmatprep.subr.bf16.mxu0 0
        %3138 = vmatpush1.bf16.msra.mxu0 0
        %3139 = vmatprep.subr.bf16.mxu0 0
        %3140 = vmatpush1.bf16.msra.mxu0 0
        %3141 = vmatprep.subr.bf16.mxu0 0
        %3142 = vmatpush1.bf16.msra.mxu0 0
        %3143 = vmatprep.subr.bf16.mxu0 0
        %3144 = vmatpush1.bf16.msra.mxu0 0
        %3145 = vmatprep.subr.bf16.mxu0 0
        %3146 = vmatpush1.bf16.msra.mxu0 0
        %3147 = vmatprep.subr.bf16.mxu0 0
        %3148 = vmatpush1.bf16.msra.mxu0 0
        %3149 = vmatprep.mubr.bf16.mxu0 0
        %3150 = vmatmul.mubr.bf16.gmra.mrb[0].mxu0 %v3112
        %v3151 = vpop.f32.mrb[0].mxu0
        %v3152 = vadd.f32 0.0, %v3151
        %v3153 = vpop.f32.mrb[0].mxu0
        %v3154 = vpop.f32.mrb[0].mxu0
        %v3155 = vpop.f32.mrb[0].mxu0
        %3156 = vdwg.mxu0
        %v3158 = vsel %vm1803, %v3110, 0
        %v3161 = vsel %vm1837, %v2986, 0
        %3163 = vmatprep.subr.bf16.mxu0 0
        %3164 = vmatpush1.bf16.msra.mxu0 %v3161
        %3165 = vmatprep.subr.bf16.mxu0 0
        %3166 = vmatpush1.bf16.msra.mxu0 0
        %3167 = vmatprep.subr.bf16.mxu0 0
        %3168 = vmatpush1.bf16.msra.mxu0 0
        %3169 = vmatprep.subr.bf16.mxu0 0
        %3170 = vmatpush1.bf16.msra.mxu0 0
        %3171 = vmatprep.subr.bf16.mxu0 0
        %3172 = vmatpush1.bf16.msra.mxu0 0
        %3173 = vmatprep.subr.bf16.mxu0 0
        %3174 = vmatpush1.bf16.msra.mxu0 0
        %3175 = vmatprep.subr.bf16.mxu0 0
        %3176 = vmatpush1.bf16.msra.mxu0 0
        %3177 = vmatprep.subr.bf16.mxu0 0
        %3178 = vmatpush1.bf16.msra.mxu0 0
        %3179 = vmatprep.subr.bf16.mxu0 0
        %3180 = vmatpush1.bf16.msra.mxu0 0
        %3181 = vmatprep.subr.bf16.mxu0 0
        %3182 = vmatpush1.bf16.msra.mxu0 0
        %3183 = vmatprep.subr.bf16.mxu0 0
        %3184 = vmatpush1.bf16.msra.mxu0 0
        %3185 = vmatprep.subr.bf16.mxu0 0
        %3186 = vmatpush1.bf16.msra.mxu0 0
        %3187 = vmatprep.subr.bf16.mxu0 0
        %3188 = vmatpush1.bf16.msra.mxu0 0
        %3189 = vmatprep.subr.bf16.mxu0 0
        %3190 = vmatpush1.bf16.msra.mxu0 0
        %3191 = vmatprep.subr.bf16.mxu0 0
        %3192 = vmatpush1.bf16.msra.mxu0 0
        %3193 = vmatprep.subr.bf16.mxu0 0
        %3194 = vmatpush1.bf16.msra.mxu0 0
        %3195 = vmatprep.mubr.bf16.mxu0 0
        %3196 = vmatmul.mubr.bf16.gmra.mrb[0].mxu0 %v3158
        %v3197 = vpop.f32.mrb[0].mxu0
        %v3198 = vadd.f32 0.0, %v3197
        %v3199 = vpop.f32.mrb[0].mxu0
        %v3200 = vpop.f32.mrb[0].mxu0
        %v3201 = vpop.f32.mrb[0].mxu0
        %3202 = vdwg.mxu0
        %v3203 = vpack.c.bf16 %v3152, %v3152
        %v3204 = vpack.c.bf16 %v3198, %v3198
        %s3205 = scalar_lea.vmem [#allocation13], 32
        %v3206 = vld [vmem:[%s3205] sm:$0xf]
        %v3207 = vld [vmem:[%s3205 + $0x4] sm:$0xf]
        %v3208 = vld [vmem:[%s3205 + $0x8] sm:$0xf]
        %v3209 = vld [vmem:[%s3205 + $0xc] sm:$0xf]
        %v3212 = vunpack.c.l.b16 %v3206
        %v3213 = vunpack.c.l.b16 %v3207
        %v3214 = vpack.c.b16 %v3213, %v3212
        %v3217 = vsel %vm1708, %v3203, 0
        %3219 = vmatprep.subr.bf16.mxu0 0
        %3220 = vmatpush1.bf16.msra.mxu0 %v3214
        %3221 = vmatprep.subr.bf16.mxu0 0
        %3222 = vmatpush1.bf16.msra.mxu0 0
        %3223 = vmatprep.subr.bf16.mxu0 0
        %3224 = vmatpush1.bf16.msra.mxu0 0
        %3225 = vmatprep.subr.bf16.mxu0 0
        %3226 = vmatpush1.bf16.msra.mxu0 0
        %3227 = vmatprep.subr.bf16.mxu0 0
        %3228 = vmatpush1.bf16.msra.mxu0 0
        %3229 = vmatprep.subr.bf16.mxu0 0
        %3230 = vmatpush1.bf16.msra.mxu0 0
        %3231 = vmatprep.subr.bf16.mxu0 0
        %3232 = vmatpush1.bf16.msra.mxu0 0
        %3233 = vmatprep.subr.bf16.mxu0 0
        %3234 = vmatpush1.bf16.msra.mxu0 0
        %3235 = vmatprep.subr.bf16.mxu0 0
        %3236 = vmatpush1.bf16.msra.mxu0 0
        %3237 = vmatprep.subr.bf16.mxu0 0
        %3238 = vmatpush1.bf16.msra.mxu0 0
        %3239 = vmatprep.subr.bf16.mxu0 0
        %3240 = vmatpush1.bf16.msra.mxu0 0
        %3241 = vmatprep.subr.bf16.mxu0 0
        %3242 = vmatpush1.bf16.msra.mxu0 0
        %3243 = vmatprep.subr.bf16.mxu0 0
        %3244 = vmatpush1.bf16.msra.mxu0 0
        %3245 = vmatprep.subr.bf16.mxu0 0
        %3246 = vmatpush1.bf16.msra.mxu0 0
        %3247 = vmatprep.subr.bf16.mxu0 0
        %3248 = vmatpush1.bf16.msra.mxu0 0
        %3249 = vmatprep.subr.bf16.mxu0 0
        %3250 = vmatpush1.bf16.msra.mxu0 0
        %3251 = vmatprep.mubr.bf16.mxu0 0
        %3252 = vmatmul.mubr.bf16.gmra.mrb[0].mxu0 %v3217
        %v3253 = vpop.f32.mrb[0].mxu0
        %v3254 = vadd.f32 0.0, %v3253
        %v3255 = vpop.f32.mrb[0].mxu0
        %v3256 = vpop.f32.mrb[0].mxu0
        %v3257 = vpop.f32.mrb[0].mxu0
        %3258 = vdwg.mxu0
        %v3261 = vunpack.c.l.b16 %v3208
        %v3262 = vunpack.c.l.b16 %v3209
        %v3263 = vpack.c.b16 %v3262, %v3261
        %v3266 = vsel %vm1708, %v3204, 0
        %3268 = vmatprep.subr.bf16.mxu0 0
        %3269 = vmatpush1.bf16.msra.mxu0 %v3263
        %3270 = vmatprep.subr.bf16.mxu0 0
        %3271 = vmatpush1.bf16.msra.mxu0 0
        %3272 = vmatprep.subr.bf16.mxu0 0
        %3273 = vmatpush1.bf16.msra.mxu0 0
        %3274 = vmatprep.subr.bf16.mxu0 0
        %3275 = vmatpush1.bf16.msra.mxu0 0
        %3276 = vmatprep.subr.bf16.mxu0 0
        %3277 = vmatpush1.bf16.msra.mxu0 0
        %3278 = vmatprep.subr.bf16.mxu0 0
        %3279 = vmatpush1.bf16.msra.mxu0 0
        %3280 = vmatprep.subr.bf16.mxu0 0
        %3281 = vmatpush1.bf16.msra.mxu0 0
        %3282 = vmatprep.subr.bf16.mxu0 0
        %3283 = vmatpush1.bf16.msra.mxu0 0
        %3284 = vmatprep.subr.bf16.mxu0 0
        %3285 = vmatpush1.bf16.msra.mxu0 0
        %3286 = vmatprep.subr.bf16.mxu0 0
        %3287 = vmatpush1.bf16.msra.mxu0 0
        %3288 = vmatprep.subr.bf16.mxu0 0
        %3289 = vmatpush1.bf16.msra.mxu0 0
        %3290 = vmatprep.subr.bf16.mxu0 0
        %3291 = vmatpush1.bf16.msra.mxu0 0
        %3292 = vmatprep.subr.bf16.mxu0 0
        %3293 = vmatpush1.bf16.msra.mxu0 0
        %3294 = vmatprep.subr.bf16.mxu0 0
        %3295 = vmatpush1.bf16.msra.mxu0 0
        %3296 = vmatprep.subr.bf16.mxu0 0
        %3297 = vmatpush1.bf16.msra.mxu0 0
        %3298 = vmatprep.subr.bf16.mxu0 0
        %3299 = vmatpush1.bf16.msra.mxu0 0
        %3300 = vmatprep.mubr.bf16.mxu0 0
        %3301 = vmatmul.mubr.bf16.gmra.mrb[0].mxu0 %v3266
        %v3302 = vpop.f32.mrb[0].mxu0
        %v3303 = vadd.f32 0.0, %v3302
        %v3304 = vpop.f32.mrb[0].mxu0
        %v3305 = vpop.f32.mrb[0].mxu0
        %v3306 = vpop.f32.mrb[0].mxu0
        %3307 = vdwg.mxu0
        %v3308 = vsel %vm1457, %v3254, 0.0
        %v3309 = vsel %vm1457, %v3303, 0.0
        %v3310 = vadd.f32 %v3308, %v3309
        %s3311 = scalar_lea.vmem [#allocation7], 12
        %v3312 = vld [vmem:[%s3311] sm:$0x7]
        %s3313 = scalar_lea.vmem [#allocation8], 12
        %v3314 = vld [vmem:[%s3313] sm:$0x7]
        %v3315 = vlaneseq
        %v3316 = vshrl.u32 %v3315, 7
        %v3317 = vsub.s32 0, %v3316
        %v3318 = vrot.slane %v3312, %v3317
        %v3319 = vmul.f32 %v2771, %v3318
        %v3320 = vlaneseq
        %v3321 = vshrl.u32 %v3320, 7
        %v3322 = vsub.s32 0, %v3321
        %v3323 = vrot.slane %v3314, %v3322
        %v3324 = vadd.f32 %v3319, %v3323
        %v3325 = vpack.c.bf16 %v3324, %v3324
        %v3326 = vlaneseq
        %v3327 = vshrl.u32 %v3326, 7
        %v3328 = vsub.s32 1, %v3327
        %v3329 = vrot.slane %v3312, %v3328
        %v3330 = vmul.f32 %v2747, %v3329
        %v3331 = vlaneseq
        %v3332 = vshrl.u32 %v3331, 7
        %v3333 = vsub.s32 1, %v3332
        %v3334 = vrot.slane %v3314, %v3333
        %v3335 = vadd.f32 %v3330, %v3334
        %v3336 = vpack.c.bf16 %v3335, %v3335
        %v3337 = vlaneseq
        %v3338 = vshrl.u32 %v3337, 7
        %v3339 = vsub.s32 2, %v3338
        %v3340 = vrot.slane %v3312, %v3339
        %v3341 = vmul.f32 %v2747, %v3340
        %v3342 = vlaneseq
        %v3343 = vshrl.u32 %v3342, 7
        %v3344 = vsub.s32 2, %v3343
        %v3345 = vrot.slane %v3314, %v3344
        %v3346 = vadd.f32 %v3341, %v3345
        %v3347 = vpack.c.bf16 %v3346, %v3346
        %s3348 = scalar_lea.vmem %s25, 48
        %v3349 = vld [vmem:[%s3348] sm:$0xf]
        %v3350 = vld [vmem:[%s3348 + $0x4] sm:$0xf]
        %v3351 = vld [vmem:[%s3348 + $0x8] sm:$0xf]
        %v3352 = vld [vmem:[%s3348 + $0xc] sm:$0xf]
        %v3357 = vunpack.c.l.b16 %v3349
        %v3358 = vunpack.c.l.b16 %v3350
        %v3359 = vunpack.c.l.b16 %v3351
        %v3360 = vunpack.c.l.b16 %v3352
        %v3361 = vpack.c.b16 %v3358, %v3357
        %v3362 = vpack.c.b16 %v3360, %v3359
        %v3366 = vsel %vm1457, %v3325, 0
        %3368 = vmatprep.subr.bf16.mxu0 0
        %3369 = vmatpush1.bf16.msra.mxu0 %v3361
        %3370 = vmatprep.subr.bf16.mxu0 0
        %3371 = vmatpush1.bf16.msra.mxu0 %v3362
        %3372 = vmatprep.subr.bf16.mxu0 0
        %3373 = vmatpush1.bf16.msra.mxu0 0
        %3374 = vmatprep.subr.bf16.mxu0 0
        %3375 = vmatpush1.bf16.msra.mxu0 0
        %3376 = vmatprep.subr.bf16.mxu0 0
        %3377 = vmatpush1.bf16.msra.mxu0 0
        %3378 = vmatprep.subr.bf16.mxu0 0
        %3379 = vmatpush1.bf16.msra.mxu0 0
        %3380 = vmatprep.subr.bf16.mxu0 0
        %3381 = vmatpush1.bf16.msra.mxu0 0
        %3382 = vmatprep.subr.bf16.mxu0 0
        %3383 = vmatpush1.bf16.msra.mxu0 0
        %3384 = vmatprep.subr.bf16.mxu0 0
        %3385 = vmatpush1.bf16.msra.mxu0 0
        %3386 = vmatprep.subr.bf16.mxu0 0
        %3387 = vmatpush1.bf16.msra.mxu0 0
        %3388 = vmatprep.subr.bf16.mxu0 0
        %3389 = vmatpush1.bf16.msra.mxu0 0
        %3390 = vmatprep.subr.bf16.mxu0 0
        %3391 = vmatpush1.bf16.msra.mxu0 0
        %3392 = vmatprep.subr.bf16.mxu0 0
        %3393 = vmatpush1.bf16.msra.mxu0 0
        %3394 = vmatprep.subr.bf16.mxu0 0
        %3395 = vmatpush1.bf16.msra.mxu0 0
        %3396 = vmatprep.subr.bf16.mxu0 0
        %3397 = vmatpush1.bf16.msra.mxu0 0
        %3398 = vmatprep.subr.bf16.mxu0 0
        %3399 = vmatpush1.bf16.msra.mxu0 0
        %3400 = vmatprep.mubr.bf16.mxu0 0
        %3401 = vmatmul.mubr.bf16.gmra.mrb[0].mxu0 %v3366
        %v3402 = vpop.f32.mrb[0].mxu0
        %v3403 = vadd.f32 0.0, %v3402
        %v3404 = vpop.f32.mrb[0].mxu0
        %v3405 = vpop.f32.mrb[0].mxu0
        %v3406 = vpop.f32.mrb[0].mxu0
        %3407 = vdwg.mxu0
        %v3408 = vmul.f32 %v3403, 0.25
        %v3409 = vpack.c.bf16 %v3408, %v3408
        %s3410 = scalar_lea.vmem [#allocation10], 48
        %v3411 = vld [vmem:[%s3410] sm:$0xf]
        %v3412 = vld [vmem:[%s3410 + $0x4] sm:$0xf]
        %v3413 = vld [vmem:[%s3410 + $0x8] sm:$0xf]
        %v3414 = vld [vmem:[%s3410 + $0xc] sm:$0xf]
        %v3419 = vunpack.c.l.b16 %v3411
        %v3420 = vunpack.c.l.b16 %v3412
        %v3421 = vunpack.c.l.b16 %v3413
        %v3422 = vunpack.c.l.b16 %v3414
        %v3423 = vpack.c.b16 %v3420, %v3419
        %v3424 = vpack.c.b16 %v3422, %v3421
        %v3428 = vsel %vm1457, %v3336, 0
        %3430 = vmatprep.subr.bf16.mxu0 0
        %3431 = vmatpush1.bf16.msra.mxu0 %v3423
        %3432 = vmatprep.subr.bf16.mxu0 0
        %3433 = vmatpush1.bf16.msra.mxu0 %v3424
        %3434 = vmatprep.subr.bf16.mxu0 0
        %3435 = vmatpush1.bf16.msra.mxu0 0
        %3436 = vmatprep.subr.bf16.mxu0 0
        %3437 = vmatpush1.bf16.msra.mxu0 0
        %3438 = vmatprep.subr.bf16.mxu0 0
        %3439 = vmatpush1.bf16.msra.mxu0 0
        %3440 = vmatprep.subr.bf16.mxu0 0
        %3441 = vmatpush1.bf16.msra.mxu0 0
        %3442 = vmatprep.subr.bf16.mxu0 0
        %3443 = vmatpush1.bf16.msra.mxu0 0
        %3444 = vmatprep.subr.bf16.mxu0 0
        %3445 = vmatpush1.bf16.msra.mxu0 0
        %3446 = vmatprep.subr.bf16.mxu0 0
        %3447 = vmatpush1.bf16.msra.mxu0 0
        %3448 = vmatprep.subr.bf16.mxu0 0
        %3449 = vmatpush1.bf16.msra.mxu0 0
        %3450 = vmatprep.subr.bf16.mxu0 0
        %3451 = vmatpush1.bf16.msra.mxu0 0
        %3452 = vmatprep.subr.bf16.mxu0 0
        %3453 = vmatpush1.bf16.msra.mxu0 0
        %3454 = vmatprep.subr.bf16.mxu0 0
        %3455 = vmatpush1.bf16.msra.mxu0 0
        %3456 = vmatprep.subr.bf16.mxu0 0
        %3457 = vmatpush1.bf16.msra.mxu0 0
        %3458 = vmatprep.subr.bf16.mxu0 0
        %3459 = vmatpush1.bf16.msra.mxu0 0
        %3460 = vmatprep.subr.bf16.mxu0 0
        %3461 = vmatpush1.bf16.msra.mxu0 0
        %3462 = vmatprep.mubr.bf16.mxu0 0
        %3463 = vmatmul.mubr.bf16.gmra.mrb[0].mxu0 %v3428
        %v3464 = vpop.f32.mrb[0].mxu0
        %v3465 = vadd.f32 0.0, %v3464
        %v3466 = vpop.f32.mrb[0].mxu0
        %v3467 = vpop.f32.mrb[0].mxu0
        %v3468 = vpop.f32.mrb[0].mxu0
        %3469 = vdwg.mxu0
        %v3470 = vpack.c.bf16 %v3465, %v3465
        %s3471 = scalar_lea.vmem [#allocation11], 48
        %v3472 = vld [vmem:[%s3471] sm:$0xf]
        %v3473 = vld [vmem:[%s3471 + $0x4] sm:$0xf]
        %v3474 = vld [vmem:[%s3471 + $0x8] sm:$0xf]
        %v3475 = vld [vmem:[%s3471 + $0xc] sm:$0xf]
        %v3480 = vunpack.c.l.b16 %v3472
        %v3481 = vunpack.c.l.b16 %v3473
        %v3482 = vunpack.c.l.b16 %v3474
        %v3483 = vunpack.c.l.b16 %v3475
        %v3484 = vpack.c.b16 %v3481, %v3480
        %v3485 = vpack.c.b16 %v3483, %v3482
        %v3489 = vsel %vm1457, %v3347, 0
        %3491 = vmatprep.subr.bf16.mxu0 0
        %3492 = vmatpush1.bf16.msra.mxu0 %v3484
        %3493 = vmatprep.subr.bf16.mxu0 0
        %3494 = vmatpush1.bf16.msra.mxu0 %v3485
        %3495 = vmatprep.subr.bf16.mxu0 0
        %3496 = vmatpush1.bf16.msra.mxu0 0
        %3497 = vmatprep.subr.bf16.mxu0 0
        %3498 = vmatpush1.bf16.msra.mxu0 0
        %3499 = vmatprep.subr.bf16.mxu0 0
        %3500 = vmatpush1.bf16.msra.mxu0 0
        %3501 = vmatprep.subr.bf16.mxu0 0
        %3502 = vmatpush1.bf16.msra.mxu0 0
        %3503 = vmatprep.subr.bf16.mxu0 0
        %3504 = vmatpush1.bf16.msra.mxu0 0
        %3505 = vmatprep.subr.bf16.mxu0 0
        %3506 = vmatpush1.bf16.msra.mxu0 0
        %3507 = vmatprep.subr.bf16.mxu0 0
        %3508 = vmatpush1.bf16.msra.mxu0 0
        %3509 = vmatprep.subr.bf16.mxu0 0
        %3510 = vmatpush1.bf16.msra.mxu0 0
        %3511 = vmatprep.subr.bf16.mxu0 0
        %3512 = vmatpush1.bf16.msra.mxu0 0
        %3513 = vmatprep.subr.bf16.mxu0 0
        %3514 = vmatpush1.bf16.msra.mxu0 0
        %3515 = vmatprep.subr.bf16.mxu0 0
        %3516 = vmatpush1.bf16.msra.mxu0 0
        %3517 = vmatprep.subr.bf16.mxu0 0
        %3518 = vmatpush1.bf16.msra.mxu0 0
        %3519 = vmatprep.subr.bf16.mxu0 0
        %3520 = vmatpush1.bf16.msra.mxu0 0
        %3521 = vmatprep.subr.bf16.mxu0 0
        %3522 = vmatpush1.bf16.msra.mxu0 0
        %3523 = vmatprep.mubr.bf16.mxu0 0
        %3524 = vmatmul.mubr.bf16.gmra.mrb[0].mxu0 %v3489
        %v3525 = vpop.f32.mrb[0].mxu0
        %v3526 = vadd.f32 0.0, %v3525
        %v3527 = vpop.f32.mrb[0].mxu0
        %v3528 = vpop.f32.mrb[0].mxu0
        %v3529 = vpop.f32.mrb[0].mxu0
        %3530 = vdwg.mxu0
        %v3531 = vpack.c.bf16 %v3526, %v3526
        %3533 = vrot.lane.b32.xlu0 %v3409, 112
        %v3534 = vpop.permute.xlu0 %3533
        %3536 = vrot.lane.b32.xlu0 %v3470, 112
        %v3537 = vpop.permute.xlu0 %3536
        %3539 = vrot.lane.b32.xlu0 %v3531, 112
        %v3540 = vpop.permute.xlu0 %3539
        %v3542 = vsel %vm1708, %v3409, 0
        %v3545 = vsel %vm1708, %v3470, 0
        %3547 = vmatprep.subr.bf16.mxu0 0
        %3548 = vmatpush1.bf16.xpose.msra.mxu0 %v3545
        %3549 = vmatprep.subr.bf16.mxu0 0
        %3550 = vmatpush1.bf16.xpose.msra.mxu0 0
        %3551 = vmatprep.subr.bf16.mxu0 0
        %3552 = vmatpush1.bf16.xpose.msra.mxu0 0
        %3553 = vmatprep.subr.bf16.mxu0 0
        %3554 = vmatpush1.bf16.xpose.msra.mxu0 0
        %3555 = vmatprep.subr.bf16.mxu0 0
        %3556 = vmatpush1.bf16.xpose.msra.mxu0 0
        %3557 = vmatprep.subr.bf16.mxu0 0
        %3558 = vmatpush1.bf16.xpose.msra.mxu0 0
        %3559 = vmatprep.subr.bf16.mxu0 0
        %3560 = vmatpush1.bf16.xpose.msra.mxu0 0
        %3561 = vmatprep.subr.bf16.mxu0 0
        %3562 = vmatpush1.bf16.xpose.msra.mxu0 0
        %3563 = vmatprep.subr.bf16.mxu0 0
        %3564 = vmatpush1.bf16.xpose.msra.mxu0 0
        %3565 = vmatprep.subr.bf16.mxu0 0
        %3566 = vmatpush1.bf16.xpose.msra.mxu0 0
        %3567 = vmatprep.subr.bf16.mxu0 0
        %3568 = vmatpush1.bf16.xpose.msra.mxu0 0
        %3569 = vmatprep.subr.bf16.mxu0 0
        %3570 = vmatpush1.bf16.xpose.msra.mxu0 0
        %3571 = vmatprep.subr.bf16.mxu0 0
        %3572 = vmatpush1.bf16.xpose.msra.mxu0 0
        %3573 = vmatprep.subr.bf16.mxu0 0
        %3574 = vmatpush1.bf16.xpose.msra.mxu0 0
        %3575 = vmatprep.subr.bf16.mxu0 0
        %3576 = vmatpush1.bf16.xpose.msra.mxu0 0
        %3577 = vmatprep.subr.bf16.mxu0 0
        %3578 = vmatpush1.bf16.xpose.msra.mxu0 0
        %3579 = vmatprep.mubr.bf16.mxu0 0
        %3580 = vmatmul.mubr.bf16.gmra.mrb[0].mxu0 %v3542
        %v3581 = vpop.f32.mrb[0].mxu0
        %v3582 = vadd.f32 0.0, %v3581
        %v3583 = vpop.f32.mrb[0].mxu0
        %v3584 = vpop.f32.mrb[0].mxu0
        %v3585 = vpop.f32.mrb[0].mxu0
        %3586 = vdwg.mxu0
        %v3588 = vsel %vm1708, %v3534, 0
        %v3591 = vsel %vm1708, %v3537, 0
        %3593 = vmatprep.subr.bf16.mxu0 0
        %3594 = vmatpush1.bf16.xpose.msra.mxu0 %v3591
        %3595 = vmatprep.subr.bf16.mxu0 0
        %3596 = vmatpush1.bf16.xpose.msra.mxu0 0
        %3597 = vmatprep.subr.bf16.mxu0 0
        %3598 = vmatpush1.bf16.xpose.msra.mxu0 0
        %3599 = vmatprep.subr.bf16.mxu0 0
        %3600 = vmatpush1.bf16.xpose.msra.mxu0 0
        %3601 = vmatprep.subr.bf16.mxu0 0
        %3602 = vmatpush1.bf16.xpose.msra.mxu0 0
        %3603 = vmatprep.subr.bf16.mxu0 0
        %3604 = vmatpush1.bf16.xpose.msra.mxu0 0
        %3605 = vmatprep.subr.bf16.mxu0 0
        %3606 = vmatpush1.bf16.xpose.msra.mxu0 0
        %3607 = vmatprep.subr.bf16.mxu0 0
        %3608 = vmatpush1.bf16.xpose.msra.mxu0 0
        %3609 = vmatprep.subr.bf16.mxu0 0
        %3610 = vmatpush1.bf16.xpose.msra.mxu0 0
        %3611 = vmatprep.subr.bf16.mxu0 0
        %3612 = vmatpush1.bf16.xpose.msra.mxu0 0
        %3613 = vmatprep.subr.bf16.mxu0 0
        %3614 = vmatpush1.bf16.xpose.msra.mxu0 0
        %3615 = vmatprep.subr.bf16.mxu0 0
        %3616 = vmatpush1.bf16.xpose.msra.mxu0 0
        %3617 = vmatprep.subr.bf16.mxu0 0
        %3618 = vmatpush1.bf16.xpose.msra.mxu0 0
        %3619 = vmatprep.subr.bf16.mxu0 0
        %3620 = vmatpush1.bf16.xpose.msra.mxu0 0
        %3621 = vmatprep.subr.bf16.mxu0 0
        %3622 = vmatpush1.bf16.xpose.msra.mxu0 0
        %3623 = vmatprep.subr.bf16.mxu0 0
        %3624 = vmatpush1.bf16.xpose.msra.mxu0 0
        %3625 = vmatprep.mubr.bf16.mxu0 0
        %3626 = vmatmul.mubr.bf16.gmra.mrb[0].mxu0 %v3588
        %v3627 = vpop.f32.mrb[0].mxu0
        %v3628 = vadd.f32 0.0, %v3627
        %v3629 = vpop.f32.mrb[0].mxu0
        %v3630 = vpop.f32.mrb[0].mxu0
        %v3631 = vpop.f32.mrb[0].mxu0
        %3632 = vdwg.mxu0
        %v3633 = vmul.f32 %v3582, %v1454
        %v3634 = vmul.f32 %v3628, %v1454
        %v3635 = vsel %vm1803, %v3633, -inf
        %3636 = vmax.xlane.f32.xlu0 %v3635
        %v3637 = vpop.xlane.xlu0 %3636
        %v3638 = vsel %vm1803, %v3634, -inf
        %3639 = vmax.xlane.f32.xlu0 %v3638
        %v3640 = vpop.xlane.xlu0 %3639
        %v3641 = vsub.f32 %v3633, %v3637
        %v3642 = vsub.f32 %v3634, %v3640
        %v3643 = vmul.f32 %v3641, 1.442695
        %v3644 = vpow.pop %v3643
        %v3645 = vmul.f32 %v3642, 1.442695
        %v3646 = vpow.pop %v3645
        %v3647 = vmul.f32 %v3644, %v1454
        %v3648 = vmul.f32 %v3646, %v1454
        %v3649 = vsel %vm1803, %v3647, 0.0
        %3650 = vadd.xlane.f32.xlu0 %v3649
        %v3651 = vpop.xlane.xlu0 %3650
        %v3652 = vsel %vm1803, %v3648, 0.0
        %3653 = vadd.xlane.f32.xlu0 %v3652
        %v3654 = vpop.xlane.xlu0 %3653
        %v3655 = vadd.f32 %v3651, 1e-13
        %v3656 = vadd.f32 %v3654, 1e-13
        %v3657 = vrcp.pop %v3655
        %v3658 = vrcp.pop %v3656
        %v3659 = vmul.f32 %v3647, %v3657
        %v3660 = vmul.f32 %v3648, %v3658
        %3661 = vst.msk [vmem:[%s1380] sm:$0xff] %vm1803, %v3659
        %3662 = vst.msk [vmem:[%s1380 + $0x8] sm:$0xff] %vm1803, %v3660
        %v3663 = vpack.c.bf16 %v3659, %v3659
        %v3664 = vpack.c.bf16 %v3660, %v3660
        %v3666 = vsel %vm1803, %v3663, 0
        %v3669 = vsel %vm1837, %v3531, 0
        %3671 = vmatprep.subr.bf16.mxu0 0
        %3672 = vmatpush1.bf16.msra.mxu0 %v3669
        %3673 = vmatprep.subr.bf16.mxu0 0
        %3674 = vmatpush1.bf16.msra.mxu0 0
        %3675 = vmatprep.subr.bf16.mxu0 0
        %3676 = vmatpush1.bf16.msra.mxu0 0
        %3677 = vmatprep.subr.bf16.mxu0 0
        %3678 = vmatpush1.bf16.msra.mxu0 0
        %3679 = vmatprep.subr.bf16.mxu0 0
        %3680 = vmatpush1.bf16.msra.mxu0 0
        %3681 = vmatprep.subr.bf16.mxu0 0
        %3682 = vmatpush1.bf16.msra.mxu0 0
        %3683 = vmatprep.subr.bf16.mxu0 0
        %3684 = vmatpush1.bf16.msra.mxu0 0
        %3685 = vmatprep.subr.bf16.mxu0 0
        %3686 = vmatpush1.bf16.msra.mxu0 0
        %3687 = vmatprep.subr.bf16.mxu0 0
        %3688 = vmatpush1.bf16.msra.mxu0 0
        %3689 = vmatprep.subr.bf16.mxu0 0
        %3690 = vmatpush1.bf16.msra.mxu0 0
        %3691 = vmatprep.subr.bf16.mxu0 0
        %3692 = vmatpush1.bf16.msra.mxu0 0
        %3693 = vmatprep.subr.bf16.mxu0 0
        %3694 = vmatpush1.bf16.msra.mxu0 0
        %3695 = vmatprep.subr.bf16.mxu0 0
        %3696 = vmatpush1.bf16.msra.mxu0 0
        %3697 = vmatprep.subr.bf16.mxu0 0
        %3698 = vmatpush1.bf16.msra.mxu0 0
        %3699 = vmatprep.subr.bf16.mxu0 0
        %3700 = vmatpush1.bf16.msra.mxu0 0
        %3701 = vmatprep.subr.bf16.mxu0 0
        %3702 = vmatpush1.bf16.msra.mxu0 0
        %3703 = vmatprep.mubr.bf16.mxu0 0
        %3704 = vmatmul.mubr.bf16.gmra.mrb[0].mxu0 %v3666
        %v3705 = vpop.f32.mrb[0].mxu0
        %v3706 = vadd.f32 0.0, %v3705
        %v3707 = vpop.f32.mrb[0].mxu0
        %v3708 = vpop.f32.mrb[0].mxu0
        %v3709 = vpop.f32.mrb[0].mxu0
        %3710 = vdwg.mxu0
        %v3712 = vsel %vm1803, %v3664, 0
        %v3715 = vsel %vm1837, %v3540, 0
        %3717 = vmatprep.subr.bf16.mxu0 0
        %3718 = vmatpush1.bf16.msra.mxu0 %v3715
        %3719 = vmatprep.subr.bf16.mxu0 0
        %3720 = vmatpush1.bf16.msra.mxu0 0
        %3721 = vmatprep.subr.bf16.mxu0 0
        %3722 = vmatpush1.bf16.msra.mxu0 0
        %3723 = vmatprep.subr.bf16.mxu0 0
        %3724 = vmatpush1.bf16.msra.mxu0 0
        %3725 = vmatprep.subr.bf16.mxu0 0
        %3726 = vmatpush1.bf16.msra.mxu0 0
        %3727 = vmatprep.subr.bf16.mxu0 0
        %3728 = vmatpush1.bf16.msra.mxu0 0
        %3729 = vmatprep.subr.bf16.mxu0 0
        %3730 = vmatpush1.bf16.msra.mxu0 0
        %3731 = vmatprep.subr.bf16.mxu0 0
        %3732 = vmatpush1.bf16.msra.mxu0 0
        %3733 = vmatprep.subr.bf16.mxu0 0
        %3734 = vmatpush1.bf16.msra.mxu0 0
        %3735 = vmatprep.subr.bf16.mxu0 0
        %3736 = vmatpush1.bf16.msra.mxu0 0
        %3737 = vmatprep.subr.bf16.mxu0 0
        %3738 = vmatpush1.bf16.msra.mxu0 0
        %3739 = vmatprep.subr.bf16.mxu0 0
        %3740 = vmatpush1.bf16.msra.mxu0 0
        %3741 = vmatprep.subr.bf16.mxu0 0
        %3742 = vmatpush1.bf16.msra.mxu0 0
        %3743 = vmatprep.subr.bf16.mxu0 0
        %3744 = vmatpush1.bf16.msra.mxu0 0
        %3745 = vmatprep.subr.bf16.mxu0 0
        %3746 = vmatpush1.bf16.msra.mxu0 0
        %3747 = vmatprep.subr.bf16.mxu0 0
        %3748 = vmatpush1.bf16.msra.mxu0 0
        %3749 = vmatprep.mubr.bf16.mxu0 0
        %3750 = vmatmul.mubr.bf16.gmra.mrb[0].mxu0 %v3712
        %v3751 = vpop.f32.mrb[0].mxu0
        %v3752 = vadd.f32 0.0, %v3751
        %v3753 = vpop.f32.mrb[0].mxu0
        %v3754 = vpop.f32.mrb[0].mxu0
        %v3755 = vpop.f32.mrb[0].mxu0
        %3756 = vdwg.mxu0
        %v3757 = vpack.c.bf16 %v3706, %v3706
        %v3758 = vpack.c.bf16 %v3752, %v3752
        %s3759 = scalar_lea.vmem [#allocation13], 48
        %v3760 = vld [vmem:[%s3759] sm:$0xf]
        %v3761 = vld [vmem:[%s3759 + $0x4] sm:$0xf]
        %v3762 = vld [vmem:[%s3759 + $0x8] sm:$0xf]
        %v3763 = vld [vmem:[%s3759 + $0xc] sm:$0xf]
        %v3766 = vunpack.c.l.b16 %v3760
        %v3767 = vunpack.c.l.b16 %v3761
        %v3768 = vpack.c.b16 %v3767, %v3766
        %v3771 = vsel %vm1708, %v3757, 0
        %3773 = vmatprep.subr.bf16.mxu0 0
        %3774 = vmatpush1.bf16.msra.mxu0 %v3768
        %3775 = vmatprep.subr.bf16.mxu0 0
        %3776 = vmatpush1.bf16.msra.mxu0 0
        %3777 = vmatprep.subr.bf16.mxu0 0
        %3778 = vmatpush1.bf16.msra.mxu0 0
        %3779 = vmatprep.subr.bf16.mxu0 0
        %3780 = vmatpush1.bf16.msra.mxu0 0
        %3781 = vmatprep.subr.bf16.mxu0 0
        %3782 = vmatpush1.bf16.msra.mxu0 0
        %3783 = vmatprep.subr.bf16.mxu0 0
        %3784 = vmatpush1.bf16.msra.mxu0 0
        %3785 = vmatprep.subr.bf16.mxu0 0
        %3786 = vmatpush1.bf16.msra.mxu0 0
        %3787 = vmatprep.subr.bf16.mxu0 0
        %3788 = vmatpush1.bf16.msra.mxu0 0
        %3789 = vmatprep.subr.bf16.mxu0 0
        %3790 = vmatpush1.bf16.msra.mxu0 0
        %3791 = vmatprep.subr.bf16.mxu0 0
        %3792 = vmatpush1.bf16.msra.mxu0 0
        %3793 = vmatprep.subr.bf16.mxu0 0
        %3794 = vmatpush1.bf16.msra.mxu0 0
        %3795 = vmatprep.subr.bf16.mxu0 0
        %3796 = vmatpush1.bf16.msra.mxu0 0
        %3797 = vmatprep.subr.bf16.mxu0 0
        %3798 = vmatpush1.bf16.msra.mxu0 0
        %3799 = vmatprep.subr.bf16.mxu0 0
        %3800 = vmatpush1.bf16.msra.mxu0 0
        %3801 = vmatprep.subr.bf16.mxu0 0
        %3802 = vmatpush1.bf16.msra.mxu0 0
        %3803 = vmatprep.subr.bf16.mxu0 0
        %3804 = vmatpush1.bf16.msra.mxu0 0
        %3805 = vmatprep.mubr.bf16.mxu0 0
        %3806 = vmatmul.mubr.bf16.gmra.mrb[0].mxu0 %v3771
        %v3807 = vpop.f32.mrb[0].mxu0
        %v3808 = vadd.f32 0.0, %v3807
        %v3809 = vpop.f32.mrb[0].mxu0
        %v3810 = vpop.f32.mrb[0].mxu0
        %v3811 = vpop.f32.mrb[0].mxu0
        %3812 = vdwg.mxu0
        %v3815 = vunpack.c.l.b16 %v3762
        %v3816 = vunpack.c.l.b16 %v3763
        %v3817 = vpack.c.b16 %v3816, %v3815
        %v3820 = vsel %vm1708, %v3758, 0
        %3822 = vmatprep.subr.bf16.mxu0 0
        %3823 = vmatpush1.bf16.msra.mxu0 %v3817
        %3824 = vmatprep.subr.bf16.mxu0 0
        %3825 = vmatpush1.bf16.msra.mxu0 0
        %3826 = vmatprep.subr.bf16.mxu0 0
        %3827 = vmatpush1.bf16.msra.mxu0 0
        %3828 = vmatprep.subr.bf16.mxu0 0
        %3829 = vmatpush1.bf16.msra.mxu0 0
        %3830 = vmatprep.subr.bf16.mxu0 0
        %3831 = vmatpush1.bf16.msra.mxu0 0
        %3832 = vmatprep.subr.bf16.mxu0 0
        %3833 = vmatpush1.bf16.msra.mxu0 0
        %3834 = vmatprep.subr.bf16.mxu0 0
        %3835 = vmatpush1.bf16.msra.mxu0 0
        %3836 = vmatprep.subr.bf16.mxu0 0
        %3837 = vmatpush1.bf16.msra.mxu0 0
        %3838 = vmatprep.subr.bf16.mxu0 0
        %3839 = vmatpush1.bf16.msra.mxu0 0
        %3840 = vmatprep.subr.bf16.mxu0 0
        %3841 = vmatpush1.bf16.msra.mxu0 0
        %3842 = vmatprep.subr.bf16.mxu0 0
        %3843 = vmatpush1.bf16.msra.mxu0 0
        %3844 = vmatprep.subr.bf16.mxu0 0
        %3845 = vmatpush1.bf16.msra.mxu0 0
        %3846 = vmatprep.subr.bf16.mxu0 0
        %3847 = vmatpush1.bf16.msra.mxu0 0
        %3848 = vmatprep.subr.bf16.mxu0 0
        %3849 = vmatpush1.bf16.msra.mxu0 0
        %3850 = vmatprep.subr.bf16.mxu0 0
        %3851 = vmatpush1.bf16.msra.mxu0 0
        %3852 = vmatprep.subr.bf16.mxu0 0
        %3853 = vmatpush1.bf16.msra.mxu0 0
        %3854 = vmatprep.mubr.bf16.mxu0 0
        %3855 = vmatmul.mubr.bf16.gmra.mrb[0].mxu0 %v3820
        %v3856 = vpop.f32.mrb[0].mxu0
        %v3857 = vadd.f32 0.0, %v3856
        %v3858 = vpop.f32.mrb[0].mxu0
        %v3859 = vpop.f32.mrb[0].mxu0
        %v3860 = vpop.f32.mrb[0].mxu0
        %3861 = vdwg.mxu0
        %v3862 = vsel %vm1457, %v3808, 0.0
        %v3863 = vsel %vm1457, %v3857, 0.0
        %v3864 = vadd.f32 %v3862, %v3863
        %s3865 = scalar_lea.vmem [#allocation7], 16
        %v3866 = vld [vmem:[%s3865] sm:$0x7]
        %s3867 = scalar_lea.vmem [#allocation8], 16
        %v3868 = vld [vmem:[%s3867] sm:$0x7]
        %v3869 = vsel %vm1457, %v3310, 0.0
        %3870 = vadd.xlane.f32.xlu0 %v3869
        %v3871 = vpop.xlane.xlu0 %3870
        %v3872 = vmul.f32 %v3871, %v1461
        %v3873 = vsub.f32 %v3310, %v3872
        %v3874 = vmul.f32 %v3873, %v3873
        %v3875 = vsel %vm1457, %v3874, 0.0
        %3876 = vadd.xlane.f32.xlu0 %v3875
        %v3877 = vpop.xlane.xlu0 %3876
        %v3878 = vmul.f32 %v3877, %v1461
        %v3879 = vadd.f32 %v3878, 1e-05
        %v3880 = vrsqrt.pop %v3879
        %v3881 = vmul.f32 %v3873, %v3880
        %v3882 = vlaneseq
        %v3883 = vshrl.u32 %v3882, 7
        %v3884 = vsub.s32 0, %v3883
        %v3885 = vrot.slane %v3866, %v3884
        %v3886 = vmul.f32 %v3881, %v3885
        %v3887 = vlaneseq
        %v3888 = vshrl.u32 %v3887, 7
        %v3889 = vsub.s32 0, %v3888
        %v3890 = vrot.slane %v3868, %v3889
        %v3891 = vadd.f32 %v3886, %v3890
        %v3892 = vpack.c.bf16 %v3891, %v3891
        %v3893 = vlaneseq
        %v3894 = vshrl.u32 %v3893, 7
        %v3895 = vsub.s32 1, %v3894
        %v3896 = vrot.slane %v3866, %v3895
        %v3897 = vmul.f32 %v3881, %v3896
        %v3898 = vlaneseq
        %v3899 = vshrl.u32 %v3898, 7
        %v3900 = vsub.s32 1, %v3899
        %v3901 = vrot.slane %v3868, %v3900
        %v3902 = vadd.f32 %v3897, %v3901
        %v3903 = vpack.c.bf16 %v3902, %v3902
        %v3904 = vlaneseq
        %v3905 = vshrl.u32 %v3904, 7
        %v3906 = vsub.s32 2, %v3905
        %v3907 = vrot.slane %v3866, %v3906
        %v3908 = vmul.f32 %v3881, %v3907
        %v3909 = vlaneseq
        %v3910 = vshrl.u32 %v3909, 7
        %v3911 = vsub.s32 2, %v3910
        %v3912 = vrot.slane %v3868, %v3911
        %v3913 = vadd.f32 %v3908, %v3912
        %v3914 = vpack.c.bf16 %v3913, %v3913
        %s3915 = scalar_lea.vmem %s25, 64
        %v3916 = vld [vmem:[%s3915] sm:$0xf]
        %v3917 = vld [vmem:[%s3915 + $0x4] sm:$0xf]
        %v3918 = vld [vmem:[%s3915 + $0x8] sm:$0xf]
        %v3919 = vld [vmem:[%s3915 + $0xc] sm:$0xf]
        %v3924 = vunpack.c.l.b16 %v3916
        %v3925 = vunpack.c.l.b16 %v3917
        %v3926 = vunpack.c.l.b16 %v3918
        %v3927 = vunpack.c.l.b16 %v3919
        %v3928 = vpack.c.b16 %v3925, %v3924
        %v3929 = vpack.c.b16 %v3927, %v3926
        %v3933 = vsel %vm1457, %v3892, 0
        %3935 = vmatprep.subr.bf16.mxu0 0
        %3936 = vmatpush1.bf16.msra.mxu0 %v3928
        %3937 = vmatprep.subr.bf16.mxu0 0
        %3938 = vmatpush1.bf16.msra.mxu0 %v3929
        %3939 = vmatprep.subr.bf16.mxu0 0
        %3940 = vmatpush1.bf16.msra.mxu0 0
        %3941 = vmatprep.subr.bf16.mxu0 0
        %3942 = vmatpush1.bf16.msra.mxu0 0
        %3943 = vmatprep.subr.bf16.mxu0 0
        %3944 = vmatpush1.bf16.msra.mxu0 0
        %3945 = vmatprep.subr.bf16.mxu0 0
        %3946 = vmatpush1.bf16.msra.mxu0 0
        %3947 = vmatprep.subr.bf16.mxu0 0
        %3948 = vmatpush1.bf16.msra.mxu0 0
        %3949 = vmatprep.subr.bf16.mxu0 0
        %3950 = vmatpush1.bf16.msra.mxu0 0
        %3951 = vmatprep.subr.bf16.mxu0 0
        %3952 = vmatpush1.bf16.msra.mxu0 0
        %3953 = vmatprep.subr.bf16.mxu0 0
        %3954 = vmatpush1.bf16.msra.mxu0 0
        %3955 = vmatprep.subr.bf16.mxu0 0
        %3956 = vmatpush1.bf16.msra.mxu0 0
        %3957 = vmatprep.subr.bf16.mxu0 0
        %3958 = vmatpush1.bf16.msra.mxu0 0
        %3959 = vmatprep.subr.bf16.mxu0 0
        %3960 = vmatpush1.bf16.msra.mxu0 0
        %3961 = vmatprep.subr.bf16.mxu0 0
        %3962 = vmatpush1.bf16.msra.mxu0 0
        %3963 = vmatprep.subr.bf16.mxu0 0
        %3964 = vmatpush1.bf16.msra.mxu0 0
        %3965 = vmatprep.subr.bf16.mxu0 0
        %3966 = vmatpush1.bf16.msra.mxu0 0
        %3967 = vmatprep.mubr.bf16.mxu0 0
        %3968 = vmatmul.mubr.bf16.gmra.mrb[0].mxu0 %v3933
        %v3969 = vpop.f32.mrb[0].mxu0
        %v3970 = vadd.f32 0.0, %v3969
        %v3971 = vpop.f32.mrb[0].mxu0
        %v3972 = vpop.f32.mrb[0].mxu0
        %v3973 = vpop.f32.mrb[0].mxu0
        %3974 = vdwg.mxu0
        %v3975 = vmul.f32 %v3970, 0.25
        %v3976 = vpack.c.bf16 %v3975, %v3975
        %s3977 = scalar_lea.vmem [#allocation10], 64
        %v3978 = vld [vmem:[%s3977] sm:$0xf]
        %v3979 = vld [vmem:[%s3977 + $0x4] sm:$0xf]
        %v3980 = vld [vmem:[%s3977 + $0x8] sm:$0xf]
        %v3981 = vld [vmem:[%s3977 + $0xc] sm:$0xf]
        %v3986 = vunpack.c.l.b16 %v3978
        %v3987 = vunpack.c.l.b16 %v3979
        %v3988 = vunpack.c.l.b16 %v3980
        %v3989 = vunpack.c.l.b16 %v3981
        %v3990 = vpack.c.b16 %v3987, %v3986
        %v3991 = vpack.c.b16 %v3989, %v3988
        %v3995 = vsel %vm1457, %v3903, 0
        %3997 = vmatprep.subr.bf16.mxu0 0
        %3998 = vmatpush1.bf16.msra.mxu0 %v3990
        %3999 = vmatprep.subr.bf16.mxu0 0
        %4000 = vmatpush1.bf16.msra.mxu0 %v3991
        %4001 = vmatprep.subr.bf16.mxu0 0
        %4002 = vmatpush1.bf16.msra.mxu0 0
        %4003 = vmatprep.subr.bf16.mxu0 0
        %4004 = vmatpush1.bf16.msra.mxu0 0
        %4005 = vmatprep.subr.bf16.mxu0 0
        %4006 = vmatpush1.bf16.msra.mxu0 0
        %4007 = vmatprep.subr.bf16.mxu0 0
        %4008 = vmatpush1.bf16.msra.mxu0 0
        %4009 = vmatprep.subr.bf16.mxu0 0
        %4010 = vmatpush1.bf16.msra.mxu0 0
        %4011 = vmatprep.subr.bf16.mxu0 0
        %4012 = vmatpush1.bf16.msra.mxu0 0
        %4013 = vmatprep.subr.bf16.mxu0 0
        %4014 = vmatpush1.bf16.msra.mxu0 0
        %4015 = vmatprep.subr.bf16.mxu0 0
        %4016 = vmatpush1.bf16.msra.mxu0 0
        %4017 = vmatprep.subr.bf16.mxu0 0
        %4018 = vmatpush1.bf16.msra.mxu0 0
        %4019 = vmatprep.subr.bf16.mxu0 0
        %4020 = vmatpush1.bf16.msra.mxu0 0
        %4021 = vmatprep.subr.bf16.mxu0 0
        %4022 = vmatpush1.bf16.msra.mxu0 0
        %4023 = vmatprep.subr.bf16.mxu0 0
        %4024 = vmatpush1.bf16.msra.mxu0 0
        %4025 = vmatprep.subr.bf16.mxu0 0
        %4026 = vmatpush1.bf16.msra.mxu0 0
        %4027 = vmatprep.subr.bf16.mxu0 0
        %4028 = vmatpush1.bf16.msra.mxu0 0
        %4029 = vmatprep.mubr.bf16.mxu0 0
        %4030 = vmatmul.mubr.bf16.gmra.mrb[0].mxu0 %v3995
        %v4031 = vpop.f32.mrb[0].mxu0
        %v4032 = vadd.f32 0.0, %v4031
        %v4033 = vpop.f32.mrb[0].mxu0
        %v4034 = vpop.f32.mrb[0].mxu0
        %v4035 = vpop.f32.mrb[0].mxu0
        %4036 = vdwg.mxu0
        %v4037 = vpack.c.bf16 %v4032, %v4032
        %s4038 = scalar_lea.vmem [#allocation11], 64
        %v4039 = vld [vmem:[%s4038] sm:$0xf]
        %v4040 = vld [vmem:[%s4038 + $0x4] sm:$0xf]
        %v4041 = vld [vmem:[%s4038 + $0x8] sm:$0xf]
        %v4042 = vld [vmem:[%s4038 + $0xc] sm:$0xf]
        %v4047 = vunpack.c.l.b16 %v4039
        %v4048 = vunpack.c.l.b16 %v4040
        %v4049 = vunpack.c.l.b16 %v4041
        %v4050 = vunpack.c.l.b16 %v4042
        %v4051 = vpack.c.b16 %v4048, %v4047
        %v4052 = vpack.c.b16 %v4050, %v4049
        %v4056 = vsel %vm1457, %v3914, 0
        %4058 = vmatprep.subr.bf16.mxu0 0
        %4059 = vmatpush1.bf16.msra.mxu0 %v4051
        %4060 = vmatprep.subr.bf16.mxu0 0
        %4061 = vmatpush1.bf16.msra.mxu0 %v4052
        %4062 = vmatprep.subr.bf16.mxu0 0
        %4063 = vmatpush1.bf16.msra.mxu0 0
        %4064 = vmatprep.subr.bf16.mxu0 0
        %4065 = vmatpush1.bf16.msra.mxu0 0
        %4066 = vmatprep.subr.bf16.mxu0 0
        %4067 = vmatpush1.bf16.msra.mxu0 0
        %4068 = vmatprep.subr.bf16.mxu0 0
        %4069 = vmatpush1.bf16.msra.mxu0 0
        %4070 = vmatprep.subr.bf16.mxu0 0
        %4071 = vmatpush1.bf16.msra.mxu0 0
        %4072 = vmatprep.subr.bf16.mxu0 0
        %4073 = vmatpush1.bf16.msra.mxu0 0
        %4074 = vmatprep.subr.bf16.mxu0 0
        %4075 = vmatpush1.bf16.msra.mxu0 0
        %4076 = vmatprep.subr.bf16.mxu0 0
        %4077 = vmatpush1.bf16.msra.mxu0 0
        %4078 = vmatprep.subr.bf16.mxu0 0
        %4079 = vmatpush1.bf16.msra.mxu0 0
        %4080 = vmatprep.subr.bf16.mxu0 0
        %4081 = vmatpush1.bf16.msra.mxu0 0
        %4082 = vmatprep.subr.bf16.mxu0 0
        %4083 = vmatpush1.bf16.msra.mxu0 0
        %4084 = vmatprep.subr.bf16.mxu0 0
        %4085 = vmatpush1.bf16.msra.mxu0 0
        %4086 = vmatprep.subr.bf16.mxu0 0
        %4087 = vmatpush1.bf16.msra.mxu0 0
        %4088 = vmatprep.subr.bf16.mxu0 0
        %4089 = vmatpush1.bf16.msra.mxu0 0
        %4090 = vmatprep.mubr.bf16.mxu0 0
        %4091 = vmatmul.mubr.bf16.gmra.mrb[0].mxu0 %v4056
        %v4092 = vpop.f32.mrb[0].mxu0
        %v4093 = vadd.f32 0.0, %v4092
        %v4094 = vpop.f32.mrb[0].mxu0
        %v4095 = vpop.f32.mrb[0].mxu0
        %v4096 = vpop.f32.mrb[0].mxu0
        %4097 = vdwg.mxu0
        %v4098 = vpack.c.bf16 %v4093, %v4093
        %4100 = vrot.lane.b32.xlu0 %v3976, 112
        %v4101 = vpop.permute.xlu0 %4100
        %4103 = vrot.lane.b32.xlu0 %v4037, 112
        %v4104 = vpop.permute.xlu0 %4103
        %4106 = vrot.lane.b32.xlu0 %v4098, 112
        %v4107 = vpop.permute.xlu0 %4106
        %v4109 = vsel %vm1708, %v3976, 0
        %v4112 = vsel %vm1708, %v4037, 0
        %4114 = vmatprep.subr.bf16.mxu0 0
        %4115 = vmatpush1.bf16.xpose.msra.mxu0 %v4112
        %4116 = vmatprep.subr.bf16.mxu0 0
        %4117 = vmatpush1.bf16.xpose.msra.mxu0 0
        %4118 = vmatprep.subr.bf16.mxu0 0
        %4119 = vmatpush1.bf16.xpose.msra.mxu0 0
        %4120 = vmatprep.subr.bf16.mxu0 0
        %4121 = vmatpush1.bf16.xpose.msra.mxu0 0
        %4122 = vmatprep.subr.bf16.mxu0 0
        %4123 = vmatpush1.bf16.xpose.msra.mxu0 0
        %4124 = vmatprep.subr.bf16.mxu0 0
        %4125 = vmatpush1.bf16.xpose.msra.mxu0 0
        %4126 = vmatprep.subr.bf16.mxu0 0
        %4127 = vmatpush1.bf16.xpose.msra.mxu0 0
        %4128 = vmatprep.subr.bf16.mxu0 0
        %4129 = vmatpush1.bf16.xpose.msra.mxu0 0
        %4130 = vmatprep.subr.bf16.mxu0 0
        %4131 = vmatpush1.bf16.xpose.msra.mxu0 0
        %4132 = vmatprep.subr.bf16.mxu0 0
        %4133 = vmatpush1.bf16.xpose.msra.mxu0 0
        %4134 = vmatprep.subr.bf16.mxu0 0
        %4135 = vmatpush1.bf16.xpose.msra.mxu0 0
        %4136 = vmatprep.subr.bf16.mxu0 0
        %4137 = vmatpush1.bf16.xpose.msra.mxu0 0
        %4138 = vmatprep.subr.bf16.mxu0 0
        %4139 = vmatpush1.bf16.xpose.msra.mxu0 0
        %4140 = vmatprep.subr.bf16.mxu0 0
        %4141 = vmatpush1.bf16.xpose.msra.mxu0 0
        %4142 = vmatprep.subr.bf16.mxu0 0
        %4143 = vmatpush1.bf16.xpose.msra.mxu0 0
        %4144 = vmatprep.subr.bf16.mxu0 0
        %4145 = vmatpush1.bf16.xpose.msra.mxu0 0
        %4146 = vmatprep.mubr.bf16.mxu0 0
        %4147 = vmatmul.mubr.bf16.gmra.mrb[0].mxu0 %v4109
        %v4148 = vpop.f32.mrb[0].mxu0
        %v4149 = vadd.f32 0.0, %v4148
        %v4150 = vpop.f32.mrb[0].mxu0
        %v4151 = vpop.f32.mrb[0].mxu0
        %v4152 = vpop.f32.mrb[0].mxu0
        %4153 = vdwg.mxu0
        %v4155 = vsel %vm1708, %v4101, 0
        %v4158 = vsel %vm1708, %v4104, 0
        %4160 = vmatprep.subr.bf16.mxu0 0
        %4161 = vmatpush1.bf16.xpose.msra.mxu0 %v4158
        %4162 = vmatprep.subr.bf16.mxu0 0
        %4163 = vmatpush1.bf16.xpose.msra.mxu0 0
        %4164 = vmatprep.subr.bf16.mxu0 0
        %4165 = vmatpush1.bf16.xpose.msra.mxu0 0
        %4166 = vmatprep.subr.bf16.mxu0 0
        %4167 = vmatpush1.bf16.xpose.msra.mxu0 0
        %4168 = vmatprep.subr.bf16.mxu0 0
        %4169 = vmatpush1.bf16.xpose.msra.mxu0 0
        %4170 = vmatprep.subr.bf16.mxu0 0
        %4171 = vmatpush1.bf16.xpose.msra.mxu0 0
        %4172 = vmatprep.subr.bf16.mxu0 0
        %4173 = vmatpush1.bf16.xpose.msra.mxu0 0
        %4174 = vmatprep.subr.bf16.mxu0 0
        %4175 = vmatpush1.bf16.xpose.msra.mxu0 0
        %4176 = vmatprep.subr.bf16.mxu0 0
        %4177 = vmatpush1.bf16.xpose.msra.mxu0 0
        %4178 = vmatprep.subr.bf16.mxu0 0
        %4179 = vmatpush1.bf16.xpose.msra.mxu0 0
        %4180 = vmatprep.subr.bf16.mxu0 0
        %4181 = vmatpush1.bf16.xpose.msra.mxu0 0
        %4182 = vmatprep.subr.bf16.mxu0 0
        %4183 = vmatpush1.bf16.xpose.msra.mxu0 0
        %4184 = vmatprep.subr.bf16.mxu0 0
        %4185 = vmatpush1.bf16.xpose.msra.mxu0 0
        %4186 = vmatprep.subr.bf16.mxu0 0
        %4187 = vmatpush1.bf16.xpose.msra.mxu0 0
        %4188 = vmatprep.subr.bf16.mxu0 0
        %4189 = vmatpush1.bf16.xpose.msra.mxu0 0
        %4190 = vmatprep.subr.bf16.mxu0 0
        %4191 = vmatpush1.bf16.xpose.msra.mxu0 0
        %4192 = vmatprep.mubr.bf16.mxu0 0
        %4193 = vmatmul.mubr.bf16.gmra.mrb[0].mxu0 %v4155
        %v4194 = vpop.f32.mrb[0].mxu0
        %v4195 = vadd.f32 0.0, %v4194
        %v4196 = vpop.f32.mrb[0].mxu0
        %v4197 = vpop.f32.mrb[0].mxu0
        %v4198 = vpop.f32.mrb[0].mxu0
        %4199 = vdwg.mxu0
        %v4200 = vmul.f32 %v4149, %v1433
        %v4201 = vmul.f32 %v4195, %v1433
        %v4202 = vsel %vm1803, %v4200, -inf
        %4203 = vmax.xlane.f32.xlu0 %v4202
        %v4204 = vpop.xlane.xlu0 %4203
        %v4205 = vsel %vm1803, %v4201, -inf
        %4206 = vmax.xlane.f32.xlu0 %v4205
        %v4207 = vpop.xlane.xlu0 %4206
        %v4208 = vsub.f32 %v4200, %v4204
        %v4209 = vsub.f32 %v4201, %v4207
        %v4210 = vmul.f32 %v4208, 1.442695
        %v4211 = vpow.pop %v4210
        %v4212 = vmul.f32 %v4209, 1.442695
        %v4213 = vpow.pop %v4212
        %v4214 = vmul.f32 %v4211, %v1433
        %v4215 = vmul.f32 %v4213, %v1433
        %v4216 = vsel %vm1803, %v4214, 0.0
        %4217 = vadd.xlane.f32.xlu0 %v4216
        %v4218 = vpop.xlane.xlu0 %4217
        %v4219 = vsel %vm1803, %v4215, 0.0
        %4220 = vadd.xlane.f32.xlu0 %v4219
        %v4221 = vpop.xlane.xlu0 %4220
        %v4222 = vadd.f32 %v4218, 1e-13
        %v4223 = vadd.f32 %v4221, 1e-13
        %v4224 = vrcp.pop %v4222
        %v4225 = vrcp.pop %v4223
        %v4226 = vmul.f32 %v4214, %v4224
        %v4227 = vmul.f32 %v4215, %v4225
        %4228 = vst.msk [vmem:[%s1359] sm:$0xff] %vm1803, %v4226
        %4229 = vst.msk [vmem:[%s1359 + $0x8] sm:$0xff] %vm1803, %v4227
        %v4230 = vpack.c.bf16 %v4226, %v4226
        %v4231 = vpack.c.bf16 %v4227, %v4227
        %v4233 = vsel %vm1803, %v4230, 0
        %v4236 = vsel %vm1837, %v4098, 0
        %4238 = vmatprep.subr.bf16.mxu0 0
        %4239 = vmatpush1.bf16.msra.mxu0 %v4236
        %4240 = vmatprep.subr.bf16.mxu0 0
        %4241 = vmatpush1.bf16.msra.mxu0 0
        %4242 = vmatprep.subr.bf16.mxu0 0
        %4243 = vmatpush1.bf16.msra.mxu0 0
        %4244 = vmatprep.subr.bf16.mxu0 0
        %4245 = vmatpush1.bf16.msra.mxu0 0
        %4246 = vmatprep.subr.bf16.mxu0 0
        %4247 = vmatpush1.bf16.msra.mxu0 0
        %4248 = vmatprep.subr.bf16.mxu0 0
        %4249 = vmatpush1.bf16.msra.mxu0 0
        %4250 = vmatprep.subr.bf16.mxu0 0
        %4251 = vmatpush1.bf16.msra.mxu0 0
        %4252 = vmatprep.subr.bf16.mxu0 0
        %4253 = vmatpush1.bf16.msra.mxu0 0
        %4254 = vmatprep.subr.bf16.mxu0 0
        %4255 = vmatpush1.bf16.msra.mxu0 0
        %4256 = vmatprep.subr.bf16.mxu0 0
        %4257 = vmatpush1.bf16.msra.mxu0 0
        %4258 = vmatprep.subr.bf16.mxu0 0
        %4259 = vmatpush1.bf16.msra.mxu0 0
        %4260 = vmatprep.subr.bf16.mxu0 0
        %4261 = vmatpush1.bf16.msra.mxu0 0
        %4262 = vmatprep.subr.bf16.mxu0 0
        %4263 = vmatpush1.bf16.msra.mxu0 0
        %4264 = vmatprep.subr.bf16.mxu0 0
        %4265 = vmatpush1.bf16.msra.mxu0 0
        %4266 = vmatprep.subr.bf16.mxu0 0
        %4267 = vmatpush1.bf16.msra.mxu0 0
        %4268 = vmatprep.subr.bf16.mxu0 0
        %4269 = vmatpush1.bf16.msra.mxu0 0
        %4270 = vmatprep.mubr.bf16.mxu0 0
        %4271 = vmatmul.mubr.bf16.gmra.mrb[0].mxu0 %v4233
        %v4272 = vpop.f32.mrb[0].mxu0
        %v4273 = vadd.f32 0.0, %v4272
        %v4274 = vpop.f32.mrb[0].mxu0
        %v4275 = vpop.f32.mrb[0].mxu0
        %v4276 = vpop.f32.mrb[0].mxu0
        %4277 = vdwg.mxu0
        %v4279 = vsel %vm1803, %v4231, 0
        %v4282 = vsel %vm1837, %v4107, 0
        %4284 = vmatprep.subr.bf16.mxu0 0
        %4285 = vmatpush1.bf16.msra.mxu0 %v4282
        %4286 = vmatprep.subr.bf16.mxu0 0
        %4287 = vmatpush1.bf16.msra.mxu0 0
        %4288 = vmatprep.subr.bf16.mxu0 0
        %4289 = vmatpush1.bf16.msra.mxu0 0
        %4290 = vmatprep.subr.bf16.mxu0 0
        %4291 = vmatpush1.bf16.msra.mxu0 0
        %4292 = vmatprep.subr.bf16.mxu0 0
        %4293 = vmatpush1.bf16.msra.mxu0 0
        %4294 = vmatprep.subr.bf16.mxu0 0
        %4295 = vmatpush1.bf16.msra.mxu0 0
        %4296 = vmatprep.subr.bf16.mxu0 0
        %4297 = vmatpush1.bf16.msra.mxu0 0
        %4298 = vmatprep.subr.bf16.mxu0 0
        %4299 = vmatpush1.bf16.msra.mxu0 0
        %4300 = vmatprep.subr.bf16.mxu0 0
        %4301 = vmatpush1.bf16.msra.mxu0 0
        %4302 = vmatprep.subr.bf16.mxu0 0
        %4303 = vmatpush1.bf16.msra.mxu0 0
        %4304 = vmatprep.subr.bf16.mxu0 0
        %4305 = vmatpush1.bf16.msra.mxu0 0
        %4306 = vmatprep.subr.bf16.mxu0 0
        %4307 = vmatpush1.bf16.msra.mxu0 0
        %4308 = vmatprep.subr.bf16.mxu0 0
        %4309 = vmatpush1.bf16.msra.mxu0 0
        %4310 = vmatprep.subr.bf16.mxu0 0
        %4311 = vmatpush1.bf16.msra.mxu0 0
        %4312 = vmatprep.subr.bf16.mxu0 0
        %4313 = vmatpush1.bf16.msra.mxu0 0
        %4314 = vmatprep.subr.bf16.mxu0 0
        %4315 = vmatpush1.bf16.msra.mxu0 0
        %4316 = vmatprep.mubr.bf16.mxu0 0
        %4317 = vmatmul.mubr.bf16.gmra.mrb[0].mxu0 %v4279
        %v4318 = vpop.f32.mrb[0].mxu0
        %v4319 = vadd.f32 0.0, %v4318
        %v4320 = vpop.f32.mrb[0].mxu0
        %v4321 = vpop.f32.mrb[0].mxu0
        %v4322 = vpop.f32.mrb[0].mxu0
        %4323 = vdwg.mxu0
        %v4324 = vpack.c.bf16 %v4273, %v4273
        %v4325 = vpack.c.bf16 %v4319, %v4319
        %s4326 = scalar_lea.vmem [#allocation13], 64
        %v4327 = vld [vmem:[%s4326] sm:$0xf]
        %v4328 = vld [vmem:[%s4326 + $0x4] sm:$0xf]
        %v4329 = vld [vmem:[%s4326 + $0x8] sm:$0xf]
        %v4330 = vld [vmem:[%s4326 + $0xc] sm:$0xf]
        %v4333 = vunpack.c.l.b16 %v4327
        %v4334 = vunpack.c.l.b16 %v4328
        %v4335 = vpack.c.b16 %v4334, %v4333
        %v4338 = vsel %vm1708, %v4324, 0
        %4340 = vmatprep.subr.bf16.mxu0 0
        %4341 = vmatpush1.bf16.msra.mxu0 %v4335
        %4342 = vmatprep.subr.bf16.mxu0 0
        %4343 = vmatpush1.bf16.msra.mxu0 0
        %4344 = vmatprep.subr.bf16.mxu0 0
        %4345 = vmatpush1.bf16.msra.mxu0 0
        %4346 = vmatprep.subr.bf16.mxu0 0
        %4347 = vmatpush1.bf16.msra.mxu0 0
        %4348 = vmatprep.subr.bf16.mxu0 0
        %4349 = vmatpush1.bf16.msra.mxu0 0
        %4350 = vmatprep.subr.bf16.mxu0 0
        %4351 = vmatpush1.bf16.msra.mxu0 0
        %4352 = vmatprep.subr.bf16.mxu0 0
        %4353 = vmatpush1.bf16.msra.mxu0 0
        %4354 = vmatprep.subr.bf16.mxu0 0
        %4355 = vmatpush1.bf16.msra.mxu0 0
        %4356 = vmatprep.subr.bf16.mxu0 0
        %4357 = vmatpush1.bf16.msra.mxu0 0
        %4358 = vmatprep.subr.bf16.mxu0 0
        %4359 = vmatpush1.bf16.msra.mxu0 0
        %4360 = vmatprep.subr.bf16.mxu0 0
        %4361 = vmatpush1.bf16.msra.mxu0 0
        %4362 = vmatprep.subr.bf16.mxu0 0
        %4363 = vmatpush1.bf16.msra.mxu0 0
        %4364 = vmatprep.subr.bf16.mxu0 0
        %4365 = vmatpush1.bf16.msra.mxu0 0
        %4366 = vmatprep.subr.bf16.mxu0 0
        %4367 = vmatpush1.bf16.msra.mxu0 0
        %4368 = vmatprep.subr.bf16.mxu0 0
        %4369 = vmatpush1.bf16.msra.mxu0 0
        %4370 = vmatprep.subr.bf16.mxu0 0
        %4371 = vmatpush1.bf16.msra.mxu0 0
        %4372 = vmatprep.mubr.bf16.mxu0 0
        %4373 = vmatmul.mubr.bf16.gmra.mrb[0].mxu0 %v4338
        %v4374 = vpop.f32.mrb[0].mxu0
        %v4375 = vadd.f32 0.0, %v4374
        %v4376 = vpop.f32.mrb[0].mxu0
        %v4377 = vpop.f32.mrb[0].mxu0
        %v4378 = vpop.f32.mrb[0].mxu0
        %4379 = vdwg.mxu0
        %v4382 = vunpack.c.l.b16 %v4329
        %v4383 = vunpack.c.l.b16 %v4330
        %v4384 = vpack.c.b16 %v4383, %v4382
        %v4387 = vsel %vm1708, %v4325, 0
        %4389 = vmatprep.subr.bf16.mxu0 0
        %4390 = vmatpush1.bf16.msra.mxu0 %v4384
        %4391 = vmatprep.subr.bf16.mxu0 0
        %4392 = vmatpush1.bf16.msra.mxu0 0
        %4393 = vmatprep.subr.bf16.mxu0 0
        %4394 = vmatpush1.bf16.msra.mxu0 0
        %4395 = vmatprep.subr.bf16.mxu0 0
        %4396 = vmatpush1.bf16.msra.mxu0 0
        %4397 = vmatprep.subr.bf16.mxu0 0
        %4398 = vmatpush1.bf16.msra.mxu0 0
        %4399 = vmatprep.subr.bf16.mxu0 0
        %4400 = vmatpush1.bf16.msra.mxu0 0
        %4401 = vmatprep.subr.bf16.mxu0 0
        %4402 = vmatpush1.bf16.msra.mxu0 0
        %4403 = vmatprep.subr.bf16.mxu0 0
        %4404 = vmatpush1.bf16.msra.mxu0 0
        %4405 = vmatprep.subr.bf16.mxu0 0
        %4406 = vmatpush1.bf16.msra.mxu0 0
        %4407 = vmatprep.subr.bf16.mxu0 0
        %4408 = vmatpush1.bf16.msra.mxu0 0
        %4409 = vmatprep.subr.bf16.mxu0 0
        %4410 = vmatpush1.bf16.msra.mxu0 0
        %4411 = vmatprep.subr.bf16.mxu0 0
        %4412 = vmatpush1.bf16.msra.mxu0 0
        %4413 = vmatprep.subr.bf16.mxu0 0
        %4414 = vmatpush1.bf16.msra.mxu0 0
        %4415 = vmatprep.subr.bf16.mxu0 0
        %4416 = vmatpush1.bf16.msra.mxu0 0
        %4417 = vmatprep.subr.bf16.mxu0 0
        %4418 = vmatpush1.bf16.msra.mxu0 0
        %4419 = vmatprep.subr.bf16.mxu0 0
        %4420 = vmatpush1.bf16.msra.mxu0 0
        %4421 = vmatprep.mubr.bf16.mxu0 0
        %4422 = vmatmul.mubr.bf16.gmra.mrb[0].mxu0 %v4387
        %v4423 = vpop.f32.mrb[0].mxu0
        %v4424 = vadd.f32 0.0, %v4423
        %v4425 = vpop.f32.mrb[0].mxu0
        %v4426 = vpop.f32.mrb[0].mxu0
        %v4427 = vpop.f32.mrb[0].mxu0
        %4428 = vdwg.mxu0
        %v4429 = vsel %vm1457, %v4375, 0.0
        %v4430 = vsel %vm1457, %v4424, 0.0
        %v4431 = vadd.f32 %v4429, %v4430
        %s4432 = scalar_lea.vmem [#allocation7], 20
        %v4433 = vld [vmem:[%s4432] sm:$0x7]
        %s4434 = scalar_lea.vmem [#allocation8], 20
        %v4435 = vld [vmem:[%s4434] sm:$0x7]
        %v4436 = vsel %vm1457, %v3864, 0.0
        %4437 = vadd.xlane.f32.xlu0 %v4436
        %v4438 = vpop.xlane.xlu0 %4437
        %v4439 = vmul.f32 %v4438, %v1461
        %v4440 = vsub.f32 %v3864, %v4439
        %v4441 = vmul.f32 %v4440, %v4440
        %v4442 = vsel %vm1457, %v4441, 0.0
        %4443 = vadd.xlane.f32.xlu0 %v4442
        %v4444 = vpop.xlane.xlu0 %4443
        %v4445 = vmul.f32 %v4444, %v1461
        %v4446 = vadd.f32 %v4445, 1e-05
        %v4447 = vrsqrt.pop %v4446
        %v4448 = vmul.f32 %v4440, %v4447
        %v4449 = vlaneseq
        %v4450 = vshrl.u32 %v4449, 7
        %v4451 = vsub.s32 0, %v4450
        %v4452 = vrot.slane %v4433, %v4451
        %v4453 = vmul.f32 %v4448, %v4452
        %v4454 = vlaneseq
        %v4455 = vshrl.u32 %v4454, 7
        %v4456 = vsub.s32 0, %v4455
        %v4457 = vrot.slane %v4435, %v4456
        %v4458 = vadd.f32 %v4453, %v4457
        %v4459 = vpack.c.bf16 %v4458, %v4458
        %v4460 = vlaneseq
        %v4461 = vshrl.u32 %v4460, 7
        %v4462 = vsub.s32 1, %v4461
        %v4463 = vrot.slane %v4433, %v4462
        %v4464 = vmul.f32 %v4448, %v4463
        %v4465 = vlaneseq
        %v4466 = vshrl.u32 %v4465, 7
        %v4467 = vsub.s32 1, %v4466
        %v4468 = vrot.slane %v4435, %v4467
        %v4469 = vadd.f32 %v4464, %v4468
        %v4470 = vpack.c.bf16 %v4469, %v4469
        %v4471 = vlaneseq
        %v4472 = vshrl.u32 %v4471, 7
        %v4473 = vsub.s32 2, %v4472
        %v4474 = vrot.slane %v4433, %v4473
        %v4475 = vmul.f32 %v4448, %v4474
        %v4476 = vlaneseq
        %v4477 = vshrl.u32 %v4476, 7
        %v4478 = vsub.s32 2, %v4477
        %v4479 = vrot.slane %v4435, %v4478
        %v4480 = vadd.f32 %v4475, %v4479
        %v4481 = vpack.c.bf16 %v4480, %v4480
        %s4482 = scalar_lea.vmem %s25, 80
        %v4483 = vld [vmem:[%s4482] sm:$0xf]
        %v4484 = vld [vmem:[%s4482 + $0x4] sm:$0xf]
        %v4485 = vld [vmem:[%s4482 + $0x8] sm:$0xf]
        %v4486 = vld [vmem:[%s4482 + $0xc] sm:$0xf]
        %v4491 = vunpack.c.l.b16 %v4483
        %v4492 = vunpack.c.l.b16 %v4484
        %v4493 = vunpack.c.l.b16 %v4485
        %v4494 = vunpack.c.l.b16 %v4486
        %v4495 = vpack.c.b16 %v4492, %v4491
        %v4496 = vpack.c.b16 %v4494, %v4493
        %v4500 = vsel %vm1457, %v4459, 0
        %4502 = vmatprep.subr.bf16.mxu0 0
        %4503 = vmatpush1.bf16.msra.mxu0 %v4495
        %4504 = vmatprep.subr.bf16.mxu0 0
        %4505 = vmatpush1.bf16.msra.mxu0 %v4496
        %4506 = vmatprep.subr.bf16.mxu0 0
        %4507 = vmatpush1.bf16.msra.mxu0 0
        %4508 = vmatprep.subr.bf16.mxu0 0
        %4509 = vmatpush1.bf16.msra.mxu0 0
        %4510 = vmatprep.subr.bf16.mxu0 0
        %4511 = vmatpush1.bf16.msra.mxu0 0
        %4512 = vmatprep.subr.bf16.mxu0 0
        %4513 = vmatpush1.bf16.msra.mxu0 0
        %4514 = vmatprep.subr.bf16.mxu0 0
        %4515 = vmatpush1.bf16.msra.mxu0 0
        %4516 = vmatprep.subr.bf16.mxu0 0
        %4517 = vmatpush1.bf16.msra.mxu0 0
        %4518 = vmatprep.subr.bf16.mxu0 0
        %4519 = vmatpush1.bf16.msra.mxu0 0
        %4520 = vmatprep.subr.bf16.mxu0 0
        %4521 = vmatpush1.bf16.msra.mxu0 0
        %4522 = vmatprep.subr.bf16.mxu0 0
        %4523 = vmatpush1.bf16.msra.mxu0 0
        %4524 = vmatprep.subr.bf16.mxu0 0
        %4525 = vmatpush1.bf16.msra.mxu0 0
        %4526 = vmatprep.subr.bf16.mxu0 0
        %4527 = vmatpush1.bf16.msra.mxu0 0
        %4528 = vmatprep.subr.bf16.mxu0 0
        %4529 = vmatpush1.bf16.msra.mxu0 0
        %4530 = vmatprep.subr.bf16.mxu0 0
        %4531 = vmatpush1.bf16.msra.mxu0 0
        %4532 = vmatprep.subr.bf16.mxu0 0
        %4533 = vmatpush1.bf16.msra.mxu0 0
        %4534 = vmatprep.mubr.bf16.mxu0 0
        %4535 = vmatmul.mubr.bf16.gmra.mrb[0].mxu0 %v4500
        %v4536 = vpop.f32.mrb[0].mxu0
        %v4537 = vadd.f32 0.0, %v4536
        %v4538 = vpop.f32.mrb[0].mxu0
        %v4539 = vpop.f32.mrb[0].mxu0
        %v4540 = vpop.f32.mrb[0].mxu0
        %4541 = vdwg.mxu0
        %v4542 = vmul.f32 %v4537, 0.25
        %v4543 = vpack.c.bf16 %v4542, %v4542
        %s4544 = scalar_lea.vmem [#allocation10], 80
        %v4545 = vld [vmem:[%s4544] sm:$0xf]
        %v4546 = vld [vmem:[%s4544 + $0x4] sm:$0xf]
        %v4547 = vld [vmem:[%s4544 + $0x8] sm:$0xf]
        %v4548 = vld [vmem:[%s4544 + $0xc] sm:$0xf]
        %v4553 = vunpack.c.l.b16 %v4545
        %v4554 = vunpack.c.l.b16 %v4546
        %v4555 = vunpack.c.l.b16 %v4547
        %v4556 = vunpack.c.l.b16 %v4548
        %v4557 = vpack.c.b16 %v4554, %v4553
        %v4558 = vpack.c.b16 %v4556, %v4555
        %v4562 = vsel %vm1457, %v4470, 0
        %4564 = vmatprep.subr.bf16.mxu0 0
        %4565 = vmatpush1.bf16.msra.mxu0 %v4557
        %4566 = vmatprep.subr.bf16.mxu0 0
        %4567 = vmatpush1.bf16.msra.mxu0 %v4558
        %4568 = vmatprep.subr.bf16.mxu0 0
        %4569 = vmatpush1.bf16.msra.mxu0 0
        %4570 = vmatprep.subr.bf16.mxu0 0
        %4571 = vmatpush1.bf16.msra.mxu0 0
        %4572 = vmatprep.subr.bf16.mxu0 0
        %4573 = vmatpush1.bf16.msra.mxu0 0
        %4574 = vmatprep.subr.bf16.mxu0 0
        %4575 = vmatpush1.bf16.msra.mxu0 0
        %4576 = vmatprep.subr.bf16.mxu0 0
        %4577 = vmatpush1.bf16.msra.mxu0 0
        %4578 = vmatprep.subr.bf16.mxu0 0
        %4579 = vmatpush1.bf16.msra.mxu0 0
        %4580 = vmatprep.subr.bf16.mxu0 0
        %4581 = vmatpush1.bf16.msra.mxu0 0
        %4582 = vmatprep.subr.bf16.mxu0 0
        %4583 = vmatpush1.bf16.msra.mxu0 0
        %4584 = vmatprep.subr.bf16.mxu0 0
        %4585 = vmatpush1.bf16.msra.mxu0 0
        %4586 = vmatprep.subr.bf16.mxu0 0
        %4587 = vmatpush1.bf16.msra.mxu0 0
        %4588 = vmatprep.subr.bf16.mxu0 0
        %4589 = vmatpush1.bf16.msra.mxu0 0
        %4590 = vmatprep.subr.bf16.mxu0 0
        %4591 = vmatpush1.bf16.msra.mxu0 0
        %4592 = vmatprep.subr.bf16.mxu0 0
        %4593 = vmatpush1.bf16.msra.mxu0 0
        %4594 = vmatprep.subr.bf16.mxu0 0
        %4595 = vmatpush1.bf16.msra.mxu0 0
        %4596 = vmatprep.mubr.bf16.mxu0 0
        %4597 = vmatmul.mubr.bf16.gmra.mrb[0].mxu0 %v4562
        %v4598 = vpop.f32.mrb[0].mxu0
        %v4599 = vadd.f32 0.0, %v4598
        %v4600 = vpop.f32.mrb[0].mxu0
        %v4601 = vpop.f32.mrb[0].mxu0
        %v4602 = vpop.f32.mrb[0].mxu0
        %4603 = vdwg.mxu0
        %v4604 = vpack.c.bf16 %v4599, %v4599
        %s4605 = scalar_lea.vmem [#allocation11], 80
        %v4606 = vld [vmem:[%s4605] sm:$0xf]
        %v4607 = vld [vmem:[%s4605 + $0x4] sm:$0xf]
        %v4608 = vld [vmem:[%s4605 + $0x8] sm:$0xf]
        %v4609 = vld [vmem:[%s4605 + $0xc] sm:$0xf]
        %v4614 = vunpack.c.l.b16 %v4606
        %v4615 = vunpack.c.l.b16 %v4607
        %v4616 = vunpack.c.l.b16 %v4608
        %v4617 = vunpack.c.l.b16 %v4609
        %v4618 = vpack.c.b16 %v4615, %v4614
        %v4619 = vpack.c.b16 %v4617, %v4616
        %v4623 = vsel %vm1457, %v4481, 0
        %4625 = vmatprep.subr.bf16.mxu0 0
        %4626 = vmatpush1.bf16.msra.mxu0 %v4618
        %4627 = vmatprep.subr.bf16.mxu0 0
        %4628 = vmatpush1.bf16.msra.mxu0 %v4619
        %4629 = vmatprep.subr.bf16.mxu0 0
        %4630 = vmatpush1.bf16.msra.mxu0 0
        %4631 = vmatprep.subr.bf16.mxu0 0
        %4632 = vmatpush1.bf16.msra.mxu0 0
        %4633 = vmatprep.subr.bf16.mxu0 0
        %4634 = vmatpush1.bf16.msra.mxu0 0
        %4635 = vmatprep.subr.bf16.mxu0 0
        %4636 = vmatpush1.bf16.msra.mxu0 0
        %4637 = vmatprep.subr.bf16.mxu0 0
        %4638 = vmatpush1.bf16.msra.mxu0 0
        %4639 = vmatprep.subr.bf16.mxu0 0
        %4640 = vmatpush1.bf16.msra.mxu0 0
        %4641 = vmatprep.subr.bf16.mxu0 0
        %4642 = vmatpush1.bf16.msra.mxu0 0
        %4643 = vmatprep.subr.bf16.mxu0 0
        %4644 = vmatpush1.bf16.msra.mxu0 0
        %4645 = vmatprep.subr.bf16.mxu0 0
        %4646 = vmatpush1.bf16.msra.mxu0 0
        %4647 = vmatprep.subr.bf16.mxu0 0
        %4648 = vmatpush1.bf16.msra.mxu0 0
        %4649 = vmatprep.subr.bf16.mxu0 0
        %4650 = vmatpush1.bf16.msra.mxu0 0
        %4651 = vmatprep.subr.bf16.mxu0 0
        %4652 = vmatpush1.bf16.msra.mxu0 0
        %4653 = vmatprep.subr.bf16.mxu0 0
        %4654 = vmatpush1.bf16.msra.mxu0 0
        %4655 = vmatprep.subr.bf16.mxu0 0
        %4656 = vmatpush1.bf16.msra.mxu0 0
        %4657 = vmatprep.mubr.bf16.mxu0 0
        %4658 = vmatmul.mubr.bf16.gmra.mrb[0].mxu0 %v4623
        %v4659 = vpop.f32.mrb[0].mxu0
        %v4660 = vadd.f32 0.0, %v4659
        %v4661 = vpop.f32.mrb[0].mxu0
        %v4662 = vpop.f32.mrb[0].mxu0
        %v4663 = vpop.f32.mrb[0].mxu0
        %4664 = vdwg.mxu0
        %v4665 = vpack.c.bf16 %v4660, %v4660
        %4667 = vrot.lane.b32.xlu0 %v4543, 112
        %v4668 = vpop.permute.xlu0 %4667
        %4670 = vrot.lane.b32.xlu0 %v4604, 112
        %v4671 = vpop.permute.xlu0 %4670
        %4673 = vrot.lane.b32.xlu0 %v4665, 112
        %v4674 = vpop.permute.xlu0 %4673
        %v4676 = vsel %vm1708, %v4543, 0
        %v4679 = vsel %vm1708, %v4604, 0
        %4681 = vmatprep.subr.bf16.mxu0 0
        %4682 = vmatpush1.bf16.xpose.msra.mxu0 %v4679
        %4683 = vmatprep.subr.bf16.mxu0 0
        %4684 = vmatpush1.bf16.xpose.msra.mxu0 0
        %4685 = vmatprep.subr.bf16.mxu0 0
        %4686 = vmatpush1.bf16.xpose.msra.mxu0 0
        %4687 = vmatprep.subr.bf16.mxu0 0
        %4688 = vmatpush1.bf16.xpose.msra.mxu0 0
        %4689 = vmatprep.subr.bf16.mxu0 0
        %4690 = vmatpush1.bf16.xpose.msra.mxu0 0
        %4691 = vmatprep.subr.bf16.mxu0 0
        %4692 = vmatpush1.bf16.xpose.msra.mxu0 0
        %4693 = vmatprep.subr.bf16.mxu0 0
        %4694 = vmatpush1.bf16.xpose.msra.mxu0 0
        %4695 = vmatprep.subr.bf16.mxu0 0
        %4696 = vmatpush1.bf16.xpose.msra.mxu0 0
        %4697 = vmatprep.subr.bf16.mxu0 0
        %4698 = vmatpush1.bf16.xpose.msra.mxu0 0
        %4699 = vmatprep.subr.bf16.mxu0 0
        %4700 = vmatpush1.bf16.xpose.msra.mxu0 0
        %4701 = vmatprep.subr.bf16.mxu0 0
        %4702 = vmatpush1.bf16.xpose.msra.mxu0 0
        %4703 = vmatprep.subr.bf16.mxu0 0
        %4704 = vmatpush1.bf16.xpose.msra.mxu0 0
        %4705 = vmatprep.subr.bf16.mxu0 0
        %4706 = vmatpush1.bf16.xpose.msra.mxu0 0
        %4707 = vmatprep.subr.bf16.mxu0 0
        %4708 = vmatpush1.bf16.xpose.msra.mxu0 0
        %4709 = vmatprep.subr.bf16.mxu0 0
        %4710 = vmatpush1.bf16.xpose.msra.mxu0 0
        %4711 = vmatprep.subr.bf16.mxu0 0
        %4712 = vmatpush1.bf16.xpose.msra.mxu0 0
        %4713 = vmatprep.mubr.bf16.mxu0 0
        %4714 = vmatmul.mubr.bf16.gmra.mrb[0].mxu0 %v4676
        %v4715 = vpop.f32.mrb[0].mxu0
        %v4716 = vadd.f32 0.0, %v4715
        %v4717 = vpop.f32.mrb[0].mxu0
        %v4718 = vpop.f32.mrb[0].mxu0
        %v4719 = vpop.f32.mrb[0].mxu0
        %4720 = vdwg.mxu0
        %v4722 = vsel %vm1708, %v4668, 0
        %v4725 = vsel %vm1708, %v4671, 0
        %4727 = vmatprep.subr.bf16.mxu0 0
        %4728 = vmatpush1.bf16.xpose.msra.mxu0 %v4725
        %4729 = vmatprep.subr.bf16.mxu0 0
        %4730 = vmatpush1.bf16.xpose.msra.mxu0 0
        %4731 = vmatprep.subr.bf16.mxu0 0
        %4732 = vmatpush1.bf16.xpose.msra.mxu0 0
        %4733 = vmatprep.subr.bf16.mxu0 0
        %4734 = vmatpush1.bf16.xpose.msra.mxu0 0
        %4735 = vmatprep.subr.bf16.mxu0 0
        %4736 = vmatpush1.bf16.xpose.msra.mxu0 0
        %4737 = vmatprep.subr.bf16.mxu0 0
        %4738 = vmatpush1.bf16.xpose.msra.mxu0 0
        %4739 = vmatprep.subr.bf16.mxu0 0
        %4740 = vmatpush1.bf16.xpose.msra.mxu0 0
        %4741 = vmatprep.subr.bf16.mxu0 0
        %4742 = vmatpush1.bf16.xpose.msra.mxu0 0
        %4743 = vmatprep.subr.bf16.mxu0 0
        %4744 = vmatpush1.bf16.xpose.msra.mxu0 0
        %4745 = vmatprep.subr.bf16.mxu0 0
        %4746 = vmatpush1.bf16.xpose.msra.mxu0 0
        %4747 = vmatprep.subr.bf16.mxu0 0
        %4748 = vmatpush1.bf16.xpose.msra.mxu0 0
        %4749 = vmatprep.subr.bf16.mxu0 0
        %4750 = vmatpush1.bf16.xpose.msra.mxu0 0
        %4751 = vmatprep.subr.bf16.mxu0 0
        %4752 = vmatpush1.bf16.xpose.msra.mxu0 0
        %4753 = vmatprep.subr.bf16.mxu0 0
        %4754 = vmatpush1.bf16.xpose.msra.mxu0 0
        %4755 = vmatprep.subr.bf16.mxu0 0
        %4756 = vmatpush1.bf16.xpose.msra.mxu0 0
        %4757 = vmatprep.subr.bf16.mxu0 0
        %4758 = vmatpush1.bf16.xpose.msra.mxu0 0
        %4759 = vmatprep.mubr.bf16.mxu0 0
        %4760 = vmatmul.mubr.bf16.gmra.mrb[0].mxu0 %v4722
        %v4761 = vpop.f32.mrb[0].mxu0
        %v4762 = vadd.f32 0.0, %v4761
        %v4763 = vpop.f32.mrb[0].mxu0
        %v4764 = vpop.f32.mrb[0].mxu0
        %v4765 = vpop.f32.mrb[0].mxu0
        %4766 = vdwg.mxu0
        %v4767 = vmul.f32 %v4716, %v1440
        %v4768 = vmul.f32 %v4762, %v1440
        %v4769 = vsel %vm1803, %v4767, -inf
        %4770 = vmax.xlane.f32.xlu0 %v4769
        %v4771 = vpop.xlane.xlu0 %4770
        %v4772 = vsel %vm1803, %v4768, -inf
        %4773 = vmax.xlane.f32.xlu0 %v4772
        %v4774 = vpop.xlane.xlu0 %4773
        %v4775 = vsub.f32 %v4767, %v4771
        %v4776 = vsub.f32 %v4768, %v4774
        %v4777 = vmul.f32 %v4775, 1.442695
        %v4778 = vpow.pop %v4777
        %v4779 = vmul.f32 %v4776, 1.442695
        %v4780 = vpow.pop %v4779
        %v4781 = vmul.f32 %v4778, %v1440
        %v4782 = vmul.f32 %v4780, %v1440
        %v4783 = vsel %vm1803, %v4781, 0.0
        %4784 = vadd.xlane.f32.xlu0 %v4783
        %v4785 = vpop.xlane.xlu0 %4784
        %v4786 = vsel %vm1803, %v4782, 0.0
        %4787 = vadd.xlane.f32.xlu0 %v4786
        %v4788 = vpop.xlane.xlu0 %4787
        %v4789 = vadd.f32 %v4785, 1e-13
        %v4790 = vadd.f32 %v4788, 1e-13
        %v4791 = vrcp.pop %v4789
        %v4792 = vrcp.pop %v4790
        %v4793 = vmul.f32 %v4781, %v4791
        %v4794 = vmul.f32 %v4782, %v4792
        %4795 = vst.msk [vmem:[%s1366] sm:$0xff] %vm1803, %v4793
        %4796 = vst.msk [vmem:[%s1366 + $0x8] sm:$0xff] %vm1803, %v4794
        %v4797 = vpack.c.bf16 %v4793, %v4793
        %v4798 = vpack.c.bf16 %v4794, %v4794
        %v4800 = vsel %vm1803, %v4797, 0
        %v4803 = vsel %vm1837, %v4665, 0
        %4805 = vmatprep.subr.bf16.mxu0 0
        %4806 = vmatpush1.bf16.msra.mxu0 %v4803
        %4807 = vmatprep.subr.bf16.mxu0 0
        %4808 = vmatpush1.bf16.msra.mxu0 0
        %4809 = vmatprep.subr.bf16.mxu0 0
        %4810 = vmatpush1.bf16.msra.mxu0 0
        %4811 = vmatprep.subr.bf16.mxu0 0
        %4812 = vmatpush1.bf16.msra.mxu0 0
        %4813 = vmatprep.subr.bf16.mxu0 0
        %4814 = vmatpush1.bf16.msra.mxu0 0
        %4815 = vmatprep.subr.bf16.mxu0 0
        %4816 = vmatpush1.bf16.msra.mxu0 0
        %4817 = vmatprep.subr.bf16.mxu0 0
        %4818 = vmatpush1.bf16.msra.mxu0 0
        %4819 = vmatprep.subr.bf16.mxu0 0
        %4820 = vmatpush1.bf16.msra.mxu0 0
        %4821 = vmatprep.subr.bf16.mxu0 0
        %4822 = vmatpush1.bf16.msra.mxu0 0
        %4823 = vmatprep.subr.bf16.mxu0 0
        %4824 = vmatpush1.bf16.msra.mxu0 0
        %4825 = vmatprep.subr.bf16.mxu0 0
        %4826 = vmatpush1.bf16.msra.mxu0 0
        %4827 = vmatprep.subr.bf16.mxu0 0
        %4828 = vmatpush1.bf16.msra.mxu0 0
        %4829 = vmatprep.subr.bf16.mxu0 0
        %4830 = vmatpush1.bf16.msra.mxu0 0
        %4831 = vmatprep.subr.bf16.mxu0 0
        %4832 = vmatpush1.bf16.msra.mxu0 0
        %4833 = vmatprep.subr.bf16.mxu0 0
        %4834 = vmatpush1.bf16.msra.mxu0 0
        %4835 = vmatprep.subr.bf16.mxu0 0
        %4836 = vmatpush1.bf16.msra.mxu0 0
        %4837 = vmatprep.mubr.bf16.mxu0 0
        %4838 = vmatmul.mubr.bf16.gmra.mrb[0].mxu0 %v4800
        %v4839 = vpop.f32.mrb[0].mxu0
        %v4840 = vadd.f32 0.0, %v4839
        %v4841 = vpop.f32.mrb[0].mxu0
        %v4842 = vpop.f32.mrb[0].mxu0
        %v4843 = vpop.f32.mrb[0].mxu0
        %4844 = vdwg.mxu0
        %v4846 = vsel %vm1803, %v4798, 0
        %v4849 = vsel %vm1837, %v4674, 0
        %4851 = vmatprep.subr.bf16.mxu0 0
        %4852 = vmatpush1.bf16.msra.mxu0 %v4849
        %4853 = vmatprep.subr.bf16.mxu0 0
        %4854 = vmatpush1.bf16.msra.mxu0 0
        %4855 = vmatprep.subr.bf16.mxu0 0
        %4856 = vmatpush1.bf16.msra.mxu0 0
        %4857 = vmatprep.subr.bf16.mxu0 0
        %4858 = vmatpush1.bf16.msra.mxu0 0
        %4859 = vmatprep.subr.bf16.mxu0 0
        %4860 = vmatpush1.bf16.msra.mxu0 0
        %4861 = vmatprep.subr.bf16.mxu0 0
        %4862 = vmatpush1.bf16.msra.mxu0 0
        %4863 = vmatprep.subr.bf16.mxu0 0
        %4864 = vmatpush1.bf16.msra.mxu0 0
        %4865 = vmatprep.subr.bf16.mxu0 0
        %4866 = vmatpush1.bf16.msra.mxu0 0
        %4867 = vmatprep.subr.bf16.mxu0 0
        %4868 = vmatpush1.bf16.msra.mxu0 0
        %4869 = vmatprep.subr.bf16.mxu0 0
        %4870 = vmatpush1.bf16.msra.mxu0 0
        %4871 = vmatprep.subr.bf16.mxu0 0
        %4872 = vmatpush1.bf16.msra.mxu0 0
        %4873 = vmatprep.subr.bf16.mxu0 0
        %4874 = vmatpush1.bf16.msra.mxu0 0
        %4875 = vmatprep.subr.bf16.mxu0 0
        %4876 = vmatpush1.bf16.msra.mxu0 0
        %4877 = vmatprep.subr.bf16.mxu0 0
        %4878 = vmatpush1.bf16.msra.mxu0 0
        %4879 = vmatprep.subr.bf16.mxu0 0
        %4880 = vmatpush1.bf16.msra.mxu0 0
        %4881 = vmatprep.subr.bf16.mxu0 0
        %4882 = vmatpush1.bf16.msra.mxu0 0
        %4883 = vmatprep.mubr.bf16.mxu0 0
        %4884 = vmatmul.mubr.bf16.gmra.mrb[0].mxu0 %v4846
        %v4885 = vpop.f32.mrb[0].mxu0
        %v4886 = vadd.f32 0.0, %v4885
        %v4887 = vpop.f32.mrb[0].mxu0
        %v4888 = vpop.f32.mrb[0].mxu0
        %v4889 = vpop.f32.mrb[0].mxu0
        %4890 = vdwg.mxu0
        %v4891 = vpack.c.bf16 %v4840, %v4840
        %v4892 = vpack.c.bf16 %v4886, %v4886
        %s4893 = scalar_lea.vmem [#allocation13], 80
        %v4894 = vld [vmem:[%s4893] sm:$0xf]
        %v4895 = vld [vmem:[%s4893 + $0x4] sm:$0xf]
        %v4896 = vld [vmem:[%s4893 + $0x8] sm:$0xf]
        %v4897 = vld [vmem:[%s4893 + $0xc] sm:$0xf]
        %v4900 = vunpack.c.l.b16 %v4894
        %v4901 = vunpack.c.l.b16 %v4895
        %v4902 = vpack.c.b16 %v4901, %v4900
        %v4905 = vsel %vm1708, %v4891, 0
        %4907 = vmatprep.subr.bf16.mxu0 0
        %4908 = vmatpush1.bf16.msra.mxu0 %v4902
        %4909 = vmatprep.subr.bf16.mxu0 0
        %4910 = vmatpush1.bf16.msra.mxu0 0
        %4911 = vmatprep.subr.bf16.mxu0 0
        %4912 = vmatpush1.bf16.msra.mxu0 0
        %4913 = vmatprep.subr.bf16.mxu0 0
        %4914 = vmatpush1.bf16.msra.mxu0 0
        %4915 = vmatprep.subr.bf16.mxu0 0
        %4916 = vmatpush1.bf16.msra.mxu0 0
        %4917 = vmatprep.subr.bf16.mxu0 0
        %4918 = vmatpush1.bf16.msra.mxu0 0
        %4919 = vmatprep.subr.bf16.mxu0 0
        %4920 = vmatpush1.bf16.msra.mxu0 0
        %4921 = vmatprep.subr.bf16.mxu0 0
        %4922 = vmatpush1.bf16.msra.mxu0 0
        %4923 = vmatprep.subr.bf16.mxu0 0
        %4924 = vmatpush1.bf16.msra.mxu0 0
        %4925 = vmatprep.subr.bf16.mxu0 0
        %4926 = vmatpush1.bf16.msra.mxu0 0
        %4927 = vmatprep.subr.bf16.mxu0 0
        %4928 = vmatpush1.bf16.msra.mxu0 0
        %4929 = vmatprep.subr.bf16.mxu0 0
        %4930 = vmatpush1.bf16.msra.mxu0 0
        %4931 = vmatprep.subr.bf16.mxu0 0
        %4932 = vmatpush1.bf16.msra.mxu0 0
        %4933 = vmatprep.subr.bf16.mxu0 0
        %4934 = vmatpush1.bf16.msra.mxu0 0
        %4935 = vmatprep.subr.bf16.mxu0 0
        %4936 = vmatpush1.bf16.msra.mxu0 0
        %4937 = vmatprep.subr.bf16.mxu0 0
        %4938 = vmatpush1.bf16.msra.mxu0 0
        %4939 = vmatprep.mubr.bf16.mxu0 0
        %4940 = vmatmul.mubr.bf16.gmra.mrb[0].mxu0 %v4905
        %v4941 = vpop.f32.mrb[0].mxu0
        %v4942 = vadd.f32 0.0, %v4941
        %v4943 = vpop.f32.mrb[0].mxu0
        %v4944 = vpop.f32.mrb[0].mxu0
        %v4945 = vpop.f32.mrb[0].mxu0
        %4946 = vdwg.mxu0
        %v4949 = vunpack.c.l.b16 %v4896
        %v4950 = vunpack.c.l.b16 %v4897
        %v4951 = vpack.c.b16 %v4950, %v4949
        %v4954 = vsel %vm1708, %v4892, 0
        %4956 = vmatprep.subr.bf16.mxu0 0
        %4957 = vmatpush1.bf16.msra.mxu0 %v4951
        %4958 = vmatprep.subr.bf16.mxu0 0
        %4959 = vmatpush1.bf16.msra.mxu0 0
        %4960 = vmatprep.subr.bf16.mxu0 0
        %4961 = vmatpush1.bf16.msra.mxu0 0
        %4962 = vmatprep.subr.bf16.mxu0 0
        %4963 = vmatpush1.bf16.msra.mxu0 0
        %4964 = vmatprep.subr.bf16.mxu0 0
        %4965 = vmatpush1.bf16.msra.mxu0 0
        %4966 = vmatprep.subr.bf16.mxu0 0
        %4967 = vmatpush1.bf16.msra.mxu0 0
        %4968 = vmatprep.subr.bf16.mxu0 0
        %4969 = vmatpush1.bf16.msra.mxu0 0
        %4970 = vmatprep.subr.bf16.mxu0 0
        %4971 = vmatpush1.bf16.msra.mxu0 0
        %4972 = vmatprep.subr.bf16.mxu0 0
        %4973 = vmatpush1.bf16.msra.mxu0 0
        %4974 = vmatprep.subr.bf16.mxu0 0
        %4975 = vmatpush1.bf16.msra.mxu0 0
        %4976 = vmatprep.subr.bf16.mxu0 0
        %4977 = vmatpush1.bf16.msra.mxu0 0
        %4978 = vmatprep.subr.bf16.mxu0 0
        %4979 = vmatpush1.bf16.msra.mxu0 0
        %4980 = vmatprep.subr.bf16.mxu0 0
        %4981 = vmatpush1.bf16.msra.mxu0 0
        %4982 = vmatprep.subr.bf16.mxu0 0
        %4983 = vmatpush1.bf16.msra.mxu0 0
        %4984 = vmatprep.subr.bf16.mxu0 0
        %4985 = vmatpush1.bf16.msra.mxu0 0
        %4986 = vmatprep.subr.bf16.mxu0 0
        %4987 = vmatpush1.bf16.msra.mxu0 0
        %4988 = vmatprep.mubr.bf16.mxu0 0
        %4989 = vmatmul.mubr.bf16.gmra.mrb[0].mxu0 %v4954
        %v4990 = vpop.f32.mrb[0].mxu0
        %v4991 = vadd.f32 0.0, %v4990
        %v4992 = vpop.f32.mrb[0].mxu0
        %v4993 = vpop.f32.mrb[0].mxu0
        %v4994 = vpop.f32.mrb[0].mxu0
        %4995 = vdwg.mxu0
        %v4996 = vsel %vm1457, %v4942, 0.0
        %v4997 = vsel %vm1457, %v4991, 0.0
        %v4998 = vadd.f32 %v4996, %v4997
        %5000 = vset.pattern.permute.xlu0 0
        %5001 = vperm.xlu0 %5000, %v1418
        %v5002 = vpop.permute.xlu0 %5001
        %v5004 = vmul.f32 %v4431, %v5002
        %v5005 = vpack.c.bf16 %v5004, %v5004
        %v5006 = vld [vmem:[%s35] sm:$0xf]
        %v5007 = vld [vmem:[%s35 + $0x4] sm:$0xf]
        %v5008 = vld [vmem:[%s35 + $0x8] sm:$0xf]
        %v5009 = vld [vmem:[%s35 + $0xc] sm:$0xf]
        %v5010 = vld [vmem:[#allocation16] sm:$0x1]
        %v5012 = vlaneseq
        %v5013 = vshrl.u32 %v5012, 7
        %v5014 = vsub.s32 0, %v5013
        %v5015 = vrot.slane %v5010, %v5014
        %v5021 = vunpack.c.l.b16 %v5006
        %v5022 = vunpack.c.l.b16 %v5007
        %v5023 = vunpack.c.l.b16 %v5008
        %v5024 = vunpack.c.l.b16 %v5009
        %v5025 = vpack.c.b16 %v5022, %v5021
        %v5026 = vpack.c.b16 %v5024, %v5023
        %v5030 = vsel %vm1457, %v5005, 0
        %5032 = vmatprep.subr.bf16.mxu0 0
        %5033 = vmatpush1.bf16.msra.mxu0 %v5025
        %5034 = vmatprep.subr.bf16.mxu0 0
        %5035 = vmatpush1.bf16.msra.mxu0 %v5026
        %5036 = vmatprep.subr.bf16.mxu0 0
        %5037 = vmatpush1.bf16.msra.mxu0 0
        %5038 = vmatprep.subr.bf16.mxu0 0
        %5039 = vmatpush1.bf16.msra.mxu0 0
        %5040 = vmatprep.subr.bf16.mxu0 0
        %5041 = vmatpush1.bf16.msra.mxu0 0
        %5042 = vmatprep.subr.bf16.mxu0 0
        %5043 = vmatpush1.bf16.msra.mxu0 0
        %5044 = vmatprep.subr.bf16.mxu0 0
        %5045 = vmatpush1.bf16.msra.mxu0 0
        %5046 = vmatprep.subr.bf16.mxu0 0
        %5047 = vmatpush1.bf16.msra.mxu0 0
        %5048 = vmatprep.subr.bf16.mxu0 0
        %5049 = vmatpush1.bf16.msra.mxu0 0
        %5050 = vmatprep.subr.bf16.mxu0 0
        %5051 = vmatpush1.bf16.msra.mxu0 0
        %5052 = vmatprep.subr.bf16.mxu0 0
        %5053 = vmatpush1.bf16.msra.mxu0 0
        %5054 = vmatprep.subr.bf16.mxu0 0
        %5055 = vmatpush1.bf16.msra.mxu0 0
        %5056 = vmatprep.subr.bf16.mxu0 0
        %5057 = vmatpush1.bf16.msra.mxu0 0
        %5058 = vmatprep.subr.bf16.mxu0 0
        %5059 = vmatpush1.bf16.msra.mxu0 0
        %5060 = vmatprep.subr.bf16.mxu0 0
        %5061 = vmatpush1.bf16.msra.mxu0 0
        %5062 = vmatprep.subr.bf16.mxu0 0
        %5063 = vmatpush1.bf16.msra.mxu0 0
        %5064 = vmatprep.mubr.bf16.mxu0 0
        %5065 = vmatmul.mubr.bf16.gmra.mrb[0].mxu0 %v5030
        %v5066 = vpop.f32.mrb[0].mxu0
        %v5067 = vadd.f32 %v5015, %v5066
        %v5068 = vpop.f32.mrb[0].mxu0
        %v5069 = vpop.f32.mrb[0].mxu0
        %v5070 = vpop.f32.mrb[0].mxu0
        %5071 = vdwg.mxu0
        %v5072 = vtanh.pop %v5067
        %v5073 = vpack.c.bf16 %v5072, %v5072
        %v5074 = vld [vmem:[#allocation17] sm:$0xf]
        %v5075 = vld [vmem:[#allocation17 + $0x4] sm:$0xf]
        %v5076 = vld [vmem:[#allocation17 + $0x8] sm:$0xf]
        %v5077 = vld [vmem:[#allocation17 + $0xc] sm:$0xf]
        %v5078 = vld [vmem:[#allocation19] sm:$0x1]
        %v5080 = vlaneseq
        %v5081 = vshrl.u32 %v5080, 7
        %v5082 = vsub.s32 0, %v5081
        %v5083 = vrot.slane %v5078, %v5082
        %v5089 = vunpack.c.l.b16 %v5074
        %v5090 = vunpack.c.l.b16 %v5075
        %v5091 = vunpack.c.l.b16 %v5076
        %v5092 = vunpack.c.l.b16 %v5077
        %v5093 = vpack.c.b16 %v5090, %v5089
        %v5094 = vpack.c.b16 %v5092, %v5091
        %v5098 = vsel %vm1457, %v5073, 0
        %5100 = vmatprep.subr.bf16.mxu0 0
        %5101 = vmatpush1.bf16.msra.mxu0 %v5093
        %5102 = vmatprep.subr.bf16.mxu0 0
        %5103 = vmatpush1.bf16.msra.mxu0 %v5094
        %5104 = vmatprep.subr.bf16.mxu0 0
        %5105 = vmatpush1.bf16.msra.mxu0 0
        %5106 = vmatprep.subr.bf16.mxu0 0
        %5107 = vmatpush1.bf16.msra.mxu0 0
        %5108 = vmatprep.subr.bf16.mxu0 0
        %5109 = vmatpush1.bf16.msra.mxu0 0
        %5110 = vmatprep.subr.bf16.mxu0 0
        %5111 = vmatpush1.bf16.msra.mxu0 0
        %5112 = vmatprep.subr.bf16.mxu0 0
        %5113 = vmatpush1.bf16.msra.mxu0 0
        %5114 = vmatprep.subr.bf16.mxu0 0
        %5115 = vmatpush1.bf16.msra.mxu0 0
        %5116 = vmatprep.subr.bf16.mxu0 0
        %5117 = vmatpush1.bf16.msra.mxu0 0
        %5118 = vmatprep.subr.bf16.mxu0 0
        %5119 = vmatpush1.bf16.msra.mxu0 0
        %5120 = vmatprep.subr.bf16.mxu0 0
        %5121 = vmatpush1.bf16.msra.mxu0 0
        %5122 = vmatprep.subr.bf16.mxu0 0
        %5123 = vmatpush1.bf16.msra.mxu0 0
        %5124 = vmatprep.subr.bf16.mxu0 0
        %5125 = vmatpush1.bf16.msra.mxu0 0
        %5126 = vmatprep.subr.bf16.mxu0 0
        %5127 = vmatpush1.bf16.msra.mxu0 0
        %5128 = vmatprep.subr.bf16.mxu0 0
        %5129 = vmatpush1.bf16.msra.mxu0 0
        %5130 = vmatprep.subr.bf16.mxu0 0
        %5131 = vmatpush1.bf16.msra.mxu0 0
        %5132 = vmatprep.mubr.bf16.mxu0 0
        %5133 = vmatmul.mubr.bf16.gmra.mrb[0].mxu0 %v5098
        %v5134 = vpop.f32.mrb[0].mxu0
        %v5135 = vadd.f32 %v5083, %v5134
        %v5136 = vpop.f32.mrb[0].mxu0
        %v5137 = vpop.f32.mrb[0].mxu0
        %v5138 = vpop.f32.mrb[0].mxu0
        %5139 = vdwg.mxu0
        %v5140 = vadd.f32 %v5135, %v5004
        %v5141 = vld [vmem:[#allocation20] sm:$0x1]
        %v5142 = vld [vmem:[#allocation22] sm:$0x1]
        %v5143 = vsel %vm1457, %v5140, 0.0
        %5144 = vadd.xlane.f32.xlu0 %v5143
        %v5145 = vpop.xlane.xlu0 %5144
        %v5146 = vmul.f32 %v5145, %v1461
        %v5147 = vsub.f32 %v5140, %v5146
        %v5148 = vmul.f32 %v5147, %v5147
        %v5149 = vsel %vm1457, %v5148, 0.0
        %5150 = vadd.xlane.f32.xlu0 %v5149
        %v5151 = vpop.xlane.xlu0 %5150
        %v5152 = vmul.f32 %v5151, %v1461
        %v5153 = vadd.f32 %v5152, 1e-05
        %v5154 = vrsqrt.pop %v5153
        %v5155 = vmul.f32 %v5147, %v5154
        %v5157 = vlaneseq
        %v5158 = vshrl.u32 %v5157, 7
        %v5159 = vsub.s32 0, %v5158
        %v5160 = vrot.slane %v5141, %v5159
        %v5162 = vmul.f32 %v5155, %v5160
        %v5164 = vlaneseq
        %v5165 = vshrl.u32 %v5164, 7
        %v5166 = vsub.s32 0, %v5165
        %v5167 = vrot.slane %v5142, %v5166
        %v5169 = vadd.f32 %v5162, %v5167
        %v5170 = vmul.f32 %v5169, %v5002
        %5171 = vst.msk [vmem:[%s1317] sm:$0xff] %vm1457, %v5170
        %v5172 = vmul.f32 %v2087, %v5002
        %v5173 = vpack.c.bf16 %v5172, %v5172
        %s5174 = scalar_lea.vmem %s35, 16
        %v5175 = vld [vmem:[%s5174] sm:$0xf]
        %v5176 = vld [vmem:[%s5174 + $0x4] sm:$0xf]
        %v5177 = vld [vmem:[%s5174 + $0x8] sm:$0xf]
        %v5178 = vld [vmem:[%s5174 + $0xc] sm:$0xf]
        %s5179 = scalar_lea.vmem [#allocation16], 1
        %v5180 = vld [vmem:[%s5179] sm:$0x1]
        %v5182 = vlaneseq
        %v5183 = vshrl.u32 %v5182, 7
        %v5184 = vsub.s32 0, %v5183
        %v5185 = vrot.slane %v5180, %v5184
        %v5191 = vunpack.c.l.b16 %v5175
        %v5192 = vunpack.c.l.b16 %v5176
        %v5193 = vunpack.c.l.b16 %v5177
        %v5194 = vunpack.c.l.b16 %v5178
        %v5195 = vpack.c.b16 %v5192, %v5191
        %v5196 = vpack.c.b16 %v5194, %v5193
        %v5200 = vsel %vm1457, %v5173, 0
        %5202 = vmatprep.subr.bf16.mxu0 0
        %5203 = vmatpush1.bf16.msra.mxu0 %v5195
        %5204 = vmatprep.subr.bf16.mxu0 0
        %5205 = vmatpush1.bf16.msra.mxu0 %v5196
        %5206 = vmatprep.subr.bf16.mxu0 0
        %5207 = vmatpush1.bf16.msra.mxu0 0
        %5208 = vmatprep.subr.bf16.mxu0 0
        %5209 = vmatpush1.bf16.msra.mxu0 0
        %5210 = vmatprep.subr.bf16.mxu0 0
        %5211 = vmatpush1.bf16.msra.mxu0 0
        %5212 = vmatprep.subr.bf16.mxu0 0
        %5213 = vmatpush1.bf16.msra.mxu0 0
        %5214 = vmatprep.subr.bf16.mxu0 0
        %5215 = vmatpush1.bf16.msra.mxu0 0
        %5216 = vmatprep.subr.bf16.mxu0 0
        %5217 = vmatpush1.bf16.msra.mxu0 0
        %5218 = vmatprep.subr.bf16.mxu0 0
        %5219 = vmatpush1.bf16.msra.mxu0 0
        %5220 = vmatprep.subr.bf16.mxu0 0
        %5221 = vmatpush1.bf16.msra.mxu0 0
        %5222 = vmatprep.subr.bf16.mxu0 0
        %5223 = vmatpush1.bf16.msra.mxu0 0
        %5224 = vmatprep.subr.bf16.mxu0 0
        %5225 = vmatpush1.bf16.msra.mxu0 0
        %5226 = vmatprep.subr.bf16.mxu0 0
        %5227 = vmatpush1.bf16.msra.mxu0 0
        %5228 = vmatprep.subr.bf16.mxu0 0
        %5229 = vmatpush1.bf16.msra.mxu0 0
        %5230 = vmatprep.subr.bf16.mxu0 0
        %5231 = vmatpush1.bf16.msra.mxu0 0
        %5232 = vmatprep.subr.bf16.mxu0 0
        %5233 = vmatpush1.bf16.msra.mxu0 0
        %5234 = vmatprep.mubr.bf16.mxu0 0
        %5235 = vmatmul.mubr.bf16.gmra.mrb[0].mxu0 %v5200
        %v5236 = vpop.f32.mrb[0].mxu0
        %v5237 = vadd.f32 %v5185, %v5236
        %v5238 = vpop.f32.mrb[0].mxu0
        %v5239 = vpop.f32.mrb[0].mxu0
        %v5240 = vpop.f32.mrb[0].mxu0
        %5241 = vdwg.mxu0
        %v5242 = vtanh.pop %v5237
        %v5243 = vpack.c.bf16 %v5242, %v5242
        %s5244 = scalar_lea.vmem [#allocation17], 16
        %v5245 = vld [vmem:[%s5244] sm:$0xf]
        %v5246 = vld [vmem:[%s5244 + $0x4] sm:$0xf]
        %v5247 = vld [vmem:[%s5244 + $0x8] sm:$0xf]
        %v5248 = vld [vmem:[%s5244 + $0xc] sm:$0xf]
        %s5249 = scalar_lea.vmem [#allocation19], 1
        %v5250 = vld [vmem:[%s5249] sm:$0x1]
        %v5252 = vlaneseq
        %v5253 = vshrl.u32 %v5252, 7
        %v5254 = vsub.s32 0, %v5253
        %v5255 = vrot.slane %v5250, %v5254
        %v5261 = vunpack.c.l.b16 %v5245
        %v5262 = vunpack.c.l.b16 %v5246
        %v5263 = vunpack.c.l.b16 %v5247
        %v5264 = vunpack.c.l.b16 %v5248
        %v5265 = vpack.c.b16 %v5262, %v5261
        %v5266 = vpack.c.b16 %v5264, %v5263
        %v5270 = vsel %vm1457, %v5243, 0
        %5272 = vmatprep.subr.bf16.mxu0 0
        %5273 = vmatpush1.bf16.msra.mxu0 %v5265
        %5274 = vmatprep.subr.bf16.mxu0 0
        %5275 = vmatpush1.bf16.msra.mxu0 %v5266
        %5276 = vmatprep.subr.bf16.mxu0 0
        %5277 = vmatpush1.bf16.msra.mxu0 0
        %5278 = vmatprep.subr.bf16.mxu0 0
        %5279 = vmatpush1.bf16.msra.mxu0 0
        %5280 = vmatprep.subr.bf16.mxu0 0
        %5281 = vmatpush1.bf16.msra.mxu0 0
        %5282 = vmatprep.subr.bf16.mxu0 0
        %5283 = vmatpush1.bf16.msra.mxu0 0
        %5284 = vmatprep.subr.bf16.mxu0 0
        %5285 = vmatpush1.bf16.msra.mxu0 0
        %5286 = vmatprep.subr.bf16.mxu0 0
        %5287 = vmatpush1.bf16.msra.mxu0 0
        %5288 = vmatprep.subr.bf16.mxu0 0
        %5289 = vmatpush1.bf16.msra.mxu0 0
        %5290 = vmatprep.subr.bf16.mxu0 0
        %5291 = vmatpush1.bf16.msra.mxu0 0
        %5292 = vmatprep.subr.bf16.mxu0 0
        %5293 = vmatpush1.bf16.msra.mxu0 0
        %5294 = vmatprep.subr.bf16.mxu0 0
        %5295 = vmatpush1.bf16.msra.mxu0 0
        %5296 = vmatprep.subr.bf16.mxu0 0
        %5297 = vmatpush1.bf16.msra.mxu0 0
        %5298 = vmatprep.subr.bf16.mxu0 0
        %5299 = vmatpush1.bf16.msra.mxu0 0
        %5300 = vmatprep.subr.bf16.mxu0 0
        %5301 = vmatpush1.bf16.msra.mxu0 0
        %5302 = vmatprep.subr.bf16.mxu0 0
        %5303 = vmatpush1.bf16.msra.mxu0 0
        %5304 = vmatprep.mubr.bf16.mxu0 0
        %5305 = vmatmul.mubr.bf16.gmra.mrb[0].mxu0 %v5270
        %v5306 = vpop.f32.mrb[0].mxu0
        %v5307 = vadd.f32 %v5255, %v5306
        %v5308 = vpop.f32.mrb[0].mxu0
        %v5309 = vpop.f32.mrb[0].mxu0
        %v5310 = vpop.f32.mrb[0].mxu0
        %5311 = vdwg.mxu0
        %s5312 = scalar_lea.vmem [#allocation20], 1
        %v5313 = vld [vmem:[%s5312] sm:$0x1]
        %s5314 = scalar_lea.vmem [#allocation22], 1
        %v5315 = vld [vmem:[%s5314] sm:$0x1]
        %v5316 = vsel %vm1457, %v5307, 0.0
        %5317 = vadd.xlane.f32.xlu0 %v5316
        %v5318 = vpop.xlane.xlu0 %5317
        %v5319 = vmul.f32 %v5318, %v1461
        %v5320 = vsub.f32 %v5307, %v5319
        %v5321 = vmul.f32 %v5320, %v5320
        %v5322 = vsel %vm1457, %v5321, 0.0
        %5323 = vadd.xlane.f32.xlu0 %v5322
        %v5324 = vpop.xlane.xlu0 %5323
        %v5325 = vmul.f32 %v5324, %v1461
        %v5326 = vadd.f32 %v5325, 1e-05
        %v5327 = vrsqrt.pop %v5326
        %v5328 = vmul.f32 %v5320, %v5327
        %v5330 = vlaneseq
        %v5331 = vshrl.u32 %v5330, 7
        %v5332 = vsub.s32 0, %v5331
        %v5333 = vrot.slane %v5313, %v5332
        %v5335 = vmul.f32 %v5328, %v5333
        %v5337 = vlaneseq
        %v5338 = vshrl.u32 %v5337, 7
        %v5339 = vsub.s32 0, %v5338
        %v5340 = vrot.slane %v5315, %v5339
        %v5342 = vadd.f32 %v5335, %v5340
        %v5343 = vmul.f32 %v5342, %v5002
        %5344 = vst.msk [vmem:[%s1324] sm:$0xff] %vm1457, %v5343
        %5346 = vset.pattern.permute.xlu0 0
        %5347 = vperm.xlu0 %5346, %v1419
        %v5348 = vpop.permute.xlu0 %5347
        %v5350 = vmul.f32 %v4998, %v5348
        %v5351 = vpack.c.bf16 %v5350, %v5350
        %s5352 = scalar_lea.vmem %s35, 32
        %v5353 = vld [vmem:[%s5352] sm:$0xf]
        %v5354 = vld [vmem:[%s5352 + $0x4] sm:$0xf]
        %v5355 = vld [vmem:[%s5352 + $0x8] sm:$0xf]
        %v5356 = vld [vmem:[%s5352 + $0xc] sm:$0xf]
        %s5357 = scalar_lea.vmem [#allocation16], 2
        %v5358 = vld [vmem:[%s5357] sm:$0x1]
        %v5360 = vlaneseq
        %v5361 = vshrl.u32 %v5360, 7
        %v5362 = vsub.s32 0, %v5361
        %v5363 = vrot.slane %v5358, %v5362
        %v5369 = vunpack.c.l.b16 %v5353
        %v5370 = vunpack.c.l.b16 %v5354
        %v5371 = vunpack.c.l.b16 %v5355
        %v5372 = vunpack.c.l.b16 %v5356
        %v5373 = vpack.c.b16 %v5370, %v5369
        %v5374 = vpack.c.b16 %v5372, %v5371
        %v5378 = vsel %vm1457, %v5351, 0
        %5380 = vmatprep.subr.bf16.mxu0 0
        %5381 = vmatpush1.bf16.msra.mxu0 %v5373
        %5382 = vmatprep.subr.bf16.mxu0 0
        %5383 = vmatpush1.bf16.msra.mxu0 %v5374
        %5384 = vmatprep.subr.bf16.mxu0 0
        %5385 = vmatpush1.bf16.msra.mxu0 0
        %5386 = vmatprep.subr.bf16.mxu0 0
        %5387 = vmatpush1.bf16.msra.mxu0 0
        %5388 = vmatprep.subr.bf16.mxu0 0
        %5389 = vmatpush1.bf16.msra.mxu0 0
        %5390 = vmatprep.subr.bf16.mxu0 0
        %5391 = vmatpush1.bf16.msra.mxu0 0
        %5392 = vmatprep.subr.bf16.mxu0 0
        %5393 = vmatpush1.bf16.msra.mxu0 0
        %5394 = vmatprep.subr.bf16.mxu0 0
        %5395 = vmatpush1.bf16.msra.mxu0 0
        %5396 = vmatprep.subr.bf16.mxu0 0
        %5397 = vmatpush1.bf16.msra.mxu0 0
        %5398 = vmatprep.subr.bf16.mxu0 0
        %5399 = vmatpush1.bf16.msra.mxu0 0
        %5400 = vmatprep.subr.bf16.mxu0 0
        %5401 = vmatpush1.bf16.msra.mxu0 0
        %5402 = vmatprep.subr.bf16.mxu0 0
        %5403 = vmatpush1.bf16.msra.mxu0 0
        %5404 = vmatprep.subr.bf16.mxu0 0
        %5405 = vmatpush1.bf16.msra.mxu0 0
        %5406 = vmatprep.subr.bf16.mxu0 0
        %5407 = vmatpush1.bf16.msra.mxu0 0
        %5408 = vmatprep.subr.bf16.mxu0 0
        %5409 = vmatpush1.bf16.msra.mxu0 0
        %5410 = vmatprep.subr.bf16.mxu0 0
        %5411 = vmatpush1.bf16.msra.mxu0 0
        %5412 = vmatprep.mubr.bf16.mxu0 0
        %5413 = vmatmul.mubr.bf16.gmra.mrb[0].mxu0 %v5378
        %v5414 = vpop.f32.mrb[0].mxu0
        %v5415 = vadd.f32 %v5363, %v5414
        %v5416 = vpop.f32.mrb[0].mxu0
        %v5417 = vpop.f32.mrb[0].mxu0
        %v5418 = vpop.f32.mrb[0].mxu0
        %5419 = vdwg.mxu0
        %v5420 = vtanh.pop %v5415
        %v5421 = vpack.c.bf16 %v5420, %v5420
        %s5422 = scalar_lea.vmem [#allocation17], 32
        %v5423 = vld [vmem:[%s5422] sm:$0xf]
        %v5424 = vld [vmem:[%s5422 + $0x4] sm:$0xf]
        %v5425 = vld [vmem:[%s5422 + $0x8] sm:$0xf]
        %v5426 = vld [vmem:[%s5422 + $0xc] sm:$0xf]
        %s5427 = scalar_lea.vmem [#allocation19], 2
        %v5428 = vld [vmem:[%s5427] sm:$0x1]
        %v5430 = vlaneseq
        %v5431 = vshrl.u32 %v5430, 7
        %v5432 = vsub.s32 0, %v5431
        %v5433 = vrot.slane %v5428, %v5432
        %v5439 = vunpack.c.l.b16 %v5423
        %v5440 = vunpack.c.l.b16 %v5424
        %v5441 = vunpack.c.l.b16 %v5425
        %v5442 = vunpack.c.l.b16 %v5426
        %v5443 = vpack.c.b16 %v5440, %v5439
        %v5444 = vpack.c.b16 %v5442, %v5441
        %v5448 = vsel %vm1457, %v5421, 0
        %5450 = vmatprep.subr.bf16.mxu0 0
        %5451 = vmatpush1.bf16.msra.mxu0 %v5443
        %5452 = vmatprep.subr.bf16.mxu0 0
        %5453 = vmatpush1.bf16.msra.mxu0 %v5444
        %5454 = vmatprep.subr.bf16.mxu0 0
        %5455 = vmatpush1.bf16.msra.mxu0 0
        %5456 = vmatprep.subr.bf16.mxu0 0
        %5457 = vmatpush1.bf16.msra.mxu0 0
        %5458 = vmatprep.subr.bf16.mxu0 0
        %5459 = vmatpush1.bf16.msra.mxu0 0
        %5460 = vmatprep.subr.bf16.mxu0 0
        %5461 = vmatpush1.bf16.msra.mxu0 0
        %5462 = vmatprep.subr.bf16.mxu0 0
        %5463 = vmatpush1.bf16.msra.mxu0 0
        %5464 = vmatprep.subr.bf16.mxu0 0
        %5465 = vmatpush1.bf16.msra.mxu0 0
        %5466 = vmatprep.subr.bf16.mxu0 0
        %5467 = vmatpush1.bf16.msra.mxu0 0
        %5468 = vmatprep.subr.bf16.mxu0 0
        %5469 = vmatpush1.bf16.msra.mxu0 0
        %5470 = vmatprep.subr.bf16.mxu0 0
        %5471 = vmatpush1.bf16.msra.mxu0 0
        %5472 = vmatprep.subr.bf16.mxu0 0
        %5473 = vmatpush1.bf16.msra.mxu0 0
        %5474 = vmatprep.subr.bf16.mxu0 0
        %5475 = vmatpush1.bf16.msra.mxu0 0
        %5476 = vmatprep.subr.bf16.mxu0 0
        %5477 = vmatpush1.bf16.msra.mxu0 0
        %5478 = vmatprep.subr.bf16.mxu0 0
        %5479 = vmatpush1.bf16.msra.mxu0 0
        %5480 = vmatprep.subr.bf16.mxu0 0
        %5481 = vmatpush1.bf16.msra.mxu0 0
        %5482 = vmatprep.mubr.bf16.mxu0 0
        %5483 = vmatmul.mubr.bf16.gmra.mrb[0].mxu0 %v5448
        %v5484 = vpop.f32.mrb[0].mxu0
        %v5485 = vadd.f32 %v5433, %v5484
        %v5486 = vpop.f32.mrb[0].mxu0
        %v5487 = vpop.f32.mrb[0].mxu0
        %v5488 = vpop.f32.mrb[0].mxu0
        %5489 = vdwg.mxu0
        %v5490 = vadd.f32 %v5485, %v5350
        %s5491 = scalar_lea.vmem [#allocation20], 2
        %v5492 = vld [vmem:[%s5491] sm:$0x1]
        %s5493 = scalar_lea.vmem [#allocation22], 2
        %v5494 = vld [vmem:[%s5493] sm:$0x1]
        %v5495 = vsel %vm1457, %v5490, 0.0
        %5496 = vadd.xlane.f32.xlu0 %v5495
        %v5497 = vpop.xlane.xlu0 %5496
        %v5498 = vmul.f32 %v5497, %v1461
        %v5499 = vsub.f32 %v5490, %v5498
        %v5500 = vmul.f32 %v5499, %v5499
        %v5501 = vsel %vm1457, %v5500, 0.0
        %5502 = vadd.xlane.f32.xlu0 %v5501
        %v5503 = vpop.xlane.xlu0 %5502
        %v5504 = vmul.f32 %v5503, %v1461
        %v5505 = vadd.f32 %v5504, 1e-05
        %v5506 = vrsqrt.pop %v5505
        %v5507 = vmul.f32 %v5499, %v5506
        %v5509 = vlaneseq
        %v5510 = vshrl.u32 %v5509, 7
        %v5511 = vsub.s32 0, %v5510
        %v5512 = vrot.slane %v5492, %v5511
        %v5514 = vmul.f32 %v5507, %v5512
        %v5516 = vlaneseq
        %v5517 = vshrl.u32 %v5516, 7
        %v5518 = vsub.s32 0, %v5517
        %v5519 = vrot.slane %v5494, %v5518
        %v5521 = vadd.f32 %v5514, %v5519
        %v5522 = vmul.f32 %v5521, %v5348
        %5523 = vst.msk [vmem:[%s1331] sm:$0xff] %vm1457, %v5522
        %v5524 = vmul.f32 %v2726, %v5348
        %v5525 = vpack.c.bf16 %v5524, %v5524
        %s5526 = scalar_lea.vmem %s35, 48
        %v5527 = vld [vmem:[%s5526] sm:$0xf]
        %v5528 = vld [vmem:[%s5526 + $0x4] sm:$0xf]
        %v5529 = vld [vmem:[%s5526 + $0x8] sm:$0xf]
        %v5530 = vld [vmem:[%s5526 + $0xc] sm:$0xf]
        %s5531 = scalar_lea.vmem [#allocation16], 3
        %v5532 = vld [vmem:[%s5531] sm:$0x1]
        %v5534 = vlaneseq
        %v5535 = vshrl.u32 %v5534, 7
        %v5536 = vsub.s32 0, %v5535
        %v5537 = vrot.slane %v5532, %v5536
        %v5543 = vunpack.c.l.b16 %v5527
        %v5544 = vunpack.c.l.b16 %v5528
        %v5545 = vunpack.c.l.b16 %v5529
        %v5546 = vunpack.c.l.b16 %v5530
        %v5547 = vpack.c.b16 %v5544, %v5543
        %v5548 = vpack.c.b16 %v5546, %v5545
        %v5552 = vsel %vm1457, %v5525, 0
        %5554 = vmatprep.subr.bf16.mxu0 0
        %5555 = vmatpush1.bf16.msra.mxu0 %v5547
        %5556 = vmatprep.subr.bf16.mxu0 0
        %5557 = vmatpush1.bf16.msra.mxu0 %v5548
        %5558 = vmatprep.subr.bf16.mxu0 0
        %5559 = vmatpush1.bf16.msra.mxu0 0
        %5560 = vmatprep.subr.bf16.mxu0 0
        %5561 = vmatpush1.bf16.msra.mxu0 0
        %5562 = vmatprep.subr.bf16.mxu0 0
        %5563 = vmatpush1.bf16.msra.mxu0 0
        %5564 = vmatprep.subr.bf16.mxu0 0
        %5565 = vmatpush1.bf16.msra.mxu0 0
        %5566 = vmatprep.subr.bf16.mxu0 0
        %5567 = vmatpush1.bf16.msra.mxu0 0
        %5568 = vmatprep.subr.bf16.mxu0 0
        %5569 = vmatpush1.bf16.msra.mxu0 0
        %5570 = vmatprep.subr.bf16.mxu0 0
        %5571 = vmatpush1.bf16.msra.mxu0 0
        %5572 = vmatprep.subr.bf16.mxu0 0
        %5573 = vmatpush1.bf16.msra.mxu0 0
        %5574 = vmatprep.subr.bf16.mxu0 0
        %5575 = vmatpush1.bf16.msra.mxu0 0
        %5576 = vmatprep.subr.bf16.mxu0 0
        %5577 = vmatpush1.bf16.msra.mxu0 0
        %5578 = vmatprep.subr.bf16.mxu0 0
        %5579 = vmatpush1.bf16.msra.mxu0 0
        %5580 = vmatprep.subr.bf16.mxu0 0
        %5581 = vmatpush1.bf16.msra.mxu0 0
        %5582 = vmatprep.subr.bf16.mxu0 0
        %5583 = vmatpush1.bf16.msra.mxu0 0
        %5584 = vmatprep.subr.bf16.mxu0 0
        %5585 = vmatpush1.bf16.msra.mxu0 0
        %5586 = vmatprep.mubr.bf16.mxu0 0
        %5587 = vmatmul.mubr.bf16.gmra.mrb[0].mxu0 %v5552
        %v5588 = vpop.f32.mrb[0].mxu0
        %v5589 = vadd.f32 %v5537, %v5588
        %v5590 = vpop.f32.mrb[0].mxu0
        %v5591 = vpop.f32.mrb[0].mxu0
        %v5592 = vpop.f32.mrb[0].mxu0
        %5593 = vdwg.mxu0
        %v5594 = vtanh.pop %v5589
        %v5595 = vpack.c.bf16 %v5594, %v5594
        %s5596 = scalar_lea.vmem [#allocation17], 48
        %v5597 = vld [vmem:[%s5596] sm:$0xf]
        %v5598 = vld [vmem:[%s5596 + $0x4] sm:$0xf]
        %v5599 = vld [vmem:[%s5596 + $0x8] sm:$0xf]
        %v5600 = vld [vmem:[%s5596 + $0xc] sm:$0xf]
        %s5601 = scalar_lea.vmem [#allocation19], 3
        %v5602 = vld [vmem:[%s5601] sm:$0x1]
        %v5604 = vlaneseq
        %v5605 = vshrl.u32 %v5604, 7
        %v5606 = vsub.s32 0, %v5605
        %v5607 = vrot.slane %v5602, %v5606
        %v5613 = vunpack.c.l.b16 %v5597
        %v5614 = vunpack.c.l.b16 %v5598
        %v5615 = vunpack.c.l.b16 %v5599
        %v5616 = vunpack.c.l.b16 %v5600
        %v5617 = vpack.c.b16 %v5614, %v5613
        %v5618 = vpack.c.b16 %v5616, %v5615
        %v5622 = vsel %vm1457, %v5595, 0
        %5624 = vmatprep.subr.bf16.mxu0 0
        %5625 = vmatpush1.bf16.msra.mxu0 %v5617
        %5626 = vmatprep.subr.bf16.mxu0 0
        %5627 = vmatpush1.bf16.msra.mxu0 %v5618
        %5628 = vmatprep.subr.bf16.mxu0 0
        %5629 = vmatpush1.bf16.msra.mxu0 0
        %5630 = vmatprep.subr.bf16.mxu0 0
        %5631 = vmatpush1.bf16.msra.mxu0 0
        %5632 = vmatprep.subr.bf16.mxu0 0
        %5633 = vmatpush1.bf16.msra.mxu0 0
        %5634 = vmatprep.subr.bf16.mxu0 0
        %5635 = vmatpush1.bf16.msra.mxu0 0
        %5636 = vmatprep.subr.bf16.mxu0 0
        %5637 = vmatpush1.bf16.msra.mxu0 0
        %5638 = vmatprep.subr.bf16.mxu0 0
        %5639 = vmatpush1.bf16.msra.mxu0 0
        %5640 = vmatprep.subr.bf16.mxu0 0
        %5641 = vmatpush1.bf16.msra.mxu0 0
        %5642 = vmatprep.subr.bf16.mxu0 0
        %5643 = vmatpush1.bf16.msra.mxu0 0
        %5644 = vmatprep.subr.bf16.mxu0 0
        %5645 = vmatpush1.bf16.msra.mxu0 0
        %5646 = vmatprep.subr.bf16.mxu0 0
        %5647 = vmatpush1.bf16.msra.mxu0 0
        %5648 = vmatprep.subr.bf16.mxu0 0
        %5649 = vmatpush1.bf16.msra.mxu0 0
        %5650 = vmatprep.subr.bf16.mxu0 0
        %5651 = vmatpush1.bf16.msra.mxu0 0
        %5652 = vmatprep.subr.bf16.mxu0 0
        %5653 = vmatpush1.bf16.msra.mxu0 0
        %5654 = vmatprep.subr.bf16.mxu0 0
        %5655 = vmatpush1.bf16.msra.mxu0 0
        %5656 = vmatprep.mubr.bf16.mxu0 0
        %5657 = vmatmul.mubr.bf16.gmra.mrb[0].mxu0 %v5622
        %v5658 = vpop.f32.mrb[0].mxu0
        %v5659 = vadd.f32 %v5607, %v5658
        %v5660 = vpop.f32.mrb[0].mxu0
        %v5661 = vpop.f32.mrb[0].mxu0
        %v5662 = vpop.f32.mrb[0].mxu0
        %5663 = vdwg.mxu0
        %s5664 = scalar_lea.vmem [#allocation20], 3
        %v5665 = vld [vmem:[%s5664] sm:$0x1]
        %s5666 = scalar_lea.vmem [#allocation22], 3
        %v5667 = vld [vmem:[%s5666] sm:$0x1]
        %v5668 = vsel %vm1457, %v5659, 0.0
        %5669 = vadd.xlane.f32.xlu0 %v5668
        %v5670 = vpop.xlane.xlu0 %5669
        %v5671 = vmul.f32 %v5670, %v1461
        %v5672 = vsub.f32 %v5659, %v5671
        %v5673 = vmul.f32 %v5672, %v5672
        %v5674 = vsel %vm1457, %v5673, 0.0
        %5675 = vadd.xlane.f32.xlu0 %v5674
        %v5676 = vpop.xlane.xlu0 %5675
        %v5677 = vmul.f32 %v5676, %v1461
        %v5678 = vadd.f32 %v5677, 1e-05
        %v5679 = vrsqrt.pop %v5678
        %v5680 = vmul.f32 %v5672, %v5679
        %v5682 = vlaneseq
        %v5683 = vshrl.u32 %v5682, 7
        %v5684 = vsub.s32 0, %v5683
        %v5685 = vrot.slane %v5665, %v5684
        %v5687 = vmul.f32 %v5680, %v5685
        %v5689 = vlaneseq
        %v5690 = vshrl.u32 %v5689, 7
        %v5691 = vsub.s32 0, %v5690
        %v5692 = vrot.slane %v5667, %v5691
        %v5694 = vadd.f32 %v5687, %v5692
        %v5695 = vmul.f32 %v5694, %v5348
        %5696 = vst.msk [vmem:[%s1338] sm:$0xff] %vm1457, %v5695
        %s5697 = sand.u32 %s647, 1
        %s5698 = scalar_lea.sflag [#allocation4], %s5697
        %s5699 = sand.u32 %s647, 1
        %s5700 = smul.addr %s5699, 8
        %s5701 = scalar_lea.vmem [#allocation23], %s5700
        %s5702 = sand.u32 %s106, 1
        %s5703 = scalar_lea.sflag [#allocation25], %s5702
        %s5704 = sand.u32 %s673, 1
        %s5705 = smul.addr %s5704, 8
        %s5706 = scalar_lea.vmem [#allocation24], %s5705
        %s5707 = sand.u32 %s106, 1
        %s5708 = scalar_lea.sflag [#allocation25], %s5707
        %s5709 = sand.u32 %s699, 1
        %s5710 = smul.addr %s5709, 8
        %s5711 = scalar_lea.vmem [#allocation26], %s5710
        %s5712 = sand.u32 %s106, 1
        %s5713 = scalar_lea.sflag [#allocation28], %s5712
        %s5714 = sand.u32 %s725, 1
        %s5715 = smul.addr %s5714, 8
        %s5716 = scalar_lea.vmem [#allocation27], %s5715
        %s5717 = sand.u32 %s106, 1
        %s5718 = scalar_lea.sflag [#allocation28], %s5717
        %s5719 = sand.u32 %s751, 1
        %s5720 = smul.addr %s5719, 16
        %s5721 = scalar_lea.vmem [#allocation29], %s5720
        %s5722 = sand.u32 %s106, 1
        %s5723 = scalar_lea.sflag [#allocation31], %s5722
        %s5724 = sand.u32 %s777, 1
        %s5725 = smul.addr %s5724, 16
        %s5726 = scalar_lea.vmem [#allocation30], %s5725
        %s5727 = sand.u32 %s106, 1
        %s5728 = scalar_lea.sflag [#allocation31], %s5727
        %s5729 = sand.u32 %s803, 1
        %s5730 = smul.addr %s5729, 16
        %s5731 = scalar_lea.vmem [#allocation32], %s5730
        %s5732 = sand.u32 %s106, 1
        %s5733 = scalar_lea.sflag [#allocation34], %s5732
        %s5734 = sand.u32 %s829, 1
        %s5735 = smul.addr %s5734, 16
        %s5736 = scalar_lea.vmem [#allocation33], %s5735
        %s5737 = sand.u32 %s106, 1
        %s5738 = scalar_lea.sflag [#allocation34], %s5737
        %s5739 = sand.u32 %s855, 1
        %s5740 = smul.addr %s5739, 16
        %s5741 = scalar_lea.vmem [#allocation35], %s5740
        %s5742 = sand.u32 %s881, 1
        %s5743 = scalar_lea.sflag [#allocation37], %s5742
        %s5744 = sand.u32 %s881, 1
        %s5745 = smul.addr %s5744, 16
        %s5746 = scalar_lea.vmem [#allocation36], %s5745
        // Predicated region
        $region165: #{cross_attention_forward.1} parent=111 // pred_check
          %p5747 = pneg %p657
        $region166: #{cross_attention_forward.1} parent=111 // pred_check_branch
          %5749 = sbr.rel (%p5747) target = $region168
        $region167: #{cross_attention_forward.1} parent=111 // pred_region
          %s5751 = ssub.s32 128, 128
          %5752 = vsyncadd %s5698, %s5751
          %s5753 = smul.addr %s106, 128
          %s5754 = scalar_lea.hbm %s47, %s5753
          %s5756 = sshll.u32 %s5701, 4
          %s5757 = int_to_ptr.vmem [resolvable:$true] %s5756
          %5759 = dma.vmem_to_hbm [thread:$0]  %s5757, 128, %s5754, %s5698
        $region168: #{cross_attention_forward.1} parent=111 // pred_fallthru
          _
        // Predicated region
        $region169: #{cross_attention_forward.1} parent=111 // pred_check
          %p5760 = pneg %p683
        $region170: #{cross_attention_forward.1} parent=111 // pred_check_branch
          %5762 = sbr.rel (%p5760) target = $region172
        $region171: #{cross_attention_forward.1} parent=111 // pred_region
          %s5764 = ssub.s32 128, 128
          %5765 = vsyncadd %s5703, %s5764
          %s5766 = smul.addr %s106, 128
          %s5767 = scalar_lea.hbm %s49, %s5766
          %s5769 = sshll.u32 %s5706, 4
          %s5770 = int_to_ptr.vmem [resolvable:$true] %s5769
          %5772 = dma.vmem_to_hbm [thread:$0]  %s5770, 128, %s5767, %s5703
        $region172: #{cross_attention_forward.1} parent=111 // pred_fallthru
          _
        // Predicated region
        $region173: #{cross_attention_forward.1} parent=111 // pred_check
          %p5773 = pneg %p709
        $region174: #{cross_attention_forward.1} parent=111 // pred_check_branch
          %5775 = sbr.rel (%p5773) target = $region176
        $region175: #{cross_attention_forward.1} parent=111 // pred_region
          %s5777 = ssub.s32 128, 128
          %5778 = vsyncadd %s5708, %s5777
          %s5779 = smul.addr %s106, 128
          %s5780 = scalar_lea.hbm %s51, %s5779
          %s5782 = sshll.u32 %s5711, 4
          %s5783 = int_to_ptr.vmem [resolvable:$true] %s5782
          %5785 = dma.vmem_to_hbm [thread:$0]  %s5783, 128, %s5780, %s5708
        $region176: #{cross_attention_forward.1} parent=111 // pred_fallthru
          _
        // Predicated region
        $region177: #{cross_attention_forward.1} parent=111 // pred_check
          %p5786 = pneg %p735
        $region178: #{cross_attention_forward.1} parent=111 // pred_check_branch
          %5788 = sbr.rel (%p5786) target = $region180
        $region179: #{cross_attention_forward.1} parent=111 // pred_region
          %s5790 = ssub.s32 128, 128
          %5791 = vsyncadd %s5713, %s5790
          %s5792 = smul.addr %s106, 128
          %s5793 = scalar_lea.hbm %s53, %s5792
          %s5795 = sshll.u32 %s5716, 4
          %s5796 = int_to_ptr.vmem [resolvable:$true] %s5795
          %5798 = dma.vmem_to_hbm [thread:$0]  %s5796, 128, %s5793, %s5713
        $region180: #{cross_attention_forward.1} parent=111 // pred_fallthru
          _
        // Predicated region
        $region181: #{cross_attention_forward.1} parent=111 // pred_check
          %p5799 = pneg %p761
        $region182: #{cross_attention_forward.1} parent=111 // pred_check_branch
          %5801 = sbr.rel (%p5799) target = $region184
        $region183: #{cross_attention_forward.1} parent=111 // pred_region
          %s5803 = ssub.s32 256, 256
          %5804 = vsyncadd %s5718, %s5803
          %s5805 = smul.addr %s106, 128
          %s5806 = scalar_lea.hbm %s55, %s5805
          %s5807 = sshll.u32 %s5721, 4
          %s5808 = int_to_ptr.vmem [resolvable:$true] %s5807
          %5813 = dma.vmem_to_hbm [thread:$0]  %s5808, 256, %s5806, %s5718, 128, 256, 8
        $region184: #{cross_attention_forward.1} parent=111 // pred_fallthru
          _
        // Predicated region
        $region185: #{cross_attention_forward.1} parent=111 // pred_check
          %p5814 = pneg %p787
        $region186: #{cross_attention_forward.1} parent=111 // pred_check_branch
          %5816 = sbr.rel (%p5814) target = $region188
        $region187: #{cross_attention_forward.1} parent=111 // pred_region
          %s5818 = ssub.s32 256, 256
          %5819 = vsyncadd %s5723, %s5818
          %s5820 = smul.addr %s106, 128
          %s5821 = scalar_lea.hbm %s57, %s5820
          %s5822 = sshll.u32 %s5726, 4
          %s5823 = int_to_ptr.vmem [resolvable:$true] %s5822
          %5828 = dma.vmem_to_hbm [thread:$0]  %s5823, 256, %s5821, %s5723, 128, 256, 8
        $region188: #{cross_attention_forward.1} parent=111 // pred_fallthru
          _
        // Predicated region
        $region189: #{cross_attention_forward.1} parent=111 // pred_check
          %p5829 = pneg %p813
        $region190: #{cross_attention_forward.1} parent=111 // pred_check_branch
          %5831 = sbr.rel (%p5829) target = $region192
        $region191: #{cross_attention_forward.1} parent=111 // pred_region
          %s5833 = ssub.s32 256, 256
          %5834 = vsyncadd %s5728, %s5833
          %s5835 = smul.addr %s106, 128
          %s5836 = scalar_lea.hbm %s59, %s5835
          %s5837 = sshll.u32 %s5731, 4
          %s5838 = int_to_ptr.vmem [resolvable:$true] %s5837
          %5843 = dma.vmem_to_hbm [thread:$0]  %s5838, 256, %s5836, %s5728, 128, 256, 8
        $region192: #{cross_attention_forward.1} parent=111 // pred_fallthru
          _
        // Predicated region
        $region193: #{cross_attention_forward.1} parent=111 // pred_check
          %p5844 = pneg %p839
        $region194: #{cross_attention_forward.1} parent=111 // pred_check_branch
          %5846 = sbr.rel (%p5844) target = $region196
        $region195: #{cross_attention_forward.1} parent=111 // pred_region
          %s5848 = ssub.s32 256, 256
          %5849 = vsyncadd %s5733, %s5848
          %s5850 = smul.addr %s106, 128
          %s5851 = scalar_lea.hbm %s61, %s5850
          %s5852 = sshll.u32 %s5736, 4
          %s5853 = int_to_ptr.vmem [resolvable:$true] %s5852
          %5858 = dma.vmem_to_hbm [thread:$0]  %s5853, 256, %s5851, %s5733, 128, 256, 8
        $region196: #{cross_attention_forward.1} parent=111 // pred_fallthru
          _
        // Predicated region
        $region197: #{cross_attention_forward.1} parent=111 // pred_check
          %p5859 = pneg %p865
        $region198: #{cross_attention_forward.1} parent=111 // pred_check_branch
          %5861 = sbr.rel (%p5859) target = $region200
        $region199: #{cross_attention_forward.1} parent=111 // pred_region
          %s5863 = ssub.s32 256, 256
          %5864 = vsyncadd %s5738, %s5863
          %s5865 = smul.addr %s106, 128
          %s5866 = scalar_lea.hbm %s63, %s5865
          %s5867 = sshll.u32 %s5741, 4
          %s5868 = int_to_ptr.vmem [resolvable:$true] %s5867
          %5873 = dma.vmem_to_hbm [thread:$0]  %s5868, 256, %s5866, %s5738, 128, 256, 8
        $region200: #{cross_attention_forward.1} parent=111 // pred_fallthru
          _
        // Predicated region
        $region201: #{cross_attention_forward.1} parent=111 // pred_check
          %p5874 = pneg %p891
        $region202: #{cross_attention_forward.1} parent=111 // pred_check_branch
          %5876 = sbr.rel (%p5874) target = $region204
        $region203: #{cross_attention_forward.1} parent=111 // pred_region
          %s5878 = ssub.s32 256, 256
          %5879 = vsyncadd %s5743, %s5878
          %s5880 = smul.addr %s106, 128
          %s5881 = scalar_lea.hbm %s65, %s5880
          %s5882 = sshll.u32 %s5746, 4
          %s5883 = int_to_ptr.vmem [resolvable:$true] %s5882
          %5888 = dma.vmem_to_hbm [thread:$0]  %s5883, 256, %s5881, %s5743, 128, 256, 8
        $region204: #{cross_attention_forward.1} parent=111 // pred_fallthru
          _
      $region112: #{cross_attention_forward.1} parent=5 // pred_fallthru
        _
      %p5889 = scmp.le.s32.totalorder 2, %s101
      // Predicated region
      $region205: #{cross_attention_forward.1} parent=5 // pred_check
        %p5890 = pneg %p5889
      $region206: #{cross_attention_forward.1} parent=5 // pred_check_branch
        %5892 = sbr.rel (%p5890) target = $region208
      $region207: #{cross_attention_forward.1} parent=5 // pred_region
        %s5893 = ssub.s32 %s101, 2
        // Predicated region
        $region209: #{cross_attention_forward.1} parent=207 // pred_check
          %p5894 = pneg %p663
        $region210: #{cross_attention_forward.1} parent=207 // pred_check_branch
          %5896 = sbr.rel (%p5894) target = $region212
        $region211: #{cross_attention_forward.1} parent=207 // pred_region
          %s5897 = sand.u32 %s648, 1
          %s5898 = scalar_lea.sflag [#allocation4], %s5897
          %s5899 = sand.u32 %s648, 1
          %s5900 = smul.addr %s5899, 8
          %s5901 = scalar_lea.vmem [#allocation23], %s5900
          %5902 = dma.done %s5898, 128
        $region212: #{cross_attention_forward.1} parent=207 // pred_fallthru
          _
        // Predicated region
        $region213: #{cross_attention_forward.1} parent=207 // pred_check
          %p5903 = pneg %p689
        $region214: #{cross_attention_forward.1} parent=207 // pred_check_branch
          %5905 = sbr.rel (%p5903) target = $region216
        $region215: #{cross_attention_forward.1} parent=207 // pred_region
          %s5906 = sand.u32 %s107, 1
          %s5907 = scalar_lea.sflag [#allocation25], %s5906
          %s5908 = sand.u32 %s674, 1
          %s5909 = smul.addr %s5908, 8
          %s5910 = scalar_lea.vmem [#allocation24], %s5909
          %5911 = dma.done %s5907, 128
        $region216: #{cross_attention_forward.1} parent=207 // pred_fallthru
          _
        // Predicated region
        $region217: #{cross_attention_forward.1} parent=207 // pred_check
          %p5912 = pneg %p715
        $region218: #{cross_attention_forward.1} parent=207 // pred_check_branch
          %5914 = sbr.rel (%p5912) target = $region220
        $region219: #{cross_attention_forward.1} parent=207 // pred_region
          %s5915 = sand.u32 %s107, 1
          %s5916 = scalar_lea.sflag [#allocation25], %s5915
          %s5917 = sand.u32 %s700, 1
          %s5918 = smul.addr %s5917, 8
          %s5919 = scalar_lea.vmem [#allocation26], %s5918
          %5920 = dma.done %s5916, 128
        $region220: #{cross_attention_forward.1} parent=207 // pred_fallthru
          _
        // Predicated region
        $region221: #{cross_attention_forward.1} parent=207 // pred_check
          %p5921 = pneg %p741
        $region222: #{cross_attention_forward.1} parent=207 // pred_check_branch
          %5923 = sbr.rel (%p5921) target = $region224
        $region223: #{cross_attention_forward.1} parent=207 // pred_region
          %s5924 = sand.u32 %s107, 1
          %s5925 = scalar_lea.sflag [#allocation28], %s5924
          %s5926 = sand.u32 %s726, 1
          %s5927 = smul.addr %s5926, 8
          %s5928 = scalar_lea.vmem [#allocation27], %s5927
          %5929 = dma.done %s5925, 128
        $region224: #{cross_attention_forward.1} parent=207 // pred_fallthru
          _
        // Predicated region
        $region225: #{cross_attention_forward.1} parent=207 // pred_check
          %p5930 = pneg %p767
        $region226: #{cross_attention_forward.1} parent=207 // pred_check_branch
          %5932 = sbr.rel (%p5930) target = $region228
        $region227: #{cross_attention_forward.1} parent=207 // pred_region
          %s5933 = sand.u32 %s107, 1
          %s5934 = scalar_lea.sflag [#allocation28], %s5933
          %s5935 = sand.u32 %s752, 1
          %s5936 = smul.addr %s5935, 16
          %s5937 = scalar_lea.vmem [#allocation29], %s5936
          %5938 = dma.done %s5934, 256
        $region228: #{cross_attention_forward.1} parent=207 // pred_fallthru
          _
        // Predicated region
        $region229: #{cross_attention_forward.1} parent=207 // pred_check
          %p5939 = pneg %p793
        $region230: #{cross_attention_forward.1} parent=207 // pred_check_branch
          %5941 = sbr.rel (%p5939) target = $region232
        $region231: #{cross_attention_forward.1} parent=207 // pred_region
          %s5942 = sand.u32 %s107, 1
          %s5943 = scalar_lea.sflag [#allocation31], %s5942
          %s5944 = sand.u32 %s778, 1
          %s5945 = smul.addr %s5944, 16
          %s5946 = scalar_lea.vmem [#allocation30], %s5945
          %5947 = dma.done %s5943, 256
        $region232: #{cross_attention_forward.1} parent=207 // pred_fallthru
          _
        // Predicated region
        $region233: #{cross_attention_forward.1} parent=207 // pred_check
          %p5948 = pneg %p819
        $region234: #{cross_attention_forward.1} parent=207 // pred_check_branch
          %5950 = sbr.rel (%p5948) target = $region236
        $region235: #{cross_attention_forward.1} parent=207 // pred_region
          %s5951 = sand.u32 %s107, 1
          %s5952 = scalar_lea.sflag [#allocation31], %s5951
          %s5953 = sand.u32 %s804, 1
          %s5954 = smul.addr %s5953, 16
          %s5955 = scalar_lea.vmem [#allocation32], %s5954
          %5956 = dma.done %s5952, 256
        $region236: #{cross_attention_forward.1} parent=207 // pred_fallthru
          _
        // Predicated region
        $region237: #{cross_attention_forward.1} parent=207 // pred_check
          %p5957 = pneg %p845
        $region238: #{cross_attention_forward.1} parent=207 // pred_check_branch
          %5959 = sbr.rel (%p5957) target = $region240
        $region239: #{cross_attention_forward.1} parent=207 // pred_region
          %s5960 = sand.u32 %s107, 1
          %s5961 = scalar_lea.sflag [#allocation34], %s5960
          %s5962 = sand.u32 %s830, 1
          %s5963 = smul.addr %s5962, 16
          %s5964 = scalar_lea.vmem [#allocation33], %s5963
          %5965 = dma.done %s5961, 256
        $region240: #{cross_attention_forward.1} parent=207 // pred_fallthru
          _
        // Predicated region
        $region241: #{cross_attention_forward.1} parent=207 // pred_check
          %p5966 = pneg %p871
        $region242: #{cross_attention_forward.1} parent=207 // pred_check_branch
          %5968 = sbr.rel (%p5966) target = $region244
        $region243: #{cross_attention_forward.1} parent=207 // pred_region
          %s5969 = sand.u32 %s107, 1
          %s5970 = scalar_lea.sflag [#allocation34], %s5969
          %s5971 = sand.u32 %s856, 1
          %s5972 = smul.addr %s5971, 16
          %s5973 = scalar_lea.vmem [#allocation35], %s5972
          %5974 = dma.done %s5970, 256
        $region244: #{cross_attention_forward.1} parent=207 // pred_fallthru
          _
        // Predicated region
        $region245: #{cross_attention_forward.1} parent=207 // pred_check
          %p5975 = pneg %p897
        $region246: #{cross_attention_forward.1} parent=207 // pred_check_branch
          %5977 = sbr.rel (%p5975) target = $region248
        $region247: #{cross_attention_forward.1} parent=207 // pred_region
          %s5978 = sand.u32 %s882, 1
          %s5979 = scalar_lea.sflag [#allocation37], %s5978
          %s5980 = sand.u32 %s882, 1
          %s5981 = smul.addr %s5980, 16
          %s5982 = scalar_lea.vmem [#allocation36], %s5981
          %5983 = dma.done %s5979, 256
        $region248: #{cross_attention_forward.1} parent=207 // pred_fallthru
          _
      $region208: #{cross_attention_forward.1} parent=5 // pred_fallthru
        _
    $region6: #{cross_attention_forward.1} parent=1 // loop_footer
      %s105 = sadd.s32 1, %s101
    $region7: #{cross_attention_forward.1} parent=1 // loop_footer_branch
      %100 = sbr.rel target = $region3
    $region8: #{cross_attention_forward.1} parent=1 // loop_exit
      _
    %5984 = vsyncpa [#allocation3], 1
    %s5985 = scalar_lea.sflag [#allocation3], 1
    %5986 = vsyncpa %s5985, 1
    %5987 = vsyncpa [#allocation6], 1
    %s5988 = scalar_lea.sflag [#allocation6], 1
    %5989 = vsyncpa %s5988, 1
    %5990 = vsyncpa [#allocation9], 1
    %5991 = vsyncpa [#allocation12], 1
    %5992 = vsyncpa [#allocation15], 1
    %5993 = vsyncpa [#allocation18], 1
    %5994 = vsyncpa [#allocation21], 1
    %5995 = vsyncpa [#allocation4], 1
    %s5996 = scalar_lea.sflag [#allocation4], 1
    %5997 = vsyncpa %s5996, 1
    %5998 = vsyncpa [#allocation25], 1
    %s5999 = scalar_lea.sflag [#allocation25], 1
    %6000 = vsyncpa %s5999, 1
    %6001 = vsyncpa [#allocation28], 1
    %s6002 = scalar_lea.sflag [#allocation28], 1
    %6003 = vsyncpa %s6002, 1
    %6004 = vsyncpa [#allocation31], 1
    %s6005 = scalar_lea.sflag [#allocation31], 1
    %6006 = vsyncpa %s6005, 1
    %6007 = vsyncpa [#allocation34], 1
    %s6008 = scalar_lea.sflag [#allocation34], 1
    %6009 = vsyncpa %s6008, 1
    %6010 = vsyncpa [#allocation37], 1
    %s6011 = scalar_lea.sflag [#allocation37], 1
    %6012 = vsyncpa %s6011, 1

</llo_original>
